<compile_context>
chip_gen: v7x
topology: tpu7x:2x2x1
jax: 0.10.0
libtpu: 0.0.40
codegen_flags: <defaults>
</compile_context>

<pallas_src>
import functools

import jax
import jax.numpy as jnp
from jax.experimental import pallas as pl
from jax.experimental.pallas import tpu as pltpu

EPS = 1e-9          # matches module-level EPS in the PyTorch file
BN_EPS = 1e-5       # nn.BatchNorm2d default eps
Z_DIM = 18
K = 4               # all ConvTranspose2d kernels are 4x4

VMEM_LIMIT = 32 * 1024 * 1024


def _round_up(x, m):
    return (x + m - 1) // m * m


def _balanced_tile(m, cap):
    """Balanced row tile: multiple of 8, ~<= cap, minimizes padded rows."""
    nblk = max(1, -(-m // cap))                 # cdiv(m, cap)
    return _round_up(-(-m // nblk), 8)          # round_up(cdiv(m, nblk), 8)


def _pad_rows(x, rows):
    if rows == x.shape[0]:
        return x
    return jnp.pad(x, ((0, rows - x.shape[0]), (0, 0)))


# ----------------------------------------------------------------------------
# Kernel 1: matmul with optional fused BN-affine+ReLU prologue, bias, ReLU.
#   bf16 operands on the MXU, f32 accumulate, bf16 output.
#   Used for the Linear layer and every conv-transpose (as X @ W_flat).
# ----------------------------------------------------------------------------
def _matmul_kernel(*refs, has_bias, has_affine, relu_out):
    idx = 0
    x_ref = refs[idx]; idx += 1
    w_ref = refs[idx]; idx += 1
    b_ref = None
    if has_bias:
        b_ref = refs[idx]; idx += 1
    if has_affine:
        scale_ref = refs[idx]; shift_ref = refs[idx + 1]; idx += 2
    o_ref = refs[idx]

    x = x_ref[...]
    if has_affine:
        # train-mode BatchNorm (folded to y = x*scale + shift) + ReLU, in f32.
        xf = x.astype(jnp.float32) * scale_ref[...] + shift_ref[...]
        x = jnp.maximum(xf, 0.0).astype(jnp.bfloat16)
    acc = jnp.dot(x, w_ref[...], preferred_element_type=jnp.float32)
    if has_bias:
        acc = acc + b_ref[...]
    if relu_out:
        acc = jnp.maximum(acc, 0.0)
    o_ref[...] = acc.astype(o_ref.dtype)


def matmul_fused(x_bf16, w_bf16, bias=None, scale=None, shift=None,
                 relu_out=False, tm_cap=512):
    """x: (M, Kd) bf16.  w: (Kd, N) bf16.  bias (N,) f32.  scale/shift (1, Kd) f32."""
    M, Kd = x_bf16.shape
    Kw, N = w_bf16.shape
    assert Kd == Kw
    has_bias = bias is not None
    has_affine = scale is not None

    tm = _balanced_tile(M, tm_cap)
    Mp = _round_up(M, tm)
    xp = _pad_rows(x_bf16, Mp)

    in_specs = [pl.BlockSpec((tm, Kd), lambda i: (i, 0)),
                pl.BlockSpec((Kd, N), lambda i: (0, 0))]
    args = [xp, w_bf16]
    if has_bias:
        in_specs.append(pl.BlockSpec((1, N), lambda i: (0, 0)))
        args.append(bias.reshape(1, N).astype(jnp.float32))
    if has_affine:
        in_specs.append(pl.BlockSpec((1, Kd), lambda i: (0, 0)))
        in_specs.append(pl.BlockSpec((1, Kd), lambda i: (0, 0)))
        args.append(scale.reshape(1, Kd).astype(jnp.float32))
        args.append(shift.reshape(1, Kd).astype(jnp.float32))

    out = pl.pallas_call(
        functools.partial(_matmul_kernel, has_bias=has_bias,
                          has_affine=has_affine, relu_out=relu_out),
        out_shape=jax.ShapeDtypeStruct((Mp, N), jnp.bfloat16),
        grid_spec=pltpu.PrefetchScalarGridSpec(
            num_scalar_prefetch=0,
            grid=(Mp // tm,),
            in_specs=in_specs,
            out_specs=pl.BlockSpec((tm, N), lambda i: (i, 0)),
        ),
        compiler_params=pltpu.CompilerParams(
            dimension_semantics=("parallel",),
            vmem_limit_bytes=VMEM_LIMIT),
    )(*args)
    return out[:M] if Mp != M else out


# ----------------------------------------------------------------------------
# Kernel 2: BatchNorm batch-statistics pass (lane-dense, tiled, accumulator).
#   Input viewed as (B*Ho, Wo*C) with 1024 lanes for every BN layer here.
#   Per-channel fold + scale/shift is done on a tiny (1, 1024) array in XLA;
#   normalize+ReLU is applied inside the consumer matmul's prologue.
# ----------------------------------------------------------------------------
def _bn_stats_kernel(x_ref, s1_ref, s2_ref):
    @pl.when(pl.program_id(0) == 0)
    def _():
        s1_ref[...] = jnp.zeros_like(s1_ref)
        s2_ref[...] = jnp.zeros_like(s2_ref)
    x = x_ref[...].astype(jnp.float32)
    s1_ref[...] += jnp.sum(x, axis=0, keepdims=True)
    s2_ref[...] += jnp.sum(x * x, axis=0, keepdims=True)


def bn_scale_shift(x_rows_wc, count, wo, c, gamma, beta, tm_cap=512):
    M, WC = x_rows_wc.shape
    tm = _balanced_tile(M, tm_cap)
    Mp = _round_up(M, tm)
    xp = _pad_rows(x_rows_wc, Mp)         # zero rows do not perturb the sums

    s1, s2 = pl.pallas_call(
        _bn_stats_kernel,
        out_shape=(jax.ShapeDtypeStruct((1, WC), jnp.float32),
                   jax.ShapeDtypeStruct((1, WC), jnp.float32)),
        grid_spec=pltpu.PrefetchScalarGridSpec(
            num_scalar_prefetch=0,
            grid=(Mp // tm,),
            in_specs=[pl.BlockSpec((tm, WC), lambda i: (i, 0))],
            out_specs=(pl.BlockSpec((1, WC), lambda i: (0, 0)),
                       pl.BlockSpec((1, WC), lambda i: (0, 0))),
        ),
        compiler_params=pltpu.CompilerParams(
            dimension_semantics=("arbitrary",),
            vmem_limit_bytes=VMEM_LIMIT),
    )(xp)

    s1c = s1.reshape(wo, c).sum(axis=0)
    s2c = s2.reshape(wo, c).sum(axis=0)
    mean = s1c / count
    var = s2c / count - mean * mean       # biased variance (PyTorch train fwd)
    scale = gamma * jax.lax.rsqrt(var + BN_EPS)
    shift = beta - mean * scale
    return scale.reshape(1, c), shift.reshape(1, c)


# ----------------------------------------------------------------------------
# Kernel 3: fused Sigmoid + Bernoulli reconstruction loss.
#   Lane-dense (rows, 4096) NCHW blocks; the per-(b,c,h) sum over W is an MXU
#   matmul against a block-diagonal summing matrix (no masked 1-lane stores).
# ----------------------------------------------------------------------------
def _sigmoid_bce_kernel(lg_ref, x_ref, s_ref, xh_ref, loss_ref):
    xh = jax.nn.sigmoid(lg_ref[...].astype(jnp.float32))
    x = x_ref[...]
    t = -(jnp.log(xh + EPS) * x + jnp.log(1.0 - xh + EPS) * (1.0 - x))
    xh_ref[...] = xh
    loss_ref[...] = jnp.dot(t, s_ref[...], preferred_element_type=jnp.float32)


def sigmoid_bce(logits_bf16, images_f32, w_groups, tm_cap=128):
    R, L = logits_bf16.shape
    group = L // w_groups
    tm = _balanced_tile(R, tm_cap)
    Rp = _round_up(R, tm)
    lg = _pad_rows(logits_bf16, Rp)
    im = _pad_rows(images_f32, Rp)
    # column h of ssum sums lanes [h*group, (h+1)*group)  (== sum over W)
    ssum = (jnp.arange(L)[:, None] // group ==
            jnp.arange(w_groups)[None, :]).astype(jnp.float32)

    xh, loss = pl.pallas_call(
        _sigmoid_bce_kernel,
        out_shape=(jax.ShapeDtypeStruct((Rp, L), jnp.float32),
                   jax.ShapeDtypeStruct((Rp, w_groups), jnp.float32)),
        grid_spec=pltpu.PrefetchScalarGridSpec(
            num_scalar_prefetch=0,
            grid=(Rp // tm,),
            in_specs=[pl.BlockSpec((tm, L), lambda i: (i, 0)),
                      pl.BlockSpec((tm, L), lambda i: (i, 0)),
                      pl.BlockSpec((L, w_groups), lambda i: (0, 0))],
            out_specs=(pl.BlockSpec((tm, L), lambda i: (i, 0)),
                       pl.BlockSpec((tm, w_groups), lambda i: (i, 0))),
        ),
        compiler_params=pltpu.CompilerParams(
            dimension_semantics=("parallel",),
            vmem_limit_bytes=VMEM_LIMIT),
    )(lg, im, ssum)
    return xh[:R], loss[:R]


# ----------------------------------------------------------------------------
# col2im overlap-add (plain-JAX glue: pads/adds/transpose only).
#   y: (B*H*W, K*K*Cout) bf16 per-pixel contributions, columns (kh, kw, cout).
#   Accumulates in f32, emits bf16 in NHWC (or NCHW for the final layer so the
#   BCE kernel needs no extra transpose pass).
# ----------------------------------------------------------------------------
def col2im(y_bf16, B, H, W, Cout, stride, padding, nchw=False):
    s = stride
    assert K % s == 0
    Q = K // s
    y = y_bf16.reshape(B, H, W, Q, s, Q, s, Cout).astype(jnp.float32)
    Hs, Ws = H + Q - 1, W + Q - 1
    subs = []
    for rh in range(s):
        row = []
        for rw in range(s):
            acc = jnp.zeros((B, Hs, Ws, Cout), jnp.float32)
            for qh in range(Q):
                for qw in range(Q):
                    acc = acc + jnp.pad(
                        y[:, :, :, qh, rh, qw, rw, :],
                        ((0, 0), (qh, Q - 1 - qh), (qw, Q - 1 - qw), (0, 0)))
            row.append(acc)
        subs.append(row)
    full = jnp.stack([jnp.stack(r, axis=0) for r in subs], axis=0)  # (s,s,B,Hs,Ws,C)
    Ho = (H - 1) * s - 2 * padding + K
    Wo = (W - 1) * s - 2 * padding + K
    if nchw:
        full = jnp.transpose(full, (2, 5, 3, 0, 4, 1))              # (B,C,Hs,rh,Ws,rw)
        full = full.reshape(B, Cout, Hs * s, Ws * s)
        out = full[:, :, padding:padding + Ho, padding:padding + Wo]
    else:
        full = jnp.transpose(full, (2, 3, 0, 4, 1, 5))              # (B,Hs,rh,Ws,rw,C)
        full = full.reshape(B, Hs * s, Ws * s, Cout)
        out = full[:, padding:padding + Ho, padding:padding + Wo, :]
    return out.astype(jnp.bfloat16)


# ----------------------------------------------------------------------------
# Parameters: deterministic kaiming-style init in PyTorch layout, then one-time
# preparation into kernel-friendly layout (bf16, flattened, permutation folded).
# ----------------------------------------------------------------------------
CONV_CFG = [(256, 128, 1, 0),   # (Cin, Cout, stride, padding)
            (128, 64, 2, 1),
            (64, 32, 2, 1),
            (32, 3, 2, 1)]


def init_params_torch_layout(seed, zShared_dim=Z_DIM):
    key = jax.random.PRNGKey(seed)
    ks = jax.random.split(key, 5)

    def kaiming(k, shape, fan_in):
        return jax.random.normal(k, shape, jnp.float32) * jnp.sqrt(2.0 / fan_in)

    p = {}
    # nn.Linear(18, 6400): PyTorch weight layout (out, in)
    p["lin_w"] = kaiming(ks[0], (256 * 5 * 5, zShared_dim), zShared_dim)
    p["lin_b"] = jnp.zeros((256 * 5 * 5,), jnp.float32)
    # ConvTranspose2d weights, PyTorch layout (Cin, Cout, K, K), bias=False
    for idx, (cin, cout, _, _) in enumerate(CONV_CFG):
        p[f"convt{idx}_w"] = kaiming(ks[idx + 1], (cin, cout, K, K), cin * K * K)
    # BatchNorm2d params
    for idx, c in enumerate([128, 64, 32]):
        p[f"bn{idx}_gamma"] = jnp.ones((c,), jnp.float32)
        p[f"bn{idx}_beta"] = jnp.zeros((c,), jnp.float32)
    return p


def prepare_params(pt):
    q = {}
    # Linear: (out,in) -> (in,out); fold the view(-1,256,5,5) + NCHW->NHWC
    # permutation into the columns so the linear output is already (h,w,c).
    w = pt["lin_w"].T                                        # (18, 6400), cols (c,h,w)
    w = w.reshape(-1, 256, 5, 5).transpose(0, 2, 3, 1).reshape(-1, 256 * 25)
    q["lin_w"] = w.astype(jnp.bfloat16)
    q["lin_b"] = pt["lin_b"].reshape(256, 5, 5).transpose(1, 2, 0).reshape(-1)
    # ConvTranspose: (Cin,Cout,K,K) -> (Cin, K*K*Cout), columns (kh,kw,cout).
    # No lane padding: the final layer keeps its real 48 columns.
    for idx, (cin, cout, _, _) in enumerate(CONV_CFG):
        wf = pt[f"convt{idx}_w"].transpose(0, 2, 3, 1).reshape(cin, K * K * cout)
        q[f"convt{idx}_w"] = wf.astype(jnp.bfloat16)
    for idx in range(3):
        q[f"bn{idx}_gamma"] = pt[f"bn{idx}_gamma"]
        q[f"bn{idx}_beta"] = pt[f"bn{idx}_beta"]
    return q


# ----------------------------------------------------------------------------
# Forward pass (single shared key)
# ----------------------------------------------------------------------------
def decoder_a_forward(images_nchw, zShared, params):
    # TODO(synk): probtorch Trace / Normal prior log-prob bookkeeping has no
    # Pallas equivalent; this returns (images_mean, Bernoulli recon-loss term).
    # TODO(synk): BatchNorm uses train-mode batch statistics (module default
    # right after construction); eval-mode running stats are not wired.
    z = jnp.squeeze(zShared, axis=0).astype(jnp.bfloat16)     # (B, 18)

    # dec_hidden: Linear + ReLU (bf16 out, tm capped for v7x VMEM headroom).
    hid = matmul_fused(z, params["lin_w"], bias=params["lin_b"],
                       relu_out=True, tm_cap=256)             # (B, 6400) bf16
    B = hid.shape[0]
    x = hid.reshape(B * 25, 256)        # rows=(b,h,w), 256 ch (NHWC view, free)

    # dec_image: ConvTranspose2d layers as matmul (+ fused BN/ReLU prologue)
    # followed by an XLA col2im overlap-add.
    spatial = 5
    scale = shift = None
    out = None
    for idx, (_cin, cout, s, pd) in enumerate(CONV_CFG):
        H = W = spatial
        y = matmul_fused(x, params[f"convt{idx}_w"],
                         scale=scale, shift=shift, tm_cap=512)  # (B*H*W, K*K*cout) bf16
        Ho = (H - 1) * s - 2 * pd + K
        out = col2im(y, B, H, W, cout, s, pd, nchw=(idx == 3))
        if idx < 3:
            # lane-dense (B*Ho, Wo*C)=(rows,1024) stats pass; normalize+ReLU is
            # applied inside the NEXT conv matmul's prologue.
            scale, shift = bn_scale_shift(out.reshape(B * Ho, Ho * cout),
                                          count=B * Ho * Ho, wo=Ho, c=cout,
                                          gamma=params[f"bn{idx}_gamma"],
                                          beta=params[f"bn{idx}_beta"])
            x = out.reshape(B * Ho * Ho, cout)                  # free NHWC view
        spatial = Ho

    logits = out                                    # (B, 3, 64, 64) bf16, NCHW
    R = B * 3
    xh2, loss2 = sigmoid_bce(logits.reshape(R, 64 * 64),
                             images_nchw.reshape(R, 64 * 64), w_groups=64)
    images_mean = xh2.reshape(B, 3, 64, 64)         # f32 NCHW, in [0, 1]
    loss = loss2.reshape(B, 3, 64)                  # .sum(-1) over W
    return images_mean, loss


if __name__ == "__main__":
    key = jax.random.PRNGKey(0)
    k_img, k_z = jax.random.split(key)
    B = 2
    images = jax.random.uniform(k_img, (B, 3, 64, 64), jnp.float32)   # NCHW in [0,1]
    zShared = jax.random.normal(k_z, (1, B, Z_DIM), jnp.float32)
    params = prepare_params(init_params_torch_layout(seed=0))

    images_mean, loss = jax.jit(decoder_a_forward)(images, zShared, params)
    jax.block_until_ready((images_mean, loss))

    assert images_mean.shape == (B, 3, 64, 64)
    assert loss.shape == (B, 3, 64)
    assert bool(jnp.all(jnp.isfinite(images_mean))) and bool(jnp.all(jnp.isfinite(loss)))
    assert bool(jnp.all(images_mean >= 0.0)) and bool(jnp.all(images_mean <= 1.0))
    print("KERNEL_OK")
</pallas_src>

<mosaic_0001>
module attributes {stable_mosaic.version = 11 : i64} {
  func.func @_matmul_kernel(%arg0: i32, %arg1: memref<8x18xbf16, #tpu.memory_space<vmem>>, %arg2: memref<18x6400xbf16, #tpu.memory_space<vmem>>, %arg3: memref<1x6400xf32, #tpu.memory_space<vmem>>, %arg4: memref<8x6400xbf16, #tpu.memory_space<vmem>>) attributes {dimension_semantics = [#tpu.dimension_semantics<parallel>], iteration_bounds = array<i64: 1>, scalar_prefetch = 0 : i64, scratch_operands = 0 : i64, tpu.core_type = #tpu.core_type<tc>, window_params = [{transform_indices = @transform_0, window_bounds = array<i64: 8, 18>}, {pipeline_mode = #tpu.pipeline_mode<synchronous>, transform_indices = @transform_1, window_bounds = array<i64: 18, 6400>}, {pipeline_mode = #tpu.pipeline_mode<synchronous>, transform_indices = @transform_2, window_bounds = array<i64: 1, 6400>}, {transform_indices = @transform_3, window_bounds = array<i64: 8, 6400>}]} {
    %c0 = arith.constant 0 : index
    %c0_0 = arith.constant 0 : index
    %0 = vector.load %arg1[%c0, %c0_0] : memref<8x18xbf16, #tpu.memory_space<vmem>>, vector<8x18xbf16>
    %c0_1 = arith.constant 0 : index
    %c0_2 = arith.constant 0 : index
    %1 = vector.load %arg2[%c0_1, %c0_2] : memref<18x6400xbf16, #tpu.memory_space<vmem>>, vector<18x6400xbf16>
    %cst = arith.constant dense<0.000000e+00> : vector<8x6400xf32>
    %2 = tpu.matmul %0, %1, %cst {dimension_numbers = #tpu.dot_dimension_numbers<[1], [0], [0], [1], [0, 0, 1, 1], [], []>} : vector<8x18xbf16>, vector<18x6400xbf16>, vector<8x6400xf32> -> vector<8x6400xf32>
    %c0_3 = arith.constant 0 : index
    %c0_4 = arith.constant 0 : index
    %3 = vector.load %arg3[%c0_3, %c0_4] : memref<1x6400xf32, #tpu.memory_space<vmem>>, vector<1x6400xf32>
    %4 = vector.broadcast %3 : vector<1x6400xf32> to vector<8x6400xf32>
    %5 = arith.addf %2, %4 : vector<8x6400xf32>
    %cst_5 = arith.constant 0.000000e+00 : f32
    %6 = vector.broadcast %cst_5 : f32 to vector<8x6400xf32>
    %7 = arith.maximumf %5, %6 : vector<8x6400xf32>
    %8 = arith.truncf %7 : vector<8x6400xf32> to vector<8x6400xbf16>
    %c0_6 = arith.constant 0 : index
    %c0_7 = arith.constant 0 : index
    %9 = vector.load %arg4[%c0_6, %c0_7] : memref<8x6400xbf16, #tpu.memory_space<vmem>>, vector<8x6400xbf16>
    tpu.vector_store %arg4[%c0_6, %c0_7], %8 {strides = array<i32>} : memref<8x6400xbf16, #tpu.memory_space<vmem>>, vector<8x6400xbf16>,
    return
  }
  func.func @transform_0(%arg0: i32) -> (i32, i32) {
    %c0_i32 = arith.constant 0 : i32
    %c0_i32_0 = arith.constant 0 : i32
    return %arg0, %c0_i32 : i32, i32
  }
  func.func @transform_1(%arg0: i32) -> (i32, i32) {
    %c0_i32 = arith.constant 0 : i32
    %c0_i32_0 = arith.constant 0 : i32
    %c0_i32_1 = arith.constant 0 : i32
    return %c0_i32, %c0_i32_0 : i32, i32
  }
  func.func @transform_2(%arg0: i32) -> (i32, i32) {
    %c0_i32 = arith.constant 0 : i32
    %c0_i32_0 = arith.constant 0 : i32
    %c0_i32_1 = arith.constant 0 : i32
    return %c0_i32, %c0_i32_0 : i32, i32
  }
  func.func @transform_3(%arg0: i32) -> (i32, i32) {
    %c0_i32 = arith.constant 0 : i32
    %c0_i32_0 = arith.constant 0 : i32
    return %arg0, %c0_i32 : i32, i32
  }
}

module attributes {stable_mosaic.version = 11 : i64} {
  func.func @_matmul_kernel(%arg0: i32, %arg1: memref<56x256xbf16, #tpu.memory_space<vmem>>, %arg2: memref<256x2048xbf16, #tpu.memory_space<vmem>>, %arg3: memref<56x2048xbf16, #tpu.memory_space<vmem>>) attributes {dimension_semantics = [#tpu.dimension_semantics<parallel>], iteration_bounds = array<i64: 1>, scalar_prefetch = 0 : i64, scratch_operands = 0 : i64, tpu.core_type = #tpu.core_type<tc>, window_params = [{transform_indices = @transform_0, window_bounds = array<i64: 56, 256>}, {pipeline_mode = #tpu.pipeline_mode<synchronous>, transform_indices = @transform_1, window_bounds = array<i64: 256, 2048>}, {transform_indices = @transform_2, window_bounds = array<i64: 56, 2048>}]} {
    %c0 = arith.constant 0 : index
    %c0_0 = arith.constant 0 : index
    %0 = vector.load %arg1[%c0, %c0_0] : memref<56x256xbf16, #tpu.memory_space<vmem>>, vector<56x256xbf16>
    %c0_1 = arith.constant 0 : index
    %c0_2 = arith.constant 0 : index
    %1 = vector.load %arg2[%c0_1, %c0_2] : memref<256x2048xbf16, #tpu.memory_space<vmem>>, vector<256x2048xbf16>
    %cst = arith.constant dense<0.000000e+00> : vector<56x2048xf32>
    %2 = tpu.matmul %0, %1, %cst {dimension_numbers = #tpu.dot_dimension_numbers<[1], [0], [0], [1], [0, 0, 1, 1], [], []>} : vector<56x256xbf16>, vector<256x2048xbf16>, vector<56x2048xf32> -> vector<56x2048xf32>
    %3 = arith.truncf %2 : vector<56x2048xf32> to vector<56x2048xbf16>
    %c0_3 = arith.constant 0 : index
    %c0_4 = arith.constant 0 : index
    %4 = vector.load %arg3[%c0_3, %c0_4] : memref<56x2048xbf16, #tpu.memory_space<vmem>>, vector<56x2048xbf16>
    tpu.vector_store %arg3[%c0_3, %c0_4], %3 {strides = array<i32>} : memref<56x2048xbf16, #tpu.memory_space<vmem>>, vector<56x2048xbf16>,
    return
  }
  func.func @transform_0(%arg0: i32) -> (i32, i32) {
    %c0_i32 = arith.constant 0 : i32
    %c0_i32_0 = arith.constant 0 : i32
    return %arg0, %c0_i32 : i32, i32
  }
  func.func @transform_1(%arg0: i32) -> (i32, i32) {
    %c0_i32 = arith.constant 0 : i32
    %c0_i32_0 = arith.constant 0 : i32
    %c0_i32_1 = arith.constant 0 : i32
    return %c0_i32, %c0_i32_0 : i32, i32
  }
  func.func @transform_2(%arg0: i32) -> (i32, i32) {
    %c0_i32 = arith.constant 0 : i32
    %c0_i32_0 = arith.constant 0 : i32
    return %arg0, %c0_i32 : i32, i32
  }
}

module attributes {stable_mosaic.version = 11 : i64} {
  func.func @_bn_stats_kernel(%arg0: i32, %arg1: memref<16x1024xbf16, #tpu.memory_space<vmem>>, %arg2: memref<1x1024xf32, #tpu.memory_space<vmem>>, %arg3: memref<1x1024xf32, #tpu.memory_space<vmem>>) attributes {dimension_semantics = [#tpu.dimension_semantics<arbitrary>], iteration_bounds = array<i64: 1>, scalar_prefetch = 0 : i64, scratch_operands = 0 : i64, tpu.core_type = #tpu.core_type<tc>, window_params = [{transform_indices = @transform_0, window_bounds = array<i64: 16, 1024>}, {pipeline_mode = #tpu.pipeline_mode<synchronous>, transform_indices = @transform_1, window_bounds = array<i64: 1, 1024>}, {pipeline_mode = #tpu.pipeline_mode<synchronous>, transform_indices = @transform_2, window_bounds = array<i64: 1, 1024>}]} {
    %c0_i32 = arith.constant 0 : i32
    %0 = arith.cmpi eq, %arg0, %c0_i32 : i32
    %1 = arith.extui %0 : i1 to i32
    %c0_i32_0 = arith.constant 0 : i32
    %2 = arith.cmpi ne, %1, %c0_i32_0 : i32
    scf.if %2 {
      %cst_11 = arith.constant 0.000000e+00 : f32
      %16 = vector.broadcast %cst_11 : f32 to vector<1x1024xf32>
      %c0_12 = arith.constant 0 : index
      %c0_13 = arith.constant 0 : index
      %17 = vector.load %arg2[%c0_12, %c0_13] : memref<1x1024xf32, #tpu.memory_space<vmem>>, vector<1x1024xf32>
      tpu.vector_store %arg2[%c0_12, %c0_13], %16 {strides = array<i32>} : memref<1x1024xf32, #tpu.memory_space<vmem>>, vector<1x1024xf32>,
      %cst_14 = arith.constant 0.000000e+00 : f32
      %18 = vector.broadcast %cst_14 : f32 to vector<1x1024xf32>
      %c0_15 = arith.constant 0 : index
      %c0_16 = arith.constant 0 : index
      %19 = vector.load %arg3[%c0_15, %c0_16] : memref<1x1024xf32, #tpu.memory_space<vmem>>, vector<1x1024xf32>
      tpu.vector_store %arg3[%c0_15, %c0_16], %18 {strides = array<i32>} : memref<1x1024xf32, #tpu.memory_space<vmem>>, vector<1x1024xf32>,
    } else {
    }
    %c0 = arith.constant 0 : index
    %c0_1 = arith.constant 0 : index
    %3 = vector.load %arg1[%c0, %c0_1] : memref<16x1024xbf16, #tpu.memory_space<vmem>>, vector<16x1024xbf16>
    %4 = arith.extf %3 : vector<16x1024xbf16> to vector<16x1024xf32>
    %c0_2 = arith.constant 0 : index
    %c0_3 = arith.constant 0 : index
    %5 = vector.load %arg2[%c0_2, %c0_3] : memref<1x1024xf32, #tpu.memory_space<vmem>>, vector<1x1024xf32>
    %cst = arith.constant dense<0.000000e+00> : vector<1024xf32>
    %6 = vector.multi_reduction <add>, %4, %cst [0] : vector<16x1024xf32> to vector<1024xf32>
    %7 = vector.shape_cast %6 : vector<1024xf32> to vector<1x1024xf32>
    %8 = arith.addf %5, %7 : vector<1x1024xf32>
    %c0_4 = arith.constant 0 : index
    %c0_5 = arith.constant 0 : index
    %9 = vector.load %arg2[%c0_4, %c0_5] : memref<1x1024xf32, #tpu.memory_space<vmem>>, vector<1x1024xf32>
    tpu.vector_store %arg2[%c0_4, %c0_5], %8 {strides = array<i32>} : memref<1x1024xf32, #tpu.memory_space<vmem>>, vector<1x1024xf32>,
    %c0_6 = arith.constant 0 : index
    %c0_7 = arith.constant 0 : index
    %10 = vector.load %arg3[%c0_6, %c0_7] : memref<1x1024xf32, #tpu.memory_space<vmem>>, vector<1x1024xf32>
    %11 = arith.mulf %4, %4 : vector<16x1024xf32>
    %cst_8 = arith.constant dense<0.000000e+00> : vector<1024xf32>
    %12 = vector.multi_reduction <add>, %11, %cst_8 [0] : vector<16x1024xf32> to vector<1024xf32>
    %13 = vector.shape_cast %12 : vector<1024xf32> to vector<1x1024xf32>
    %14 = arith.addf %10, %13 : vector<1x1024xf32>
    %c0_9 = arith.constant 0 : index
    %c0_10 = arith.constant 0 : index
    %15 = vector.load %arg3[%c0_9, %c0_10] : memref<1x1024xf32, #tpu.memory_space<vmem>>, vector<1x1024xf32>
    tpu.vector_store %arg3[%c0_9, %c0_10], %14 {strides = array<i32>} : memref<1x1024xf32, #tpu.memory_space<vmem>>, vector<1x1024xf32>,
    return
  }
  func.func @transform_0(%arg0: i32) -> (i32, i32) {
    %c0_i32 = arith.constant 0 : i32
    %c0_i32_0 = arith.constant 0 : i32
    return %arg0, %c0_i32 : i32, i32
  }
  func.func @transform_1(%arg0: i32) -> (i32, i32) {
    %c0_i32 = arith.constant 0 : i32
    %c0_i32_0 = arith.constant 0 : i32
    %c0_i32_1 = arith.constant 0 : i32
    return %c0_i32, %c0_i32_0 : i32, i32
  }
  func.func @transform_2(%arg0: i32) -> (i32, i32) {
    %c0_i32 = arith.constant 0 : i32
    %c0_i32_0 = arith.constant 0 : i32
    %c0_i32_1 = arith.constant 0 : i32
    return %c0_i32, %c0_i32_0 : i32, i32
  }
}

module attributes {stable_mosaic.version = 11 : i64} {
  func.func @_matmul_kernel(%arg0: i32, %arg1: memref<128x128xbf16, #tpu.memory_space<vmem>>, %arg2: memref<128x1024xbf16, #tpu.memory_space<vmem>>, %arg3: memref<1x128xf32, #tpu.memory_space<vmem>>, %arg4: memref<1x128xf32, #tpu.memory_space<vmem>>, %arg5: memref<128x1024xbf16, #tpu.memory_space<vmem>>) attributes {dimension_semantics = [#tpu.dimension_semantics<parallel>], iteration_bounds = array<i64: 1>, scalar_prefetch = 0 : i64, scratch_operands = 0 : i64, tpu.core_type = #tpu.core_type<tc>, window_params = [{transform_indices = @transform_0, window_bounds = array<i64: 128, 128>}, {pipeline_mode = #tpu.pipeline_mode<synchronous>, transform_indices = @transform_1, window_bounds = array<i64: 128, 1024>}, {pipeline_mode = #tpu.pipeline_mode<synchronous>, transform_indices = @transform_2, window_bounds = array<i64: 1, 128>}, {pipeline_mode = #tpu.pipeline_mode<synchronous>, transform_indices = @transform_3, window_bounds = array<i64: 1, 128>}, {transform_indices = @transform_4, window_bounds = array<i64: 128, 1024>}]} {
    %c0 = arith.constant 0 : index
    %c0_0 = arith.constant 0 : index
    %0 = vector.load %arg1[%c0, %c0_0] : memref<128x128xbf16, #tpu.memory_space<vmem>>, vector<128x128xbf16>
    %1 = arith.extf %0 : vector<128x128xbf16> to vector<128x128xf32>
    %c0_1 = arith.constant 0 : index
    %c0_2 = arith.constant 0 : index
    %2 = vector.load %arg3[%c0_1, %c0_2] : memref<1x128xf32, #tpu.memory_space<vmem>>, vector<1x128xf32>
    %3 = vector.broadcast %2 : vector<1x128xf32> to vector<128x128xf32>
    %4 = arith.mulf %1, %3 : vector<128x128xf32>
    %c0_3 = arith.constant 0 : index
    %c0_4 = arith.constant 0 : index
    %5 = vector.load %arg4[%c0_3, %c0_4] : memref<1x128xf32, #tpu.memory_space<vmem>>, vector<1x128xf32>
    %6 = vector.broadcast %5 : vector<1x128xf32> to vector<128x128xf32>
    %7 = arith.addf %4, %6 : vector<128x128xf32>
    %cst = arith.constant 0.000000e+00 : f32
    %8 = vector.broadcast %cst : f32 to vector<128x128xf32>
    %9 = arith.maximumf %7, %8 : vector<128x128xf32>
    %10 = arith.truncf %9 : vector<128x128xf32> to vector<128x128xbf16>
    %c0_5 = arith.constant 0 : index
    %c0_6 = arith.constant 0 : index
    %11 = vector.load %arg2[%c0_5, %c0_6] : memref<128x1024xbf16, #tpu.memory_space<vmem>>, vector<128x1024xbf16>
    %cst_7 = arith.constant dense<0.000000e+00> : vector<128x1024xf32>
    %12 = tpu.matmul %10, %11, %cst_7 {dimension_numbers = #tpu.dot_dimension_numbers<[1], [0], [0], [1], [0, 0, 1, 1], [], []>} : vector<128x128xbf16>, vector<128x1024xbf16>, vector<128x1024xf32> -> vector<128x1024xf32>
    %13 = arith.truncf %12 : vector<128x1024xf32> to vector<128x1024xbf16>
    %c0_8 = arith.constant 0 : index
    %c0_9 = arith.constant 0 : index
    %14 = vector.load %arg5[%c0_8, %c0_9] : memref<128x1024xbf16, #tpu.memory_space<vmem>>, vector<128x1024xbf16>
    tpu.vector_store %arg5[%c0_8, %c0_9], %13 {strides = array<i32>} : memref<128x1024xbf16, #tpu.memory_space<vmem>>, vector<128x1024xbf16>,
    return
  }
  func.func @transform_0(%arg0: i32) -> (i32, i32) {
    %c0_i32 = arith.constant 0 : i32
    %c0_i32_0 = arith.constant 0 : i32
    return %arg0, %c0_i32 : i32, i32
  }
  func.func @transform_1(%arg0: i32) -> (i32, i32) {
    %c0_i32 = arith.constant 0 : i32
    %c0_i32_0 = arith.constant 0 : i32
    %c0_i32_1 = arith.constant 0 : i32
    return %c0_i32, %c0_i32_0 : i32, i32
  }
  func.func @transform_2(%arg0: i32) -> (i32, i32) {
    %c0_i32 = arith.constant 0 : i32
    %c0_i32_0 = arith.constant 0 : i32
    %c0_i32_1 = arith.constant 0 : i32
    return %c0_i32, %c0_i32_0 : i32, i32
  }
  func.func @transform_3(%arg0: i32) -> (i32, i32) {
    %c0_i32 = arith.constant 0 : i32
    %c0_i32_0 = arith.constant 0 : i32
    %c0_i32_1 = arith.constant 0 : i32
    return %c0_i32, %c0_i32_0 : i32, i32
  }
  func.func @transform_4(%arg0: i32) -> (i32, i32) {
    %c0_i32 = arith.constant 0 : i32
    %c0_i32_0 = arith.constant 0 : i32
    return %arg0, %c0_i32 : i32, i32
  }
}

module attributes {stable_mosaic.version = 11 : i64} {
  func.func @_bn_stats_kernel(%arg0: i32, %arg1: memref<32x1024xbf16, #tpu.memory_space<vmem>>, %arg2: memref<1x1024xf32, #tpu.memory_space<vmem>>, %arg3: memref<1x1024xf32, #tpu.memory_space<vmem>>) attributes {dimension_semantics = [#tpu.dimension_semantics<arbitrary>], iteration_bounds = array<i64: 1>, scalar_prefetch = 0 : i64, scratch_operands = 0 : i64, tpu.core_type = #tpu.core_type<tc>, window_params = [{transform_indices = @transform_0, window_bounds = array<i64: 32, 1024>}, {pipeline_mode = #tpu.pipeline_mode<synchronous>, transform_indices = @transform_1, window_bounds = array<i64: 1, 1024>}, {pipeline_mode = #tpu.pipeline_mode<synchronous>, transform_indices = @transform_2, window_bounds = array<i64: 1, 1024>}]} {
    %c0_i32 = arith.constant 0 : i32
    %0 = arith.cmpi eq, %arg0, %c0_i32 : i32
    %1 = arith.extui %0 : i1 to i32
    %c0_i32_0 = arith.constant 0 : i32
    %2 = arith.cmpi ne, %1, %c0_i32_0 : i32
    scf.if %2 {
      %cst_11 = arith.constant 0.000000e+00 : f32
      %16 = vector.broadcast %cst_11 : f32 to vector<1x1024xf32>
      %c0_12 = arith.constant 0 : index
      %c0_13 = arith.constant 0 : index
      %17 = vector.load %arg2[%c0_12, %c0_13] : memref<1x1024xf32, #tpu.memory_space<vmem>>, vector<1x1024xf32>
      tpu.vector_store %arg2[%c0_12, %c0_13], %16 {strides = array<i32>} : memref<1x1024xf32, #tpu.memory_space<vmem>>, vector<1x1024xf32>,
      %cst_14 = arith.constant 0.000000e+00 : f32
      %18 = vector.broadcast %cst_14 : f32 to vector<1x1024xf32>
      %c0_15 = arith.constant 0 : index
      %c0_16 = arith.constant 0 : index
      %19 = vector.load %arg3[%c0_15, %c0_16] : memref<1x1024xf32, #tpu.memory_space<vmem>>, vector<1x1024xf32>
      tpu.vector_store %arg3[%c0_15, %c0_16], %18 {strides = array<i32>} : memref<1x1024xf32, #tpu.memory_space<vmem>>, vector<1x1024xf32>,
    } else {
    }
    %c0 = arith.constant 0 : index
    %c0_1 = arith.constant 0 : index
    %3 = vector.load %arg1[%c0, %c0_1] : memref<32x1024xbf16, #tpu.memory_space<vmem>>, vector<32x1024xbf16>
    %4 = arith.extf %3 : vector<32x1024xbf16> to vector<32x1024xf32>
    %c0_2 = arith.constant 0 : index
    %c0_3 = arith.constant 0 : index
    %5 = vector.load %arg2[%c0_2, %c0_3] : memref<1x1024xf32, #tpu.memory_space<vmem>>, vector<1x1024xf32>
    %cst = arith.constant dense<0.000000e+00> : vector<1024xf32>
    %6 = vector.multi_reduction <add>, %4, %cst [0] : vector<32x1024xf32> to vector<1024xf32>
    %7 = vector.shape_cast %6 : vector<1024xf32> to vector<1x1024xf32>
    %8 = arith.addf %5, %7 : vector<1x1024xf32>
    %c0_4 = arith.constant 0 : index
    %c0_5 = arith.constant 0 : index
    %9 = vector.load %arg2[%c0_4, %c0_5] : memref<1x1024xf32, #tpu.memory_space<vmem>>, vector<1x1024xf32>
    tpu.vector_store %arg2[%c0_4, %c0_5], %8 {strides = array<i32>} : memref<1x1024xf32, #tpu.memory_space<vmem>>, vector<1x1024xf32>,
    %c0_6 = arith.constant 0 : index
    %c0_7 = arith.constant 0 : index
    %10 = vector.load %arg3[%c0_6, %c0_7] : memref<1x1024xf32, #tpu.memory_space<vmem>>, vector<1x1024xf32>
    %11 = arith.mulf %4, %4 : vector<32x1024xf32>
    %cst_8 = arith.constant dense<0.000000e+00> : vector<1024xf32>
    %12 = vector.multi_reduction <add>, %11, %cst_8 [0] : vector<32x1024xf32> to vector<1024xf32>
    %13 = vector.shape_cast %12 : vector<1024xf32> to vector<1x1024xf32>
    %14 = arith.addf %10, %13 : vector<1x1024xf32>
    %c0_9 = arith.constant 0 : index
    %c0_10 = arith.constant 0 : index
    %15 = vector.load %arg3[%c0_9, %c0_10] : memref<1x1024xf32, #tpu.memory_space<vmem>>, vector<1x1024xf32>
    tpu.vector_store %arg3[%c0_9, %c0_10], %14 {strides = array<i32>} : memref<1x1024xf32, #tpu.memory_space<vmem>>, vector<1x1024xf32>,
    return
  }
  func.func @transform_0(%arg0: i32) -> (i32, i32) {
    %c0_i32 = arith.constant 0 : i32
    %c0_i32_0 = arith.constant 0 : i32
    return %arg0, %c0_i32 : i32, i32
  }
  func.func @transform_1(%arg0: i32) -> (i32, i32) {
    %c0_i32 = arith.constant 0 : i32
    %c0_i32_0 = arith.constant 0 : i32
    %c0_i32_1 = arith.constant 0 : i32
    return %c0_i32, %c0_i32_0 : i32, i32
  }
  func.func @transform_2(%arg0: i32) -> (i32, i32) {
    %c0_i32 = arith.constant 0 : i32
    %c0_i32_0 = arith.constant 0 : i32
    %c0_i32_1 = arith.constant 0 : i32
    return %c0_i32, %c0_i32_0 : i32, i32
  }
}

module attributes {stable_mosaic.version = 11 : i64} {
  func.func @_matmul_kernel(%arg0: i32, %arg1: memref<512x64xbf16, #tpu.memory_space<vmem>>, %arg2: memref<64x512xbf16, #tpu.memory_space<vmem>>, %arg3: memref<1x64xf32, #tpu.memory_space<vmem>>, %arg4: memref<1x64xf32, #tpu.memory_space<vmem>>, %arg5: memref<512x512xbf16, #tpu.memory_space<vmem>>) attributes {dimension_semantics = [#tpu.dimension_semantics<parallel>], iteration_bounds = array<i64: 1>, scalar_prefetch = 0 : i64, scratch_operands = 0 : i64, tpu.core_type = #tpu.core_type<tc>, window_params = [{transform_indices = @transform_0, window_bounds = array<i64: 512, 64>}, {pipeline_mode = #tpu.pipeline_mode<synchronous>, transform_indices = @transform_1, window_bounds = array<i64: 64, 512>}, {pipeline_mode = #tpu.pipeline_mode<synchronous>, transform_indices = @transform_2, window_bounds = array<i64: 1, 64>}, {pipeline_mode = #tpu.pipeline_mode<synchronous>, transform_indices = @transform_3, window_bounds = array<i64: 1, 64>}, {transform_indices = @transform_4, window_bounds = array<i64: 512, 512>}]} {
    %c0 = arith.constant 0 : index
    %c0_0 = arith.constant 0 : index
    %0 = vector.load %arg1[%c0, %c0_0] : memref<512x64xbf16, #tpu.memory_space<vmem>>, vector<512x64xbf16>
    %1 = arith.extf %0 : vector<512x64xbf16> to vector<512x64xf32>
    %c0_1 = arith.constant 0 : index
    %c0_2 = arith.constant 0 : index
    %2 = vector.load %arg3[%c0_1, %c0_2] : memref<1x64xf32, #tpu.memory_space<vmem>>, vector<1x64xf32>
    %3 = vector.broadcast %2 : vector<1x64xf32> to vector<512x64xf32>
    %4 = arith.mulf %1, %3 : vector<512x64xf32>
    %c0_3 = arith.constant 0 : index
    %c0_4 = arith.constant 0 : index
    %5 = vector.load %arg4[%c0_3, %c0_4] : memref<1x64xf32, #tpu.memory_space<vmem>>, vector<1x64xf32>
    %6 = vector.broadcast %5 : vector<1x64xf32> to vector<512x64xf32>
    %7 = arith.addf %4, %6 : vector<512x64xf32>
    %cst = arith.constant 0.000000e+00 : f32
    %8 = vector.broadcast %cst : f32 to vector<512x64xf32>
    %9 = arith.maximumf %7, %8 : vector<512x64xf32>
    %10 = arith.truncf %9 : vector<512x64xf32> to vector<512x64xbf16>
    %c0_5 = arith.constant 0 : index
    %c0_6 = arith.constant 0 : index
    %11 = vector.load %arg2[%c0_5, %c0_6] : memref<64x512xbf16, #tpu.memory_space<vmem>>, vector<64x512xbf16>
    %cst_7 = arith.constant dense<0.000000e+00> : vector<512x512xf32>
    %12 = tpu.matmul %10, %11, %cst_7 {dimension_numbers = #tpu.dot_dimension_numbers<[1], [0], [0], [1], [0, 0, 1, 1], [], []>} : vector<512x64xbf16>, vector<64x512xbf16>, vector<512x512xf32> -> vector<512x512xf32>
    %13 = arith.truncf %12 : vector<512x512xf32> to vector<512x512xbf16>
    %c0_8 = arith.constant 0 : index
    %c0_9 = arith.constant 0 : index
    %14 = vector.load %arg5[%c0_8, %c0_9] : memref<512x512xbf16, #tpu.memory_space<vmem>>, vector<512x512xbf16>
    tpu.vector_store %arg5[%c0_8, %c0_9], %13 {strides = array<i32>} : memref<512x512xbf16, #tpu.memory_space<vmem>>, vector<512x512xbf16>,
    return
  }
  func.func @transform_0(%arg0: i32) -> (i32, i32) {
    %c0_i32 = arith.constant 0 : i32
    %c0_i32_0 = arith.constant 0 : i32
    return %arg0, %c0_i32 : i32, i32
  }
  func.func @transform_1(%arg0: i32) -> (i32, i32) {
    %c0_i32 = arith.constant 0 : i32
    %c0_i32_0 = arith.constant 0 : i32
    %c0_i32_1 = arith.constant 0 : i32
    return %c0_i32, %c0_i32_0 : i32, i32
  }
  func.func @transform_2(%arg0: i32) -> (i32, i32) {
    %c0_i32 = arith.constant 0 : i32
    %c0_i32_0 = arith.constant 0 : i32
    %c0_i32_1 = arith.constant 0 : i32
    return %c0_i32, %c0_i32_0 : i32, i32
  }
  func.func @transform_3(%arg0: i32) -> (i32, i32) {
    %c0_i32 = arith.constant 0 : i32
    %c0_i32_0 = arith.constant 0 : i32
    %c0_i32_1 = arith.constant 0 : i32
    return %c0_i32, %c0_i32_0 : i32, i32
  }
  func.func @transform_4(%arg0: i32) -> (i32, i32) {
    %c0_i32 = arith.constant 0 : i32
    %c0_i32_0 = arith.constant 0 : i32
    return %arg0, %c0_i32 : i32, i32
  }
}

module attributes {stable_mosaic.version = 11 : i64} {
  func.func @_bn_stats_kernel(%arg0: i32, %arg1: memref<64x1024xbf16, #tpu.memory_space<vmem>>, %arg2: memref<1x1024xf32, #tpu.memory_space<vmem>>, %arg3: memref<1x1024xf32, #tpu.memory_space<vmem>>) attributes {dimension_semantics = [#tpu.dimension_semantics<arbitrary>], iteration_bounds = array<i64: 1>, scalar_prefetch = 0 : i64, scratch_operands = 0 : i64, tpu.core_type = #tpu.core_type<tc>, window_params = [{transform_indices = @transform_0, window_bounds = array<i64: 64, 1024>}, {pipeline_mode = #tpu.pipeline_mode<synchronous>, transform_indices = @transform_1, window_bounds = array<i64: 1, 1024>}, {pipeline_mode = #tpu.pipeline_mode<synchronous>, transform_indices = @transform_2, window_bounds = array<i64: 1, 1024>}]} {
    %c0_i32 = arith.constant 0 : i32
    %0 = arith.cmpi eq, %arg0, %c0_i32 : i32
    %1 = arith.extui %0 : i1 to i32
    %c0_i32_0 = arith.constant 0 : i32
    %2 = arith.cmpi ne, %1, %c0_i32_0 : i32
    scf.if %2 {
      %cst_11 = arith.constant 0.000000e+00 : f32
      %16 = vector.broadcast %cst_11 : f32 to vector<1x1024xf32>
      %c0_12 = arith.constant 0 : index
      %c0_13 = arith.constant 0 : index
      %17 = vector.load %arg2[%c0_12, %c0_13] : memref<1x1024xf32, #tpu.memory_space<vmem>>, vector<1x1024xf32>
      tpu.vector_store %arg2[%c0_12, %c0_13], %16 {strides = array<i32>} : memref<1x1024xf32, #tpu.memory_space<vmem>>, vector<1x1024xf32>,
      %cst_14 = arith.constant 0.000000e+00 : f32
      %18 = vector.broadcast %cst_14 : f32 to vector<1x1024xf32>
      %c0_15 = arith.constant 0 : index
      %c0_16 = arith.constant 0 : index
      %19 = vector.load %arg3[%c0_15, %c0_16] : memref<1x1024xf32, #tpu.memory_space<vmem>>, vector<1x1024xf32>
      tpu.vector_store %arg3[%c0_15, %c0_16], %18 {strides = array<i32>} : memref<1x1024xf32, #tpu.memory_space<vmem>>, vector<1x1024xf32>,
    } else {
    }
    %c0 = arith.constant 0 : index
    %c0_1 = arith.constant 0 : index
    %3 = vector.load %arg1[%c0, %c0_1] : memref<64x1024xbf16, #tpu.memory_space<vmem>>, vector<64x1024xbf16>
    %4 = arith.extf %3 : vector<64x1024xbf16> to vector<64x1024xf32>
    %c0_2 = arith.constant 0 : index
    %c0_3 = arith.constant 0 : index
    %5 = vector.load %arg2[%c0_2, %c0_3] : memref<1x1024xf32, #tpu.memory_space<vmem>>, vector<1x1024xf32>
    %cst = arith.constant dense<0.000000e+00> : vector<1024xf32>
    %6 = vector.multi_reduction <add>, %4, %cst [0] : vector<64x1024xf32> to vector<1024xf32>
    %7 = vector.shape_cast %6 : vector<1024xf32> to vector<1x1024xf32>
    %8 = arith.addf %5, %7 : vector<1x1024xf32>
    %c0_4 = arith.constant 0 : index
    %c0_5 = arith.constant 0 : index
    %9 = vector.load %arg2[%c0_4, %c0_5] : memref<1x1024xf32, #tpu.memory_space<vmem>>, vector<1x1024xf32>
    tpu.vector_store %arg2[%c0_4, %c0_5], %8 {strides = array<i32>} : memref<1x1024xf32, #tpu.memory_space<vmem>>, vector<1x1024xf32>,
    %c0_6 = arith.constant 0 : index
    %c0_7 = arith.constant 0 : index
    %10 = vector.load %arg3[%c0_6, %c0_7] : memref<1x1024xf32, #tpu.memory_space<vmem>>, vector<1x1024xf32>
    %11 = arith.mulf %4, %4 : vector<64x1024xf32>
    %cst_8 = arith.constant dense<0.000000e+00> : vector<1024xf32>
    %12 = vector.multi_reduction <add>, %11, %cst_8 [0] : vector<64x1024xf32> to vector<1024xf32>
    %13 = vector.shape_cast %12 : vector<1024xf32> to vector<1x1024xf32>
    %14 = arith.addf %10, %13 : vector<1x1024xf32>
    %c0_9 = arith.constant 0 : index
    %c0_10 = arith.constant 0 : index
    %15 = vector.load %arg3[%c0_9, %c0_10] : memref<1x1024xf32, #tpu.memory_space<vmem>>, vector<1x1024xf32>
    tpu.vector_store %arg3[%c0_9, %c0_10], %14 {strides = array<i32>} : memref<1x1024xf32, #tpu.memory_space<vmem>>, vector<1x1024xf32>,
    return
  }
  func.func @transform_0(%arg0: i32) -> (i32, i32) {
    %c0_i32 = arith.constant 0 : i32
    %c0_i32_0 = arith.constant 0 : i32
    return %arg0, %c0_i32 : i32, i32
  }
  func.func @transform_1(%arg0: i32) -> (i32, i32) {
    %c0_i32 = arith.constant 0 : i32
    %c0_i32_0 = arith.constant 0 : i32
    %c0_i32_1 = arith.constant 0 : i32
    return %c0_i32, %c0_i32_0 : i32, i32
  }
  func.func @transform_2(%arg0: i32) -> (i32, i32) {
    %c0_i32 = arith.constant 0 : i32
    %c0_i32_0 = arith.constant 0 : i32
    %c0_i32_1 = arith.constant 0 : i32
    return %c0_i32, %c0_i32_0 : i32, i32
  }
}

module attributes {stable_mosaic.version = 11 : i64} {
  func.func @_matmul_kernel(%arg0: i32, %arg1: memref<512x32xbf16, #tpu.memory_space<vmem>>, %arg2: memref<32x48xbf16, #tpu.memory_space<vmem>>, %arg3: memref<1x32xf32, #tpu.memory_space<vmem>>, %arg4: memref<1x32xf32, #tpu.memory_space<vmem>>, %arg5: memref<512x48xbf16, #tpu.memory_space<vmem>>) attributes {dimension_semantics = [#tpu.dimension_semantics<parallel>], iteration_bounds = array<i64: 4>, scalar_prefetch = 0 : i64, scratch_operands = 0 : i64, tpu.core_type = #tpu.core_type<tc>, window_params = [{transform_indices = @transform_0, window_bounds = array<i64: 512, 32>}, {pipeline_mode = #tpu.pipeline_mode<synchronous>, transform_indices = @transform_1, window_bounds = array<i64: 32, 48>}, {pipeline_mode = #tpu.pipeline_mode<synchronous>, transform_indices = @transform_2, window_bounds = array<i64: 1, 32>}, {pipeline_mode = #tpu.pipeline_mode<synchronous>, transform_indices = @transform_3, window_bounds = array<i64: 1, 32>}, {transform_indices = @transform_4, window_bounds = array<i64: 512, 48>}]} {
    %c0 = arith.constant 0 : index
    %c0_0 = arith.constant 0 : index
    %0 = vector.load %arg1[%c0, %c0_0] : memref<512x32xbf16, #tpu.memory_space<vmem>>, vector<512x32xbf16>
    %1 = arith.extf %0 : vector<512x32xbf16> to vector<512x32xf32>
    %c0_1 = arith.constant 0 : index
    %c0_2 = arith.constant 0 : index
    %2 = vector.load %arg3[%c0_1, %c0_2] : memref<1x32xf32, #tpu.memory_space<vmem>>, vector<1x32xf32>
    %3 = vector.broadcast %2 : vector<1x32xf32> to vector<512x32xf32>
    %4 = arith.mulf %1, %3 : vector<512x32xf32>
    %c0_3 = arith.constant 0 : index
    %c0_4 = arith.constant 0 : index
    %5 = vector.load %arg4[%c0_3, %c0_4] : memref<1x32xf32, #tpu.memory_space<vmem>>, vector<1x32xf32>
    %6 = vector.broadcast %5 : vector<1x32xf32> to vector<512x32xf32>
    %7 = arith.addf %4, %6 : vector<512x32xf32>
    %cst = arith.constant 0.000000e+00 : f32
    %8 = vector.broadcast %cst : f32 to vector<512x32xf32>
    %9 = arith.maximumf %7, %8 : vector<512x32xf32>
    %10 = arith.truncf %9 : vector<512x32xf32> to vector<512x32xbf16>
    %c0_5 = arith.constant 0 : index
    %c0_6 = arith.constant 0 : index
    %11 = vector.load %arg2[%c0_5, %c0_6] : memref<32x48xbf16, #tpu.memory_space<vmem>>, vector<32x48xbf16>
    %cst_7 = arith.constant dense<0.000000e+00> : vector<512x48xf32>
    %12 = tpu.matmul %10, %11, %cst_7 {dimension_numbers = #tpu.dot_dimension_numbers<[1], [0], [0], [1], [0, 0, 1, 1], [], []>} : vector<512x32xbf16>, vector<32x48xbf16>, vector<512x48xf32> -> vector<512x48xf32>
    %13 = arith.truncf %12 : vector<512x48xf32> to vector<512x48xbf16>
    %c0_8 = arith.constant 0 : index
    %c0_9 = arith.constant 0 : index
    %14 = vector.load %arg5[%c0_8, %c0_9] : memref<512x48xbf16, #tpu.memory_space<vmem>>, vector<512x48xbf16>
    tpu.vector_store %arg5[%c0_8, %c0_9], %13 {strides = array<i32>} : memref<512x48xbf16, #tpu.memory_space<vmem>>, vector<512x48xbf16>,
    return
  }
  func.func @transform_0(%arg0: i32) -> (i32, i32) {
    %c0_i32 = arith.constant 0 : i32
    %c0_i32_0 = arith.constant 0 : i32
    return %arg0, %c0_i32 : i32, i32
  }
  func.func @transform_1(%arg0: i32) -> (i32, i32) {
    %c0_i32 = arith.constant 0 : i32
    %c0_i32_0 = arith.constant 0 : i32
    %c0_i32_1 = arith.constant 0 : i32
    return %c0_i32, %c0_i32_0 : i32, i32
  }
  func.func @transform_2(%arg0: i32) -> (i32, i32) {
    %c0_i32 = arith.constant 0 : i32
    %c0_i32_0 = arith.constant 0 : i32
    %c0_i32_1 = arith.constant 0 : i32
    return %c0_i32, %c0_i32_0 : i32, i32
  }
  func.func @transform_3(%arg0: i32) -> (i32, i32) {
    %c0_i32 = arith.constant 0 : i32
    %c0_i32_0 = arith.constant 0 : i32
    %c0_i32_1 = arith.constant 0 : i32
    return %c0_i32, %c0_i32_0 : i32, i32
  }
  func.func @transform_4(%arg0: i32) -> (i32, i32) {
    %c0_i32 = arith.constant 0 : i32
    %c0_i32_0 = arith.constant 0 : i32
    return %arg0, %c0_i32 : i32, i32
  }
}

module attributes {stable_mosaic.version = 11 : i64} {
  func.func @_sigmoid_bce_kernel(%arg0: i32, %arg1: memref<8x4096xbf16, #tpu.memory_space<vmem>>, %arg2: memref<8x4096xf32, #tpu.memory_space<vmem>>, %arg3: memref<4096x64xf32, #tpu.memory_space<vmem>>, %arg4: memref<8x4096xf32, #tpu.memory_space<vmem>>, %arg5: memref<8x64xf32, #tpu.memory_space<vmem>>) attributes {dimension_semantics = [#tpu.dimension_semantics<parallel>], iteration_bounds = array<i64: 1>, scalar_prefetch = 0 : i64, scratch_operands = 0 : i64, tpu.core_type = #tpu.core_type<tc>, window_params = [{transform_indices = @transform_0, window_bounds = array<i64: 8, 4096>}, {transform_indices = @transform_1, window_bounds = array<i64: 8, 4096>}, {pipeline_mode = #tpu.pipeline_mode<synchronous>, transform_indices = @transform_2, window_bounds = array<i64: 4096, 64>}, {transform_indices = @transform_3, window_bounds = array<i64: 8, 4096>}, {transform_indices = @transform_4, window_bounds = array<i64: 8, 64>}]} {
    %c0 = arith.constant 0 : index
    %c0_0 = arith.constant 0 : index
    %0 = vector.load %arg1[%c0, %c0_0] : memref<8x4096xbf16, #tpu.memory_space<vmem>>, vector<8x4096xbf16>
    %1 = arith.extf %0 : vector<8x4096xbf16> to vector<8x4096xf32>
    %2 = arith.negf %1 : vector<8x4096xf32>
    %3 = math.exp %2 : vector<8x4096xf32>
    %cst = arith.constant 1.000000e+00 : f32
    %4 = vector.broadcast %cst : f32 to vector<8x4096xf32>
    %5 = arith.addf %4, %3 : vector<8x4096xf32>
    %6 = arith.divf %4, %5 : vector<8x4096xf32>
    %c0_1 = arith.constant 0 : index
    %c0_2 = arith.constant 0 : index
    %7 = vector.load %arg2[%c0_1, %c0_2] : memref<8x4096xf32, #tpu.memory_space<vmem>>, vector<8x4096xf32>
    %cst_3 = arith.constant 9.99999971E-10 : f32
    %8 = vector.broadcast %cst_3 : f32 to vector<8x4096xf32>
    %9 = arith.addf %6, %8 : vector<8x4096xf32>
    %10 = math.log %9 : vector<8x4096xf32>
    %11 = arith.mulf %10, %7 : vector<8x4096xf32>
    %cst_4 = arith.constant 1.000000e+00 : f32
    %12 = vector.broadcast %cst_4 : f32 to vector<8x4096xf32>
    %13 = arith.subf %12, %6 : vector<8x4096xf32>
    %cst_5 = arith.constant 9.99999971E-10 : f32
    %14 = vector.broadcast %cst_5 : f32 to vector<8x4096xf32>
    %15 = arith.addf %13, %14 : vector<8x4096xf32>
    %16 = math.log %15 : vector<8x4096xf32>
    %cst_6 = arith.constant 1.000000e+00 : f32
    %17 = vector.broadcast %cst_6 : f32 to vector<8x4096xf32>
    %18 = arith.subf %17, %7 : vector<8x4096xf32>
    %19 = arith.mulf %16, %18 : vector<8x4096xf32>
    %20 = arith.addf %11, %19 : vector<8x4096xf32>
    %cst_7 = arith.constant 0.000000e+00 : f32
    %21 = vector.broadcast %cst_7 : f32 to vector<8x4096xf32>
    %22 = arith.subf %21, %20 : vector<8x4096xf32>
    %c0_8 = arith.constant 0 : index
    %c0_9 = arith.constant 0 : index
    %23 = vector.load %arg4[%c0_8, %c0_9] : memref<8x4096xf32, #tpu.memory_space<vmem>>, vector<8x4096xf32>
    tpu.vector_store %arg4[%c0_8, %c0_9], %6 {strides = array<i32>} : memref<8x4096xf32, #tpu.memory_space<vmem>>, vector<8x4096xf32>,
    %c0_10 = arith.constant 0 : index
    %c0_11 = arith.constant 0 : index
    %24 = vector.load %arg3[%c0_10, %c0_11] : memref<4096x64xf32, #tpu.memory_space<vmem>>, vector<4096x64xf32>
    %cst_12 = arith.constant dense<0.000000e+00> : vector<8x64xf32>
    %25 = tpu.matmul %22, %24, %cst_12 {dimension_numbers = #tpu.dot_dimension_numbers<[1], [0], [0], [1], [0, 0, 1, 1], [], []>} : vector<8x4096xf32>, vector<4096x64xf32>, vector<8x64xf32> -> vector<8x64xf32>
    %c0_13 = arith.constant 0 : index
    %c0_14 = arith.constant 0 : index
    %26 = vector.load %arg5[%c0_13, %c0_14] : memref<8x64xf32, #tpu.memory_space<vmem>>, vector<8x64xf32>
    tpu.vector_store %arg5[%c0_13, %c0_14], %25 {strides = array<i32>} : memref<8x64xf32, #tpu.memory_space<vmem>>, vector<8x64xf32>,
    return
  }
  func.func @transform_0(%arg0: i32) -> (i32, i32) {
    %c0_i32 = arith.constant 0 : i32
    %c0_i32_0 = arith.constant 0 : i32
    return %arg0, %c0_i32 : i32, i32
  }
  func.func @transform_1(%arg0: i32) -> (i32, i32) {
    %c0_i32 = arith.constant 0 : i32
    %c0_i32_0 = arith.constant 0 : i32
    return %arg0, %c0_i32 : i32, i32
  }
  func.func @transform_2(%arg0: i32) -> (i32, i32) {
    %c0_i32 = arith.constant 0 : i32
    %c0_i32_0 = arith.constant 0 : i32
    %c0_i32_1 = arith.constant 0 : i32
    return %c0_i32, %c0_i32_0 : i32, i32
  }
  func.func @transform_3(%arg0: i32) -> (i32, i32) {
    %c0_i32 = arith.constant 0 : i32
    %c0_i32_0 = arith.constant 0 : i32
    return %arg0, %c0_i32 : i32, i32
  }
  func.func @transform_4(%arg0: i32) -> (i32, i32) {
    %c0_i32 = arith.constant 0 : i32
    %c0_i32_0 = arith.constant 0 : i32
    return %arg0, %c0_i32 : i32, i32
  }
}

</mosaic_0001>

<llo_original>
// kernel: decoder_a_forward.9
$region0: #{decoder_a_forward.9}
  #allocation0 [shape = 'u32[]', space=smem, size = 0x4, offset = 0x4, fixed_abs, tag = 'smem constant byte address 0x4 - core index']
  #allocation1 [shape = 'u32[144,128]{1,0:T(1,128)}', space=vmem, size = 0x12000, scoped, tag = 'internal scratch']
  %s0 = inlined_call_operand.vmem [shape: bf16[8,18], index: 0, kind: input, shape index: {}]
  %s1 = inlined_call_operand.hbm [shape: bf16[18,6400], index: 1, kind: input, shape index: {}]
  %s2 = inlined_call_operand.vmem [shape: f32[1,6400], index: 2, kind: input, shape index: {}]
  %s3 = inlined_call_operand.vmem [shape: bf16[8,6400], index: 3, kind: output, shape index: {}]
  %s4 = sld [smem:[#allocation0]]
  $region26: #{decoder_a_forward.9} parent=0
    _
  %s6 = ssub.s32 1, %s4
  %s7 = scalar_select 0, %s6, %s4
  $region1: #{decoder_a_forward.9} parent=0
    #allocation2 [shape = 'u8[307200]{0}', space=vmem, size = 0x4b000, scoped, tag = 'input window, operand 1, single buffered']
    #allocation3 [shape = 's32[1]{0}', space=sflag, size = 0x4, scoped, tag = 'scoped memory for decoder_a_forward.9']
    %8 = vsyncpa [#allocation3], 0
    // Predicated region
    $region2: #{decoder_a_forward.9} parent=1 // pred_check
      _
    $region3: #{decoder_a_forward.9} parent=1 // pred_check_branch
      %10 = sbr.rel (0) target = $region5
    $region4: #{decoder_a_forward.9} parent=1 // pred_region
      _
    $region5: #{decoder_a_forward.9} parent=1 // pred_fallthru
      _
    // Predicated region
    $region6: #{decoder_a_forward.9} parent=1 // pred_check
      _
    $region7: #{decoder_a_forward.9} parent=1 // pred_check_branch
      %12 = sbr.rel (0) target = $region9
    $region8: #{decoder_a_forward.9} parent=1 // pred_region
      %s14 = ssub.s32 9600, 9600
      %15 = vsyncadd [#allocation3], %s14
      %s16 = sshll.u32 [#allocation2], 4
      %s17 = int_to_ptr.vmem [resolvable:$true] %s16
      %22 = dma.hbm_to_vmem [thread:$0]  %s1, 9600, %s17, [#allocation3], 3200, 3200, 200
    $region9: #{decoder_a_forward.9} parent=1 // pred_fallthru
      _
    // Predicated region
    $region10: #{decoder_a_forward.9} parent=1 // pred_check
      _
    $region11: #{decoder_a_forward.9} parent=1 // pred_check_branch
      %24 = sbr.rel (0) target = $region13
    $region12: #{decoder_a_forward.9} parent=1 // pred_region
      _
    $region13: #{decoder_a_forward.9} parent=1 // pred_fallthru
      _
    // Predicated region
    $region14: #{decoder_a_forward.9} parent=1 // pred_check
      _
    $region15: #{decoder_a_forward.9} parent=1 // pred_check_branch
      %26 = sbr.rel (0) target = $region17
    $region16: #{decoder_a_forward.9} parent=1 // pred_region
      %27 = dma.done [#allocation3], 9600
    $region17: #{decoder_a_forward.9} parent=1 // pred_fallthru
      _
    %v29 = vld [vmem:[%s0] sm:$0xf]
    %v30 = vld [vmem:[#allocation2] sm:$0xff]
    %v31 = vld [vmem:[#allocation2 + $0x8] sm:$0xff]
    %v32 = vld [vmem:[#allocation2 + $0x10] sm:$0xff]
    %v33 = vld [vmem:[#allocation2 + $0x18] sm:$0xff]
    %v34 = vld [vmem:[#allocation2 + $0x20] sm:$0xff]
    %v35 = vld [vmem:[#allocation2 + $0x28] sm:$0xff]
    %v36 = vld [vmem:[#allocation2 + $0x30] sm:$0xff]
    %v37 = vld [vmem:[#allocation2 + $0x38] sm:$0xff]
    %v38 = vld [vmem:[#allocation2 + $0x40] sm:$0xff]
    %v39 = vld [vmem:[#allocation2 + $0x48] sm:$0xff]
    %v40 = vld [vmem:[#allocation2 + $0x50] sm:$0xff]
    %v41 = vld [vmem:[#allocation2 + $0x58] sm:$0xff]
    %v42 = vld [vmem:[#allocation2 + $0x60] sm:$0xff]
    %v43 = vld [vmem:[#allocation2 + $0x68] sm:$0xff]
    %v44 = vld [vmem:[#allocation2 + $0x70] sm:$0xff]
    %v45 = vld [vmem:[#allocation2 + $0x78] sm:$0xff]
    %v46 = vld [vmem:[#allocation2 + $0x80] sm:$0xff]
    %v47 = vld [vmem:[#allocation2 + $0x88] sm:$0xff]
    %v48 = vld [vmem:[#allocation2 + $0x90] sm:$0xff]
    %v49 = vld [vmem:[#allocation2 + $0x98] sm:$0xff]
    %v50 = vld [vmem:[#allocation2 + $0xa0] sm:$0xff]
    %v51 = vld [vmem:[#allocation2 + $0xa8] sm:$0xff]
    %v52 = vld [vmem:[#allocation2 + $0xb0] sm:$0xff]
    %v53 = vld [vmem:[#allocation2 + $0xb8] sm:$0xff]
    %v54 = vld [vmem:[#allocation2 + $0xc0] sm:$0xff]
    %v55 = vld [vmem:[#allocation2 + $0xc8] sm:$0xff]
    %v56 = vld [vmem:[#allocation2 + $0xd0] sm:$0xff]
    %v57 = vld [vmem:[#allocation2 + $0xd8] sm:$0xff]
    %v58 = vld [vmem:[#allocation2 + $0xe0] sm:$0xff]
    %v59 = vld [vmem:[#allocation2 + $0xe8] sm:$0xff]
    %v60 = vld [vmem:[#allocation2 + $0xf0] sm:$0xff]
    %v61 = vld [vmem:[#allocation2 + $0xf8] sm:$0xff]
    %v62 = vld [vmem:[#allocation2 + $0x100] sm:$0xff]
    %v63 = vld [vmem:[#allocation2 + $0x108] sm:$0xff]
    %v64 = vld [vmem:[#allocation2 + $0x110] sm:$0xff]
    %v65 = vld [vmem:[#allocation2 + $0x118] sm:$0xff]
    %v66 = vld [vmem:[#allocation2 + $0x120] sm:$0xff]
    %v67 = vld [vmem:[#allocation2 + $0x128] sm:$0xff]
    %v68 = vld [vmem:[#allocation2 + $0x130] sm:$0xff]
    %v69 = vld [vmem:[#allocation2 + $0x138] sm:$0xff]
    %v70 = vld [vmem:[#allocation2 + $0x140] sm:$0xff]
    %v71 = vld [vmem:[#allocation2 + $0x148] sm:$0xff]
    %v72 = vld [vmem:[#allocation2 + $0x150] sm:$0xff]
    %v73 = vld [vmem:[#allocation2 + $0x158] sm:$0xff]
    %v74 = vld [vmem:[#allocation2 + $0x160] sm:$0xff]
    %v75 = vld [vmem:[#allocation2 + $0x168] sm:$0xff]
    %v76 = vld [vmem:[#allocation2 + $0x170] sm:$0xff]
    %v77 = vld [vmem:[#allocation2 + $0x178] sm:$0xff]
    %v78 = vld [vmem:[#allocation2 + $0x180] sm:$0xff]
    %v79 = vld [vmem:[#allocation2 + $0x188] sm:$0xff]
    %v80 = vld [vmem:[#allocation2 + $0x190] sm:$0x11]
    %v81 = vld [vmem:[#allocation2 + $0x198] sm:$0x11]
    %v82 = vld [vmem:[#allocation2 + $0x1a0] sm:$0x11]
    %v83 = vld [vmem:[#allocation2 + $0x1a8] sm:$0x11]
    %v84 = vld [vmem:[#allocation2 + $0x1b0] sm:$0x11]
    %v85 = vld [vmem:[#allocation2 + $0x1b8] sm:$0x11]
    %v86 = vld [vmem:[#allocation2 + $0x1c0] sm:$0x11]
    %v87 = vld [vmem:[#allocation2 + $0x1c8] sm:$0x11]
    %v88 = vld [vmem:[#allocation2 + $0x1d0] sm:$0x11]
    %v89 = vld [vmem:[#allocation2 + $0x1d8] sm:$0x11]
    %v90 = vld [vmem:[#allocation2 + $0x1e0] sm:$0x11]
    %v91 = vld [vmem:[#allocation2 + $0x1e8] sm:$0x11]
    %v92 = vld [vmem:[#allocation2 + $0x1f0] sm:$0x11]
    %v93 = vld [vmem:[#allocation2 + $0x1f8] sm:$0x11]
    %v94 = vld [vmem:[#allocation2 + $0x200] sm:$0x11]
    %v95 = vld [vmem:[#allocation2 + $0x208] sm:$0x11]
    %v96 = vld [vmem:[#allocation2 + $0x210] sm:$0x11]
    %v97 = vld [vmem:[#allocation2 + $0x218] sm:$0x11]
    %v98 = vld [vmem:[#allocation2 + $0x220] sm:$0x11]
    %v99 = vld [vmem:[#allocation2 + $0x228] sm:$0x11]
    %v100 = vld [vmem:[#allocation2 + $0x230] sm:$0x11]
    %v101 = vld [vmem:[#allocation2 + $0x238] sm:$0x11]
    %v102 = vld [vmem:[#allocation2 + $0x240] sm:$0x11]
    %v103 = vld [vmem:[#allocation2 + $0x248] sm:$0x11]
    %v104 = vld [vmem:[#allocation2 + $0x250] sm:$0x11]
    %v105 = vld [vmem:[%s2] sm:$0xff]
    %v106 = vld [vmem:[%s2 + $0x8] sm:$0xff]
    %v107 = vld [vmem:[%s2 + $0x10] sm:$0xff]
    %v108 = vld [vmem:[%s2 + $0x18] sm:$0xff]
    %v109 = vld [vmem:[%s2 + $0x20] sm:$0xff]
    %v110 = vld [vmem:[%s2 + $0x28] sm:$0xff]
    %v111 = vld [vmem:[%s2 + $0x30] sm:$0x3]
    %v119 = vlaneseq
    %v120 = vshrl.u32 %v119, 7
    %v121 = vsub.s32 0, %v120
    %v122 = vrot.slane %v105, %v121
    %v123 = vlaneseq
    %v124 = vshrl.u32 %v123, 7
    %v125 = vsub.s32 1, %v124
    %v126 = vrot.slane %v105, %v125
    %v127 = vlaneseq
    %v128 = vshrl.u32 %v127, 7
    %v129 = vsub.s32 2, %v128
    %v130 = vrot.slane %v105, %v129
    %v131 = vlaneseq
    %v132 = vshrl.u32 %v131, 7
    %v133 = vsub.s32 3, %v132
    %v134 = vrot.slane %v105, %v133
    %v135 = vlaneseq
    %v136 = vshrl.u32 %v135, 7
    %v137 = vsub.s32 4, %v136
    %v138 = vrot.slane %v105, %v137
    %v139 = vlaneseq
    %v140 = vshrl.u32 %v139, 7
    %v141 = vsub.s32 5, %v140
    %v142 = vrot.slane %v105, %v141
    %v143 = vlaneseq
    %v144 = vshrl.u32 %v143, 7
    %v145 = vsub.s32 6, %v144
    %v146 = vrot.slane %v105, %v145
    %v147 = vlaneseq
    %v148 = vshrl.u32 %v147, 7
    %v149 = vsub.s32 7, %v148
    %v150 = vrot.slane %v105, %v149
    %v151 = vlaneseq
    %v152 = vshrl.u32 %v151, 7
    %v153 = vsub.s32 0, %v152
    %v154 = vrot.slane %v106, %v153
    %v155 = vlaneseq
    %v156 = vshrl.u32 %v155, 7
    %v157 = vsub.s32 1, %v156
    %v158 = vrot.slane %v106, %v157
    %v159 = vlaneseq
    %v160 = vshrl.u32 %v159, 7
    %v161 = vsub.s32 2, %v160
    %v162 = vrot.slane %v106, %v161
    %v163 = vlaneseq
    %v164 = vshrl.u32 %v163, 7
    %v165 = vsub.s32 3, %v164
    %v166 = vrot.slane %v106, %v165
    %v167 = vlaneseq
    %v168 = vshrl.u32 %v167, 7
    %v169 = vsub.s32 4, %v168
    %v170 = vrot.slane %v106, %v169
    %v171 = vlaneseq
    %v172 = vshrl.u32 %v171, 7
    %v173 = vsub.s32 5, %v172
    %v174 = vrot.slane %v106, %v173
    %v175 = vlaneseq
    %v176 = vshrl.u32 %v175, 7
    %v177 = vsub.s32 6, %v176
    %v178 = vrot.slane %v106, %v177
    %v179 = vlaneseq
    %v180 = vshrl.u32 %v179, 7
    %v181 = vsub.s32 7, %v180
    %v182 = vrot.slane %v106, %v181
    %v183 = vlaneseq
    %v184 = vshrl.u32 %v183, 7
    %v185 = vsub.s32 0, %v184
    %v186 = vrot.slane %v107, %v185
    %v187 = vlaneseq
    %v188 = vshrl.u32 %v187, 7
    %v189 = vsub.s32 1, %v188
    %v190 = vrot.slane %v107, %v189
    %v191 = vlaneseq
    %v192 = vshrl.u32 %v191, 7
    %v193 = vsub.s32 2, %v192
    %v194 = vrot.slane %v107, %v193
    %v195 = vlaneseq
    %v196 = vshrl.u32 %v195, 7
    %v197 = vsub.s32 3, %v196
    %v198 = vrot.slane %v107, %v197
    %v199 = vlaneseq
    %v200 = vshrl.u32 %v199, 7
    %v201 = vsub.s32 4, %v200
    %v202 = vrot.slane %v107, %v201
    %v203 = vlaneseq
    %v204 = vshrl.u32 %v203, 7
    %v205 = vsub.s32 5, %v204
    %v206 = vrot.slane %v107, %v205
    %v207 = vlaneseq
    %v208 = vshrl.u32 %v207, 7
    %v209 = vsub.s32 6, %v208
    %v210 = vrot.slane %v107, %v209
    %v211 = vlaneseq
    %v212 = vshrl.u32 %v211, 7
    %v213 = vsub.s32 7, %v212
    %v214 = vrot.slane %v107, %v213
    %v215 = vlaneseq
    %v216 = vshrl.u32 %v215, 7
    %v217 = vsub.s32 0, %v216
    %v218 = vrot.slane %v108, %v217
    %v219 = vlaneseq
    %v220 = vshrl.u32 %v219, 7
    %v221 = vsub.s32 1, %v220
    %v222 = vrot.slane %v108, %v221
    %v223 = vlaneseq
    %v224 = vshrl.u32 %v223, 7
    %v225 = vsub.s32 2, %v224
    %v226 = vrot.slane %v108, %v225
    %v227 = vlaneseq
    %v228 = vshrl.u32 %v227, 7
    %v229 = vsub.s32 3, %v228
    %v230 = vrot.slane %v108, %v229
    %v231 = vlaneseq
    %v232 = vshrl.u32 %v231, 7
    %v233 = vsub.s32 4, %v232
    %v234 = vrot.slane %v108, %v233
    %v235 = vlaneseq
    %v236 = vshrl.u32 %v235, 7
    %v237 = vsub.s32 5, %v236
    %v238 = vrot.slane %v108, %v237
    %v239 = vlaneseq
    %v240 = vshrl.u32 %v239, 7
    %v241 = vsub.s32 6, %v240
    %v242 = vrot.slane %v108, %v241
    %v243 = vlaneseq
    %v244 = vshrl.u32 %v243, 7
    %v245 = vsub.s32 7, %v244
    %v246 = vrot.slane %v108, %v245
    %v247 = vlaneseq
    %v248 = vshrl.u32 %v247, 7
    %v249 = vsub.s32 0, %v248
    %v250 = vrot.slane %v109, %v249
    %v251 = vlaneseq
    %v252 = vshrl.u32 %v251, 7
    %v253 = vsub.s32 1, %v252
    %v254 = vrot.slane %v109, %v253
    %v255 = vlaneseq
    %v256 = vshrl.u32 %v255, 7
    %v257 = vsub.s32 2, %v256
    %v258 = vrot.slane %v109, %v257
    %v259 = vlaneseq
    %v260 = vshrl.u32 %v259, 7
    %v261 = vsub.s32 3, %v260
    %v262 = vrot.slane %v109, %v261
    %v263 = vlaneseq
    %v264 = vshrl.u32 %v263, 7
    %v265 = vsub.s32 4, %v264
    %v266 = vrot.slane %v109, %v265
    %v267 = vlaneseq
    %v268 = vshrl.u32 %v267, 7
    %v269 = vsub.s32 5, %v268
    %v270 = vrot.slane %v109, %v269
    %v271 = vlaneseq
    %v272 = vshrl.u32 %v271, 7
    %v273 = vsub.s32 6, %v272
    %v274 = vrot.slane %v109, %v273
    %v275 = vlaneseq
    %v276 = vshrl.u32 %v275, 7
    %v277 = vsub.s32 7, %v276
    %v278 = vrot.slane %v109, %v277
    %v279 = vlaneseq
    %v280 = vshrl.u32 %v279, 7
    %v281 = vsub.s32 0, %v280
    %v282 = vrot.slane %v110, %v281
    %v283 = vlaneseq
    %v284 = vshrl.u32 %v283, 7
    %v285 = vsub.s32 1, %v284
    %v286 = vrot.slane %v110, %v285
    %v287 = vlaneseq
    %v288 = vshrl.u32 %v287, 7
    %v289 = vsub.s32 2, %v288
    %v290 = vrot.slane %v110, %v289
    %v291 = vlaneseq
    %v292 = vshrl.u32 %v291, 7
    %v293 = vsub.s32 3, %v292
    %v294 = vrot.slane %v110, %v293
    %v295 = vlaneseq
    %v296 = vshrl.u32 %v295, 7
    %v297 = vsub.s32 4, %v296
    %v298 = vrot.slane %v110, %v297
    %v299 = vlaneseq
    %v300 = vshrl.u32 %v299, 7
    %v301 = vsub.s32 5, %v300
    %v302 = vrot.slane %v110, %v301
    %v303 = vlaneseq
    %v304 = vshrl.u32 %v303, 7
    %v305 = vsub.s32 6, %v304
    %v306 = vrot.slane %v110, %v305
    %v307 = vlaneseq
    %v308 = vshrl.u32 %v307, 7
    %v309 = vsub.s32 7, %v308
    %v310 = vrot.slane %v110, %v309
    %v311 = vlaneseq
    %v312 = vshrl.u32 %v311, 7
    %v313 = vsub.s32 0, %v312
    %v314 = vrot.slane %v111, %v313
    %v315 = vlaneseq
    %v316 = vshrl.u32 %v315, 7
    %v317 = vsub.s32 1, %v316
    %v318 = vrot.slane %v111, %v317
    %v444 = vunpack.c.l.b16 %v30
    %v445 = vunpack.c.h.b16 %v30
    %v446 = vunpack.c.l.b16 %v31
    %v447 = vunpack.c.h.b16 %v31
    %v448 = vunpack.c.l.b16 %v32
    %v449 = vunpack.c.h.b16 %v32
    %v450 = vunpack.c.l.b16 %v33
    %v451 = vunpack.c.h.b16 %v33
    %v452 = vunpack.c.l.b16 %v34
    %v453 = vunpack.c.h.b16 %v34
    %v454 = vunpack.c.l.b16 %v35
    %v455 = vunpack.c.h.b16 %v35
    %v456 = vunpack.c.l.b16 %v36
    %v457 = vunpack.c.h.b16 %v36
    %v458 = vunpack.c.l.b16 %v37
    %v459 = vunpack.c.h.b16 %v37
    %v460 = vunpack.c.l.b16 %v38
    %v461 = vunpack.c.h.b16 %v38
    %v462 = vunpack.c.l.b16 %v39
    %v463 = vunpack.c.h.b16 %v39
    %v464 = vunpack.c.l.b16 %v40
    %v465 = vunpack.c.h.b16 %v40
    %v466 = vunpack.c.l.b16 %v41
    %v467 = vunpack.c.h.b16 %v41
    %v468 = vunpack.c.l.b16 %v42
    %v469 = vunpack.c.h.b16 %v42
    %v470 = vunpack.c.l.b16 %v43
    %v471 = vunpack.c.h.b16 %v43
    %v472 = vunpack.c.l.b16 %v44
    %v473 = vunpack.c.h.b16 %v44
    %v474 = vunpack.c.l.b16 %v45
    %v475 = vunpack.c.h.b16 %v45
    %v476 = vunpack.c.l.b16 %v46
    %v477 = vunpack.c.h.b16 %v46
    %v478 = vunpack.c.l.b16 %v47
    %v479 = vunpack.c.h.b16 %v47
    %v480 = vunpack.c.l.b16 %v48
    %v481 = vunpack.c.h.b16 %v48
    %v482 = vunpack.c.l.b16 %v49
    %v483 = vunpack.c.h.b16 %v49
    %v484 = vunpack.c.l.b16 %v50
    %v485 = vunpack.c.h.b16 %v50
    %v486 = vunpack.c.l.b16 %v51
    %v487 = vunpack.c.h.b16 %v51
    %v488 = vunpack.c.l.b16 %v52
    %v489 = vunpack.c.h.b16 %v52
    %v490 = vunpack.c.l.b16 %v53
    %v491 = vunpack.c.h.b16 %v53
    %v492 = vunpack.c.l.b16 %v54
    %v493 = vunpack.c.h.b16 %v54
    %v494 = vunpack.c.l.b16 %v55
    %v495 = vunpack.c.h.b16 %v55
    %v496 = vunpack.c.l.b16 %v56
    %v497 = vunpack.c.h.b16 %v56
    %v498 = vunpack.c.l.b16 %v57
    %v499 = vunpack.c.h.b16 %v57
    %v500 = vunpack.c.l.b16 %v58
    %v501 = vunpack.c.h.b16 %v58
    %v502 = vunpack.c.l.b16 %v59
    %v503 = vunpack.c.h.b16 %v59
    %v504 = vunpack.c.l.b16 %v60
    %v505 = vunpack.c.h.b16 %v60
    %v506 = vunpack.c.l.b16 %v61
    %v507 = vunpack.c.h.b16 %v61
    %v508 = vunpack.c.l.b16 %v62
    %v509 = vunpack.c.h.b16 %v62
    %v510 = vunpack.c.l.b16 %v63
    %v511 = vunpack.c.h.b16 %v63
    %v512 = vunpack.c.l.b16 %v64
    %v513 = vunpack.c.h.b16 %v64
    %v514 = vunpack.c.l.b16 %v65
    %v515 = vunpack.c.h.b16 %v65
    %v516 = vunpack.c.l.b16 %v66
    %v517 = vunpack.c.h.b16 %v66
    %v518 = vunpack.c.l.b16 %v67
    %v519 = vunpack.c.h.b16 %v67
    %v520 = vunpack.c.l.b16 %v68
    %v521 = vunpack.c.h.b16 %v68
    %v522 = vunpack.c.l.b16 %v69
    %v523 = vunpack.c.h.b16 %v69
    %v524 = vunpack.c.l.b16 %v70
    %v525 = vunpack.c.h.b16 %v70
    %v526 = vunpack.c.l.b16 %v71
    %v527 = vunpack.c.h.b16 %v71
    %v528 = vunpack.c.l.b16 %v72
    %v529 = vunpack.c.h.b16 %v72
    %v530 = vunpack.c.l.b16 %v73
    %v531 = vunpack.c.h.b16 %v73
    %v532 = vunpack.c.l.b16 %v74
    %v533 = vunpack.c.h.b16 %v74
    %v534 = vunpack.c.l.b16 %v75
    %v535 = vunpack.c.h.b16 %v75
    %v536 = vunpack.c.l.b16 %v76
    %v537 = vunpack.c.h.b16 %v76
    %v538 = vunpack.c.l.b16 %v77
    %v539 = vunpack.c.h.b16 %v77
    %v540 = vunpack.c.l.b16 %v78
    %v541 = vunpack.c.h.b16 %v78
    %v542 = vunpack.c.l.b16 %v79
    %v543 = vunpack.c.h.b16 %v79
    %v544 = vunpack.c.l.b16 %v80
    %v545 = vunpack.c.h.b16 %v80
    %v546 = vunpack.c.l.b16 %v81
    %v547 = vunpack.c.h.b16 %v81
    %v548 = vunpack.c.l.b16 %v82
    %v549 = vunpack.c.h.b16 %v82
    %v550 = vunpack.c.l.b16 %v83
    %v551 = vunpack.c.h.b16 %v83
    %v552 = vunpack.c.l.b16 %v84
    %v553 = vunpack.c.h.b16 %v84
    %v554 = vunpack.c.l.b16 %v85
    %v555 = vunpack.c.h.b16 %v85
    %v556 = vunpack.c.l.b16 %v86
    %v557 = vunpack.c.h.b16 %v86
    %v558 = vunpack.c.l.b16 %v87
    %v559 = vunpack.c.h.b16 %v87
    %v560 = vunpack.c.l.b16 %v88
    %v561 = vunpack.c.h.b16 %v88
    %v562 = vunpack.c.l.b16 %v89
    %v563 = vunpack.c.h.b16 %v89
    %v564 = vunpack.c.l.b16 %v90
    %v565 = vunpack.c.h.b16 %v90
    %v566 = vunpack.c.l.b16 %v91
    %v567 = vunpack.c.h.b16 %v91
    %v568 = vunpack.c.l.b16 %v92
    %v569 = vunpack.c.h.b16 %v92
    %v570 = vunpack.c.l.b16 %v93
    %v571 = vunpack.c.h.b16 %v93
    %v572 = vunpack.c.l.b16 %v94
    %v573 = vunpack.c.h.b16 %v94
    %v574 = vunpack.c.l.b16 %v95
    %v575 = vunpack.c.h.b16 %v95
    %v576 = vunpack.c.l.b16 %v96
    %v577 = vunpack.c.h.b16 %v96
    %v578 = vunpack.c.l.b16 %v97
    %v579 = vunpack.c.h.b16 %v97
    %v580 = vunpack.c.l.b16 %v98
    %v581 = vunpack.c.h.b16 %v98
    %v582 = vunpack.c.l.b16 %v99
    %v583 = vunpack.c.h.b16 %v99
    %v584 = vunpack.c.l.b16 %v100
    %v585 = vunpack.c.h.b16 %v100
    %v586 = vunpack.c.l.b16 %v101
    %v587 = vunpack.c.h.b16 %v101
    %v588 = vunpack.c.l.b16 %v102
    %v589 = vunpack.c.h.b16 %v102
    %v590 = vunpack.c.l.b16 %v103
    %v591 = vunpack.c.h.b16 %v103
    %v592 = vunpack.c.l.b16 %v104
    %v593 = vunpack.c.h.b16 %v104
    %v594 = vpack.c.b16 %v494, %v444
    %v595 = vpack.c.b16 %v495, %v445
    %v596 = vpack.c.b16 %v496, %v446
    %v597 = vpack.c.b16 %v497, %v447
    %v598 = vpack.c.b16 %v498, %v448
    %v599 = vpack.c.b16 %v499, %v449
    %v600 = vpack.c.b16 %v500, %v450
    %v601 = vpack.c.b16 %v501, %v451
    %v602 = vpack.c.b16 %v502, %v452
    %v603 = vpack.c.b16 %v503, %v453
    %v604 = vpack.c.b16 %v504, %v454
    %v605 = vpack.c.b16 %v505, %v455
    %v606 = vpack.c.b16 %v506, %v456
    %v607 = vpack.c.b16 %v507, %v457
    %v608 = vpack.c.b16 %v508, %v458
    %v609 = vpack.c.b16 %v509, %v459
    %v610 = vpack.c.b16 %v510, %v460
    %v611 = vpack.c.b16 %v511, %v461
    %v612 = vpack.c.b16 %v512, %v462
    %v613 = vpack.c.b16 %v513, %v463
    %v614 = vpack.c.b16 %v514, %v464
    %v615 = vpack.c.b16 %v515, %v465
    %v616 = vpack.c.b16 %v516, %v466
    %v617 = vpack.c.b16 %v517, %v467
    %v618 = vpack.c.b16 %v518, %v468
    %v619 = vpack.c.b16 %v519, %v469
    %v620 = vpack.c.b16 %v520, %v470
    %v621 = vpack.c.b16 %v521, %v471
    %v622 = vpack.c.b16 %v522, %v472
    %v623 = vpack.c.b16 %v523, %v473
    %v624 = vpack.c.b16 %v524, %v474
    %v625 = vpack.c.b16 %v525, %v475
    %v626 = vpack.c.b16 %v526, %v476
    %v627 = vpack.c.b16 %v527, %v477
    %v628 = vpack.c.b16 %v528, %v478
    %v629 = vpack.c.b16 %v529, %v479
    %v630 = vpack.c.b16 %v530, %v480
    %v631 = vpack.c.b16 %v531, %v481
    %v632 = vpack.c.b16 %v532, %v482
    %v633 = vpack.c.b16 %v533, %v483
    %v634 = vpack.c.b16 %v534, %v484
    %v635 = vpack.c.b16 %v535, %v485
    %v636 = vpack.c.b16 %v536, %v486
    %v637 = vpack.c.b16 %v537, %v487
    %v638 = vpack.c.b16 %v538, %v488
    %v639 = vpack.c.b16 %v539, %v489
    %v640 = vpack.c.b16 %v540, %v490
    %v641 = vpack.c.b16 %v541, %v491
    %v642 = vpack.c.b16 %v542, %v492
    %v643 = vpack.c.b16 %v543, %v493
    %v644 = vpack.c.b16 %v544, %v544
    %v645 = vpack.c.b16 %v545, %v545
    %v646 = vpack.c.b16 %v546, %v546
    %v647 = vpack.c.b16 %v547, %v547
    %v648 = vpack.c.b16 %v548, %v548
    %v649 = vpack.c.b16 %v549, %v549
    %v650 = vpack.c.b16 %v550, %v550
    %v651 = vpack.c.b16 %v551, %v551
    %v652 = vpack.c.b16 %v552, %v552
    %v653 = vpack.c.b16 %v553, %v553
    %v654 = vpack.c.b16 %v554, %v554
    %v655 = vpack.c.b16 %v555, %v555
    %v656 = vpack.c.b16 %v556, %v556
    %v657 = vpack.c.b16 %v557, %v557
    %v658 = vpack.c.b16 %v558, %v558
    %v659 = vpack.c.b16 %v559, %v559
    %v660 = vpack.c.b16 %v560, %v560
    %v661 = vpack.c.b16 %v561, %v561
    %v662 = vpack.c.b16 %v562, %v562
    %v663 = vpack.c.b16 %v563, %v563
    %v664 = vpack.c.b16 %v564, %v564
    %v665 = vpack.c.b16 %v565, %v565
    %v666 = vpack.c.b16 %v566, %v566
    %v667 = vpack.c.b16 %v567, %v567
    %v668 = vpack.c.b16 %v568, %v568
    %v669 = vpack.c.b16 %v569, %v569
    %v670 = vpack.c.b16 %v570, %v570
    %v671 = vpack.c.b16 %v571, %v571
    %v672 = vpack.c.b16 %v572, %v572
    %v673 = vpack.c.b16 %v573, %v573
    %v674 = vpack.c.b16 %v574, %v574
    %v675 = vpack.c.b16 %v575, %v575
    %v676 = vpack.c.b16 %v576, %v576
    %v677 = vpack.c.b16 %v577, %v577
    %v678 = vpack.c.b16 %v578, %v578
    %v679 = vpack.c.b16 %v579, %v579
    %v680 = vpack.c.b16 %v580, %v580
    %v681 = vpack.c.b16 %v581, %v581
    %v682 = vpack.c.b16 %v582, %v582
    %v683 = vpack.c.b16 %v583, %v583
    %v684 = vpack.c.b16 %v584, %v584
    %v685 = vpack.c.b16 %v585, %v585
    %v686 = vpack.c.b16 %v586, %v586
    %v687 = vpack.c.b16 %v587, %v587
    %v688 = vpack.c.b16 %v588, %v588
    %v689 = vpack.c.b16 %v589, %v589
    %v690 = vpack.c.b16 %v590, %v590
    %v691 = vpack.c.b16 %v591, %v591
    %v692 = vpack.c.b16 %v592, %v592
    %v693 = vpack.c.b16 %v593, %v593
    %vm744 = vcmask 146432
    %v746 = vsel %vm744, %v29, 0
    %vm748 = vcmask 1040384
    %v750 = vsel %vm748, %v644, 0
    %v753 = vsel %vm748, %v645, 0
    %v756 = vsel %vm748, %v646, 0
    %v759 = vsel %vm748, %v647, 0
    %v762 = vsel %vm748, %v648, 0
    %v765 = vsel %vm748, %v649, 0
    %v768 = vsel %vm748, %v650, 0
    %v771 = vsel %vm748, %v651, 0
    %v774 = vsel %vm748, %v652, 0
    %v777 = vsel %vm748, %v653, 0
    %v780 = vsel %vm748, %v654, 0
    %v783 = vsel %vm748, %v655, 0
    %v786 = vsel %vm748, %v656, 0
    %v789 = vsel %vm748, %v657, 0
    %v792 = vsel %vm748, %v658, 0
    %v795 = vsel %vm748, %v659, 0
    %v798 = vsel %vm748, %v660, 0
    %v801 = vsel %vm748, %v661, 0
    %v804 = vsel %vm748, %v662, 0
    %v807 = vsel %vm748, %v663, 0
    %v810 = vsel %vm748, %v664, 0
    %v813 = vsel %vm748, %v665, 0
    %v816 = vsel %vm748, %v666, 0
    %v819 = vsel %vm748, %v667, 0
    %v822 = vsel %vm748, %v668, 0
    %v825 = vsel %vm748, %v669, 0
    %v828 = vsel %vm748, %v670, 0
    %v831 = vsel %vm748, %v671, 0
    %v834 = vsel %vm748, %v672, 0
    %v837 = vsel %vm748, %v673, 0
    %v840 = vsel %vm748, %v674, 0
    %v843 = vsel %vm748, %v675, 0
    %v846 = vsel %vm748, %v676, 0
    %v849 = vsel %vm748, %v677, 0
    %v852 = vsel %vm748, %v678, 0
    %v855 = vsel %vm748, %v679, 0
    %v858 = vsel %vm748, %v680, 0
    %v861 = vsel %vm748, %v681, 0
    %v864 = vsel %vm748, %v682, 0
    %v867 = vsel %vm748, %v683, 0
    %v870 = vsel %vm748, %v684, 0
    %v873 = vsel %vm748, %v685, 0
    %v876 = vsel %vm748, %v686, 0
    %v879 = vsel %vm748, %v687, 0
    %v882 = vsel %vm748, %v688, 0
    %v885 = vsel %vm748, %v689, 0
    %v888 = vsel %vm748, %v690, 0
    %v891 = vsel %vm748, %v691, 0
    %v894 = vsel %vm748, %v692, 0
    %v897 = vsel %vm748, %v693, 0
    %899 = vmatprep.subr.bf16.mxu0 %v595
    %900 = vmatpush1.bf16.msra.mxu0 %v594
    %901 = vmatprep.subr.bf16.mxu0 %v753
    %902 = vmatpush1.bf16.msra.mxu0 %v750
    %903 = vmatprep.subr.bf16.mxu0 0
    %904 = vmatpush1.bf16.msra.mxu0 0
    %905 = vmatprep.subr.bf16.mxu0 0
    %906 = vmatpush1.bf16.msra.mxu0 0
    %907 = vmatprep.subr.bf16.mxu0 0
    %908 = vmatpush1.bf16.msra.mxu0 0
    %909 = vmatprep.subr.bf16.mxu0 0
    %910 = vmatpush1.bf16.msra.mxu0 0
    %911 = vmatprep.subr.bf16.mxu0 0
    %912 = vmatpush1.bf16.msra.mxu0 0
    %913 = vmatprep.subr.bf16.mxu0 0
    %914 = vmatpush1.bf16.msra.mxu0 0
    %915 = vmatprep.subr.bf16.mxu0 0
    %916 = vmatpush1.bf16.msra.mxu0 0
    %917 = vmatprep.subr.bf16.mxu0 0
    %918 = vmatpush1.bf16.msra.mxu0 0
    %919 = vmatprep.subr.bf16.mxu0 0
    %920 = vmatpush1.bf16.msra.mxu0 0
    %921 = vmatprep.subr.bf16.mxu0 0
    %922 = vmatpush1.bf16.msra.mxu0 0
    %923 = vmatprep.subr.bf16.mxu0 0
    %924 = vmatpush1.bf16.msra.mxu0 0
    %925 = vmatprep.subr.bf16.mxu0 0
    %926 = vmatpush1.bf16.msra.mxu0 0
    %927 = vmatprep.subr.bf16.mxu0 0
    %928 = vmatpush1.bf16.msra.mxu0 0
    %929 = vmatprep.subr.bf16.mxu0 0
    %930 = vmatpush1.bf16.msra.mxu0 0
    %931 = vmatprep.mubr.bf16.mxu0 0
    %932 = vmatmul.mubr.bf16.gmra.mrb[0].mxu0 %v746
    %v933 = vpop.f32.mrb[0].mxu0
    %v934 = vadd.f32 %v122, %v933
    %v935 = vpop.f32.mrb[0].mxu0
    %v936 = vadd.f32 %v126, %v935
    %v937 = vpop.f32.mrb[0].mxu0
    %v938 = vpop.f32.mrb[0].mxu0
    %939 = vdwg.mxu0
    %940 = vmatprep.subr.bf16.mxu0 %v597
    %941 = vmatpush1.bf16.msra.mxu0 %v596
    %942 = vmatprep.subr.bf16.mxu0 %v759
    %943 = vmatpush1.bf16.msra.mxu0 %v756
    %944 = vmatprep.subr.bf16.mxu0 0
    %945 = vmatpush1.bf16.msra.mxu0 0
    %946 = vmatprep.subr.bf16.mxu0 0
    %947 = vmatpush1.bf16.msra.mxu0 0
    %948 = vmatprep.subr.bf16.mxu0 0
    %949 = vmatpush1.bf16.msra.mxu0 0
    %950 = vmatprep.subr.bf16.mxu0 0
    %951 = vmatpush1.bf16.msra.mxu0 0
    %952 = vmatprep.subr.bf16.mxu0 0
    %953 = vmatpush1.bf16.msra.mxu0 0
    %954 = vmatprep.subr.bf16.mxu0 0
    %955 = vmatpush1.bf16.msra.mxu0 0
    %956 = vmatprep.subr.bf16.mxu0 0
    %957 = vmatpush1.bf16.msra.mxu0 0
    %958 = vmatprep.subr.bf16.mxu0 0
    %959 = vmatpush1.bf16.msra.mxu0 0
    %960 = vmatprep.subr.bf16.mxu0 0
    %961 = vmatpush1.bf16.msra.mxu0 0
    %962 = vmatprep.subr.bf16.mxu0 0
    %963 = vmatpush1.bf16.msra.mxu0 0
    %964 = vmatprep.subr.bf16.mxu0 0
    %965 = vmatpush1.bf16.msra.mxu0 0
    %966 = vmatprep.subr.bf16.mxu0 0
    %967 = vmatpush1.bf16.msra.mxu0 0
    %968 = vmatprep.subr.bf16.mxu0 0
    %969 = vmatpush1.bf16.msra.mxu0 0
    %970 = vmatprep.subr.bf16.mxu0 0
    %971 = vmatpush1.bf16.msra.mxu0 0
    %972 = vmatprep.mubr.bf16.mxu0 0
    %973 = vmatmul.mubr.bf16.gmra.mrb[0].mxu0 %v746
    %v974 = vpop.f32.mrb[0].mxu0
    %v975 = vadd.f32 %v130, %v974
    %v976 = vpop.f32.mrb[0].mxu0
    %v977 = vadd.f32 %v134, %v976
    %v978 = vpop.f32.mrb[0].mxu0
    %v979 = vpop.f32.mrb[0].mxu0
    %980 = vdwg.mxu0
    %981 = vmatprep.subr.bf16.mxu0 %v599
    %982 = vmatpush1.bf16.msra.mxu0 %v598
    %983 = vmatprep.subr.bf16.mxu0 %v765
    %984 = vmatpush1.bf16.msra.mxu0 %v762
    %985 = vmatprep.subr.bf16.mxu0 0
    %986 = vmatpush1.bf16.msra.mxu0 0
    %987 = vmatprep.subr.bf16.mxu0 0
    %988 = vmatpush1.bf16.msra.mxu0 0
    %989 = vmatprep.subr.bf16.mxu0 0
    %990 = vmatpush1.bf16.msra.mxu0 0
    %991 = vmatprep.subr.bf16.mxu0 0
    %992 = vmatpush1.bf16.msra.mxu0 0
    %993 = vmatprep.subr.bf16.mxu0 0
    %994 = vmatpush1.bf16.msra.mxu0 0
    %995 = vmatprep.subr.bf16.mxu0 0
    %996 = vmatpush1.bf16.msra.mxu0 0
    %997 = vmatprep.subr.bf16.mxu0 0
    %998 = vmatpush1.bf16.msra.mxu0 0
    %999 = vmatprep.subr.bf16.mxu0 0
    %1000 = vmatpush1.bf16.msra.mxu0 0
    %1001 = vmatprep.subr.bf16.mxu0 0
    %1002 = vmatpush1.bf16.msra.mxu0 0
    %1003 = vmatprep.subr.bf16.mxu0 0
    %1004 = vmatpush1.bf16.msra.mxu0 0
    %1005 = vmatprep.subr.bf16.mxu0 0
    %1006 = vmatpush1.bf16.msra.mxu0 0
    %1007 = vmatprep.subr.bf16.mxu0 0
    %1008 = vmatpush1.bf16.msra.mxu0 0
    %1009 = vmatprep.subr.bf16.mxu0 0
    %1010 = vmatpush1.bf16.msra.mxu0 0
    %1011 = vmatprep.subr.bf16.mxu0 0
    %1012 = vmatpush1.bf16.msra.mxu0 0
    %1013 = vmatprep.mubr.bf16.mxu0 0
    %1014 = vmatmul.mubr.bf16.gmra.mrb[0].mxu0 %v746
    %v1015 = vpop.f32.mrb[0].mxu0
    %v1016 = vadd.f32 %v138, %v1015
    %v1017 = vpop.f32.mrb[0].mxu0
    %v1018 = vadd.f32 %v142, %v1017
    %v1019 = vpop.f32.mrb[0].mxu0
    %v1020 = vpop.f32.mrb[0].mxu0
    %1021 = vdwg.mxu0
    %1022 = vmatprep.subr.bf16.mxu0 %v601
    %1023 = vmatpush1.bf16.msra.mxu0 %v600
    %1024 = vmatprep.subr.bf16.mxu0 %v771
    %1025 = vmatpush1.bf16.msra.mxu0 %v768
    %1026 = vmatprep.subr.bf16.mxu0 0
    %1027 = vmatpush1.bf16.msra.mxu0 0
    %1028 = vmatprep.subr.bf16.mxu0 0
    %1029 = vmatpush1.bf16.msra.mxu0 0
    %1030 = vmatprep.subr.bf16.mxu0 0
    %1031 = vmatpush1.bf16.msra.mxu0 0
    %1032 = vmatprep.subr.bf16.mxu0 0
    %1033 = vmatpush1.bf16.msra.mxu0 0
    %1034 = vmatprep.subr.bf16.mxu0 0
    %1035 = vmatpush1.bf16.msra.mxu0 0
    %1036 = vmatprep.subr.bf16.mxu0 0
    %1037 = vmatpush1.bf16.msra.mxu0 0
    %1038 = vmatprep.subr.bf16.mxu0 0
    %1039 = vmatpush1.bf16.msra.mxu0 0
    %1040 = vmatprep.subr.bf16.mxu0 0
    %1041 = vmatpush1.bf16.msra.mxu0 0
    %1042 = vmatprep.subr.bf16.mxu0 0
    %1043 = vmatpush1.bf16.msra.mxu0 0
    %1044 = vmatprep.subr.bf16.mxu0 0
    %1045 = vmatpush1.bf16.msra.mxu0 0
    %1046 = vmatprep.subr.bf16.mxu0 0
    %1047 = vmatpush1.bf16.msra.mxu0 0
    %1048 = vmatprep.subr.bf16.mxu0 0
    %1049 = vmatpush1.bf16.msra.mxu0 0
    %1050 = vmatprep.subr.bf16.mxu0 0
    %1051 = vmatpush1.bf16.msra.mxu0 0
    %1052 = vmatprep.subr.bf16.mxu0 0
    %1053 = vmatpush1.bf16.msra.mxu0 0
    %1054 = vmatprep.mubr.bf16.mxu0 0
    %1055 = vmatmul.mubr.bf16.gmra.mrb[0].mxu0 %v746
    %v1056 = vpop.f32.mrb[0].mxu0
    %v1057 = vadd.f32 %v146, %v1056
    %v1058 = vpop.f32.mrb[0].mxu0
    %v1059 = vadd.f32 %v150, %v1058
    %v1060 = vpop.f32.mrb[0].mxu0
    %v1061 = vpop.f32.mrb[0].mxu0
    %1062 = vdwg.mxu0
    %1063 = vmatprep.subr.bf16.mxu0 %v603
    %1064 = vmatpush1.bf16.msra.mxu0 %v602
    %1065 = vmatprep.subr.bf16.mxu0 %v777
    %1066 = vmatpush1.bf16.msra.mxu0 %v774
    %1067 = vmatprep.subr.bf16.mxu0 0
    %1068 = vmatpush1.bf16.msra.mxu0 0
    %1069 = vmatprep.subr.bf16.mxu0 0
    %1070 = vmatpush1.bf16.msra.mxu0 0
    %1071 = vmatprep.subr.bf16.mxu0 0
    %1072 = vmatpush1.bf16.msra.mxu0 0
    %1073 = vmatprep.subr.bf16.mxu0 0
    %1074 = vmatpush1.bf16.msra.mxu0 0
    %1075 = vmatprep.subr.bf16.mxu0 0
    %1076 = vmatpush1.bf16.msra.mxu0 0
    %1077 = vmatprep.subr.bf16.mxu0 0
    %1078 = vmatpush1.bf16.msra.mxu0 0
    %1079 = vmatprep.subr.bf16.mxu0 0
    %1080 = vmatpush1.bf16.msra.mxu0 0
    %1081 = vmatprep.subr.bf16.mxu0 0
    %1082 = vmatpush1.bf16.msra.mxu0 0
    %1083 = vmatprep.subr.bf16.mxu0 0
    %1084 = vmatpush1.bf16.msra.mxu0 0
    %1085 = vmatprep.subr.bf16.mxu0 0
    %1086 = vmatpush1.bf16.msra.mxu0 0
    %1087 = vmatprep.subr.bf16.mxu0 0
    %1088 = vmatpush1.bf16.msra.mxu0 0
    %1089 = vmatprep.subr.bf16.mxu0 0
    %1090 = vmatpush1.bf16.msra.mxu0 0
    %1091 = vmatprep.subr.bf16.mxu0 0
    %1092 = vmatpush1.bf16.msra.mxu0 0
    %1093 = vmatprep.subr.bf16.mxu0 0
    %1094 = vmatpush1.bf16.msra.mxu0 0
    %1095 = vmatprep.mubr.bf16.mxu0 0
    %1096 = vmatmul.mubr.bf16.gmra.mrb[0].mxu0 %v746
    %v1097 = vpop.f32.mrb[0].mxu0
    %v1098 = vadd.f32 %v154, %v1097
    %v1099 = vpop.f32.mrb[0].mxu0
    %v1100 = vadd.f32 %v158, %v1099
    %v1101 = vpop.f32.mrb[0].mxu0
    %v1102 = vpop.f32.mrb[0].mxu0
    %1103 = vdwg.mxu0
    %1104 = vmatprep.subr.bf16.mxu0 %v605
    %1105 = vmatpush1.bf16.msra.mxu0 %v604
    %1106 = vmatprep.subr.bf16.mxu0 %v783
    %1107 = vmatpush1.bf16.msra.mxu0 %v780
    %1108 = vmatprep.subr.bf16.mxu0 0
    %1109 = vmatpush1.bf16.msra.mxu0 0
    %1110 = vmatprep.subr.bf16.mxu0 0
    %1111 = vmatpush1.bf16.msra.mxu0 0
    %1112 = vmatprep.subr.bf16.mxu0 0
    %1113 = vmatpush1.bf16.msra.mxu0 0
    %1114 = vmatprep.subr.bf16.mxu0 0
    %1115 = vmatpush1.bf16.msra.mxu0 0
    %1116 = vmatprep.subr.bf16.mxu0 0
    %1117 = vmatpush1.bf16.msra.mxu0 0
    %1118 = vmatprep.subr.bf16.mxu0 0
    %1119 = vmatpush1.bf16.msra.mxu0 0
    %1120 = vmatprep.subr.bf16.mxu0 0
    %1121 = vmatpush1.bf16.msra.mxu0 0
    %1122 = vmatprep.subr.bf16.mxu0 0
    %1123 = vmatpush1.bf16.msra.mxu0 0
    %1124 = vmatprep.subr.bf16.mxu0 0
    %1125 = vmatpush1.bf16.msra.mxu0 0
    %1126 = vmatprep.subr.bf16.mxu0 0
    %1127 = vmatpush1.bf16.msra.mxu0 0
    %1128 = vmatprep.subr.bf16.mxu0 0
    %1129 = vmatpush1.bf16.msra.mxu0 0
    %1130 = vmatprep.subr.bf16.mxu0 0
    %1131 = vmatpush1.bf16.msra.mxu0 0
    %1132 = vmatprep.subr.bf16.mxu0 0
    %1133 = vmatpush1.bf16.msra.mxu0 0
    %1134 = vmatprep.subr.bf16.mxu0 0
    %1135 = vmatpush1.bf16.msra.mxu0 0
    %1136 = vmatprep.mubr.bf16.mxu0 0
    %1137 = vmatmul.mubr.bf16.gmra.mrb[0].mxu0 %v746
    %v1138 = vpop.f32.mrb[0].mxu0
    %v1139 = vadd.f32 %v162, %v1138
    %v1140 = vpop.f32.mrb[0].mxu0
    %v1141 = vadd.f32 %v166, %v1140
    %v1142 = vpop.f32.mrb[0].mxu0
    %v1143 = vpop.f32.mrb[0].mxu0
    %1144 = vdwg.mxu0
    %1145 = vmatprep.subr.bf16.mxu0 %v607
    %1146 = vmatpush1.bf16.msra.mxu0 %v606
    %1147 = vmatprep.subr.bf16.mxu0 %v789
    %1148 = vmatpush1.bf16.msra.mxu0 %v786
    %1149 = vmatprep.subr.bf16.mxu0 0
    %1150 = vmatpush1.bf16.msra.mxu0 0
    %1151 = vmatprep.subr.bf16.mxu0 0
    %1152 = vmatpush1.bf16.msra.mxu0 0
    %1153 = vmatprep.subr.bf16.mxu0 0
    %1154 = vmatpush1.bf16.msra.mxu0 0
    %1155 = vmatprep.subr.bf16.mxu0 0
    %1156 = vmatpush1.bf16.msra.mxu0 0
    %1157 = vmatprep.subr.bf16.mxu0 0
    %1158 = vmatpush1.bf16.msra.mxu0 0
    %1159 = vmatprep.subr.bf16.mxu0 0
    %1160 = vmatpush1.bf16.msra.mxu0 0
    %1161 = vmatprep.subr.bf16.mxu0 0
    %1162 = vmatpush1.bf16.msra.mxu0 0
    %1163 = vmatprep.subr.bf16.mxu0 0
    %1164 = vmatpush1.bf16.msra.mxu0 0
    %1165 = vmatprep.subr.bf16.mxu0 0
    %1166 = vmatpush1.bf16.msra.mxu0 0
    %1167 = vmatprep.subr.bf16.mxu0 0
    %1168 = vmatpush1.bf16.msra.mxu0 0
    %1169 = vmatprep.subr.bf16.mxu0 0
    %1170 = vmatpush1.bf16.msra.mxu0 0
    %1171 = vmatprep.subr.bf16.mxu0 0
    %1172 = vmatpush1.bf16.msra.mxu0 0
    %1173 = vmatprep.subr.bf16.mxu0 0
    %1174 = vmatpush1.bf16.msra.mxu0 0
    %1175 = vmatprep.subr.bf16.mxu0 0
    %1176 = vmatpush1.bf16.msra.mxu0 0
    %1177 = vmatprep.mubr.bf16.mxu0 0
    %1178 = vmatmul.mubr.bf16.gmra.mrb[0].mxu0 %v746
    %v1179 = vpop.f32.mrb[0].mxu0
    %v1180 = vadd.f32 %v170, %v1179
    %v1181 = vpop.f32.mrb[0].mxu0
    %v1182 = vadd.f32 %v174, %v1181
    %v1183 = vpop.f32.mrb[0].mxu0
    %v1184 = vpop.f32.mrb[0].mxu0
    %1185 = vdwg.mxu0
    %1186 = vmatprep.subr.bf16.mxu0 %v609
    %1187 = vmatpush1.bf16.msra.mxu0 %v608
    %1188 = vmatprep.subr.bf16.mxu0 %v795
    %1189 = vmatpush1.bf16.msra.mxu0 %v792
    %1190 = vmatprep.subr.bf16.mxu0 0
    %1191 = vmatpush1.bf16.msra.mxu0 0
    %1192 = vmatprep.subr.bf16.mxu0 0
    %1193 = vmatpush1.bf16.msra.mxu0 0
    %1194 = vmatprep.subr.bf16.mxu0 0
    %1195 = vmatpush1.bf16.msra.mxu0 0
    %1196 = vmatprep.subr.bf16.mxu0 0
    %1197 = vmatpush1.bf16.msra.mxu0 0
    %1198 = vmatprep.subr.bf16.mxu0 0
    %1199 = vmatpush1.bf16.msra.mxu0 0
    %1200 = vmatprep.subr.bf16.mxu0 0
    %1201 = vmatpush1.bf16.msra.mxu0 0
    %1202 = vmatprep.subr.bf16.mxu0 0
    %1203 = vmatpush1.bf16.msra.mxu0 0
    %1204 = vmatprep.subr.bf16.mxu0 0
    %1205 = vmatpush1.bf16.msra.mxu0 0
    %1206 = vmatprep.subr.bf16.mxu0 0
    %1207 = vmatpush1.bf16.msra.mxu0 0
    %1208 = vmatprep.subr.bf16.mxu0 0
    %1209 = vmatpush1.bf16.msra.mxu0 0
    %1210 = vmatprep.subr.bf16.mxu0 0
    %1211 = vmatpush1.bf16.msra.mxu0 0
    %1212 = vmatprep.subr.bf16.mxu0 0
    %1213 = vmatpush1.bf16.msra.mxu0 0
    %1214 = vmatprep.subr.bf16.mxu0 0
    %1215 = vmatpush1.bf16.msra.mxu0 0
    %1216 = vmatprep.subr.bf16.mxu0 0
    %1217 = vmatpush1.bf16.msra.mxu0 0
    %1218 = vmatprep.mubr.bf16.mxu0 0
    %1219 = vmatmul.mubr.bf16.gmra.mrb[0].mxu0 %v746
    %v1220 = vpop.f32.mrb[0].mxu0
    %v1221 = vadd.f32 %v178, %v1220
    %v1222 = vpop.f32.mrb[0].mxu0
    %v1223 = vadd.f32 %v182, %v1222
    %v1224 = vpop.f32.mrb[0].mxu0
    %v1225 = vpop.f32.mrb[0].mxu0
    %1226 = vdwg.mxu0
    %1227 = vmatprep.subr.bf16.mxu0 %v611
    %1228 = vmatpush1.bf16.msra.mxu0 %v610
    %1229 = vmatprep.subr.bf16.mxu0 %v801
    %1230 = vmatpush1.bf16.msra.mxu0 %v798
    %1231 = vmatprep.subr.bf16.mxu0 0
    %1232 = vmatpush1.bf16.msra.mxu0 0
    %1233 = vmatprep.subr.bf16.mxu0 0
    %1234 = vmatpush1.bf16.msra.mxu0 0
    %1235 = vmatprep.subr.bf16.mxu0 0
    %1236 = vmatpush1.bf16.msra.mxu0 0
    %1237 = vmatprep.subr.bf16.mxu0 0
    %1238 = vmatpush1.bf16.msra.mxu0 0
    %1239 = vmatprep.subr.bf16.mxu0 0
    %1240 = vmatpush1.bf16.msra.mxu0 0
    %1241 = vmatprep.subr.bf16.mxu0 0
    %1242 = vmatpush1.bf16.msra.mxu0 0
    %1243 = vmatprep.subr.bf16.mxu0 0
    %1244 = vmatpush1.bf16.msra.mxu0 0
    %1245 = vmatprep.subr.bf16.mxu0 0
    %1246 = vmatpush1.bf16.msra.mxu0 0
    %1247 = vmatprep.subr.bf16.mxu0 0
    %1248 = vmatpush1.bf16.msra.mxu0 0
    %1249 = vmatprep.subr.bf16.mxu0 0
    %1250 = vmatpush1.bf16.msra.mxu0 0
    %1251 = vmatprep.subr.bf16.mxu0 0
    %1252 = vmatpush1.bf16.msra.mxu0 0
    %1253 = vmatprep.subr.bf16.mxu0 0
    %1254 = vmatpush1.bf16.msra.mxu0 0
    %1255 = vmatprep.subr.bf16.mxu0 0
    %1256 = vmatpush1.bf16.msra.mxu0 0
    %1257 = vmatprep.subr.bf16.mxu0 0
    %1258 = vmatpush1.bf16.msra.mxu0 0
    %1259 = vmatprep.mubr.bf16.mxu0 0
    %1260 = vmatmul.mubr.bf16.gmra.mrb[0].mxu0 %v746
    %v1261 = vpop.f32.mrb[0].mxu0
    %v1262 = vadd.f32 %v186, %v1261
    %v1263 = vpop.f32.mrb[0].mxu0
    %v1264 = vadd.f32 %v190, %v1263
    %v1265 = vpop.f32.mrb[0].mxu0
    %v1266 = vpop.f32.mrb[0].mxu0
    %1267 = vdwg.mxu0
    %1268 = vmatprep.subr.bf16.mxu0 %v613
    %1269 = vmatpush1.bf16.msra.mxu0 %v612
    %1270 = vmatprep.subr.bf16.mxu0 %v807
    %1271 = vmatpush1.bf16.msra.mxu0 %v804
    %1272 = vmatprep.subr.bf16.mxu0 0
    %1273 = vmatpush1.bf16.msra.mxu0 0
    %1274 = vmatprep.subr.bf16.mxu0 0
    %1275 = vmatpush1.bf16.msra.mxu0 0
    %1276 = vmatprep.subr.bf16.mxu0 0
    %1277 = vmatpush1.bf16.msra.mxu0 0
    %1278 = vmatprep.subr.bf16.mxu0 0
    %1279 = vmatpush1.bf16.msra.mxu0 0
    %1280 = vmatprep.subr.bf16.mxu0 0
    %1281 = vmatpush1.bf16.msra.mxu0 0
    %1282 = vmatprep.subr.bf16.mxu0 0
    %1283 = vmatpush1.bf16.msra.mxu0 0
    %1284 = vmatprep.subr.bf16.mxu0 0
    %1285 = vmatpush1.bf16.msra.mxu0 0
    %1286 = vmatprep.subr.bf16.mxu0 0
    %1287 = vmatpush1.bf16.msra.mxu0 0
    %1288 = vmatprep.subr.bf16.mxu0 0
    %1289 = vmatpush1.bf16.msra.mxu0 0
    %1290 = vmatprep.subr.bf16.mxu0 0
    %1291 = vmatpush1.bf16.msra.mxu0 0
    %1292 = vmatprep.subr.bf16.mxu0 0
    %1293 = vmatpush1.bf16.msra.mxu0 0
    %1294 = vmatprep.subr.bf16.mxu0 0
    %1295 = vmatpush1.bf16.msra.mxu0 0
    %1296 = vmatprep.subr.bf16.mxu0 0
    %1297 = vmatpush1.bf16.msra.mxu0 0
    %1298 = vmatprep.subr.bf16.mxu0 0
    %1299 = vmatpush1.bf16.msra.mxu0 0
    %1300 = vmatprep.mubr.bf16.mxu0 0
    %1301 = vmatmul.mubr.bf16.gmra.mrb[0].mxu0 %v746
    %v1302 = vpop.f32.mrb[0].mxu0
    %v1303 = vadd.f32 %v194, %v1302
    %v1304 = vpop.f32.mrb[0].mxu0
    %v1305 = vadd.f32 %v198, %v1304
    %v1306 = vpop.f32.mrb[0].mxu0
    %v1307 = vpop.f32.mrb[0].mxu0
    %1308 = vdwg.mxu0
    %1309 = vmatprep.subr.bf16.mxu0 %v615
    %1310 = vmatpush1.bf16.msra.mxu0 %v614
    %1311 = vmatprep.subr.bf16.mxu0 %v813
    %1312 = vmatpush1.bf16.msra.mxu0 %v810
    %1313 = vmatprep.subr.bf16.mxu0 0
    %1314 = vmatpush1.bf16.msra.mxu0 0
    %1315 = vmatprep.subr.bf16.mxu0 0
    %1316 = vmatpush1.bf16.msra.mxu0 0
    %1317 = vmatprep.subr.bf16.mxu0 0
    %1318 = vmatpush1.bf16.msra.mxu0 0
    %1319 = vmatprep.subr.bf16.mxu0 0
    %1320 = vmatpush1.bf16.msra.mxu0 0
    %1321 = vmatprep.subr.bf16.mxu0 0
    %1322 = vmatpush1.bf16.msra.mxu0 0
    %1323 = vmatprep.subr.bf16.mxu0 0
    %1324 = vmatpush1.bf16.msra.mxu0 0
    %1325 = vmatprep.subr.bf16.mxu0 0
    %1326 = vmatpush1.bf16.msra.mxu0 0
    %1327 = vmatprep.subr.bf16.mxu0 0
    %1328 = vmatpush1.bf16.msra.mxu0 0
    %1329 = vmatprep.subr.bf16.mxu0 0
    %1330 = vmatpush1.bf16.msra.mxu0 0
    %1331 = vmatprep.subr.bf16.mxu0 0
    %1332 = vmatpush1.bf16.msra.mxu0 0
    %1333 = vmatprep.subr.bf16.mxu0 0
    %1334 = vmatpush1.bf16.msra.mxu0 0
    %1335 = vmatprep.subr.bf16.mxu0 0
    %1336 = vmatpush1.bf16.msra.mxu0 0
    %1337 = vmatprep.subr.bf16.mxu0 0
    %1338 = vmatpush1.bf16.msra.mxu0 0
    %1339 = vmatprep.subr.bf16.mxu0 0
    %1340 = vmatpush1.bf16.msra.mxu0 0
    %1341 = vmatprep.mubr.bf16.mxu0 0
    %1342 = vmatmul.mubr.bf16.gmra.mrb[0].mxu0 %v746
    %v1343 = vpop.f32.mrb[0].mxu0
    %v1344 = vadd.f32 %v202, %v1343
    %v1345 = vpop.f32.mrb[0].mxu0
    %v1346 = vadd.f32 %v206, %v1345
    %v1347 = vpop.f32.mrb[0].mxu0
    %v1348 = vpop.f32.mrb[0].mxu0
    %1349 = vdwg.mxu0
    %1350 = vmatprep.subr.bf16.mxu0 %v617
    %1351 = vmatpush1.bf16.msra.mxu0 %v616
    %1352 = vmatprep.subr.bf16.mxu0 %v819
    %1353 = vmatpush1.bf16.msra.mxu0 %v816
    %1354 = vmatprep.subr.bf16.mxu0 0
    %1355 = vmatpush1.bf16.msra.mxu0 0
    %1356 = vmatprep.subr.bf16.mxu0 0
    %1357 = vmatpush1.bf16.msra.mxu0 0
    %1358 = vmatprep.subr.bf16.mxu0 0
    %1359 = vmatpush1.bf16.msra.mxu0 0
    %1360 = vmatprep.subr.bf16.mxu0 0
    %1361 = vmatpush1.bf16.msra.mxu0 0
    %1362 = vmatprep.subr.bf16.mxu0 0
    %1363 = vmatpush1.bf16.msra.mxu0 0
    %1364 = vmatprep.subr.bf16.mxu0 0
    %1365 = vmatpush1.bf16.msra.mxu0 0
    %1366 = vmatprep.subr.bf16.mxu0 0
    %1367 = vmatpush1.bf16.msra.mxu0 0
    %1368 = vmatprep.subr.bf16.mxu0 0
    %1369 = vmatpush1.bf16.msra.mxu0 0
    %1370 = vmatprep.subr.bf16.mxu0 0
    %1371 = vmatpush1.bf16.msra.mxu0 0
    %1372 = vmatprep.subr.bf16.mxu0 0
    %1373 = vmatpush1.bf16.msra.mxu0 0
    %1374 = vmatprep.subr.bf16.mxu0 0
    %1375 = vmatpush1.bf16.msra.mxu0 0
    %1376 = vmatprep.subr.bf16.mxu0 0
    %1377 = vmatpush1.bf16.msra.mxu0 0
    %1378 = vmatprep.subr.bf16.mxu0 0
    %1379 = vmatpush1.bf16.msra.mxu0 0
    %1380 = vmatprep.subr.bf16.mxu0 0
    %1381 = vmatpush1.bf16.msra.mxu0 0
    %1382 = vmatprep.mubr.bf16.mxu0 0
    %1383 = vmatmul.mubr.bf16.gmra.mrb[0].mxu0 %v746
    %v1384 = vpop.f32.mrb[0].mxu0
    %v1385 = vadd.f32 %v210, %v1384
    %v1386 = vpop.f32.mrb[0].mxu0
    %v1387 = vadd.f32 %v214, %v1386
    %v1388 = vpop.f32.mrb[0].mxu0
    %v1389 = vpop.f32.mrb[0].mxu0
    %1390 = vdwg.mxu0
    %1391 = vmatprep.subr.bf16.mxu0 %v619
    %1392 = vmatpush1.bf16.msra.mxu0 %v618
    %1393 = vmatprep.subr.bf16.mxu0 %v825
    %1394 = vmatpush1.bf16.msra.mxu0 %v822
    %1395 = vmatprep.subr.bf16.mxu0 0
    %1396 = vmatpush1.bf16.msra.mxu0 0
    %1397 = vmatprep.subr.bf16.mxu0 0
    %1398 = vmatpush1.bf16.msra.mxu0 0
    %1399 = vmatprep.subr.bf16.mxu0 0
    %1400 = vmatpush1.bf16.msra.mxu0 0
    %1401 = vmatprep.subr.bf16.mxu0 0
    %1402 = vmatpush1.bf16.msra.mxu0 0
    %1403 = vmatprep.subr.bf16.mxu0 0
    %1404 = vmatpush1.bf16.msra.mxu0 0
    %1405 = vmatprep.subr.bf16.mxu0 0
    %1406 = vmatpush1.bf16.msra.mxu0 0
    %1407 = vmatprep.subr.bf16.mxu0 0
    %1408 = vmatpush1.bf16.msra.mxu0 0
    %1409 = vmatprep.subr.bf16.mxu0 0
    %1410 = vmatpush1.bf16.msra.mxu0 0
    %1411 = vmatprep.subr.bf16.mxu0 0
    %1412 = vmatpush1.bf16.msra.mxu0 0
    %1413 = vmatprep.subr.bf16.mxu0 0
    %1414 = vmatpush1.bf16.msra.mxu0 0
    %1415 = vmatprep.subr.bf16.mxu0 0
    %1416 = vmatpush1.bf16.msra.mxu0 0
    %1417 = vmatprep.subr.bf16.mxu0 0
    %1418 = vmatpush1.bf16.msra.mxu0 0
    %1419 = vmatprep.subr.bf16.mxu0 0
    %1420 = vmatpush1.bf16.msra.mxu0 0
    %1421 = vmatprep.subr.bf16.mxu0 0
    %1422 = vmatpush1.bf16.msra.mxu0 0
    %1423 = vmatprep.mubr.bf16.mxu0 0
    %1424 = vmatmul.mubr.bf16.gmra.mrb[0].mxu0 %v746
    %v1425 = vpop.f32.mrb[0].mxu0
    %v1426 = vadd.f32 %v218, %v1425
    %v1427 = vpop.f32.mrb[0].mxu0
    %v1428 = vadd.f32 %v222, %v1427
    %v1429 = vpop.f32.mrb[0].mxu0
    %v1430 = vpop.f32.mrb[0].mxu0
    %1431 = vdwg.mxu0
    %1432 = vmatprep.subr.bf16.mxu0 %v621
    %1433 = vmatpush1.bf16.msra.mxu0 %v620
    %1434 = vmatprep.subr.bf16.mxu0 %v831
    %1435 = vmatpush1.bf16.msra.mxu0 %v828
    %1436 = vmatprep.subr.bf16.mxu0 0
    %1437 = vmatpush1.bf16.msra.mxu0 0
    %1438 = vmatprep.subr.bf16.mxu0 0
    %1439 = vmatpush1.bf16.msra.mxu0 0
    %1440 = vmatprep.subr.bf16.mxu0 0
    %1441 = vmatpush1.bf16.msra.mxu0 0
    %1442 = vmatprep.subr.bf16.mxu0 0
    %1443 = vmatpush1.bf16.msra.mxu0 0
    %1444 = vmatprep.subr.bf16.mxu0 0
    %1445 = vmatpush1.bf16.msra.mxu0 0
    %1446 = vmatprep.subr.bf16.mxu0 0
    %1447 = vmatpush1.bf16.msra.mxu0 0
    %1448 = vmatprep.subr.bf16.mxu0 0
    %1449 = vmatpush1.bf16.msra.mxu0 0
    %1450 = vmatprep.subr.bf16.mxu0 0
    %1451 = vmatpush1.bf16.msra.mxu0 0
    %1452 = vmatprep.subr.bf16.mxu0 0
    %1453 = vmatpush1.bf16.msra.mxu0 0
    %1454 = vmatprep.subr.bf16.mxu0 0
    %1455 = vmatpush1.bf16.msra.mxu0 0
    %1456 = vmatprep.subr.bf16.mxu0 0
    %1457 = vmatpush1.bf16.msra.mxu0 0
    %1458 = vmatprep.subr.bf16.mxu0 0
    %1459 = vmatpush1.bf16.msra.mxu0 0
    %1460 = vmatprep.subr.bf16.mxu0 0
    %1461 = vmatpush1.bf16.msra.mxu0 0
    %1462 = vmatprep.subr.bf16.mxu0 0
    %1463 = vmatpush1.bf16.msra.mxu0 0
    %1464 = vmatprep.mubr.bf16.mxu0 0
    %1465 = vmatmul.mubr.bf16.gmra.mrb[0].mxu0 %v746
    %v1466 = vpop.f32.mrb[0].mxu0
    %v1467 = vadd.f32 %v226, %v1466
    %v1468 = vpop.f32.mrb[0].mxu0
    %v1469 = vadd.f32 %v230, %v1468
    %v1470 = vpop.f32.mrb[0].mxu0
    %v1471 = vpop.f32.mrb[0].mxu0
    %1472 = vdwg.mxu0
    %1473 = vmatprep.subr.bf16.mxu0 %v623
    %1474 = vmatpush1.bf16.msra.mxu0 %v622
    %1475 = vmatprep.subr.bf16.mxu0 %v837
    %1476 = vmatpush1.bf16.msra.mxu0 %v834
    %1477 = vmatprep.subr.bf16.mxu0 0
    %1478 = vmatpush1.bf16.msra.mxu0 0
    %1479 = vmatprep.subr.bf16.mxu0 0
    %1480 = vmatpush1.bf16.msra.mxu0 0
    %1481 = vmatprep.subr.bf16.mxu0 0
    %1482 = vmatpush1.bf16.msra.mxu0 0
    %1483 = vmatprep.subr.bf16.mxu0 0
    %1484 = vmatpush1.bf16.msra.mxu0 0
    %1485 = vmatprep.subr.bf16.mxu0 0
    %1486 = vmatpush1.bf16.msra.mxu0 0
    %1487 = vmatprep.subr.bf16.mxu0 0
    %1488 = vmatpush1.bf16.msra.mxu0 0
    %1489 = vmatprep.subr.bf16.mxu0 0
    %1490 = vmatpush1.bf16.msra.mxu0 0
    %1491 = vmatprep.subr.bf16.mxu0 0
    %1492 = vmatpush1.bf16.msra.mxu0 0
    %1493 = vmatprep.subr.bf16.mxu0 0
    %1494 = vmatpush1.bf16.msra.mxu0 0
    %1495 = vmatprep.subr.bf16.mxu0 0
    %1496 = vmatpush1.bf16.msra.mxu0 0
    %1497 = vmatprep.subr.bf16.mxu0 0
    %1498 = vmatpush1.bf16.msra.mxu0 0
    %1499 = vmatprep.subr.bf16.mxu0 0
    %1500 = vmatpush1.bf16.msra.mxu0 0
    %1501 = vmatprep.subr.bf16.mxu0 0
    %1502 = vmatpush1.bf16.msra.mxu0 0
    %1503 = vmatprep.subr.bf16.mxu0 0
    %1504 = vmatpush1.bf16.msra.mxu0 0
    %1505 = vmatprep.mubr.bf16.mxu0 0
    %1506 = vmatmul.mubr.bf16.gmra.mrb[0].mxu0 %v746
    %v1507 = vpop.f32.mrb[0].mxu0
    %v1508 = vadd.f32 %v234, %v1507
    %v1509 = vpop.f32.mrb[0].mxu0
    %v1510 = vadd.f32 %v238, %v1509
    %v1511 = vpop.f32.mrb[0].mxu0
    %v1512 = vpop.f32.mrb[0].mxu0
    %1513 = vdwg.mxu0
    %1514 = vmatprep.subr.bf16.mxu0 %v625
    %1515 = vmatpush1.bf16.msra.mxu0 %v624
    %1516 = vmatprep.subr.bf16.mxu0 %v843
    %1517 = vmatpush1.bf16.msra.mxu0 %v840
    %1518 = vmatprep.subr.bf16.mxu0 0
    %1519 = vmatpush1.bf16.msra.mxu0 0
    %1520 = vmatprep.subr.bf16.mxu0 0
    %1521 = vmatpush1.bf16.msra.mxu0 0
    %1522 = vmatprep.subr.bf16.mxu0 0
    %1523 = vmatpush1.bf16.msra.mxu0 0
    %1524 = vmatprep.subr.bf16.mxu0 0
    %1525 = vmatpush1.bf16.msra.mxu0 0
    %1526 = vmatprep.subr.bf16.mxu0 0
    %1527 = vmatpush1.bf16.msra.mxu0 0
    %1528 = vmatprep.subr.bf16.mxu0 0
    %1529 = vmatpush1.bf16.msra.mxu0 0
    %1530 = vmatprep.subr.bf16.mxu0 0
    %1531 = vmatpush1.bf16.msra.mxu0 0
    %1532 = vmatprep.subr.bf16.mxu0 0
    %1533 = vmatpush1.bf16.msra.mxu0 0
    %1534 = vmatprep.subr.bf16.mxu0 0
    %1535 = vmatpush1.bf16.msra.mxu0 0
    %1536 = vmatprep.subr.bf16.mxu0 0
    %1537 = vmatpush1.bf16.msra.mxu0 0
    %1538 = vmatprep.subr.bf16.mxu0 0
    %1539 = vmatpush1.bf16.msra.mxu0 0
    %1540 = vmatprep.subr.bf16.mxu0 0
    %1541 = vmatpush1.bf16.msra.mxu0 0
    %1542 = vmatprep.subr.bf16.mxu0 0
    %1543 = vmatpush1.bf16.msra.mxu0 0
    %1544 = vmatprep.subr.bf16.mxu0 0
    %1545 = vmatpush1.bf16.msra.mxu0 0
    %1546 = vmatprep.mubr.bf16.mxu0 0
    %1547 = vmatmul.mubr.bf16.gmra.mrb[0].mxu0 %v746
    %v1548 = vpop.f32.mrb[0].mxu0
    %v1549 = vadd.f32 %v242, %v1548
    %v1550 = vpop.f32.mrb[0].mxu0
    %v1551 = vadd.f32 %v246, %v1550
    %v1552 = vpop.f32.mrb[0].mxu0
    %v1553 = vpop.f32.mrb[0].mxu0
    %1554 = vdwg.mxu0
    %1555 = vmatprep.subr.bf16.mxu0 %v627
    %1556 = vmatpush1.bf16.msra.mxu0 %v626
    %1557 = vmatprep.subr.bf16.mxu0 %v849
    %1558 = vmatpush1.bf16.msra.mxu0 %v846
    %1559 = vmatprep.subr.bf16.mxu0 0
    %1560 = vmatpush1.bf16.msra.mxu0 0
    %1561 = vmatprep.subr.bf16.mxu0 0
    %1562 = vmatpush1.bf16.msra.mxu0 0
    %1563 = vmatprep.subr.bf16.mxu0 0
    %1564 = vmatpush1.bf16.msra.mxu0 0
    %1565 = vmatprep.subr.bf16.mxu0 0
    %1566 = vmatpush1.bf16.msra.mxu0 0
    %1567 = vmatprep.subr.bf16.mxu0 0
    %1568 = vmatpush1.bf16.msra.mxu0 0
    %1569 = vmatprep.subr.bf16.mxu0 0
    %1570 = vmatpush1.bf16.msra.mxu0 0
    %1571 = vmatprep.subr.bf16.mxu0 0
    %1572 = vmatpush1.bf16.msra.mxu0 0
    %1573 = vmatprep.subr.bf16.mxu0 0
    %1574 = vmatpush1.bf16.msra.mxu0 0
    %1575 = vmatprep.subr.bf16.mxu0 0
    %1576 = vmatpush1.bf16.msra.mxu0 0
    %1577 = vmatprep.subr.bf16.mxu0 0
    %1578 = vmatpush1.bf16.msra.mxu0 0
    %1579 = vmatprep.subr.bf16.mxu0 0
    %1580 = vmatpush1.bf16.msra.mxu0 0
    %1581 = vmatprep.subr.bf16.mxu0 0
    %1582 = vmatpush1.bf16.msra.mxu0 0
    %1583 = vmatprep.subr.bf16.mxu0 0
    %1584 = vmatpush1.bf16.msra.mxu0 0
    %1585 = vmatprep.subr.bf16.mxu0 0
    %1586 = vmatpush1.bf16.msra.mxu0 0
    %1587 = vmatprep.mubr.bf16.mxu0 0
    %1588 = vmatmul.mubr.bf16.gmra.mrb[0].mxu0 %v746
    %v1589 = vpop.f32.mrb[0].mxu0
    %v1590 = vadd.f32 %v250, %v1589
    %v1591 = vpop.f32.mrb[0].mxu0
    %v1592 = vadd.f32 %v254, %v1591
    %v1593 = vpop.f32.mrb[0].mxu0
    %v1594 = vpop.f32.mrb[0].mxu0
    %1595 = vdwg.mxu0
    %1596 = vmatprep.subr.bf16.mxu0 %v629
    %1597 = vmatpush1.bf16.msra.mxu0 %v628
    %1598 = vmatprep.subr.bf16.mxu0 %v855
    %1599 = vmatpush1.bf16.msra.mxu0 %v852
    %1600 = vmatprep.subr.bf16.mxu0 0
    %1601 = vmatpush1.bf16.msra.mxu0 0
    %1602 = vmatprep.subr.bf16.mxu0 0
    %1603 = vmatpush1.bf16.msra.mxu0 0
    %1604 = vmatprep.subr.bf16.mxu0 0
    %1605 = vmatpush1.bf16.msra.mxu0 0
    %1606 = vmatprep.subr.bf16.mxu0 0
    %1607 = vmatpush1.bf16.msra.mxu0 0
    %1608 = vmatprep.subr.bf16.mxu0 0
    %1609 = vmatpush1.bf16.msra.mxu0 0
    %1610 = vmatprep.subr.bf16.mxu0 0
    %1611 = vmatpush1.bf16.msra.mxu0 0
    %1612 = vmatprep.subr.bf16.mxu0 0
    %1613 = vmatpush1.bf16.msra.mxu0 0
    %1614 = vmatprep.subr.bf16.mxu0 0
    %1615 = vmatpush1.bf16.msra.mxu0 0
    %1616 = vmatprep.subr.bf16.mxu0 0
    %1617 = vmatpush1.bf16.msra.mxu0 0
    %1618 = vmatprep.subr.bf16.mxu0 0
    %1619 = vmatpush1.bf16.msra.mxu0 0
    %1620 = vmatprep.subr.bf16.mxu0 0
    %1621 = vmatpush1.bf16.msra.mxu0 0
    %1622 = vmatprep.subr.bf16.mxu0 0
    %1623 = vmatpush1.bf16.msra.mxu0 0
    %1624 = vmatprep.subr.bf16.mxu0 0
    %1625 = vmatpush1.bf16.msra.mxu0 0
    %1626 = vmatprep.subr.bf16.mxu0 0
    %1627 = vmatpush1.bf16.msra.mxu0 0
    %1628 = vmatprep.mubr.bf16.mxu0 0
    %1629 = vmatmul.mubr.bf16.gmra.mrb[0].mxu0 %v746
    %v1630 = vpop.f32.mrb[0].mxu0
    %v1631 = vadd.f32 %v258, %v1630
    %v1632 = vpop.f32.mrb[0].mxu0
    %v1633 = vadd.f32 %v262, %v1632
    %v1634 = vpop.f32.mrb[0].mxu0
    %v1635 = vpop.f32.mrb[0].mxu0
    %1636 = vdwg.mxu0
    %1637 = vmatprep.subr.bf16.mxu0 %v631
    %1638 = vmatpush1.bf16.msra.mxu0 %v630
    %1639 = vmatprep.subr.bf16.mxu0 %v861
    %1640 = vmatpush1.bf16.msra.mxu0 %v858
    %1641 = vmatprep.subr.bf16.mxu0 0
    %1642 = vmatpush1.bf16.msra.mxu0 0
    %1643 = vmatprep.subr.bf16.mxu0 0
    %1644 = vmatpush1.bf16.msra.mxu0 0
    %1645 = vmatprep.subr.bf16.mxu0 0
    %1646 = vmatpush1.bf16.msra.mxu0 0
    %1647 = vmatprep.subr.bf16.mxu0 0
    %1648 = vmatpush1.bf16.msra.mxu0 0
    %1649 = vmatprep.subr.bf16.mxu0 0
    %1650 = vmatpush1.bf16.msra.mxu0 0
    %1651 = vmatprep.subr.bf16.mxu0 0
    %1652 = vmatpush1.bf16.msra.mxu0 0
    %1653 = vmatprep.subr.bf16.mxu0 0
    %1654 = vmatpush1.bf16.msra.mxu0 0
    %1655 = vmatprep.subr.bf16.mxu0 0
    %1656 = vmatpush1.bf16.msra.mxu0 0
    %1657 = vmatprep.subr.bf16.mxu0 0
    %1658 = vmatpush1.bf16.msra.mxu0 0
    %1659 = vmatprep.subr.bf16.mxu0 0
    %1660 = vmatpush1.bf16.msra.mxu0 0
    %1661 = vmatprep.subr.bf16.mxu0 0
    %1662 = vmatpush1.bf16.msra.mxu0 0
    %1663 = vmatprep.subr.bf16.mxu0 0
    %1664 = vmatpush1.bf16.msra.mxu0 0
    %1665 = vmatprep.subr.bf16.mxu0 0
    %1666 = vmatpush1.bf16.msra.mxu0 0
    %1667 = vmatprep.subr.bf16.mxu0 0
    %1668 = vmatpush1.bf16.msra.mxu0 0
    %1669 = vmatprep.mubr.bf16.mxu0 0
    %1670 = vmatmul.mubr.bf16.gmra.mrb[0].mxu0 %v746
    %v1671 = vpop.f32.mrb[0].mxu0
    %v1672 = vadd.f32 %v266, %v1671
    %v1673 = vpop.f32.mrb[0].mxu0
    %v1674 = vadd.f32 %v270, %v1673
    %v1675 = vpop.f32.mrb[0].mxu0
    %v1676 = vpop.f32.mrb[0].mxu0
    %1677 = vdwg.mxu0
    %1678 = vmatprep.subr.bf16.mxu0 %v633
    %1679 = vmatpush1.bf16.msra.mxu0 %v632
    %1680 = vmatprep.subr.bf16.mxu0 %v867
    %1681 = vmatpush1.bf16.msra.mxu0 %v864
    %1682 = vmatprep.subr.bf16.mxu0 0
    %1683 = vmatpush1.bf16.msra.mxu0 0
    %1684 = vmatprep.subr.bf16.mxu0 0
    %1685 = vmatpush1.bf16.msra.mxu0 0
    %1686 = vmatprep.subr.bf16.mxu0 0
    %1687 = vmatpush1.bf16.msra.mxu0 0
    %1688 = vmatprep.subr.bf16.mxu0 0
    %1689 = vmatpush1.bf16.msra.mxu0 0
    %1690 = vmatprep.subr.bf16.mxu0 0
    %1691 = vmatpush1.bf16.msra.mxu0 0
    %1692 = vmatprep.subr.bf16.mxu0 0
    %1693 = vmatpush1.bf16.msra.mxu0 0
    %1694 = vmatprep.subr.bf16.mxu0 0
    %1695 = vmatpush1.bf16.msra.mxu0 0
    %1696 = vmatprep.subr.bf16.mxu0 0
    %1697 = vmatpush1.bf16.msra.mxu0 0
    %1698 = vmatprep.subr.bf16.mxu0 0
    %1699 = vmatpush1.bf16.msra.mxu0 0
    %1700 = vmatprep.subr.bf16.mxu0 0
    %1701 = vmatpush1.bf16.msra.mxu0 0
    %1702 = vmatprep.subr.bf16.mxu0 0
    %1703 = vmatpush1.bf16.msra.mxu0 0
    %1704 = vmatprep.subr.bf16.mxu0 0
    %1705 = vmatpush1.bf16.msra.mxu0 0
    %1706 = vmatprep.subr.bf16.mxu0 0
    %1707 = vmatpush1.bf16.msra.mxu0 0
    %1708 = vmatprep.subr.bf16.mxu0 0
    %1709 = vmatpush1.bf16.msra.mxu0 0
    %1710 = vmatprep.mubr.bf16.mxu0 0
    %1711 = vmatmul.mubr.bf16.gmra.mrb[0].mxu0 %v746
    %v1712 = vpop.f32.mrb[0].mxu0
    %v1713 = vadd.f32 %v274, %v1712
    %v1714 = vpop.f32.mrb[0].mxu0
    %v1715 = vadd.f32 %v278, %v1714
    %v1716 = vpop.f32.mrb[0].mxu0
    %v1717 = vpop.f32.mrb[0].mxu0
    %1718 = vdwg.mxu0
    %1719 = vmatprep.subr.bf16.mxu0 %v635
    %1720 = vmatpush1.bf16.msra.mxu0 %v634
    %1721 = vmatprep.subr.bf16.mxu0 %v873
    %1722 = vmatpush1.bf16.msra.mxu0 %v870
    %1723 = vmatprep.subr.bf16.mxu0 0
    %1724 = vmatpush1.bf16.msra.mxu0 0
    %1725 = vmatprep.subr.bf16.mxu0 0
    %1726 = vmatpush1.bf16.msra.mxu0 0
    %1727 = vmatprep.subr.bf16.mxu0 0
    %1728 = vmatpush1.bf16.msra.mxu0 0
    %1729 = vmatprep.subr.bf16.mxu0 0
    %1730 = vmatpush1.bf16.msra.mxu0 0
    %1731 = vmatprep.subr.bf16.mxu0 0
    %1732 = vmatpush1.bf16.msra.mxu0 0
    %1733 = vmatprep.subr.bf16.mxu0 0
    %1734 = vmatpush1.bf16.msra.mxu0 0
    %1735 = vmatprep.subr.bf16.mxu0 0
    %1736 = vmatpush1.bf16.msra.mxu0 0
    %1737 = vmatprep.subr.bf16.mxu0 0
    %1738 = vmatpush1.bf16.msra.mxu0 0
    %1739 = vmatprep.subr.bf16.mxu0 0
    %1740 = vmatpush1.bf16.msra.mxu0 0
    %1741 = vmatprep.subr.bf16.mxu0 0
    %1742 = vmatpush1.bf16.msra.mxu0 0
    %1743 = vmatprep.subr.bf16.mxu0 0
    %1744 = vmatpush1.bf16.msra.mxu0 0
    %1745 = vmatprep.subr.bf16.mxu0 0
    %1746 = vmatpush1.bf16.msra.mxu0 0
    %1747 = vmatprep.subr.bf16.mxu0 0
    %1748 = vmatpush1.bf16.msra.mxu0 0
    %1749 = vmatprep.subr.bf16.mxu0 0
    %1750 = vmatpush1.bf16.msra.mxu0 0
    %1751 = vmatprep.mubr.bf16.mxu0 0
    %1752 = vmatmul.mubr.bf16.gmra.mrb[0].mxu0 %v746
    %v1753 = vpop.f32.mrb[0].mxu0
    %v1754 = vadd.f32 %v282, %v1753
    %v1755 = vpop.f32.mrb[0].mxu0
    %v1756 = vadd.f32 %v286, %v1755
    %v1757 = vpop.f32.mrb[0].mxu0
    %v1758 = vpop.f32.mrb[0].mxu0
    %1759 = vdwg.mxu0
    %1760 = vmatprep.subr.bf16.mxu0 %v637
    %1761 = vmatpush1.bf16.msra.mxu0 %v636
    %1762 = vmatprep.subr.bf16.mxu0 %v879
    %1763 = vmatpush1.bf16.msra.mxu0 %v876
    %1764 = vmatprep.subr.bf16.mxu0 0
    %1765 = vmatpush1.bf16.msra.mxu0 0
    %1766 = vmatprep.subr.bf16.mxu0 0
    %1767 = vmatpush1.bf16.msra.mxu0 0
    %1768 = vmatprep.subr.bf16.mxu0 0
    %1769 = vmatpush1.bf16.msra.mxu0 0
    %1770 = vmatprep.subr.bf16.mxu0 0
    %1771 = vmatpush1.bf16.msra.mxu0 0
    %1772 = vmatprep.subr.bf16.mxu0 0
    %1773 = vmatpush1.bf16.msra.mxu0 0
    %1774 = vmatprep.subr.bf16.mxu0 0
    %1775 = vmatpush1.bf16.msra.mxu0 0
    %1776 = vmatprep.subr.bf16.mxu0 0
    %1777 = vmatpush1.bf16.msra.mxu0 0
    %1778 = vmatprep.subr.bf16.mxu0 0
    %1779 = vmatpush1.bf16.msra.mxu0 0
    %1780 = vmatprep.subr.bf16.mxu0 0
    %1781 = vmatpush1.bf16.msra.mxu0 0
    %1782 = vmatprep.subr.bf16.mxu0 0
    %1783 = vmatpush1.bf16.msra.mxu0 0
    %1784 = vmatprep.subr.bf16.mxu0 0
    %1785 = vmatpush1.bf16.msra.mxu0 0
    %1786 = vmatprep.subr.bf16.mxu0 0
    %1787 = vmatpush1.bf16.msra.mxu0 0
    %1788 = vmatprep.subr.bf16.mxu0 0
    %1789 = vmatpush1.bf16.msra.mxu0 0
    %1790 = vmatprep.subr.bf16.mxu0 0
    %1791 = vmatpush1.bf16.msra.mxu0 0
    %1792 = vmatprep.mubr.bf16.mxu0 0
    %1793 = vmatmul.mubr.bf16.gmra.mrb[0].mxu0 %v746
    %v1794 = vpop.f32.mrb[0].mxu0
    %v1795 = vadd.f32 %v290, %v1794
    %v1796 = vpop.f32.mrb[0].mxu0
    %v1797 = vadd.f32 %v294, %v1796
    %v1798 = vpop.f32.mrb[0].mxu0
    %v1799 = vpop.f32.mrb[0].mxu0
    %1800 = vdwg.mxu0
    %1801 = vmatprep.subr.bf16.mxu0 %v639
    %1802 = vmatpush1.bf16.msra.mxu0 %v638
    %1803 = vmatprep.subr.bf16.mxu0 %v885
    %1804 = vmatpush1.bf16.msra.mxu0 %v882
    %1805 = vmatprep.subr.bf16.mxu0 0
    %1806 = vmatpush1.bf16.msra.mxu0 0
    %1807 = vmatprep.subr.bf16.mxu0 0
    %1808 = vmatpush1.bf16.msra.mxu0 0
    %1809 = vmatprep.subr.bf16.mxu0 0
    %1810 = vmatpush1.bf16.msra.mxu0 0
    %1811 = vmatprep.subr.bf16.mxu0 0
    %1812 = vmatpush1.bf16.msra.mxu0 0
    %1813 = vmatprep.subr.bf16.mxu0 0
    %1814 = vmatpush1.bf16.msra.mxu0 0
    %1815 = vmatprep.subr.bf16.mxu0 0
    %1816 = vmatpush1.bf16.msra.mxu0 0
    %1817 = vmatprep.subr.bf16.mxu0 0
    %1818 = vmatpush1.bf16.msra.mxu0 0
    %1819 = vmatprep.subr.bf16.mxu0 0
    %1820 = vmatpush1.bf16.msra.mxu0 0
    %1821 = vmatprep.subr.bf16.mxu0 0
    %1822 = vmatpush1.bf16.msra.mxu0 0
    %1823 = vmatprep.subr.bf16.mxu0 0
    %1824 = vmatpush1.bf16.msra.mxu0 0
    %1825 = vmatprep.subr.bf16.mxu0 0
    %1826 = vmatpush1.bf16.msra.mxu0 0
    %1827 = vmatprep.subr.bf16.mxu0 0
    %1828 = vmatpush1.bf16.msra.mxu0 0
    %1829 = vmatprep.subr.bf16.mxu0 0
    %1830 = vmatpush1.bf16.msra.mxu0 0
    %1831 = vmatprep.subr.bf16.mxu0 0
    %1832 = vmatpush1.bf16.msra.mxu0 0
    %1833 = vmatprep.mubr.bf16.mxu0 0
    %1834 = vmatmul.mubr.bf16.gmra.mrb[0].mxu0 %v746
    %v1835 = vpop.f32.mrb[0].mxu0
    %v1836 = vadd.f32 %v298, %v1835
    %v1837 = vpop.f32.mrb[0].mxu0
    %v1838 = vadd.f32 %v302, %v1837
    %v1839 = vpop.f32.mrb[0].mxu0
    %v1840 = vpop.f32.mrb[0].mxu0
    %1841 = vdwg.mxu0
    %1842 = vmatprep.subr.bf16.mxu0 %v641
    %1843 = vmatpush1.bf16.msra.mxu0 %v640
    %1844 = vmatprep.subr.bf16.mxu0 %v891
    %1845 = vmatpush1.bf16.msra.mxu0 %v888
    %1846 = vmatprep.subr.bf16.mxu0 0
    %1847 = vmatpush1.bf16.msra.mxu0 0
    %1848 = vmatprep.subr.bf16.mxu0 0
    %1849 = vmatpush1.bf16.msra.mxu0 0
    %1850 = vmatprep.subr.bf16.mxu0 0
    %1851 = vmatpush1.bf16.msra.mxu0 0
    %1852 = vmatprep.subr.bf16.mxu0 0
    %1853 = vmatpush1.bf16.msra.mxu0 0
    %1854 = vmatprep.subr.bf16.mxu0 0
    %1855 = vmatpush1.bf16.msra.mxu0 0
    %1856 = vmatprep.subr.bf16.mxu0 0
    %1857 = vmatpush1.bf16.msra.mxu0 0
    %1858 = vmatprep.subr.bf16.mxu0 0
    %1859 = vmatpush1.bf16.msra.mxu0 0
    %1860 = vmatprep.subr.bf16.mxu0 0
    %1861 = vmatpush1.bf16.msra.mxu0 0
    %1862 = vmatprep.subr.bf16.mxu0 0
    %1863 = vmatpush1.bf16.msra.mxu0 0
    %1864 = vmatprep.subr.bf16.mxu0 0
    %1865 = vmatpush1.bf16.msra.mxu0 0
    %1866 = vmatprep.subr.bf16.mxu0 0
    %1867 = vmatpush1.bf16.msra.mxu0 0
    %1868 = vmatprep.subr.bf16.mxu0 0
    %1869 = vmatpush1.bf16.msra.mxu0 0
    %1870 = vmatprep.subr.bf16.mxu0 0
    %1871 = vmatpush1.bf16.msra.mxu0 0
    %1872 = vmatprep.subr.bf16.mxu0 0
    %1873 = vmatpush1.bf16.msra.mxu0 0
    %1874 = vmatprep.mubr.bf16.mxu0 0
    %1875 = vmatmul.mubr.bf16.gmra.mrb[0].mxu0 %v746
    %v1876 = vpop.f32.mrb[0].mxu0
    %v1877 = vadd.f32 %v306, %v1876
    %v1878 = vpop.f32.mrb[0].mxu0
    %v1879 = vadd.f32 %v310, %v1878
    %v1880 = vpop.f32.mrb[0].mxu0
    %v1881 = vpop.f32.mrb[0].mxu0
    %1882 = vdwg.mxu0
    %1883 = vmatprep.subr.bf16.mxu0 %v643
    %1884 = vmatpush1.bf16.msra.mxu0 %v642
    %1885 = vmatprep.subr.bf16.mxu0 %v897
    %1886 = vmatpush1.bf16.msra.mxu0 %v894
    %1887 = vmatprep.subr.bf16.mxu0 0
    %1888 = vmatpush1.bf16.msra.mxu0 0
    %1889 = vmatprep.subr.bf16.mxu0 0
    %1890 = vmatpush1.bf16.msra.mxu0 0
    %1891 = vmatprep.subr.bf16.mxu0 0
    %1892 = vmatpush1.bf16.msra.mxu0 0
    %1893 = vmatprep.subr.bf16.mxu0 0
    %1894 = vmatpush1.bf16.msra.mxu0 0
    %1895 = vmatprep.subr.bf16.mxu0 0
    %1896 = vmatpush1.bf16.msra.mxu0 0
    %1897 = vmatprep.subr.bf16.mxu0 0
    %1898 = vmatpush1.bf16.msra.mxu0 0
    %1899 = vmatprep.subr.bf16.mxu0 0
    %1900 = vmatpush1.bf16.msra.mxu0 0
    %1901 = vmatprep.subr.bf16.mxu0 0
    %1902 = vmatpush1.bf16.msra.mxu0 0
    %1903 = vmatprep.subr.bf16.mxu0 0
    %1904 = vmatpush1.bf16.msra.mxu0 0
    %1905 = vmatprep.subr.bf16.mxu0 0
    %1906 = vmatpush1.bf16.msra.mxu0 0
    %1907 = vmatprep.subr.bf16.mxu0 0
    %1908 = vmatpush1.bf16.msra.mxu0 0
    %1909 = vmatprep.subr.bf16.mxu0 0
    %1910 = vmatpush1.bf16.msra.mxu0 0
    %1911 = vmatprep.subr.bf16.mxu0 0
    %1912 = vmatpush1.bf16.msra.mxu0 0
    %1913 = vmatprep.subr.bf16.mxu0 0
    %1914 = vmatpush1.bf16.msra.mxu0 0
    %1915 = vmatprep.mubr.bf16.mxu0 0
    %1916 = vmatmul.mubr.bf16.gmra.mrb[0].mxu0 %v746
    %v1917 = vpop.f32.mrb[0].mxu0
    %v1918 = vadd.f32 %v314, %v1917
    %v1919 = vpop.f32.mrb[0].mxu0
    %v1920 = vadd.f32 %v318, %v1919
    %v1921 = vpop.f32.mrb[0].mxu0
    %v1922 = vpop.f32.mrb[0].mxu0
    %1923 = vdwg.mxu0
    %v1924 = vmax.f32 %v934, 0.0
    %v1925 = vmax.f32 %v936, 0.0
    %v1926 = vmax.f32 %v975, 0.0
    %v1927 = vmax.f32 %v977, 0.0
    %v1928 = vmax.f32 %v1016, 0.0
    %v1929 = vmax.f32 %v1018, 0.0
    %v1930 = vmax.f32 %v1057, 0.0
    %v1931 = vmax.f32 %v1059, 0.0
    %v1932 = vmax.f32 %v1098, 0.0
    %v1933 = vmax.f32 %v1100, 0.0
    %v1934 = vmax.f32 %v1139, 0.0
    %v1935 = vmax.f32 %v1141, 0.0
    %v1936 = vmax.f32 %v1180, 0.0
    %v1937 = vmax.f32 %v1182, 0.0
    %v1938 = vmax.f32 %v1221, 0.0
    %v1939 = vmax.f32 %v1223, 0.0
    %v1940 = vmax.f32 %v1262, 0.0
    %v1941 = vmax.f32 %v1264, 0.0
    %v1942 = vmax.f32 %v1303, 0.0
    %v1943 = vmax.f32 %v1305, 0.0
    %v1944 = vmax.f32 %v1344, 0.0
    %v1945 = vmax.f32 %v1346, 0.0
    %v1946 = vmax.f32 %v1385, 0.0
    %v1947 = vmax.f32 %v1387, 0.0
    %v1948 = vmax.f32 %v1426, 0.0
    %v1949 = vmax.f32 %v1428, 0.0
    %v1950 = vmax.f32 %v1467, 0.0
    %v1951 = vmax.f32 %v1469, 0.0
    %v1952 = vmax.f32 %v1508, 0.0
    %v1953 = vmax.f32 %v1510, 0.0
    %v1954 = vmax.f32 %v1549, 0.0
    %v1955 = vmax.f32 %v1551, 0.0
    %v1956 = vmax.f32 %v1590, 0.0
    %v1957 = vmax.f32 %v1592, 0.0
    %v1958 = vmax.f32 %v1631, 0.0
    %v1959 = vmax.f32 %v1633, 0.0
    %v1960 = vmax.f32 %v1672, 0.0
    %v1961 = vmax.f32 %v1674, 0.0
    %v1962 = vmax.f32 %v1713, 0.0
    %v1963 = vmax.f32 %v1715, 0.0
    %v1964 = vmax.f32 %v1754, 0.0
    %v1965 = vmax.f32 %v1756, 0.0
    %v1966 = vmax.f32 %v1795, 0.0
    %v1967 = vmax.f32 %v1797, 0.0
    %v1968 = vmax.f32 %v1836, 0.0
    %v1969 = vmax.f32 %v1838, 0.0
    %v1970 = vmax.f32 %v1877, 0.0
    %v1971 = vmax.f32 %v1879, 0.0
    %v1972 = vmax.f32 %v1918, 0.0
    %v1973 = vmax.f32 %v1920, 0.0
    %v1974 = vpack.c.bf16 %v1924, %v1924
    %v1975 = vpack.c.bf16 %v1925, %v1925
    %v1976 = vpack.c.bf16 %v1926, %v1926
    %v1977 = vpack.c.bf16 %v1927, %v1927
    %v1978 = vpack.c.bf16 %v1928, %v1928
    %v1979 = vpack.c.bf16 %v1929, %v1929
    %v1980 = vpack.c.bf16 %v1930, %v1930
    %v1981 = vpack.c.bf16 %v1931, %v1931
    %v1982 = vpack.c.bf16 %v1932, %v1932
    %v1983 = vpack.c.bf16 %v1933, %v1933
    %v1984 = vpack.c.bf16 %v1934, %v1934
    %v1985 = vpack.c.bf16 %v1935, %v1935
    %v1986 = vpack.c.bf16 %v1936, %v1936
    %v1987 = vpack.c.bf16 %v1937, %v1937
    %v1988 = vpack.c.bf16 %v1938, %v1938
    %v1989 = vpack.c.bf16 %v1939, %v1939
    %v1990 = vpack.c.bf16 %v1940, %v1940
    %v1991 = vpack.c.bf16 %v1941, %v1941
    %v1992 = vpack.c.bf16 %v1942, %v1942
    %v1993 = vpack.c.bf16 %v1943, %v1943
    %v1994 = vpack.c.bf16 %v1944, %v1944
    %v1995 = vpack.c.bf16 %v1945, %v1945
    %v1996 = vpack.c.bf16 %v1946, %v1946
    %v1997 = vpack.c.bf16 %v1947, %v1947
    %v1998 = vpack.c.bf16 %v1948, %v1948
    %v1999 = vpack.c.bf16 %v1949, %v1949
    %v2000 = vpack.c.bf16 %v1950, %v1950
    %v2001 = vpack.c.bf16 %v1951, %v1951
    %v2002 = vpack.c.bf16 %v1952, %v1952
    %v2003 = vpack.c.bf16 %v1953, %v1953
    %v2004 = vpack.c.bf16 %v1954, %v1954
    %v2005 = vpack.c.bf16 %v1955, %v1955
    %v2006 = vpack.c.bf16 %v1956, %v1956
    %v2007 = vpack.c.bf16 %v1957, %v1957
    %v2008 = vpack.c.bf16 %v1958, %v1958
    %v2009 = vpack.c.bf16 %v1959, %v1959
    %v2010 = vpack.c.bf16 %v1960, %v1960
    %v2011 = vpack.c.bf16 %v1961, %v1961
    %v2012 = vpack.c.bf16 %v1962, %v1962
    %v2013 = vpack.c.bf16 %v1963, %v1963
    %v2014 = vpack.c.bf16 %v1964, %v1964
    %v2015 = vpack.c.bf16 %v1965, %v1965
    %v2016 = vpack.c.bf16 %v1966, %v1966
    %v2017 = vpack.c.bf16 %v1967, %v1967
    %v2018 = vpack.c.bf16 %v1968, %v1968
    %v2019 = vpack.c.bf16 %v1969, %v1969
    %v2020 = vpack.c.bf16 %v1970, %v1970
    %v2021 = vpack.c.bf16 %v1971, %v1971
    %v2022 = vpack.c.bf16 %v1972, %v1972
    %v2023 = vpack.c.bf16 %v1973, %v1973
    %v2074 = vunpack.c.l.b16 %v1974
    %v2075 = vunpack.c.l.b16 %v1975
    %v2076 = vunpack.c.l.b16 %v1976
    %v2077 = vunpack.c.l.b16 %v1977
    %v2078 = vunpack.c.l.b16 %v1978
    %v2079 = vunpack.c.l.b16 %v1979
    %v2080 = vunpack.c.l.b16 %v1980
    %v2081 = vunpack.c.l.b16 %v1981
    %v2082 = vunpack.c.l.b16 %v1982
    %v2083 = vunpack.c.l.b16 %v1983
    %v2084 = vunpack.c.l.b16 %v1984
    %v2085 = vunpack.c.l.b16 %v1985
    %v2086 = vunpack.c.l.b16 %v1986
    %v2087 = vunpack.c.l.b16 %v1987
    %v2088 = vunpack.c.l.b16 %v1988
    %v2089 = vunpack.c.l.b16 %v1989
    %v2090 = vunpack.c.l.b16 %v1990
    %v2091 = vunpack.c.l.b16 %v1991
    %v2092 = vunpack.c.l.b16 %v1992
    %v2093 = vunpack.c.l.b16 %v1993
    %v2094 = vunpack.c.l.b16 %v1994
    %v2095 = vunpack.c.l.b16 %v1995
    %v2096 = vunpack.c.l.b16 %v1996
    %v2097 = vunpack.c.l.b16 %v1997
    %v2098 = vunpack.c.l.b16 %v1998
    %v2099 = vunpack.c.l.b16 %v1999
    %v2100 = vunpack.c.l.b16 %v2000
    %v2101 = vunpack.c.l.b16 %v2001
    %v2102 = vunpack.c.l.b16 %v2002
    %v2103 = vunpack.c.l.b16 %v2003
    %v2104 = vunpack.c.l.b16 %v2004
    %v2105 = vunpack.c.l.b16 %v2005
    %v2106 = vunpack.c.l.b16 %v2006
    %v2107 = vunpack.c.l.b16 %v2007
    %v2108 = vunpack.c.l.b16 %v2008
    %v2109 = vunpack.c.l.b16 %v2009
    %v2110 = vunpack.c.l.b16 %v2010
    %v2111 = vunpack.c.l.b16 %v2011
    %v2112 = vunpack.c.l.b16 %v2012
    %v2113 = vunpack.c.l.b16 %v2013
    %v2114 = vunpack.c.l.b16 %v2014
    %v2115 = vunpack.c.l.b16 %v2015
    %v2116 = vunpack.c.l.b16 %v2016
    %v2117 = vunpack.c.l.b16 %v2017
    %v2118 = vunpack.c.l.b16 %v2018
    %v2119 = vunpack.c.l.b16 %v2019
    %v2120 = vunpack.c.l.b16 %v2020
    %v2121 = vunpack.c.l.b16 %v2021
    %v2122 = vunpack.c.l.b16 %v2022
    %v2123 = vunpack.c.l.b16 %v2023
    %v2124 = vpack.c.b16 %v2075, %v2074
    %v2125 = vpack.c.b16 %v2077, %v2076
    %v2126 = vpack.c.b16 %v2079, %v2078
    %v2127 = vpack.c.b16 %v2081, %v2080
    %v2128 = vpack.c.b16 %v2083, %v2082
    %v2129 = vpack.c.b16 %v2085, %v2084
    %v2130 = vpack.c.b16 %v2087, %v2086
    %v2131 = vpack.c.b16 %v2089, %v2088
    %v2132 = vpack.c.b16 %v2091, %v2090
    %v2133 = vpack.c.b16 %v2093, %v2092
    %v2134 = vpack.c.b16 %v2095, %v2094
    %v2135 = vpack.c.b16 %v2097, %v2096
    %v2136 = vpack.c.b16 %v2099, %v2098
    %v2137 = vpack.c.b16 %v2101, %v2100
    %v2138 = vpack.c.b16 %v2103, %v2102
    %v2139 = vpack.c.b16 %v2105, %v2104
    %v2140 = vpack.c.b16 %v2107, %v2106
    %v2141 = vpack.c.b16 %v2109, %v2108
    %v2142 = vpack.c.b16 %v2111, %v2110
    %v2143 = vpack.c.b16 %v2113, %v2112
    %v2144 = vpack.c.b16 %v2115, %v2114
    %v2145 = vpack.c.b16 %v2117, %v2116
    %v2146 = vpack.c.b16 %v2119, %v2118
    %v2147 = vpack.c.b16 %v2121, %v2120
    %v2148 = vpack.c.b16 %v2123, %v2122
    %2174 = vst [vmem:[%s3] sm:$0xff] %v2124
    %2175 = vst [vmem:[%s3 + $0x8] sm:$0xff] %v2125
    %2176 = vst [vmem:[%s3 + $0x10] sm:$0xff] %v2126
    %2177 = vst [vmem:[%s3 + $0x18] sm:$0xff] %v2127
    %2178 = vst [vmem:[%s3 + $0x20] sm:$0xff] %v2128
    %2179 = vst [vmem:[%s3 + $0x28] sm:$0xff] %v2129
    %2180 = vst [vmem:[%s3 + $0x30] sm:$0xff] %v2130
    %2181 = vst [vmem:[%s3 + $0x38] sm:$0xff] %v2131
    %2182 = vst [vmem:[%s3 + $0x40] sm:$0xff] %v2132
    %2183 = vst [vmem:[%s3 + $0x48] sm:$0xff] %v2133
    %2184 = vst [vmem:[%s3 + $0x50] sm:$0xff] %v2134
    %2185 = vst [vmem:[%s3 + $0x58] sm:$0xff] %v2135
    %2186 = vst [vmem:[%s3 + $0x60] sm:$0xff] %v2136
    %2187 = vst [vmem:[%s3 + $0x68] sm:$0xff] %v2137
    %2188 = vst [vmem:[%s3 + $0x70] sm:$0xff] %v2138
    %2189 = vst [vmem:[%s3 + $0x78] sm:$0xff] %v2139
    %2190 = vst [vmem:[%s3 + $0x80] sm:$0xff] %v2140
    %2191 = vst [vmem:[%s3 + $0x88] sm:$0xff] %v2141
    %2192 = vst [vmem:[%s3 + $0x90] sm:$0xff] %v2142
    %2193 = vst [vmem:[%s3 + $0x98] sm:$0xff] %v2143
    %2194 = vst [vmem:[%s3 + $0xa0] sm:$0xff] %v2144
    %2195 = vst [vmem:[%s3 + $0xa8] sm:$0xff] %v2145
    %2196 = vst [vmem:[%s3 + $0xb0] sm:$0xff] %v2146
    %2197 = vst [vmem:[%s3 + $0xb8] sm:$0xff] %v2147
    %2198 = vst [vmem:[%s3 + $0xc0] sm:$0xff] %v2148
    // Predicated region
    $region18: #{decoder_a_forward.9} parent=1 // pred_check
      _
    $region19: #{decoder_a_forward.9} parent=1 // pred_check_branch
      %2200 = sbr.rel (0) target = $region21
    $region20: #{decoder_a_forward.9} parent=1 // pred_region
      _
    $region21: #{decoder_a_forward.9} parent=1 // pred_fallthru
      _
    // Predicated region
    $region22: #{decoder_a_forward.9} parent=1 // pred_check
      _
    $region23: #{decoder_a_forward.9} parent=1 // pred_check_branch
      %2202 = sbr.rel (0) target = $region25
    $region24: #{decoder_a_forward.9} parent=1 // pred_region
      _
    $region25: #{decoder_a_forward.9} parent=1 // pred_fallthru
      _
    %2203 = vsyncpa [#allocation3], 1

// kernel: decoder_a_forward.10
$region0: #{decoder_a_forward.10}
  #allocation0 [shape = 'u32[]', space=smem, size = 0x4, offset = 0x4, fixed_abs, tag = 'smem constant byte address 0x4 - core index']
  #allocation1 [shape = 'u32[144,128]{1,0:T(1,128)}', space=vmem, size = 0x12000, scoped, tag = 'internal scratch']
  %s0 = inlined_call_operand.vmem [shape: bf16[56,256], index: 0, kind: input, shape index: {}]
  %s1 = inlined_call_operand.hbm [shape: bf16[256,2048], index: 1, kind: input, shape index: {}]
  %s2 = inlined_call_operand.vmem [shape: bf16[56,2048], index: 2, kind: output, shape index: {}]
  %s3 = sld [smem:[#allocation0]]
  $region22: #{decoder_a_forward.10} parent=0
    _
  %s5 = ssub.s32 1, %s3
  %s6 = scalar_select 0, %s5, %s3
  $region1: #{decoder_a_forward.10} parent=0
    #allocation2 [shape = 'u8[1048576]{0}', space=vmem, size = 0x100000, scoped, tag = 'input window, operand 1, single buffered']
    #allocation3 [shape = 's32[1]{0}', space=sflag, size = 0x4, scoped, tag = 'scoped memory for decoder_a_forward.10']
    %7 = vsyncpa [#allocation3], 0
    // Predicated region
    $region2: #{decoder_a_forward.10} parent=1 // pred_check
      _
    $region3: #{decoder_a_forward.10} parent=1 // pred_check_branch
      %9 = sbr.rel (0) target = $region5
    $region4: #{decoder_a_forward.10} parent=1 // pred_region
      _
    $region5: #{decoder_a_forward.10} parent=1 // pred_fallthru
      _
    // Predicated region
    $region6: #{decoder_a_forward.10} parent=1 // pred_check
      _
    $region7: #{decoder_a_forward.10} parent=1 // pred_check_branch
      %11 = sbr.rel (0) target = $region9
    $region8: #{decoder_a_forward.10} parent=1 // pred_region
      %s13 = ssub.s32 32768, 32768
      %14 = vsyncadd [#allocation3], %s13
      %s15 = sshll.u32 [#allocation2], 4
      %s16 = int_to_ptr.vmem [resolvable:$true] %s15
      %21 = dma.hbm_to_vmem [thread:$0]  %s1, 32768, %s16, [#allocation3], 1024, 1024, 64
    $region9: #{decoder_a_forward.10} parent=1 // pred_fallthru
      _
    // Predicated region
    $region10: #{decoder_a_forward.10} parent=1 // pred_check
      _
    $region11: #{decoder_a_forward.10} parent=1 // pred_check_branch
      %23 = sbr.rel (0) target = $region13
    $region12: #{decoder_a_forward.10} parent=1 // pred_region
      %24 = dma.done [#allocation3], 32768
    $region13: #{decoder_a_forward.10} parent=1 // pred_fallthru
      _
    %v25 = vld [vmem:[%s0] sm:$0xff]
    %v26 = vld [vmem:[%s0 + $0x8] sm:$0xff]
    %v27 = vld [vmem:[%s0 + $0x10] sm:$0xff]
    %v28 = vld [vmem:[%s0 + $0x18] sm:$0xff]
    %v29 = vld [vmem:[%s0 + $0x20] sm:$0xff]
    %v30 = vld [vmem:[%s0 + $0x28] sm:$0xff]
    %v31 = vld [vmem:[%s0 + $0x30] sm:$0xff]
    %v32 = vld [vmem:[#allocation2] sm:$0xff]
    %v33 = vld [vmem:[#allocation2 + $0x8] sm:$0xff]
    %v34 = vld [vmem:[#allocation2 + $0x10] sm:$0xff]
    %v35 = vld [vmem:[#allocation2 + $0x18] sm:$0xff]
    %v36 = vld [vmem:[#allocation2 + $0x20] sm:$0xff]
    %v37 = vld [vmem:[#allocation2 + $0x28] sm:$0xff]
    %v38 = vld [vmem:[#allocation2 + $0x30] sm:$0xff]
    %v39 = vld [vmem:[#allocation2 + $0x38] sm:$0xff]
    %v40 = vld [vmem:[#allocation2 + $0x40] sm:$0xff]
    %v41 = vld [vmem:[#allocation2 + $0x48] sm:$0xff]
    %v42 = vld [vmem:[#allocation2 + $0x50] sm:$0xff]
    %v43 = vld [vmem:[#allocation2 + $0x58] sm:$0xff]
    %v44 = vld [vmem:[#allocation2 + $0x60] sm:$0xff]
    %v45 = vld [vmem:[#allocation2 + $0x68] sm:$0xff]
    %v46 = vld [vmem:[#allocation2 + $0x70] sm:$0xff]
    %v47 = vld [vmem:[#allocation2 + $0x78] sm:$0xff]
    %v48 = vld [vmem:[#allocation2 + $0x80] sm:$0xff]
    %v49 = vld [vmem:[#allocation2 + $0x88] sm:$0xff]
    %v50 = vld [vmem:[#allocation2 + $0x90] sm:$0xff]
    %v51 = vld [vmem:[#allocation2 + $0x98] sm:$0xff]
    %v52 = vld [vmem:[#allocation2 + $0xa0] sm:$0xff]
    %v53 = vld [vmem:[#allocation2 + $0xa8] sm:$0xff]
    %v54 = vld [vmem:[#allocation2 + $0xb0] sm:$0xff]
    %v55 = vld [vmem:[#allocation2 + $0xb8] sm:$0xff]
    %v56 = vld [vmem:[#allocation2 + $0xc0] sm:$0xff]
    %v57 = vld [vmem:[#allocation2 + $0xc8] sm:$0xff]
    %v58 = vld [vmem:[#allocation2 + $0xd0] sm:$0xff]
    %v59 = vld [vmem:[#allocation2 + $0xd8] sm:$0xff]
    %v60 = vld [vmem:[#allocation2 + $0xe0] sm:$0xff]
    %v61 = vld [vmem:[#allocation2 + $0xe8] sm:$0xff]
    %v62 = vld [vmem:[#allocation2 + $0xf0] sm:$0xff]
    %v63 = vld [vmem:[#allocation2 + $0xf8] sm:$0xff]
    %v64 = vld [vmem:[#allocation2 + $0x100] sm:$0xff]
    %v65 = vld [vmem:[#allocation2 + $0x108] sm:$0xff]
    %v66 = vld [vmem:[#allocation2 + $0x110] sm:$0xff]
    %v67 = vld [vmem:[#allocation2 + $0x118] sm:$0xff]
    %v68 = vld [vmem:[#allocation2 + $0x120] sm:$0xff]
    %v69 = vld [vmem:[#allocation2 + $0x128] sm:$0xff]
    %v70 = vld [vmem:[#allocation2 + $0x130] sm:$0xff]
    %v71 = vld [vmem:[#allocation2 + $0x138] sm:$0xff]
    %v72 = vld [vmem:[#allocation2 + $0x140] sm:$0xff]
    %v73 = vld [vmem:[#allocation2 + $0x148] sm:$0xff]
    %v74 = vld [vmem:[#allocation2 + $0x150] sm:$0xff]
    %v75 = vld [vmem:[#allocation2 + $0x158] sm:$0xff]
    %v76 = vld [vmem:[#allocation2 + $0x160] sm:$0xff]
    %v77 = vld [vmem:[#allocation2 + $0x168] sm:$0xff]
    %v78 = vld [vmem:[#allocation2 + $0x170] sm:$0xff]
    %v79 = vld [vmem:[#allocation2 + $0x178] sm:$0xff]
    %v80 = vld [vmem:[#allocation2 + $0x180] sm:$0xff]
    %v81 = vld [vmem:[#allocation2 + $0x188] sm:$0xff]
    %v82 = vld [vmem:[#allocation2 + $0x190] sm:$0xff]
    %v83 = vld [vmem:[#allocation2 + $0x198] sm:$0xff]
    %v84 = vld [vmem:[#allocation2 + $0x1a0] sm:$0xff]
    %v85 = vld [vmem:[#allocation2 + $0x1a8] sm:$0xff]
    %v86 = vld [vmem:[#allocation2 + $0x1b0] sm:$0xff]
    %v87 = vld [vmem:[#allocation2 + $0x1b8] sm:$0xff]
    %v88 = vld [vmem:[#allocation2 + $0x1c0] sm:$0xff]
    %v89 = vld [vmem:[#allocation2 + $0x1c8] sm:$0xff]
    %v90 = vld [vmem:[#allocation2 + $0x1d0] sm:$0xff]
    %v91 = vld [vmem:[#allocation2 + $0x1d8] sm:$0xff]
    %v92 = vld [vmem:[#allocation2 + $0x1e0] sm:$0xff]
    %v93 = vld [vmem:[#allocation2 + $0x1e8] sm:$0xff]
    %v94 = vld [vmem:[#allocation2 + $0x1f0] sm:$0xff]
    %v95 = vld [vmem:[#allocation2 + $0x1f8] sm:$0xff]
    %v96 = vld [vmem:[#allocation2 + $0x200] sm:$0xff]
    %v97 = vld [vmem:[#allocation2 + $0x208] sm:$0xff]
    %v98 = vld [vmem:[#allocation2 + $0x210] sm:$0xff]
    %v99 = vld [vmem:[#allocation2 + $0x218] sm:$0xff]
    %v100 = vld [vmem:[#allocation2 + $0x220] sm:$0xff]
    %v101 = vld [vmem:[#allocation2 + $0x228] sm:$0xff]
    %v102 = vld [vmem:[#allocation2 + $0x230] sm:$0xff]
    %v103 = vld [vmem:[#allocation2 + $0x238] sm:$0xff]
    %v104 = vld [vmem:[#allocation2 + $0x240] sm:$0xff]
    %v105 = vld [vmem:[#allocation2 + $0x248] sm:$0xff]
    %v106 = vld [vmem:[#allocation2 + $0x250] sm:$0xff]
    %v107 = vld [vmem:[#allocation2 + $0x258] sm:$0xff]
    %v108 = vld [vmem:[#allocation2 + $0x260] sm:$0xff]
    %v109 = vld [vmem:[#allocation2 + $0x268] sm:$0xff]
    %v110 = vld [vmem:[#allocation2 + $0x270] sm:$0xff]
    %v111 = vld [vmem:[#allocation2 + $0x278] sm:$0xff]
    %v112 = vld [vmem:[#allocation2 + $0x280] sm:$0xff]
    %v113 = vld [vmem:[#allocation2 + $0x288] sm:$0xff]
    %v114 = vld [vmem:[#allocation2 + $0x290] sm:$0xff]
    %v115 = vld [vmem:[#allocation2 + $0x298] sm:$0xff]
    %v116 = vld [vmem:[#allocation2 + $0x2a0] sm:$0xff]
    %v117 = vld [vmem:[#allocation2 + $0x2a8] sm:$0xff]
    %v118 = vld [vmem:[#allocation2 + $0x2b0] sm:$0xff]
    %v119 = vld [vmem:[#allocation2 + $0x2b8] sm:$0xff]
    %v120 = vld [vmem:[#allocation2 + $0x2c0] sm:$0xff]
    %v121 = vld [vmem:[#allocation2 + $0x2c8] sm:$0xff]
    %v122 = vld [vmem:[#allocation2 + $0x2d0] sm:$0xff]
    %v123 = vld [vmem:[#allocation2 + $0x2d8] sm:$0xff]
    %v124 = vld [vmem:[#allocation2 + $0x2e0] sm:$0xff]
    %v125 = vld [vmem:[#allocation2 + $0x2e8] sm:$0xff]
    %v126 = vld [vmem:[#allocation2 + $0x2f0] sm:$0xff]
    %v127 = vld [vmem:[#allocation2 + $0x2f8] sm:$0xff]
    %v128 = vld [vmem:[#allocation2 + $0x300] sm:$0xff]
    %v129 = vld [vmem:[#allocation2 + $0x308] sm:$0xff]
    %v130 = vld [vmem:[#allocation2 + $0x310] sm:$0xff]
    %v131 = vld [vmem:[#allocation2 + $0x318] sm:$0xff]
    %v132 = vld [vmem:[#allocation2 + $0x320] sm:$0xff]
    %v133 = vld [vmem:[#allocation2 + $0x328] sm:$0xff]
    %v134 = vld [vmem:[#allocation2 + $0x330] sm:$0xff]
    %v135 = vld [vmem:[#allocation2 + $0x338] sm:$0xff]
    %v136 = vld [vmem:[#allocation2 + $0x340] sm:$0xff]
    %v137 = vld [vmem:[#allocation2 + $0x348] sm:$0xff]
    %v138 = vld [vmem:[#allocation2 + $0x350] sm:$0xff]
    %v139 = vld [vmem:[#allocation2 + $0x358] sm:$0xff]
    %v140 = vld [vmem:[#allocation2 + $0x360] sm:$0xff]
    %v141 = vld [vmem:[#allocation2 + $0x368] sm:$0xff]
    %v142 = vld [vmem:[#allocation2 + $0x370] sm:$0xff]
    %v143 = vld [vmem:[#allocation2 + $0x378] sm:$0xff]
    %v144 = vld [vmem:[#allocation2 + $0x380] sm:$0xff]
    %v145 = vld [vmem:[#allocation2 + $0x388] sm:$0xff]
    %v146 = vld [vmem:[#allocation2 + $0x390] sm:$0xff]
    %v147 = vld [vmem:[#allocation2 + $0x398] sm:$0xff]
    %v148 = vld [vmem:[#allocation2 + $0x3a0] sm:$0xff]
    %v149 = vld [vmem:[#allocation2 + $0x3a8] sm:$0xff]
    %v150 = vld [vmem:[#allocation2 + $0x3b0] sm:$0xff]
    %v151 = vld [vmem:[#allocation2 + $0x3b8] sm:$0xff]
    %v152 = vld [vmem:[#allocation2 + $0x3c0] sm:$0xff]
    %v153 = vld [vmem:[#allocation2 + $0x3c8] sm:$0xff]
    %v154 = vld [vmem:[#allocation2 + $0x3d0] sm:$0xff]
    %v155 = vld [vmem:[#allocation2 + $0x3d8] sm:$0xff]
    %v156 = vld [vmem:[#allocation2 + $0x3e0] sm:$0xff]
    %v157 = vld [vmem:[#allocation2 + $0x3e8] sm:$0xff]
    %v158 = vld [vmem:[#allocation2 + $0x3f0] sm:$0xff]
    %v159 = vld [vmem:[#allocation2 + $0x3f8] sm:$0xff]
    %v160 = vld [vmem:[#allocation2 + $0x400] sm:$0xff]
    %v161 = vld [vmem:[#allocation2 + $0x408] sm:$0xff]
    %v162 = vld [vmem:[#allocation2 + $0x410] sm:$0xff]
    %v163 = vld [vmem:[#allocation2 + $0x418] sm:$0xff]
    %v164 = vld [vmem:[#allocation2 + $0x420] sm:$0xff]
    %v165 = vld [vmem:[#allocation2 + $0x428] sm:$0xff]
    %v166 = vld [vmem:[#allocation2 + $0x430] sm:$0xff]
    %v167 = vld [vmem:[#allocation2 + $0x438] sm:$0xff]
    %v168 = vld [vmem:[#allocation2 + $0x440] sm:$0xff]
    %v169 = vld [vmem:[#allocation2 + $0x448] sm:$0xff]
    %v170 = vld [vmem:[#allocation2 + $0x450] sm:$0xff]
    %v171 = vld [vmem:[#allocation2 + $0x458] sm:$0xff]
    %v172 = vld [vmem:[#allocation2 + $0x460] sm:$0xff]
    %v173 = vld [vmem:[#allocation2 + $0x468] sm:$0xff]
    %v174 = vld [vmem:[#allocation2 + $0x470] sm:$0xff]
    %v175 = vld [vmem:[#allocation2 + $0x478] sm:$0xff]
    %v176 = vld [vmem:[#allocation2 + $0x480] sm:$0xff]
    %v177 = vld [vmem:[#allocation2 + $0x488] sm:$0xff]
    %v178 = vld [vmem:[#allocation2 + $0x490] sm:$0xff]
    %v179 = vld [vmem:[#allocation2 + $0x498] sm:$0xff]
    %v180 = vld [vmem:[#allocation2 + $0x4a0] sm:$0xff]
    %v181 = vld [vmem:[#allocation2 + $0x4a8] sm:$0xff]
    %v182 = vld [vmem:[#allocation2 + $0x4b0] sm:$0xff]
    %v183 = vld [vmem:[#allocation2 + $0x4b8] sm:$0xff]
    %v184 = vld [vmem:[#allocation2 + $0x4c0] sm:$0xff]
    %v185 = vld [vmem:[#allocation2 + $0x4c8] sm:$0xff]
    %v186 = vld [vmem:[#allocation2 + $0x4d0] sm:$0xff]
    %v187 = vld [vmem:[#allocation2 + $0x4d8] sm:$0xff]
    %v188 = vld [vmem:[#allocation2 + $0x4e0] sm:$0xff]
    %v189 = vld [vmem:[#allocation2 + $0x4e8] sm:$0xff]
    %v190 = vld [vmem:[#allocation2 + $0x4f0] sm:$0xff]
    %v191 = vld [vmem:[#allocation2 + $0x4f8] sm:$0xff]
    %v192 = vld [vmem:[#allocation2 + $0x500] sm:$0xff]
    %v193 = vld [vmem:[#allocation2 + $0x508] sm:$0xff]
    %v194 = vld [vmem:[#allocation2 + $0x510] sm:$0xff]
    %v195 = vld [vmem:[#allocation2 + $0x518] sm:$0xff]
    %v196 = vld [vmem:[#allocation2 + $0x520] sm:$0xff]
    %v197 = vld [vmem:[#allocation2 + $0x528] sm:$0xff]
    %v198 = vld [vmem:[#allocation2 + $0x530] sm:$0xff]
    %v199 = vld [vmem:[#allocation2 + $0x538] sm:$0xff]
    %v200 = vld [vmem:[#allocation2 + $0x540] sm:$0xff]
    %v201 = vld [vmem:[#allocation2 + $0x548] sm:$0xff]
    %v202 = vld [vmem:[#allocation2 + $0x550] sm:$0xff]
    %v203 = vld [vmem:[#allocation2 + $0x558] sm:$0xff]
    %v204 = vld [vmem:[#allocation2 + $0x560] sm:$0xff]
    %v205 = vld [vmem:[#allocation2 + $0x568] sm:$0xff]
    %v206 = vld [vmem:[#allocation2 + $0x570] sm:$0xff]
    %v207 = vld [vmem:[#allocation2 + $0x578] sm:$0xff]
    %v208 = vld [vmem:[#allocation2 + $0x580] sm:$0xff]
    %v209 = vld [vmem:[#allocation2 + $0x588] sm:$0xff]
    %v210 = vld [vmem:[#allocation2 + $0x590] sm:$0xff]
    %v211 = vld [vmem:[#allocation2 + $0x598] sm:$0xff]
    %v212 = vld [vmem:[#allocation2 + $0x5a0] sm:$0xff]
    %v213 = vld [vmem:[#allocation2 + $0x5a8] sm:$0xff]
    %v214 = vld [vmem:[#allocation2 + $0x5b0] sm:$0xff]
    %v215 = vld [vmem:[#allocation2 + $0x5b8] sm:$0xff]
    %v216 = vld [vmem:[#allocation2 + $0x5c0] sm:$0xff]
    %v217 = vld [vmem:[#allocation2 + $0x5c8] sm:$0xff]
    %v218 = vld [vmem:[#allocation2 + $0x5d0] sm:$0xff]
    %v219 = vld [vmem:[#allocation2 + $0x5d8] sm:$0xff]
    %v220 = vld [vmem:[#allocation2 + $0x5e0] sm:$0xff]
    %v221 = vld [vmem:[#allocation2 + $0x5e8] sm:$0xff]
    %v222 = vld [vmem:[#allocation2 + $0x5f0] sm:$0xff]
    %v223 = vld [vmem:[#allocation2 + $0x5f8] sm:$0xff]
    %v224 = vld [vmem:[#allocation2 + $0x600] sm:$0xff]
    %v225 = vld [vmem:[#allocation2 + $0x608] sm:$0xff]
    %v226 = vld [vmem:[#allocation2 + $0x610] sm:$0xff]
    %v227 = vld [vmem:[#allocation2 + $0x618] sm:$0xff]
    %v228 = vld [vmem:[#allocation2 + $0x620] sm:$0xff]
    %v229 = vld [vmem:[#allocation2 + $0x628] sm:$0xff]
    %v230 = vld [vmem:[#allocation2 + $0x630] sm:$0xff]
    %v231 = vld [vmem:[#allocation2 + $0x638] sm:$0xff]
    %v232 = vld [vmem:[#allocation2 + $0x640] sm:$0xff]
    %v233 = vld [vmem:[#allocation2 + $0x648] sm:$0xff]
    %v234 = vld [vmem:[#allocation2 + $0x650] sm:$0xff]
    %v235 = vld [vmem:[#allocation2 + $0x658] sm:$0xff]
    %v236 = vld [vmem:[#allocation2 + $0x660] sm:$0xff]
    %v237 = vld [vmem:[#allocation2 + $0x668] sm:$0xff]
    %v238 = vld [vmem:[#allocation2 + $0x670] sm:$0xff]
    %v239 = vld [vmem:[#allocation2 + $0x678] sm:$0xff]
    %v240 = vld [vmem:[#allocation2 + $0x680] sm:$0xff]
    %v241 = vld [vmem:[#allocation2 + $0x688] sm:$0xff]
    %v242 = vld [vmem:[#allocation2 + $0x690] sm:$0xff]
    %v243 = vld [vmem:[#allocation2 + $0x698] sm:$0xff]
    %v244 = vld [vmem:[#allocation2 + $0x6a0] sm:$0xff]
    %v245 = vld [vmem:[#allocation2 + $0x6a8] sm:$0xff]
    %v246 = vld [vmem:[#allocation2 + $0x6b0] sm:$0xff]
    %v247 = vld [vmem:[#allocation2 + $0x6b8] sm:$0xff]
    %v248 = vld [vmem:[#allocation2 + $0x6c0] sm:$0xff]
    %v249 = vld [vmem:[#allocation2 + $0x6c8] sm:$0xff]
    %v250 = vld [vmem:[#allocation2 + $0x6d0] sm:$0xff]
    %v251 = vld [vmem:[#allocation2 + $0x6d8] sm:$0xff]
    %v252 = vld [vmem:[#allocation2 + $0x6e0] sm:$0xff]
    %v253 = vld [vmem:[#allocation2 + $0x6e8] sm:$0xff]
    %v254 = vld [vmem:[#allocation2 + $0x6f0] sm:$0xff]
    %v255 = vld [vmem:[#allocation2 + $0x6f8] sm:$0xff]
    %v256 = vld [vmem:[#allocation2 + $0x700] sm:$0xff]
    %v257 = vld [vmem:[#allocation2 + $0x708] sm:$0xff]
    %v258 = vld [vmem:[#allocation2 + $0x710] sm:$0xff]
    %v259 = vld [vmem:[#allocation2 + $0x718] sm:$0xff]
    %v260 = vld [vmem:[#allocation2 + $0x720] sm:$0xff]
    %v261 = vld [vmem:[#allocation2 + $0x728] sm:$0xff]
    %v262 = vld [vmem:[#allocation2 + $0x730] sm:$0xff]
    %v263 = vld [vmem:[#allocation2 + $0x738] sm:$0xff]
    %v264 = vld [vmem:[#allocation2 + $0x740] sm:$0xff]
    %v265 = vld [vmem:[#allocation2 + $0x748] sm:$0xff]
    %v266 = vld [vmem:[#allocation2 + $0x750] sm:$0xff]
    %v267 = vld [vmem:[#allocation2 + $0x758] sm:$0xff]
    %v268 = vld [vmem:[#allocation2 + $0x760] sm:$0xff]
    %v269 = vld [vmem:[#allocation2 + $0x768] sm:$0xff]
    %v270 = vld [vmem:[#allocation2 + $0x770] sm:$0xff]
    %v271 = vld [vmem:[#allocation2 + $0x778] sm:$0xff]
    %v272 = vld [vmem:[#allocation2 + $0x780] sm:$0xff]
    %v273 = vld [vmem:[#allocation2 + $0x788] sm:$0xff]
    %v274 = vld [vmem:[#allocation2 + $0x790] sm:$0xff]
    %v275 = vld [vmem:[#allocation2 + $0x798] sm:$0xff]
    %v276 = vld [vmem:[#allocation2 + $0x7a0] sm:$0xff]
    %v277 = vld [vmem:[#allocation2 + $0x7a8] sm:$0xff]
    %v278 = vld [vmem:[#allocation2 + $0x7b0] sm:$0xff]
    %v279 = vld [vmem:[#allocation2 + $0x7b8] sm:$0xff]
    %v280 = vld [vmem:[#allocation2 + $0x7c0] sm:$0xff]
    %v281 = vld [vmem:[#allocation2 + $0x7c8] sm:$0xff]
    %v282 = vld [vmem:[#allocation2 + $0x7d0] sm:$0xff]
    %v283 = vld [vmem:[#allocation2 + $0x7d8] sm:$0xff]
    %v284 = vld [vmem:[#allocation2 + $0x7e0] sm:$0xff]
    %v285 = vld [vmem:[#allocation2 + $0x7e8] sm:$0xff]
    %v286 = vld [vmem:[#allocation2 + $0x7f0] sm:$0xff]
    %v287 = vld [vmem:[#allocation2 + $0x7f8] sm:$0xff]
    %v295 = vunpack.c.l.b16 %v25
    %v296 = vunpack.c.h.b16 %v25
    %v297 = vunpack.c.l.b16 %v26
    %v298 = vunpack.c.h.b16 %v26
    %v299 = vunpack.c.l.b16 %v27
    %v300 = vunpack.c.h.b16 %v27
    %v301 = vunpack.c.l.b16 %v28
    %v302 = vunpack.c.h.b16 %v28
    %v303 = vunpack.c.l.b16 %v29
    %v304 = vunpack.c.h.b16 %v29
    %v305 = vunpack.c.l.b16 %v30
    %v306 = vunpack.c.h.b16 %v30
    %v307 = vunpack.c.l.b16 %v31
    %v308 = vunpack.c.h.b16 %v31
    %v309 = vpack.c.b16 %v297, %v295
    %v310 = vpack.c.b16 %v298, %v296
    %v311 = vpack.c.b16 %v301, %v299
    %v312 = vpack.c.b16 %v302, %v300
    %v313 = vpack.c.b16 %v305, %v303
    %v314 = vpack.c.b16 %v306, %v304
    %v315 = vpack.c.b16 %v307, %v307
    %v316 = vpack.c.b16 %v308, %v308
    %v581 = vunpack.c.l.b16 %v32
    %v582 = vunpack.c.h.b16 %v32
    %v583 = vunpack.c.l.b16 %v33
    %v584 = vunpack.c.h.b16 %v33
    %v585 = vunpack.c.l.b16 %v34
    %v586 = vunpack.c.h.b16 %v34
    %v587 = vunpack.c.l.b16 %v35
    %v588 = vunpack.c.h.b16 %v35
    %v589 = vunpack.c.l.b16 %v36
    %v590 = vunpack.c.h.b16 %v36
    %v591 = vunpack.c.l.b16 %v37
    %v592 = vunpack.c.h.b16 %v37
    %v593 = vunpack.c.l.b16 %v38
    %v594 = vunpack.c.h.b16 %v38
    %v595 = vunpack.c.l.b16 %v39
    %v596 = vunpack.c.h.b16 %v39
    %v597 = vunpack.c.l.b16 %v40
    %v598 = vunpack.c.h.b16 %v40
    %v599 = vunpack.c.l.b16 %v41
    %v600 = vunpack.c.h.b16 %v41
    %v601 = vunpack.c.l.b16 %v42
    %v602 = vunpack.c.h.b16 %v42
    %v603 = vunpack.c.l.b16 %v43
    %v604 = vunpack.c.h.b16 %v43
    %v605 = vunpack.c.l.b16 %v44
    %v606 = vunpack.c.h.b16 %v44
    %v607 = vunpack.c.l.b16 %v45
    %v608 = vunpack.c.h.b16 %v45
    %v609 = vunpack.c.l.b16 %v46
    %v610 = vunpack.c.h.b16 %v46
    %v611 = vunpack.c.l.b16 %v47
    %v612 = vunpack.c.h.b16 %v47
    %v613 = vunpack.c.l.b16 %v48
    %v614 = vunpack.c.h.b16 %v48
    %v615 = vunpack.c.l.b16 %v49
    %v616 = vunpack.c.h.b16 %v49
    %v617 = vunpack.c.l.b16 %v50
    %v618 = vunpack.c.h.b16 %v50
    %v619 = vunpack.c.l.b16 %v51
    %v620 = vunpack.c.h.b16 %v51
    %v621 = vunpack.c.l.b16 %v52
    %v622 = vunpack.c.h.b16 %v52
    %v623 = vunpack.c.l.b16 %v53
    %v624 = vunpack.c.h.b16 %v53
    %v625 = vunpack.c.l.b16 %v54
    %v626 = vunpack.c.h.b16 %v54
    %v627 = vunpack.c.l.b16 %v55
    %v628 = vunpack.c.h.b16 %v55
    %v629 = vunpack.c.l.b16 %v56
    %v630 = vunpack.c.h.b16 %v56
    %v631 = vunpack.c.l.b16 %v57
    %v632 = vunpack.c.h.b16 %v57
    %v633 = vunpack.c.l.b16 %v58
    %v634 = vunpack.c.h.b16 %v58
    %v635 = vunpack.c.l.b16 %v59
    %v636 = vunpack.c.h.b16 %v59
    %v637 = vunpack.c.l.b16 %v60
    %v638 = vunpack.c.h.b16 %v60
    %v639 = vunpack.c.l.b16 %v61
    %v640 = vunpack.c.h.b16 %v61
    %v641 = vunpack.c.l.b16 %v62
    %v642 = vunpack.c.h.b16 %v62
    %v643 = vunpack.c.l.b16 %v63
    %v644 = vunpack.c.h.b16 %v63
    %v645 = vunpack.c.l.b16 %v64
    %v646 = vunpack.c.h.b16 %v64
    %v647 = vunpack.c.l.b16 %v65
    %v648 = vunpack.c.h.b16 %v65
    %v649 = vunpack.c.l.b16 %v66
    %v650 = vunpack.c.h.b16 %v66
    %v651 = vunpack.c.l.b16 %v67
    %v652 = vunpack.c.h.b16 %v67
    %v653 = vunpack.c.l.b16 %v68
    %v654 = vunpack.c.h.b16 %v68
    %v655 = vunpack.c.l.b16 %v69
    %v656 = vunpack.c.h.b16 %v69
    %v657 = vunpack.c.l.b16 %v70
    %v658 = vunpack.c.h.b16 %v70
    %v659 = vunpack.c.l.b16 %v71
    %v660 = vunpack.c.h.b16 %v71
    %v661 = vunpack.c.l.b16 %v72
    %v662 = vunpack.c.h.b16 %v72
    %v663 = vunpack.c.l.b16 %v73
    %v664 = vunpack.c.h.b16 %v73
    %v665 = vunpack.c.l.b16 %v74
    %v666 = vunpack.c.h.b16 %v74
    %v667 = vunpack.c.l.b16 %v75
    %v668 = vunpack.c.h.b16 %v75
    %v669 = vunpack.c.l.b16 %v76
    %v670 = vunpack.c.h.b16 %v76
    %v671 = vunpack.c.l.b16 %v77
    %v672 = vunpack.c.h.b16 %v77
    %v673 = vunpack.c.l.b16 %v78
    %v674 = vunpack.c.h.b16 %v78
    %v675 = vunpack.c.l.b16 %v79
    %v676 = vunpack.c.h.b16 %v79
    %v677 = vunpack.c.l.b16 %v80
    %v678 = vunpack.c.h.b16 %v80
    %v679 = vunpack.c.l.b16 %v81
    %v680 = vunpack.c.h.b16 %v81
    %v681 = vunpack.c.l.b16 %v82
    %v682 = vunpack.c.h.b16 %v82
    %v683 = vunpack.c.l.b16 %v83
    %v684 = vunpack.c.h.b16 %v83
    %v685 = vunpack.c.l.b16 %v84
    %v686 = vunpack.c.h.b16 %v84
    %v687 = vunpack.c.l.b16 %v85
    %v688 = vunpack.c.h.b16 %v85
    %v689 = vunpack.c.l.b16 %v86
    %v690 = vunpack.c.h.b16 %v86
    %v691 = vunpack.c.l.b16 %v87
    %v692 = vunpack.c.h.b16 %v87
    %v693 = vunpack.c.l.b16 %v88
    %v694 = vunpack.c.h.b16 %v88
    %v695 = vunpack.c.l.b16 %v89
    %v696 = vunpack.c.h.b16 %v89
    %v697 = vunpack.c.l.b16 %v90
    %v698 = vunpack.c.h.b16 %v90
    %v699 = vunpack.c.l.b16 %v91
    %v700 = vunpack.c.h.b16 %v91
    %v701 = vunpack.c.l.b16 %v92
    %v702 = vunpack.c.h.b16 %v92
    %v703 = vunpack.c.l.b16 %v93
    %v704 = vunpack.c.h.b16 %v93
    %v705 = vunpack.c.l.b16 %v94
    %v706 = vunpack.c.h.b16 %v94
    %v707 = vunpack.c.l.b16 %v95
    %v708 = vunpack.c.h.b16 %v95
    %v709 = vunpack.c.l.b16 %v96
    %v710 = vunpack.c.h.b16 %v96
    %v711 = vunpack.c.l.b16 %v97
    %v712 = vunpack.c.h.b16 %v97
    %v713 = vunpack.c.l.b16 %v98
    %v714 = vunpack.c.h.b16 %v98
    %v715 = vunpack.c.l.b16 %v99
    %v716 = vunpack.c.h.b16 %v99
    %v717 = vunpack.c.l.b16 %v100
    %v718 = vunpack.c.h.b16 %v100
    %v719 = vunpack.c.l.b16 %v101
    %v720 = vunpack.c.h.b16 %v101
    %v721 = vunpack.c.l.b16 %v102
    %v722 = vunpack.c.h.b16 %v102
    %v723 = vunpack.c.l.b16 %v103
    %v724 = vunpack.c.h.b16 %v103
    %v725 = vunpack.c.l.b16 %v104
    %v726 = vunpack.c.h.b16 %v104
    %v727 = vunpack.c.l.b16 %v105
    %v728 = vunpack.c.h.b16 %v105
    %v729 = vunpack.c.l.b16 %v106
    %v730 = vunpack.c.h.b16 %v106
    %v731 = vunpack.c.l.b16 %v107
    %v732 = vunpack.c.h.b16 %v107
    %v733 = vunpack.c.l.b16 %v108
    %v734 = vunpack.c.h.b16 %v108
    %v735 = vunpack.c.l.b16 %v109
    %v736 = vunpack.c.h.b16 %v109
    %v737 = vunpack.c.l.b16 %v110
    %v738 = vunpack.c.h.b16 %v110
    %v739 = vunpack.c.l.b16 %v111
    %v740 = vunpack.c.h.b16 %v111
    %v741 = vunpack.c.l.b16 %v112
    %v742 = vunpack.c.h.b16 %v112
    %v743 = vunpack.c.l.b16 %v113
    %v744 = vunpack.c.h.b16 %v113
    %v745 = vunpack.c.l.b16 %v114
    %v746 = vunpack.c.h.b16 %v114
    %v747 = vunpack.c.l.b16 %v115
    %v748 = vunpack.c.h.b16 %v115
    %v749 = vunpack.c.l.b16 %v116
    %v750 = vunpack.c.h.b16 %v116
    %v751 = vunpack.c.l.b16 %v117
    %v752 = vunpack.c.h.b16 %v117
    %v753 = vunpack.c.l.b16 %v118
    %v754 = vunpack.c.h.b16 %v118
    %v755 = vunpack.c.l.b16 %v119
    %v756 = vunpack.c.h.b16 %v119
    %v757 = vunpack.c.l.b16 %v120
    %v758 = vunpack.c.h.b16 %v120
    %v759 = vunpack.c.l.b16 %v121
    %v760 = vunpack.c.h.b16 %v121
    %v761 = vunpack.c.l.b16 %v122
    %v762 = vunpack.c.h.b16 %v122
    %v763 = vunpack.c.l.b16 %v123
    %v764 = vunpack.c.h.b16 %v123
    %v765 = vunpack.c.l.b16 %v124
    %v766 = vunpack.c.h.b16 %v124
    %v767 = vunpack.c.l.b16 %v125
    %v768 = vunpack.c.h.b16 %v125
    %v769 = vunpack.c.l.b16 %v126
    %v770 = vunpack.c.h.b16 %v126
    %v771 = vunpack.c.l.b16 %v127
    %v772 = vunpack.c.h.b16 %v127
    %v773 = vunpack.c.l.b16 %v128
    %v774 = vunpack.c.h.b16 %v128
    %v775 = vunpack.c.l.b16 %v129
    %v776 = vunpack.c.h.b16 %v129
    %v777 = vunpack.c.l.b16 %v130
    %v778 = vunpack.c.h.b16 %v130
    %v779 = vunpack.c.l.b16 %v131
    %v780 = vunpack.c.h.b16 %v131
    %v781 = vunpack.c.l.b16 %v132
    %v782 = vunpack.c.h.b16 %v132
    %v783 = vunpack.c.l.b16 %v133
    %v784 = vunpack.c.h.b16 %v133
    %v785 = vunpack.c.l.b16 %v134
    %v786 = vunpack.c.h.b16 %v134
    %v787 = vunpack.c.l.b16 %v135
    %v788 = vunpack.c.h.b16 %v135
    %v789 = vunpack.c.l.b16 %v136
    %v790 = vunpack.c.h.b16 %v136
    %v791 = vunpack.c.l.b16 %v137
    %v792 = vunpack.c.h.b16 %v137
    %v793 = vunpack.c.l.b16 %v138
    %v794 = vunpack.c.h.b16 %v138
    %v795 = vunpack.c.l.b16 %v139
    %v796 = vunpack.c.h.b16 %v139
    %v797 = vunpack.c.l.b16 %v140
    %v798 = vunpack.c.h.b16 %v140
    %v799 = vunpack.c.l.b16 %v141
    %v800 = vunpack.c.h.b16 %v141
    %v801 = vunpack.c.l.b16 %v142
    %v802 = vunpack.c.h.b16 %v142
    %v803 = vunpack.c.l.b16 %v143
    %v804 = vunpack.c.h.b16 %v143
    %v805 = vunpack.c.l.b16 %v144
    %v806 = vunpack.c.h.b16 %v144
    %v807 = vunpack.c.l.b16 %v145
    %v808 = vunpack.c.h.b16 %v145
    %v809 = vunpack.c.l.b16 %v146
    %v810 = vunpack.c.h.b16 %v146
    %v811 = vunpack.c.l.b16 %v147
    %v812 = vunpack.c.h.b16 %v147
    %v813 = vunpack.c.l.b16 %v148
    %v814 = vunpack.c.h.b16 %v148
    %v815 = vunpack.c.l.b16 %v149
    %v816 = vunpack.c.h.b16 %v149
    %v817 = vunpack.c.l.b16 %v150
    %v818 = vunpack.c.h.b16 %v150
    %v819 = vunpack.c.l.b16 %v151
    %v820 = vunpack.c.h.b16 %v151
    %v821 = vunpack.c.l.b16 %v152
    %v822 = vunpack.c.h.b16 %v152
    %v823 = vunpack.c.l.b16 %v153
    %v824 = vunpack.c.h.b16 %v153
    %v825 = vunpack.c.l.b16 %v154
    %v826 = vunpack.c.h.b16 %v154
    %v827 = vunpack.c.l.b16 %v155
    %v828 = vunpack.c.h.b16 %v155
    %v829 = vunpack.c.l.b16 %v156
    %v830 = vunpack.c.h.b16 %v156
    %v831 = vunpack.c.l.b16 %v157
    %v832 = vunpack.c.h.b16 %v157
    %v833 = vunpack.c.l.b16 %v158
    %v834 = vunpack.c.h.b16 %v158
    %v835 = vunpack.c.l.b16 %v159
    %v836 = vunpack.c.h.b16 %v159
    %v837 = vunpack.c.l.b16 %v160
    %v838 = vunpack.c.h.b16 %v160
    %v839 = vunpack.c.l.b16 %v161
    %v840 = vunpack.c.h.b16 %v161
    %v841 = vunpack.c.l.b16 %v162
    %v842 = vunpack.c.h.b16 %v162
    %v843 = vunpack.c.l.b16 %v163
    %v844 = vunpack.c.h.b16 %v163
    %v845 = vunpack.c.l.b16 %v164
    %v846 = vunpack.c.h.b16 %v164
    %v847 = vunpack.c.l.b16 %v165
    %v848 = vunpack.c.h.b16 %v165
    %v849 = vunpack.c.l.b16 %v166
    %v850 = vunpack.c.h.b16 %v166
    %v851 = vunpack.c.l.b16 %v167
    %v852 = vunpack.c.h.b16 %v167
    %v853 = vunpack.c.l.b16 %v168
    %v854 = vunpack.c.h.b16 %v168
    %v855 = vunpack.c.l.b16 %v169
    %v856 = vunpack.c.h.b16 %v169
    %v857 = vunpack.c.l.b16 %v170
    %v858 = vunpack.c.h.b16 %v170
    %v859 = vunpack.c.l.b16 %v171
    %v860 = vunpack.c.h.b16 %v171
    %v861 = vunpack.c.l.b16 %v172
    %v862 = vunpack.c.h.b16 %v172
    %v863 = vunpack.c.l.b16 %v173
    %v864 = vunpack.c.h.b16 %v173
    %v865 = vunpack.c.l.b16 %v174
    %v866 = vunpack.c.h.b16 %v174
    %v867 = vunpack.c.l.b16 %v175
    %v868 = vunpack.c.h.b16 %v175
    %v869 = vunpack.c.l.b16 %v176
    %v870 = vunpack.c.h.b16 %v176
    %v871 = vunpack.c.l.b16 %v177
    %v872 = vunpack.c.h.b16 %v177
    %v873 = vunpack.c.l.b16 %v178
    %v874 = vunpack.c.h.b16 %v178
    %v875 = vunpack.c.l.b16 %v179
    %v876 = vunpack.c.h.b16 %v179
    %v877 = vunpack.c.l.b16 %v180
    %v878 = vunpack.c.h.b16 %v180
    %v879 = vunpack.c.l.b16 %v181
    %v880 = vunpack.c.h.b16 %v181
    %v881 = vunpack.c.l.b16 %v182
    %v882 = vunpack.c.h.b16 %v182
    %v883 = vunpack.c.l.b16 %v183
    %v884 = vunpack.c.h.b16 %v183
    %v885 = vunpack.c.l.b16 %v184
    %v886 = vunpack.c.h.b16 %v184
    %v887 = vunpack.c.l.b16 %v185
    %v888 = vunpack.c.h.b16 %v185
    %v889 = vunpack.c.l.b16 %v186
    %v890 = vunpack.c.h.b16 %v186
    %v891 = vunpack.c.l.b16 %v187
    %v892 = vunpack.c.h.b16 %v187
    %v893 = vunpack.c.l.b16 %v188
    %v894 = vunpack.c.h.b16 %v188
    %v895 = vunpack.c.l.b16 %v189
    %v896 = vunpack.c.h.b16 %v189
    %v897 = vunpack.c.l.b16 %v190
    %v898 = vunpack.c.h.b16 %v190
    %v899 = vunpack.c.l.b16 %v191
    %v900 = vunpack.c.h.b16 %v191
    %v901 = vunpack.c.l.b16 %v192
    %v902 = vunpack.c.h.b16 %v192
    %v903 = vunpack.c.l.b16 %v193
    %v904 = vunpack.c.h.b16 %v193
    %v905 = vunpack.c.l.b16 %v194
    %v906 = vunpack.c.h.b16 %v194
    %v907 = vunpack.c.l.b16 %v195
    %v908 = vunpack.c.h.b16 %v195
    %v909 = vunpack.c.l.b16 %v196
    %v910 = vunpack.c.h.b16 %v196
    %v911 = vunpack.c.l.b16 %v197
    %v912 = vunpack.c.h.b16 %v197
    %v913 = vunpack.c.l.b16 %v198
    %v914 = vunpack.c.h.b16 %v198
    %v915 = vunpack.c.l.b16 %v199
    %v916 = vunpack.c.h.b16 %v199
    %v917 = vunpack.c.l.b16 %v200
    %v918 = vunpack.c.h.b16 %v200
    %v919 = vunpack.c.l.b16 %v201
    %v920 = vunpack.c.h.b16 %v201
    %v921 = vunpack.c.l.b16 %v202
    %v922 = vunpack.c.h.b16 %v202
    %v923 = vunpack.c.l.b16 %v203
    %v924 = vunpack.c.h.b16 %v203
    %v925 = vunpack.c.l.b16 %v204
    %v926 = vunpack.c.h.b16 %v204
    %v927 = vunpack.c.l.b16 %v205
    %v928 = vunpack.c.h.b16 %v205
    %v929 = vunpack.c.l.b16 %v206
    %v930 = vunpack.c.h.b16 %v206
    %v931 = vunpack.c.l.b16 %v207
    %v932 = vunpack.c.h.b16 %v207
    %v933 = vunpack.c.l.b16 %v208
    %v934 = vunpack.c.h.b16 %v208
    %v935 = vunpack.c.l.b16 %v209
    %v936 = vunpack.c.h.b16 %v209
    %v937 = vunpack.c.l.b16 %v210
    %v938 = vunpack.c.h.b16 %v210
    %v939 = vunpack.c.l.b16 %v211
    %v940 = vunpack.c.h.b16 %v211
    %v941 = vunpack.c.l.b16 %v212
    %v942 = vunpack.c.h.b16 %v212
    %v943 = vunpack.c.l.b16 %v213
    %v944 = vunpack.c.h.b16 %v213
    %v945 = vunpack.c.l.b16 %v214
    %v946 = vunpack.c.h.b16 %v214
    %v947 = vunpack.c.l.b16 %v215
    %v948 = vunpack.c.h.b16 %v215
    %v949 = vunpack.c.l.b16 %v216
    %v950 = vunpack.c.h.b16 %v216
    %v951 = vunpack.c.l.b16 %v217
    %v952 = vunpack.c.h.b16 %v217
    %v953 = vunpack.c.l.b16 %v218
    %v954 = vunpack.c.h.b16 %v218
    %v955 = vunpack.c.l.b16 %v219
    %v956 = vunpack.c.h.b16 %v219
    %v957 = vunpack.c.l.b16 %v220
    %v958 = vunpack.c.h.b16 %v220
    %v959 = vunpack.c.l.b16 %v221
    %v960 = vunpack.c.h.b16 %v221
    %v961 = vunpack.c.l.b16 %v222
    %v962 = vunpack.c.h.b16 %v222
    %v963 = vunpack.c.l.b16 %v223
    %v964 = vunpack.c.h.b16 %v223
    %v965 = vunpack.c.l.b16 %v224
    %v966 = vunpack.c.h.b16 %v224
    %v967 = vunpack.c.l.b16 %v225
    %v968 = vunpack.c.h.b16 %v225
    %v969 = vunpack.c.l.b16 %v226
    %v970 = vunpack.c.h.b16 %v226
    %v971 = vunpack.c.l.b16 %v227
    %v972 = vunpack.c.h.b16 %v227
    %v973 = vunpack.c.l.b16 %v228
    %v974 = vunpack.c.h.b16 %v228
    %v975 = vunpack.c.l.b16 %v229
    %v976 = vunpack.c.h.b16 %v229
    %v977 = vunpack.c.l.b16 %v230
    %v978 = vunpack.c.h.b16 %v230
    %v979 = vunpack.c.l.b16 %v231
    %v980 = vunpack.c.h.b16 %v231
    %v981 = vunpack.c.l.b16 %v232
    %v982 = vunpack.c.h.b16 %v232
    %v983 = vunpack.c.l.b16 %v233
    %v984 = vunpack.c.h.b16 %v233
    %v985 = vunpack.c.l.b16 %v234
    %v986 = vunpack.c.h.b16 %v234
    %v987 = vunpack.c.l.b16 %v235
    %v988 = vunpack.c.h.b16 %v235
    %v989 = vunpack.c.l.b16 %v236
    %v990 = vunpack.c.h.b16 %v236
    %v991 = vunpack.c.l.b16 %v237
    %v992 = vunpack.c.h.b16 %v237
    %v993 = vunpack.c.l.b16 %v238
    %v994 = vunpack.c.h.b16 %v238
    %v995 = vunpack.c.l.b16 %v239
    %v996 = vunpack.c.h.b16 %v239
    %v997 = vunpack.c.l.b16 %v240
    %v998 = vunpack.c.h.b16 %v240
    %v999 = vunpack.c.l.b16 %v241
    %v1000 = vunpack.c.h.b16 %v241
    %v1001 = vunpack.c.l.b16 %v242
    %v1002 = vunpack.c.h.b16 %v242
    %v1003 = vunpack.c.l.b16 %v243
    %v1004 = vunpack.c.h.b16 %v243
    %v1005 = vunpack.c.l.b16 %v244
    %v1006 = vunpack.c.h.b16 %v244
    %v1007 = vunpack.c.l.b16 %v245
    %v1008 = vunpack.c.h.b16 %v245
    %v1009 = vunpack.c.l.b16 %v246
    %v1010 = vunpack.c.h.b16 %v246
    %v1011 = vunpack.c.l.b16 %v247
    %v1012 = vunpack.c.h.b16 %v247
    %v1013 = vunpack.c.l.b16 %v248
    %v1014 = vunpack.c.h.b16 %v248
    %v1015 = vunpack.c.l.b16 %v249
    %v1016 = vunpack.c.h.b16 %v249
    %v1017 = vunpack.c.l.b16 %v250
    %v1018 = vunpack.c.h.b16 %v250
    %v1019 = vunpack.c.l.b16 %v251
    %v1020 = vunpack.c.h.b16 %v251
    %v1021 = vunpack.c.l.b16 %v252
    %v1022 = vunpack.c.h.b16 %v252
    %v1023 = vunpack.c.l.b16 %v253
    %v1024 = vunpack.c.h.b16 %v253
    %v1025 = vunpack.c.l.b16 %v254
    %v1026 = vunpack.c.h.b16 %v254
    %v1027 = vunpack.c.l.b16 %v255
    %v1028 = vunpack.c.h.b16 %v255
    %v1029 = vunpack.c.l.b16 %v256
    %v1030 = vunpack.c.h.b16 %v256
    %v1031 = vunpack.c.l.b16 %v257
    %v1032 = vunpack.c.h.b16 %v257
    %v1033 = vunpack.c.l.b16 %v258
    %v1034 = vunpack.c.h.b16 %v258
    %v1035 = vunpack.c.l.b16 %v259
    %v1036 = vunpack.c.h.b16 %v259
    %v1037 = vunpack.c.l.b16 %v260
    %v1038 = vunpack.c.h.b16 %v260
    %v1039 = vunpack.c.l.b16 %v261
    %v1040 = vunpack.c.h.b16 %v261
    %v1041 = vunpack.c.l.b16 %v262
    %v1042 = vunpack.c.h.b16 %v262
    %v1043 = vunpack.c.l.b16 %v263
    %v1044 = vunpack.c.h.b16 %v263
    %v1045 = vunpack.c.l.b16 %v264
    %v1046 = vunpack.c.h.b16 %v264
    %v1047 = vunpack.c.l.b16 %v265
    %v1048 = vunpack.c.h.b16 %v265
    %v1049 = vunpack.c.l.b16 %v266
    %v1050 = vunpack.c.h.b16 %v266
    %v1051 = vunpack.c.l.b16 %v267
    %v1052 = vunpack.c.h.b16 %v267
    %v1053 = vunpack.c.l.b16 %v268
    %v1054 = vunpack.c.h.b16 %v268
    %v1055 = vunpack.c.l.b16 %v269
    %v1056 = vunpack.c.h.b16 %v269
    %v1057 = vunpack.c.l.b16 %v270
    %v1058 = vunpack.c.h.b16 %v270
    %v1059 = vunpack.c.l.b16 %v271
    %v1060 = vunpack.c.h.b16 %v271
    %v1061 = vunpack.c.l.b16 %v272
    %v1062 = vunpack.c.h.b16 %v272
    %v1063 = vunpack.c.l.b16 %v273
    %v1064 = vunpack.c.h.b16 %v273
    %v1065 = vunpack.c.l.b16 %v274
    %v1066 = vunpack.c.h.b16 %v274
    %v1067 = vunpack.c.l.b16 %v275
    %v1068 = vunpack.c.h.b16 %v275
    %v1069 = vunpack.c.l.b16 %v276
    %v1070 = vunpack.c.h.b16 %v276
    %v1071 = vunpack.c.l.b16 %v277
    %v1072 = vunpack.c.h.b16 %v277
    %v1073 = vunpack.c.l.b16 %v278
    %v1074 = vunpack.c.h.b16 %v278
    %v1075 = vunpack.c.l.b16 %v279
    %v1076 = vunpack.c.h.b16 %v279
    %v1077 = vunpack.c.l.b16 %v280
    %v1078 = vunpack.c.h.b16 %v280
    %v1079 = vunpack.c.l.b16 %v281
    %v1080 = vunpack.c.h.b16 %v281
    %v1081 = vunpack.c.l.b16 %v282
    %v1082 = vunpack.c.h.b16 %v282
    %v1083 = vunpack.c.l.b16 %v283
    %v1084 = vunpack.c.h.b16 %v283
    %v1085 = vunpack.c.l.b16 %v284
    %v1086 = vunpack.c.h.b16 %v284
    %v1087 = vunpack.c.l.b16 %v285
    %v1088 = vunpack.c.h.b16 %v285
    %v1089 = vunpack.c.l.b16 %v286
    %v1090 = vunpack.c.h.b16 %v286
    %v1091 = vunpack.c.l.b16 %v287
    %v1092 = vunpack.c.h.b16 %v287
    %v1093 = vpack.c.b16 %v597, %v581
    %v1094 = vpack.c.b16 %v598, %v582
    %v1095 = vpack.c.b16 %v599, %v583
    %v1096 = vpack.c.b16 %v600, %v584
    %v1097 = vpack.c.b16 %v601, %v585
    %v1098 = vpack.c.b16 %v602, %v586
    %v1099 = vpack.c.b16 %v603, %v587
    %v1100 = vpack.c.b16 %v604, %v588
    %v1101 = vpack.c.b16 %v605, %v589
    %v1102 = vpack.c.b16 %v606, %v590
    %v1103 = vpack.c.b16 %v607, %v591
    %v1104 = vpack.c.b16 %v608, %v592
    %v1105 = vpack.c.b16 %v609, %v593
    %v1106 = vpack.c.b16 %v610, %v594
    %v1107 = vpack.c.b16 %v611, %v595
    %v1108 = vpack.c.b16 %v612, %v596
    %v1109 = vpack.c.b16 %v629, %v613
    %v1110 = vpack.c.b16 %v630, %v614
    %v1111 = vpack.c.b16 %v631, %v615
    %v1112 = vpack.c.b16 %v632, %v616
    %v1113 = vpack.c.b16 %v633, %v617
    %v1114 = vpack.c.b16 %v634, %v618
    %v1115 = vpack.c.b16 %v635, %v619
    %v1116 = vpack.c.b16 %v636, %v620
    %v1117 = vpack.c.b16 %v637, %v621
    %v1118 = vpack.c.b16 %v638, %v622
    %v1119 = vpack.c.b16 %v639, %v623
    %v1120 = vpack.c.b16 %v640, %v624
    %v1121 = vpack.c.b16 %v641, %v625
    %v1122 = vpack.c.b16 %v642, %v626
    %v1123 = vpack.c.b16 %v643, %v627
    %v1124 = vpack.c.b16 %v644, %v628
    %v1125 = vpack.c.b16 %v661, %v645
    %v1126 = vpack.c.b16 %v662, %v646
    %v1127 = vpack.c.b16 %v663, %v647
    %v1128 = vpack.c.b16 %v664, %v648
    %v1129 = vpack.c.b16 %v665, %v649
    %v1130 = vpack.c.b16 %v666, %v650
    %v1131 = vpack.c.b16 %v667, %v651
    %v1132 = vpack.c.b16 %v668, %v652
    %v1133 = vpack.c.b16 %v669, %v653
    %v1134 = vpack.c.b16 %v670, %v654
    %v1135 = vpack.c.b16 %v671, %v655
    %v1136 = vpack.c.b16 %v672, %v656
    %v1137 = vpack.c.b16 %v673, %v657
    %v1138 = vpack.c.b16 %v674, %v658
    %v1139 = vpack.c.b16 %v675, %v659
    %v1140 = vpack.c.b16 %v676, %v660
    %v1141 = vpack.c.b16 %v693, %v677
    %v1142 = vpack.c.b16 %v694, %v678
    %v1143 = vpack.c.b16 %v695, %v679
    %v1144 = vpack.c.b16 %v696, %v680
    %v1145 = vpack.c.b16 %v697, %v681
    %v1146 = vpack.c.b16 %v698, %v682
    %v1147 = vpack.c.b16 %v699, %v683
    %v1148 = vpack.c.b16 %v700, %v684
    %v1149 = vpack.c.b16 %v701, %v685
    %v1150 = vpack.c.b16 %v702, %v686
    %v1151 = vpack.c.b16 %v703, %v687
    %v1152 = vpack.c.b16 %v704, %v688
    %v1153 = vpack.c.b16 %v705, %v689
    %v1154 = vpack.c.b16 %v706, %v690
    %v1155 = vpack.c.b16 %v707, %v691
    %v1156 = vpack.c.b16 %v708, %v692
    %v1157 = vpack.c.b16 %v725, %v709
    %v1158 = vpack.c.b16 %v726, %v710
    %v1159 = vpack.c.b16 %v727, %v711
    %v1160 = vpack.c.b16 %v728, %v712
    %v1161 = vpack.c.b16 %v729, %v713
    %v1162 = vpack.c.b16 %v730, %v714
    %v1163 = vpack.c.b16 %v731, %v715
    %v1164 = vpack.c.b16 %v732, %v716
    %v1165 = vpack.c.b16 %v733, %v717
    %v1166 = vpack.c.b16 %v734, %v718
    %v1167 = vpack.c.b16 %v735, %v719
    %v1168 = vpack.c.b16 %v736, %v720
    %v1169 = vpack.c.b16 %v737, %v721
    %v1170 = vpack.c.b16 %v738, %v722
    %v1171 = vpack.c.b16 %v739, %v723
    %v1172 = vpack.c.b16 %v740, %v724
    %v1173 = vpack.c.b16 %v757, %v741
    %v1174 = vpack.c.b16 %v758, %v742
    %v1175 = vpack.c.b16 %v759, %v743
    %v1176 = vpack.c.b16 %v760, %v744
    %v1177 = vpack.c.b16 %v761, %v745
    %v1178 = vpack.c.b16 %v762, %v746
    %v1179 = vpack.c.b16 %v763, %v747
    %v1180 = vpack.c.b16 %v764, %v748
    %v1181 = vpack.c.b16 %v765, %v749
    %v1182 = vpack.c.b16 %v766, %v750
    %v1183 = vpack.c.b16 %v767, %v751
    %v1184 = vpack.c.b16 %v768, %v752
    %v1185 = vpack.c.b16 %v769, %v753
    %v1186 = vpack.c.b16 %v770, %v754
    %v1187 = vpack.c.b16 %v771, %v755
    %v1188 = vpack.c.b16 %v772, %v756
    %v1189 = vpack.c.b16 %v789, %v773
    %v1190 = vpack.c.b16 %v790, %v774
    %v1191 = vpack.c.b16 %v791, %v775
    %v1192 = vpack.c.b16 %v792, %v776
    %v1193 = vpack.c.b16 %v793, %v777
    %v1194 = vpack.c.b16 %v794, %v778
    %v1195 = vpack.c.b16 %v795, %v779
    %v1196 = vpack.c.b16 %v796, %v780
    %v1197 = vpack.c.b16 %v797, %v781
    %v1198 = vpack.c.b16 %v798, %v782
    %v1199 = vpack.c.b16 %v799, %v783
    %v1200 = vpack.c.b16 %v800, %v784
    %v1201 = vpack.c.b16 %v801, %v785
    %v1202 = vpack.c.b16 %v802, %v786
    %v1203 = vpack.c.b16 %v803, %v787
    %v1204 = vpack.c.b16 %v804, %v788
    %v1205 = vpack.c.b16 %v821, %v805
    %v1206 = vpack.c.b16 %v822, %v806
    %v1207 = vpack.c.b16 %v823, %v807
    %v1208 = vpack.c.b16 %v824, %v808
    %v1209 = vpack.c.b16 %v825, %v809
    %v1210 = vpack.c.b16 %v826, %v810
    %v1211 = vpack.c.b16 %v827, %v811
    %v1212 = vpack.c.b16 %v828, %v812
    %v1213 = vpack.c.b16 %v829, %v813
    %v1214 = vpack.c.b16 %v830, %v814
    %v1215 = vpack.c.b16 %v831, %v815
    %v1216 = vpack.c.b16 %v832, %v816
    %v1217 = vpack.c.b16 %v833, %v817
    %v1218 = vpack.c.b16 %v834, %v818
    %v1219 = vpack.c.b16 %v835, %v819
    %v1220 = vpack.c.b16 %v836, %v820
    %v1221 = vpack.c.b16 %v853, %v837
    %v1222 = vpack.c.b16 %v854, %v838
    %v1223 = vpack.c.b16 %v855, %v839
    %v1224 = vpack.c.b16 %v856, %v840
    %v1225 = vpack.c.b16 %v857, %v841
    %v1226 = vpack.c.b16 %v858, %v842
    %v1227 = vpack.c.b16 %v859, %v843
    %v1228 = vpack.c.b16 %v860, %v844
    %v1229 = vpack.c.b16 %v861, %v845
    %v1230 = vpack.c.b16 %v862, %v846
    %v1231 = vpack.c.b16 %v863, %v847
    %v1232 = vpack.c.b16 %v864, %v848
    %v1233 = vpack.c.b16 %v865, %v849
    %v1234 = vpack.c.b16 %v866, %v850
    %v1235 = vpack.c.b16 %v867, %v851
    %v1236 = vpack.c.b16 %v868, %v852
    %v1237 = vpack.c.b16 %v885, %v869
    %v1238 = vpack.c.b16 %v886, %v870
    %v1239 = vpack.c.b16 %v887, %v871
    %v1240 = vpack.c.b16 %v888, %v872
    %v1241 = vpack.c.b16 %v889, %v873
    %v1242 = vpack.c.b16 %v890, %v874
    %v1243 = vpack.c.b16 %v891, %v875
    %v1244 = vpack.c.b16 %v892, %v876
    %v1245 = vpack.c.b16 %v893, %v877
    %v1246 = vpack.c.b16 %v894, %v878
    %v1247 = vpack.c.b16 %v895, %v879
    %v1248 = vpack.c.b16 %v896, %v880
    %v1249 = vpack.c.b16 %v897, %v881
    %v1250 = vpack.c.b16 %v898, %v882
    %v1251 = vpack.c.b16 %v899, %v883
    %v1252 = vpack.c.b16 %v900, %v884
    %v1253 = vpack.c.b16 %v917, %v901
    %v1254 = vpack.c.b16 %v918, %v902
    %v1255 = vpack.c.b16 %v919, %v903
    %v1256 = vpack.c.b16 %v920, %v904
    %v1257 = vpack.c.b16 %v921, %v905
    %v1258 = vpack.c.b16 %v922, %v906
    %v1259 = vpack.c.b16 %v923, %v907
    %v1260 = vpack.c.b16 %v924, %v908
    %v1261 = vpack.c.b16 %v925, %v909
    %v1262 = vpack.c.b16 %v926, %v910
    %v1263 = vpack.c.b16 %v927, %v911
    %v1264 = vpack.c.b16 %v928, %v912
    %v1265 = vpack.c.b16 %v929, %v913
    %v1266 = vpack.c.b16 %v930, %v914
    %v1267 = vpack.c.b16 %v931, %v915
    %v1268 = vpack.c.b16 %v932, %v916
    %v1269 = vpack.c.b16 %v949, %v933
    %v1270 = vpack.c.b16 %v950, %v934
    %v1271 = vpack.c.b16 %v951, %v935
    %v1272 = vpack.c.b16 %v952, %v936
    %v1273 = vpack.c.b16 %v953, %v937
    %v1274 = vpack.c.b16 %v954, %v938
    %v1275 = vpack.c.b16 %v955, %v939
    %v1276 = vpack.c.b16 %v956, %v940
    %v1277 = vpack.c.b16 %v957, %v941
    %v1278 = vpack.c.b16 %v958, %v942
    %v1279 = vpack.c.b16 %v959, %v943
    %v1280 = vpack.c.b16 %v960, %v944
    %v1281 = vpack.c.b16 %v961, %v945
    %v1282 = vpack.c.b16 %v962, %v946
    %v1283 = vpack.c.b16 %v963, %v947
    %v1284 = vpack.c.b16 %v964, %v948
    %v1285 = vpack.c.b16 %v981, %v965
    %v1286 = vpack.c.b16 %v982, %v966
    %v1287 = vpack.c.b16 %v983, %v967
    %v1288 = vpack.c.b16 %v984, %v968
    %v1289 = vpack.c.b16 %v985, %v969
    %v1290 = vpack.c.b16 %v986, %v970
    %v1291 = vpack.c.b16 %v987, %v971
    %v1292 = vpack.c.b16 %v988, %v972
    %v1293 = vpack.c.b16 %v989, %v973
    %v1294 = vpack.c.b16 %v990, %v974
    %v1295 = vpack.c.b16 %v991, %v975
    %v1296 = vpack.c.b16 %v992, %v976
    %v1297 = vpack.c.b16 %v993, %v977
    %v1298 = vpack.c.b16 %v994, %v978
    %v1299 = vpack.c.b16 %v995, %v979
    %v1300 = vpack.c.b16 %v996, %v980
    %v1301 = vpack.c.b16 %v1013, %v997
    %v1302 = vpack.c.b16 %v1014, %v998
    %v1303 = vpack.c.b16 %v1015, %v999
    %v1304 = vpack.c.b16 %v1016, %v1000
    %v1305 = vpack.c.b16 %v1017, %v1001
    %v1306 = vpack.c.b16 %v1018, %v1002
    %v1307 = vpack.c.b16 %v1019, %v1003
    %v1308 = vpack.c.b16 %v1020, %v1004
    %v1309 = vpack.c.b16 %v1021, %v1005
    %v1310 = vpack.c.b16 %v1022, %v1006
    %v1311 = vpack.c.b16 %v1023, %v1007
    %v1312 = vpack.c.b16 %v1024, %v1008
    %v1313 = vpack.c.b16 %v1025, %v1009
    %v1314 = vpack.c.b16 %v1026, %v1010
    %v1315 = vpack.c.b16 %v1027, %v1011
    %v1316 = vpack.c.b16 %v1028, %v1012
    %v1317 = vpack.c.b16 %v1045, %v1029
    %v1318 = vpack.c.b16 %v1046, %v1030
    %v1319 = vpack.c.b16 %v1047, %v1031
    %v1320 = vpack.c.b16 %v1048, %v1032
    %v1321 = vpack.c.b16 %v1049, %v1033
    %v1322 = vpack.c.b16 %v1050, %v1034
    %v1323 = vpack.c.b16 %v1051, %v1035
    %v1324 = vpack.c.b16 %v1052, %v1036
    %v1325 = vpack.c.b16 %v1053, %v1037
    %v1326 = vpack.c.b16 %v1054, %v1038
    %v1327 = vpack.c.b16 %v1055, %v1039
    %v1328 = vpack.c.b16 %v1056, %v1040
    %v1329 = vpack.c.b16 %v1057, %v1041
    %v1330 = vpack.c.b16 %v1058, %v1042
    %v1331 = vpack.c.b16 %v1059, %v1043
    %v1332 = vpack.c.b16 %v1060, %v1044
    %v1333 = vpack.c.b16 %v1077, %v1061
    %v1334 = vpack.c.b16 %v1078, %v1062
    %v1335 = vpack.c.b16 %v1079, %v1063
    %v1336 = vpack.c.b16 %v1080, %v1064
    %v1337 = vpack.c.b16 %v1081, %v1065
    %v1338 = vpack.c.b16 %v1082, %v1066
    %v1339 = vpack.c.b16 %v1083, %v1067
    %v1340 = vpack.c.b16 %v1084, %v1068
    %v1341 = vpack.c.b16 %v1085, %v1069
    %v1342 = vpack.c.b16 %v1086, %v1070
    %v1343 = vpack.c.b16 %v1087, %v1071
    %v1344 = vpack.c.b16 %v1088, %v1072
    %v1345 = vpack.c.b16 %v1089, %v1073
    %v1346 = vpack.c.b16 %v1090, %v1074
    %v1347 = vpack.c.b16 %v1091, %v1075
    %v1348 = vpack.c.b16 %v1092, %v1076
    %1605 = vmatprep.subr.bf16.mxu0 %v1094
    %1606 = vmatpush1.bf16.msra.mxu0 %v1093
    %1607 = vmatprep.subr.bf16.mxu0 %v1110
    %1608 = vmatpush1.bf16.msra.mxu0 %v1109
    %1609 = vmatprep.subr.bf16.mxu0 %v1126
    %1610 = vmatpush1.bf16.msra.mxu0 %v1125
    %1611 = vmatprep.subr.bf16.mxu0 %v1142
    %1612 = vmatpush1.bf16.msra.mxu0 %v1141
    %1613 = vmatprep.subr.bf16.mxu0 %v1158
    %1614 = vmatpush1.bf16.msra.mxu0 %v1157
    %1615 = vmatprep.subr.bf16.mxu0 %v1174
    %1616 = vmatpush1.bf16.msra.mxu0 %v1173
    %1617 = vmatprep.subr.bf16.mxu0 %v1190
    %1618 = vmatpush1.bf16.msra.mxu0 %v1189
    %1619 = vmatprep.subr.bf16.mxu0 %v1206
    %1620 = vmatpush1.bf16.msra.mxu0 %v1205
    %1621 = vmatprep.subr.bf16.mxu0 %v1222
    %1622 = vmatpush1.bf16.msra.mxu0 %v1221
    %1623 = vmatprep.subr.bf16.mxu0 %v1238
    %1624 = vmatpush1.bf16.msra.mxu0 %v1237
    %1625 = vmatprep.subr.bf16.mxu0 %v1254
    %1626 = vmatpush1.bf16.msra.mxu0 %v1253
    %1627 = vmatprep.subr.bf16.mxu0 %v1270
    %1628 = vmatpush1.bf16.msra.mxu0 %v1269
    %1629 = vmatprep.subr.bf16.mxu0 %v1286
    %1630 = vmatpush1.bf16.msra.mxu0 %v1285
    %1631 = vmatprep.subr.bf16.mxu0 %v1302
    %1632 = vmatpush1.bf16.msra.mxu0 %v1301
    %1633 = vmatprep.subr.bf16.mxu0 %v1318
    %1634 = vmatpush1.bf16.msra.mxu0 %v1317
    %1635 = vmatprep.subr.bf16.mxu0 %v1334
    %1636 = vmatpush1.bf16.msra.mxu0 %v1333
    %1637 = vmatprep.mubr.bf16.mxu0 %v310
    %1638 = vmatmul.mubr.bf16.gmra.mrb[0].mxu0 %v309
    %v1639 = vpop.f32.mrb[0].mxu0
    %v1640 = vadd.f32 0.0, %v1639
    %v1641 = vpop.f32.mrb[0].mxu0
    %v1642 = vadd.f32 0.0, %v1641
    %v1643 = vpop.f32.mrb[0].mxu0
    %v1644 = vadd.f32 0.0, %v1643
    %v1645 = vpop.f32.mrb[0].mxu0
    %v1646 = vadd.f32 0.0, %v1645
    %1647 = vmatprep.mubr.bf16.mxu0 %v312
    %1648 = vmatmul.mubr.bf16.gmra.mrb[0].mxu0 %v311
    %v1649 = vpop.f32.mrb[0].mxu0
    %v1650 = vadd.f32 0.0, %v1649
    %v1651 = vpop.f32.mrb[0].mxu0
    %v1652 = vadd.f32 0.0, %v1651
    %v1653 = vpop.f32.mrb[0].mxu0
    %v1654 = vadd.f32 0.0, %v1653
    %v1655 = vpop.f32.mrb[0].mxu0
    %v1656 = vadd.f32 0.0, %v1655
    %1657 = vmatprep.mubr.bf16.mxu0 %v314
    %1658 = vmatmul.mubr.bf16.gmra.mrb[0].mxu0 %v313
    %v1659 = vpop.f32.mrb[0].mxu0
    %v1660 = vadd.f32 0.0, %v1659
    %v1661 = vpop.f32.mrb[0].mxu0
    %v1662 = vadd.f32 0.0, %v1661
    %v1663 = vpop.f32.mrb[0].mxu0
    %v1664 = vadd.f32 0.0, %v1663
    %v1665 = vpop.f32.mrb[0].mxu0
    %v1666 = vadd.f32 0.0, %v1665
    %1667 = vmatprep.mubr.bf16.mxu0 %v316
    %1668 = vmatmul.mubr.bf16.gmra.mrb[0].mxu0 %v315
    %v1669 = vpop.f32.mrb[0].mxu0
    %v1670 = vadd.f32 0.0, %v1669
    %v1671 = vpop.f32.mrb[0].mxu0
    %v1672 = vadd.f32 0.0, %v1671
    %v1673 = vpop.f32.mrb[0].mxu0
    %v1674 = vpop.f32.mrb[0].mxu0
    %1675 = vdwg.mxu0
    %1676 = vmatprep.subr.bf16.mxu0 %v1096
    %1677 = vmatpush1.bf16.msra.mxu0 %v1095
    %1678 = vmatprep.subr.bf16.mxu0 %v1112
    %1679 = vmatpush1.bf16.msra.mxu0 %v1111
    %1680 = vmatprep.subr.bf16.mxu0 %v1128
    %1681 = vmatpush1.bf16.msra.mxu0 %v1127
    %1682 = vmatprep.subr.bf16.mxu0 %v1144
    %1683 = vmatpush1.bf16.msra.mxu0 %v1143
    %1684 = vmatprep.subr.bf16.mxu0 %v1160
    %1685 = vmatpush1.bf16.msra.mxu0 %v1159
    %1686 = vmatprep.subr.bf16.mxu0 %v1176
    %1687 = vmatpush1.bf16.msra.mxu0 %v1175
    %1688 = vmatprep.subr.bf16.mxu0 %v1192
    %1689 = vmatpush1.bf16.msra.mxu0 %v1191
    %1690 = vmatprep.subr.bf16.mxu0 %v1208
    %1691 = vmatpush1.bf16.msra.mxu0 %v1207
    %1692 = vmatprep.subr.bf16.mxu0 %v1224
    %1693 = vmatpush1.bf16.msra.mxu0 %v1223
    %1694 = vmatprep.subr.bf16.mxu0 %v1240
    %1695 = vmatpush1.bf16.msra.mxu0 %v1239
    %1696 = vmatprep.subr.bf16.mxu0 %v1256
    %1697 = vmatpush1.bf16.msra.mxu0 %v1255
    %1698 = vmatprep.subr.bf16.mxu0 %v1272
    %1699 = vmatpush1.bf16.msra.mxu0 %v1271
    %1700 = vmatprep.subr.bf16.mxu0 %v1288
    %1701 = vmatpush1.bf16.msra.mxu0 %v1287
    %1702 = vmatprep.subr.bf16.mxu0 %v1304
    %1703 = vmatpush1.bf16.msra.mxu0 %v1303
    %1704 = vmatprep.subr.bf16.mxu0 %v1320
    %1705 = vmatpush1.bf16.msra.mxu0 %v1319
    %1706 = vmatprep.subr.bf16.mxu0 %v1336
    %1707 = vmatpush1.bf16.msra.mxu0 %v1335
    %1708 = vmatprep.mubr.bf16.mxu0 %v310
    %1709 = vmatmul.mubr.bf16.gmra.mrb[0].mxu0 %v309
    %v1710 = vpop.f32.mrb[0].mxu0
    %v1711 = vadd.f32 0.0, %v1710
    %v1712 = vpop.f32.mrb[0].mxu0
    %v1713 = vadd.f32 0.0, %v1712
    %v1714 = vpop.f32.mrb[0].mxu0
    %v1715 = vadd.f32 0.0, %v1714
    %v1716 = vpop.f32.mrb[0].mxu0
    %v1717 = vadd.f32 0.0, %v1716
    %1718 = vmatprep.mubr.bf16.mxu0 %v312
    %1719 = vmatmul.mubr.bf16.gmra.mrb[0].mxu0 %v311
    %v1720 = vpop.f32.mrb[0].mxu0
    %v1721 = vadd.f32 0.0, %v1720
    %v1722 = vpop.f32.mrb[0].mxu0
    %v1723 = vadd.f32 0.0, %v1722
    %v1724 = vpop.f32.mrb[0].mxu0
    %v1725 = vadd.f32 0.0, %v1724
    %v1726 = vpop.f32.mrb[0].mxu0
    %v1727 = vadd.f32 0.0, %v1726
    %1728 = vmatprep.mubr.bf16.mxu0 %v314
    %1729 = vmatmul.mubr.bf16.gmra.mrb[0].mxu0 %v313
    %v1730 = vpop.f32.mrb[0].mxu0
    %v1731 = vadd.f32 0.0, %v1730
    %v1732 = vpop.f32.mrb[0].mxu0
    %v1733 = vadd.f32 0.0, %v1732
    %v1734 = vpop.f32.mrb[0].mxu0
    %v1735 = vadd.f32 0.0, %v1734
    %v1736 = vpop.f32.mrb[0].mxu0
    %v1737 = vadd.f32 0.0, %v1736
    %1738 = vmatprep.mubr.bf16.mxu0 %v316
    %1739 = vmatmul.mubr.bf16.gmra.mrb[0].mxu0 %v315
    %v1740 = vpop.f32.mrb[0].mxu0
    %v1741 = vadd.f32 0.0, %v1740
    %v1742 = vpop.f32.mrb[0].mxu0
    %v1743 = vadd.f32 0.0, %v1742
    %v1744 = vpop.f32.mrb[0].mxu0
    %v1745 = vpop.f32.mrb[0].mxu0
    %1746 = vdwg.mxu0
    %1747 = vmatprep.subr.bf16.mxu0 %v1098
    %1748 = vmatpush1.bf16.msra.mxu0 %v1097
    %1749 = vmatprep.subr.bf16.mxu0 %v1114
    %1750 = vmatpush1.bf16.msra.mxu0 %v1113
    %1751 = vmatprep.subr.bf16.mxu0 %v1130
    %1752 = vmatpush1.bf16.msra.mxu0 %v1129
    %1753 = vmatprep.subr.bf16.mxu0 %v1146
    %1754 = vmatpush1.bf16.msra.mxu0 %v1145
    %1755 = vmatprep.subr.bf16.mxu0 %v1162
    %1756 = vmatpush1.bf16.msra.mxu0 %v1161
    %1757 = vmatprep.subr.bf16.mxu0 %v1178
    %1758 = vmatpush1.bf16.msra.mxu0 %v1177
    %1759 = vmatprep.subr.bf16.mxu0 %v1194
    %1760 = vmatpush1.bf16.msra.mxu0 %v1193
    %1761 = vmatprep.subr.bf16.mxu0 %v1210
    %1762 = vmatpush1.bf16.msra.mxu0 %v1209
    %1763 = vmatprep.subr.bf16.mxu0 %v1226
    %1764 = vmatpush1.bf16.msra.mxu0 %v1225
    %1765 = vmatprep.subr.bf16.mxu0 %v1242
    %1766 = vmatpush1.bf16.msra.mxu0 %v1241
    %1767 = vmatprep.subr.bf16.mxu0 %v1258
    %1768 = vmatpush1.bf16.msra.mxu0 %v1257
    %1769 = vmatprep.subr.bf16.mxu0 %v1274
    %1770 = vmatpush1.bf16.msra.mxu0 %v1273
    %1771 = vmatprep.subr.bf16.mxu0 %v1290
    %1772 = vmatpush1.bf16.msra.mxu0 %v1289
    %1773 = vmatprep.subr.bf16.mxu0 %v1306
    %1774 = vmatpush1.bf16.msra.mxu0 %v1305
    %1775 = vmatprep.subr.bf16.mxu0 %v1322
    %1776 = vmatpush1.bf16.msra.mxu0 %v1321
    %1777 = vmatprep.subr.bf16.mxu0 %v1338
    %1778 = vmatpush1.bf16.msra.mxu0 %v1337
    %1779 = vmatprep.mubr.bf16.mxu0 %v310
    %1780 = vmatmul.mubr.bf16.gmra.mrb[0].mxu0 %v309
    %v1781 = vpop.f32.mrb[0].mxu0
    %v1782 = vadd.f32 0.0, %v1781
    %v1783 = vpop.f32.mrb[0].mxu0
    %v1784 = vadd.f32 0.0, %v1783
    %v1785 = vpop.f32.mrb[0].mxu0
    %v1786 = vadd.f32 0.0, %v1785
    %v1787 = vpop.f32.mrb[0].mxu0
    %v1788 = vadd.f32 0.0, %v1787
    %1789 = vmatprep.mubr.bf16.mxu0 %v312
    %1790 = vmatmul.mubr.bf16.gmra.mrb[0].mxu0 %v311
    %v1791 = vpop.f32.mrb[0].mxu0
    %v1792 = vadd.f32 0.0, %v1791
    %v1793 = vpop.f32.mrb[0].mxu0
    %v1794 = vadd.f32 0.0, %v1793
    %v1795 = vpop.f32.mrb[0].mxu0
    %v1796 = vadd.f32 0.0, %v1795
    %v1797 = vpop.f32.mrb[0].mxu0
    %v1798 = vadd.f32 0.0, %v1797
    %1799 = vmatprep.mubr.bf16.mxu0 %v314
    %1800 = vmatmul.mubr.bf16.gmra.mrb[0].mxu0 %v313
    %v1801 = vpop.f32.mrb[0].mxu0
    %v1802 = vadd.f32 0.0, %v1801
    %v1803 = vpop.f32.mrb[0].mxu0
    %v1804 = vadd.f32 0.0, %v1803
    %v1805 = vpop.f32.mrb[0].mxu0
    %v1806 = vadd.f32 0.0, %v1805
    %v1807 = vpop.f32.mrb[0].mxu0
    %v1808 = vadd.f32 0.0, %v1807
    %1809 = vmatprep.mubr.bf16.mxu0 %v316
    %1810 = vmatmul.mubr.bf16.gmra.mrb[0].mxu0 %v315
    %v1811 = vpop.f32.mrb[0].mxu0
    %v1812 = vadd.f32 0.0, %v1811
    %v1813 = vpop.f32.mrb[0].mxu0
    %v1814 = vadd.f32 0.0, %v1813
    %v1815 = vpop.f32.mrb[0].mxu0
    %v1816 = vpop.f32.mrb[0].mxu0
    %1817 = vdwg.mxu0
    %1818 = vmatprep.subr.bf16.mxu0 %v1100
    %1819 = vmatpush1.bf16.msra.mxu0 %v1099
    %1820 = vmatprep.subr.bf16.mxu0 %v1116
    %1821 = vmatpush1.bf16.msra.mxu0 %v1115
    %1822 = vmatprep.subr.bf16.mxu0 %v1132
    %1823 = vmatpush1.bf16.msra.mxu0 %v1131
    %1824 = vmatprep.subr.bf16.mxu0 %v1148
    %1825 = vmatpush1.bf16.msra.mxu0 %v1147
    %1826 = vmatprep.subr.bf16.mxu0 %v1164
    %1827 = vmatpush1.bf16.msra.mxu0 %v1163
    %1828 = vmatprep.subr.bf16.mxu0 %v1180
    %1829 = vmatpush1.bf16.msra.mxu0 %v1179
    %1830 = vmatprep.subr.bf16.mxu0 %v1196
    %1831 = vmatpush1.bf16.msra.mxu0 %v1195
    %1832 = vmatprep.subr.bf16.mxu0 %v1212
    %1833 = vmatpush1.bf16.msra.mxu0 %v1211
    %1834 = vmatprep.subr.bf16.mxu0 %v1228
    %1835 = vmatpush1.bf16.msra.mxu0 %v1227
    %1836 = vmatprep.subr.bf16.mxu0 %v1244
    %1837 = vmatpush1.bf16.msra.mxu0 %v1243
    %1838 = vmatprep.subr.bf16.mxu0 %v1260
    %1839 = vmatpush1.bf16.msra.mxu0 %v1259
    %1840 = vmatprep.subr.bf16.mxu0 %v1276
    %1841 = vmatpush1.bf16.msra.mxu0 %v1275
    %1842 = vmatprep.subr.bf16.mxu0 %v1292
    %1843 = vmatpush1.bf16.msra.mxu0 %v1291
    %1844 = vmatprep.subr.bf16.mxu0 %v1308
    %1845 = vmatpush1.bf16.msra.mxu0 %v1307
    %1846 = vmatprep.subr.bf16.mxu0 %v1324
    %1847 = vmatpush1.bf16.msra.mxu0 %v1323
    %1848 = vmatprep.subr.bf16.mxu0 %v1340
    %1849 = vmatpush1.bf16.msra.mxu0 %v1339
    %1850 = vmatprep.mubr.bf16.mxu0 %v310
    %1851 = vmatmul.mubr.bf16.gmra.mrb[0].mxu0 %v309
    %v1852 = vpop.f32.mrb[0].mxu0
    %v1853 = vadd.f32 0.0, %v1852
    %v1854 = vpop.f32.mrb[0].mxu0
    %v1855 = vadd.f32 0.0, %v1854
    %v1856 = vpop.f32.mrb[0].mxu0
    %v1857 = vadd.f32 0.0, %v1856
    %v1858 = vpop.f32.mrb[0].mxu0
    %v1859 = vadd.f32 0.0, %v1858
    %1860 = vmatprep.mubr.bf16.mxu0 %v312
    %1861 = vmatmul.mubr.bf16.gmra.mrb[0].mxu0 %v311
    %v1862 = vpop.f32.mrb[0].mxu0
    %v1863 = vadd.f32 0.0, %v1862
    %v1864 = vpop.f32.mrb[0].mxu0
    %v1865 = vadd.f32 0.0, %v1864
    %v1866 = vpop.f32.mrb[0].mxu0
    %v1867 = vadd.f32 0.0, %v1866
    %v1868 = vpop.f32.mrb[0].mxu0
    %v1869 = vadd.f32 0.0, %v1868
    %1870 = vmatprep.mubr.bf16.mxu0 %v314
    %1871 = vmatmul.mubr.bf16.gmra.mrb[0].mxu0 %v313
    %v1872 = vpop.f32.mrb[0].mxu0
    %v1873 = vadd.f32 0.0, %v1872
    %v1874 = vpop.f32.mrb[0].mxu0
    %v1875 = vadd.f32 0.0, %v1874
    %v1876 = vpop.f32.mrb[0].mxu0
    %v1877 = vadd.f32 0.0, %v1876
    %v1878 = vpop.f32.mrb[0].mxu0
    %v1879 = vadd.f32 0.0, %v1878
    %1880 = vmatprep.mubr.bf16.mxu0 %v316
    %1881 = vmatmul.mubr.bf16.gmra.mrb[0].mxu0 %v315
    %v1882 = vpop.f32.mrb[0].mxu0
    %v1883 = vadd.f32 0.0, %v1882
    %v1884 = vpop.f32.mrb[0].mxu0
    %v1885 = vadd.f32 0.0, %v1884
    %v1886 = vpop.f32.mrb[0].mxu0
    %v1887 = vpop.f32.mrb[0].mxu0
    %1888 = vdwg.mxu0
    %1889 = vmatprep.subr.bf16.mxu0 %v1102
    %1890 = vmatpush1.bf16.msra.mxu0 %v1101
    %1891 = vmatprep.subr.bf16.mxu0 %v1118
    %1892 = vmatpush1.bf16.msra.mxu0 %v1117
    %1893 = vmatprep.subr.bf16.mxu0 %v1134
    %1894 = vmatpush1.bf16.msra.mxu0 %v1133
    %1895 = vmatprep.subr.bf16.mxu0 %v1150
    %1896 = vmatpush1.bf16.msra.mxu0 %v1149
    %1897 = vmatprep.subr.bf16.mxu0 %v1166
    %1898 = vmatpush1.bf16.msra.mxu0 %v1165
    %1899 = vmatprep.subr.bf16.mxu0 %v1182
    %1900 = vmatpush1.bf16.msra.mxu0 %v1181
    %1901 = vmatprep.subr.bf16.mxu0 %v1198
    %1902 = vmatpush1.bf16.msra.mxu0 %v1197
    %1903 = vmatprep.subr.bf16.mxu0 %v1214
    %1904 = vmatpush1.bf16.msra.mxu0 %v1213
    %1905 = vmatprep.subr.bf16.mxu0 %v1230
    %1906 = vmatpush1.bf16.msra.mxu0 %v1229
    %1907 = vmatprep.subr.bf16.mxu0 %v1246
    %1908 = vmatpush1.bf16.msra.mxu0 %v1245
    %1909 = vmatprep.subr.bf16.mxu0 %v1262
    %1910 = vmatpush1.bf16.msra.mxu0 %v1261
    %1911 = vmatprep.subr.bf16.mxu0 %v1278
    %1912 = vmatpush1.bf16.msra.mxu0 %v1277
    %1913 = vmatprep.subr.bf16.mxu0 %v1294
    %1914 = vmatpush1.bf16.msra.mxu0 %v1293
    %1915 = vmatprep.subr.bf16.mxu0 %v1310
    %1916 = vmatpush1.bf16.msra.mxu0 %v1309
    %1917 = vmatprep.subr.bf16.mxu0 %v1326
    %1918 = vmatpush1.bf16.msra.mxu0 %v1325
    %1919 = vmatprep.subr.bf16.mxu0 %v1342
    %1920 = vmatpush1.bf16.msra.mxu0 %v1341
    %1921 = vmatprep.mubr.bf16.mxu0 %v310
    %1922 = vmatmul.mubr.bf16.gmra.mrb[0].mxu0 %v309
    %v1923 = vpop.f32.mrb[0].mxu0
    %v1924 = vadd.f32 0.0, %v1923
    %v1925 = vpop.f32.mrb[0].mxu0
    %v1926 = vadd.f32 0.0, %v1925
    %v1927 = vpop.f32.mrb[0].mxu0
    %v1928 = vadd.f32 0.0, %v1927
    %v1929 = vpop.f32.mrb[0].mxu0
    %v1930 = vadd.f32 0.0, %v1929
    %1931 = vmatprep.mubr.bf16.mxu0 %v312
    %1932 = vmatmul.mubr.bf16.gmra.mrb[0].mxu0 %v311
    %v1933 = vpop.f32.mrb[0].mxu0
    %v1934 = vadd.f32 0.0, %v1933
    %v1935 = vpop.f32.mrb[0].mxu0
    %v1936 = vadd.f32 0.0, %v1935
    %v1937 = vpop.f32.mrb[0].mxu0
    %v1938 = vadd.f32 0.0, %v1937
    %v1939 = vpop.f32.mrb[0].mxu0
    %v1940 = vadd.f32 0.0, %v1939
    %1941 = vmatprep.mubr.bf16.mxu0 %v314
    %1942 = vmatmul.mubr.bf16.gmra.mrb[0].mxu0 %v313
    %v1943 = vpop.f32.mrb[0].mxu0
    %v1944 = vadd.f32 0.0, %v1943
    %v1945 = vpop.f32.mrb[0].mxu0
    %v1946 = vadd.f32 0.0, %v1945
    %v1947 = vpop.f32.mrb[0].mxu0
    %v1948 = vadd.f32 0.0, %v1947
    %v1949 = vpop.f32.mrb[0].mxu0
    %v1950 = vadd.f32 0.0, %v1949
    %1951 = vmatprep.mubr.bf16.mxu0 %v316
    %1952 = vmatmul.mubr.bf16.gmra.mrb[0].mxu0 %v315
    %v1953 = vpop.f32.mrb[0].mxu0
    %v1954 = vadd.f32 0.0, %v1953
    %v1955 = vpop.f32.mrb[0].mxu0
    %v1956 = vadd.f32 0.0, %v1955
    %v1957 = vpop.f32.mrb[0].mxu0
    %v1958 = vpop.f32.mrb[0].mxu0
    %1959 = vdwg.mxu0
    %1960 = vmatprep.subr.bf16.mxu0 %v1104
    %1961 = vmatpush1.bf16.msra.mxu0 %v1103
    %1962 = vmatprep.subr.bf16.mxu0 %v1120
    %1963 = vmatpush1.bf16.msra.mxu0 %v1119
    %1964 = vmatprep.subr.bf16.mxu0 %v1136
    %1965 = vmatpush1.bf16.msra.mxu0 %v1135
    %1966 = vmatprep.subr.bf16.mxu0 %v1152
    %1967 = vmatpush1.bf16.msra.mxu0 %v1151
    %1968 = vmatprep.subr.bf16.mxu0 %v1168
    %1969 = vmatpush1.bf16.msra.mxu0 %v1167
    %1970 = vmatprep.subr.bf16.mxu0 %v1184
    %1971 = vmatpush1.bf16.msra.mxu0 %v1183
    %1972 = vmatprep.subr.bf16.mxu0 %v1200
    %1973 = vmatpush1.bf16.msra.mxu0 %v1199
    %1974 = vmatprep.subr.bf16.mxu0 %v1216
    %1975 = vmatpush1.bf16.msra.mxu0 %v1215
    %1976 = vmatprep.subr.bf16.mxu0 %v1232
    %1977 = vmatpush1.bf16.msra.mxu0 %v1231
    %1978 = vmatprep.subr.bf16.mxu0 %v1248
    %1979 = vmatpush1.bf16.msra.mxu0 %v1247
    %1980 = vmatprep.subr.bf16.mxu0 %v1264
    %1981 = vmatpush1.bf16.msra.mxu0 %v1263
    %1982 = vmatprep.subr.bf16.mxu0 %v1280
    %1983 = vmatpush1.bf16.msra.mxu0 %v1279
    %1984 = vmatprep.subr.bf16.mxu0 %v1296
    %1985 = vmatpush1.bf16.msra.mxu0 %v1295
    %1986 = vmatprep.subr.bf16.mxu0 %v1312
    %1987 = vmatpush1.bf16.msra.mxu0 %v1311
    %1988 = vmatprep.subr.bf16.mxu0 %v1328
    %1989 = vmatpush1.bf16.msra.mxu0 %v1327
    %1990 = vmatprep.subr.bf16.mxu0 %v1344
    %1991 = vmatpush1.bf16.msra.mxu0 %v1343
    %1992 = vmatprep.mubr.bf16.mxu0 %v310
    %1993 = vmatmul.mubr.bf16.gmra.mrb[0].mxu0 %v309
    %v1994 = vpop.f32.mrb[0].mxu0
    %v1995 = vadd.f32 0.0, %v1994
    %v1996 = vpop.f32.mrb[0].mxu0
    %v1997 = vadd.f32 0.0, %v1996
    %v1998 = vpop.f32.mrb[0].mxu0
    %v1999 = vadd.f32 0.0, %v1998
    %v2000 = vpop.f32.mrb[0].mxu0
    %v2001 = vadd.f32 0.0, %v2000
    %2002 = vmatprep.mubr.bf16.mxu0 %v312
    %2003 = vmatmul.mubr.bf16.gmra.mrb[0].mxu0 %v311
    %v2004 = vpop.f32.mrb[0].mxu0
    %v2005 = vadd.f32 0.0, %v2004
    %v2006 = vpop.f32.mrb[0].mxu0
    %v2007 = vadd.f32 0.0, %v2006
    %v2008 = vpop.f32.mrb[0].mxu0
    %v2009 = vadd.f32 0.0, %v2008
    %v2010 = vpop.f32.mrb[0].mxu0
    %v2011 = vadd.f32 0.0, %v2010
    %2012 = vmatprep.mubr.bf16.mxu0 %v314
    %2013 = vmatmul.mubr.bf16.gmra.mrb[0].mxu0 %v313
    %v2014 = vpop.f32.mrb[0].mxu0
    %v2015 = vadd.f32 0.0, %v2014
    %v2016 = vpop.f32.mrb[0].mxu0
    %v2017 = vadd.f32 0.0, %v2016
    %v2018 = vpop.f32.mrb[0].mxu0
    %v2019 = vadd.f32 0.0, %v2018
    %v2020 = vpop.f32.mrb[0].mxu0
    %v2021 = vadd.f32 0.0, %v2020
    %2022 = vmatprep.mubr.bf16.mxu0 %v316
    %2023 = vmatmul.mubr.bf16.gmra.mrb[0].mxu0 %v315
    %v2024 = vpop.f32.mrb[0].mxu0
    %v2025 = vadd.f32 0.0, %v2024
    %v2026 = vpop.f32.mrb[0].mxu0
    %v2027 = vadd.f32 0.0, %v2026
    %v2028 = vpop.f32.mrb[0].mxu0
    %v2029 = vpop.f32.mrb[0].mxu0
    %2030 = vdwg.mxu0
    %2031 = vmatprep.subr.bf16.mxu0 %v1106
    %2032 = vmatpush1.bf16.msra.mxu0 %v1105
    %2033 = vmatprep.subr.bf16.mxu0 %v1122
    %2034 = vmatpush1.bf16.msra.mxu0 %v1121
    %2035 = vmatprep.subr.bf16.mxu0 %v1138
    %2036 = vmatpush1.bf16.msra.mxu0 %v1137
    %2037 = vmatprep.subr.bf16.mxu0 %v1154
    %2038 = vmatpush1.bf16.msra.mxu0 %v1153
    %2039 = vmatprep.subr.bf16.mxu0 %v1170
    %2040 = vmatpush1.bf16.msra.mxu0 %v1169
    %2041 = vmatprep.subr.bf16.mxu0 %v1186
    %2042 = vmatpush1.bf16.msra.mxu0 %v1185
    %2043 = vmatprep.subr.bf16.mxu0 %v1202
    %2044 = vmatpush1.bf16.msra.mxu0 %v1201
    %2045 = vmatprep.subr.bf16.mxu0 %v1218
    %2046 = vmatpush1.bf16.msra.mxu0 %v1217
    %2047 = vmatprep.subr.bf16.mxu0 %v1234
    %2048 = vmatpush1.bf16.msra.mxu0 %v1233
    %2049 = vmatprep.subr.bf16.mxu0 %v1250
    %2050 = vmatpush1.bf16.msra.mxu0 %v1249
    %2051 = vmatprep.subr.bf16.mxu0 %v1266
    %2052 = vmatpush1.bf16.msra.mxu0 %v1265
    %2053 = vmatprep.subr.bf16.mxu0 %v1282
    %2054 = vmatpush1.bf16.msra.mxu0 %v1281
    %2055 = vmatprep.subr.bf16.mxu0 %v1298
    %2056 = vmatpush1.bf16.msra.mxu0 %v1297
    %2057 = vmatprep.subr.bf16.mxu0 %v1314
    %2058 = vmatpush1.bf16.msra.mxu0 %v1313
    %2059 = vmatprep.subr.bf16.mxu0 %v1330
    %2060 = vmatpush1.bf16.msra.mxu0 %v1329
    %2061 = vmatprep.subr.bf16.mxu0 %v1346
    %2062 = vmatpush1.bf16.msra.mxu0 %v1345
    %2063 = vmatprep.mubr.bf16.mxu0 %v310
    %2064 = vmatmul.mubr.bf16.gmra.mrb[0].mxu0 %v309
    %v2065 = vpop.f32.mrb[0].mxu0
    %v2066 = vadd.f32 0.0, %v2065
    %v2067 = vpop.f32.mrb[0].mxu0
    %v2068 = vadd.f32 0.0, %v2067
    %v2069 = vpop.f32.mrb[0].mxu0
    %v2070 = vadd.f32 0.0, %v2069
    %v2071 = vpop.f32.mrb[0].mxu0
    %v2072 = vadd.f32 0.0, %v2071
    %2073 = vmatprep.mubr.bf16.mxu0 %v312
    %2074 = vmatmul.mubr.bf16.gmra.mrb[0].mxu0 %v311
    %v2075 = vpop.f32.mrb[0].mxu0
    %v2076 = vadd.f32 0.0, %v2075
    %v2077 = vpop.f32.mrb[0].mxu0
    %v2078 = vadd.f32 0.0, %v2077
    %v2079 = vpop.f32.mrb[0].mxu0
    %v2080 = vadd.f32 0.0, %v2079
    %v2081 = vpop.f32.mrb[0].mxu0
    %v2082 = vadd.f32 0.0, %v2081
    %2083 = vmatprep.mubr.bf16.mxu0 %v314
    %2084 = vmatmul.mubr.bf16.gmra.mrb[0].mxu0 %v313
    %v2085 = vpop.f32.mrb[0].mxu0
    %v2086 = vadd.f32 0.0, %v2085
    %v2087 = vpop.f32.mrb[0].mxu0
    %v2088 = vadd.f32 0.0, %v2087
    %v2089 = vpop.f32.mrb[0].mxu0
    %v2090 = vadd.f32 0.0, %v2089
    %v2091 = vpop.f32.mrb[0].mxu0
    %v2092 = vadd.f32 0.0, %v2091
    %2093 = vmatprep.mubr.bf16.mxu0 %v316
    %2094 = vmatmul.mubr.bf16.gmra.mrb[0].mxu0 %v315
    %v2095 = vpop.f32.mrb[0].mxu0
    %v2096 = vadd.f32 0.0, %v2095
    %v2097 = vpop.f32.mrb[0].mxu0
    %v2098 = vadd.f32 0.0, %v2097
    %v2099 = vpop.f32.mrb[0].mxu0
    %v2100 = vpop.f32.mrb[0].mxu0
    %2101 = vdwg.mxu0
    %2102 = vmatprep.subr.bf16.mxu0 %v1108
    %2103 = vmatpush1.bf16.msra.mxu0 %v1107
    %2104 = vmatprep.subr.bf16.mxu0 %v1124
    %2105 = vmatpush1.bf16.msra.mxu0 %v1123
    %2106 = vmatprep.subr.bf16.mxu0 %v1140
    %2107 = vmatpush1.bf16.msra.mxu0 %v1139
    %2108 = vmatprep.subr.bf16.mxu0 %v1156
    %2109 = vmatpush1.bf16.msra.mxu0 %v1155
    %2110 = vmatprep.subr.bf16.mxu0 %v1172
    %2111 = vmatpush1.bf16.msra.mxu0 %v1171
    %2112 = vmatprep.subr.bf16.mxu0 %v1188
    %2113 = vmatpush1.bf16.msra.mxu0 %v1187
    %2114 = vmatprep.subr.bf16.mxu0 %v1204
    %2115 = vmatpush1.bf16.msra.mxu0 %v1203
    %2116 = vmatprep.subr.bf16.mxu0 %v1220
    %2117 = vmatpush1.bf16.msra.mxu0 %v1219
    %2118 = vmatprep.subr.bf16.mxu0 %v1236
    %2119 = vmatpush1.bf16.msra.mxu0 %v1235
    %2120 = vmatprep.subr.bf16.mxu0 %v1252
    %2121 = vmatpush1.bf16.msra.mxu0 %v1251
    %2122 = vmatprep.subr.bf16.mxu0 %v1268
    %2123 = vmatpush1.bf16.msra.mxu0 %v1267
    %2124 = vmatprep.subr.bf16.mxu0 %v1284
    %2125 = vmatpush1.bf16.msra.mxu0 %v1283
    %2126 = vmatprep.subr.bf16.mxu0 %v1300
    %2127 = vmatpush1.bf16.msra.mxu0 %v1299
    %2128 = vmatprep.subr.bf16.mxu0 %v1316
    %2129 = vmatpush1.bf16.msra.mxu0 %v1315
    %2130 = vmatprep.subr.bf16.mxu0 %v1332
    %2131 = vmatpush1.bf16.msra.mxu0 %v1331
    %2132 = vmatprep.subr.bf16.mxu0 %v1348
    %2133 = vmatpush1.bf16.msra.mxu0 %v1347
    %2134 = vmatprep.mubr.bf16.mxu0 %v310
    %2135 = vmatmul.mubr.bf16.gmra.mrb[0].mxu0 %v309
    %v2136 = vpop.f32.mrb[0].mxu0
    %v2137 = vadd.f32 0.0, %v2136
    %v2138 = vpop.f32.mrb[0].mxu0
    %v2139 = vadd.f32 0.0, %v2138
    %v2140 = vpop.f32.mrb[0].mxu0
    %v2141 = vadd.f32 0.0, %v2140
    %v2142 = vpop.f32.mrb[0].mxu0
    %v2143 = vadd.f32 0.0, %v2142
    %2144 = vmatprep.mubr.bf16.mxu0 %v312
    %2145 = vmatmul.mubr.bf16.gmra.mrb[0].mxu0 %v311
    %v2146 = vpop.f32.mrb[0].mxu0
    %v2147 = vadd.f32 0.0, %v2146
    %v2148 = vpop.f32.mrb[0].mxu0
    %v2149 = vadd.f32 0.0, %v2148
    %v2150 = vpop.f32.mrb[0].mxu0
    %v2151 = vadd.f32 0.0, %v2150
    %v2152 = vpop.f32.mrb[0].mxu0
    %v2153 = vadd.f32 0.0, %v2152
    %2154 = vmatprep.mubr.bf16.mxu0 %v314
    %2155 = vmatmul.mubr.bf16.gmra.mrb[0].mxu0 %v313
    %v2156 = vpop.f32.mrb[0].mxu0
    %v2157 = vadd.f32 0.0, %v2156
    %v2158 = vpop.f32.mrb[0].mxu0
    %v2159 = vadd.f32 0.0, %v2158
    %v2160 = vpop.f32.mrb[0].mxu0
    %v2161 = vadd.f32 0.0, %v2160
    %v2162 = vpop.f32.mrb[0].mxu0
    %v2163 = vadd.f32 0.0, %v2162
    %2164 = vmatprep.mubr.bf16.mxu0 %v316
    %2165 = vmatmul.mubr.bf16.gmra.mrb[0].mxu0 %v315
    %v2166 = vpop.f32.mrb[0].mxu0
    %v2167 = vadd.f32 0.0, %v2166
    %v2168 = vpop.f32.mrb[0].mxu0
    %v2169 = vadd.f32 0.0, %v2168
    %v2170 = vpop.f32.mrb[0].mxu0
    %v2171 = vpop.f32.mrb[0].mxu0
    %2172 = vdwg.mxu0
    %v2173 = vpack.c.bf16 %v1644, %v1640
    %v2174 = vpack.c.bf16 %v1646, %v1642
    %v2175 = vpack.c.bf16 %v1715, %v1711
    %v2176 = vpack.c.bf16 %v1717, %v1713
    %v2177 = vpack.c.bf16 %v1786, %v1782
    %v2178 = vpack.c.bf16 %v1788, %v1784
    %v2179 = vpack.c.bf16 %v1857, %v1853
    %v2180 = vpack.c.bf16 %v1859, %v1855
    %v2181 = vpack.c.bf16 %v1928, %v1924
    %v2182 = vpack.c.bf16 %v1930, %v1926
    %v2183 = vpack.c.bf16 %v1999, %v1995
    %v2184 = vpack.c.bf16 %v2001, %v1997
    %v2185 = vpack.c.bf16 %v2070, %v2066
    %v2186 = vpack.c.bf16 %v2072, %v2068
    %v2187 = vpack.c.bf16 %v2141, %v2137
    %v2188 = vpack.c.bf16 %v2143, %v2139
    %v2189 = vpack.c.bf16 %v1654, %v1650
    %v2190 = vpack.c.bf16 %v1656, %v1652
    %v2191 = vpack.c.bf16 %v1725, %v1721
    %v2192 = vpack.c.bf16 %v1727, %v1723
    %v2193 = vpack.c.bf16 %v1796, %v1792
    %v2194 = vpack.c.bf16 %v1798, %v1794
    %v2195 = vpack.c.bf16 %v1867, %v1863
    %v2196 = vpack.c.bf16 %v1869, %v1865
    %v2197 = vpack.c.bf16 %v1938, %v1934
    %v2198 = vpack.c.bf16 %v1940, %v1936
    %v2199 = vpack.c.bf16 %v2009, %v2005
    %v2200 = vpack.c.bf16 %v2011, %v2007
    %v2201 = vpack.c.bf16 %v2080, %v2076
    %v2202 = vpack.c.bf16 %v2082, %v2078
    %v2203 = vpack.c.bf16 %v2151, %v2147
    %v2204 = vpack.c.bf16 %v2153, %v2149
    %v2205 = vpack.c.bf16 %v1664, %v1660
    %v2206 = vpack.c.bf16 %v1666, %v1662
    %v2207 = vpack.c.bf16 %v1735, %v1731
    %v2208 = vpack.c.bf16 %v1737, %v1733
    %v2209 = vpack.c.bf16 %v1806, %v1802
    %v2210 = vpack.c.bf16 %v1808, %v1804
    %v2211 = vpack.c.bf16 %v1877, %v1873
    %v2212 = vpack.c.bf16 %v1879, %v1875
    %v2213 = vpack.c.bf16 %v1948, %v1944
    %v2214 = vpack.c.bf16 %v1950, %v1946
    %v2215 = vpack.c.bf16 %v2019, %v2015
    %v2216 = vpack.c.bf16 %v2021, %v2017
    %v2217 = vpack.c.bf16 %v2090, %v2086
    %v2218 = vpack.c.bf16 %v2092, %v2088
    %v2219 = vpack.c.bf16 %v2161, %v2157
    %v2220 = vpack.c.bf16 %v2163, %v2159
    %v2221 = vpack.c.bf16 %v1670, %v1670
    %v2222 = vpack.c.bf16 %v1672, %v1672
    %v2223 = vpack.c.bf16 %v1741, %v1741
    %v2224 = vpack.c.bf16 %v1743, %v1743
    %v2225 = vpack.c.bf16 %v1812, %v1812
    %v2226 = vpack.c.bf16 %v1814, %v1814
    %v2227 = vpack.c.bf16 %v1883, %v1883
    %v2228 = vpack.c.bf16 %v1885, %v1885
    %v2229 = vpack.c.bf16 %v1954, %v1954
    %v2230 = vpack.c.bf16 %v1956, %v1956
    %v2231 = vpack.c.bf16 %v2025, %v2025
    %v2232 = vpack.c.bf16 %v2027, %v2027
    %v2233 = vpack.c.bf16 %v2096, %v2096
    %v2234 = vpack.c.bf16 %v2098, %v2098
    %v2235 = vpack.c.bf16 %v2167, %v2167
    %v2236 = vpack.c.bf16 %v2169, %v2169
    %v2301 = vunpack.c.l.b16 %v2173
    %v2302 = vunpack.c.l.b16 %v2174
    %v2303 = vunpack.c.l.b16 %v2175
    %v2304 = vunpack.c.l.b16 %v2176
    %v2305 = vunpack.c.l.b16 %v2177
    %v2306 = vunpack.c.l.b16 %v2178
    %v2307 = vunpack.c.l.b16 %v2179
    %v2308 = vunpack.c.l.b16 %v2180
    %v2309 = vunpack.c.l.b16 %v2181
    %v2310 = vunpack.c.l.b16 %v2182
    %v2311 = vunpack.c.l.b16 %v2183
    %v2312 = vunpack.c.l.b16 %v2184
    %v2313 = vunpack.c.l.b16 %v2185
    %v2314 = vunpack.c.l.b16 %v2186
    %v2315 = vunpack.c.l.b16 %v2187
    %v2316 = vunpack.c.l.b16 %v2188
    %v2317 = vunpack.c.h.b16 %v2173
    %v2318 = vunpack.c.h.b16 %v2174
    %v2319 = vunpack.c.h.b16 %v2175
    %v2320 = vunpack.c.h.b16 %v2176
    %v2321 = vunpack.c.h.b16 %v2177
    %v2322 = vunpack.c.h.b16 %v2178
    %v2323 = vunpack.c.h.b16 %v2179
    %v2324 = vunpack.c.h.b16 %v2180
    %v2325 = vunpack.c.h.b16 %v2181
    %v2326 = vunpack.c.h.b16 %v2182
    %v2327 = vunpack.c.h.b16 %v2183
    %v2328 = vunpack.c.h.b16 %v2184
    %v2329 = vunpack.c.h.b16 %v2185
    %v2330 = vunpack.c.h.b16 %v2186
    %v2331 = vunpack.c.h.b16 %v2187
    %v2332 = vunpack.c.h.b16 %v2188
    %v2333 = vunpack.c.l.b16 %v2189
    %v2334 = vunpack.c.l.b16 %v2190
    %v2335 = vunpack.c.l.b16 %v2191
    %v2336 = vunpack.c.l.b16 %v2192
    %v2337 = vunpack.c.l.b16 %v2193
    %v2338 = vunpack.c.l.b16 %v2194
    %v2339 = vunpack.c.l.b16 %v2195
    %v2340 = vunpack.c.l.b16 %v2196
    %v2341 = vunpack.c.l.b16 %v2197
    %v2342 = vunpack.c.l.b16 %v2198
    %v2343 = vunpack.c.l.b16 %v2199
    %v2344 = vunpack.c.l.b16 %v2200
    %v2345 = vunpack.c.l.b16 %v2201
    %v2346 = vunpack.c.l.b16 %v2202
    %v2347 = vunpack.c.l.b16 %v2203
    %v2348 = vunpack.c.l.b16 %v2204
    %v2349 = vunpack.c.h.b16 %v2189
    %v2350 = vunpack.c.h.b16 %v2190
    %v2351 = vunpack.c.h.b16 %v2191
    %v2352 = vunpack.c.h.b16 %v2192
    %v2353 = vunpack.c.h.b16 %v2193
    %v2354 = vunpack.c.h.b16 %v2194
    %v2355 = vunpack.c.h.b16 %v2195
    %v2356 = vunpack.c.h.b16 %v2196
    %v2357 = vunpack.c.h.b16 %v2197
    %v2358 = vunpack.c.h.b16 %v2198
    %v2359 = vunpack.c.h.b16 %v2199
    %v2360 = vunpack.c.h.b16 %v2200
    %v2361 = vunpack.c.h.b16 %v2201
    %v2362 = vunpack.c.h.b16 %v2202
    %v2363 = vunpack.c.h.b16 %v2203
    %v2364 = vunpack.c.h.b16 %v2204
    %v2365 = vunpack.c.l.b16 %v2205
    %v2366 = vunpack.c.l.b16 %v2206
    %v2367 = vunpack.c.l.b16 %v2207
    %v2368 = vunpack.c.l.b16 %v2208
    %v2369 = vunpack.c.l.b16 %v2209
    %v2370 = vunpack.c.l.b16 %v2210
    %v2371 = vunpack.c.l.b16 %v2211
    %v2372 = vunpack.c.l.b16 %v2212
    %v2373 = vunpack.c.l.b16 %v2213
    %v2374 = vunpack.c.l.b16 %v2214
    %v2375 = vunpack.c.l.b16 %v2215
    %v2376 = vunpack.c.l.b16 %v2216
    %v2377 = vunpack.c.l.b16 %v2217
    %v2378 = vunpack.c.l.b16 %v2218
    %v2379 = vunpack.c.l.b16 %v2219
    %v2380 = vunpack.c.l.b16 %v2220
    %v2381 = vunpack.c.h.b16 %v2205
    %v2382 = vunpack.c.h.b16 %v2206
    %v2383 = vunpack.c.h.b16 %v2207
    %v2384 = vunpack.c.h.b16 %v2208
    %v2385 = vunpack.c.h.b16 %v2209
    %v2386 = vunpack.c.h.b16 %v2210
    %v2387 = vunpack.c.h.b16 %v2211
    %v2388 = vunpack.c.h.b16 %v2212
    %v2389 = vunpack.c.h.b16 %v2213
    %v2390 = vunpack.c.h.b16 %v2214
    %v2391 = vunpack.c.h.b16 %v2215
    %v2392 = vunpack.c.h.b16 %v2216
    %v2393 = vunpack.c.h.b16 %v2217
    %v2394 = vunpack.c.h.b16 %v2218
    %v2395 = vunpack.c.h.b16 %v2219
    %v2396 = vunpack.c.h.b16 %v2220
    %v2397 = vunpack.c.l.b16 %v2221
    %v2398 = vunpack.c.l.b16 %v2222
    %v2399 = vunpack.c.l.b16 %v2223
    %v2400 = vunpack.c.l.b16 %v2224
    %v2401 = vunpack.c.l.b16 %v2225
    %v2402 = vunpack.c.l.b16 %v2226
    %v2403 = vunpack.c.l.b16 %v2227
    %v2404 = vunpack.c.l.b16 %v2228
    %v2405 = vunpack.c.l.b16 %v2229
    %v2406 = vunpack.c.l.b16 %v2230
    %v2407 = vunpack.c.l.b16 %v2231
    %v2408 = vunpack.c.l.b16 %v2232
    %v2409 = vunpack.c.l.b16 %v2233
    %v2410 = vunpack.c.l.b16 %v2234
    %v2411 = vunpack.c.l.b16 %v2235
    %v2412 = vunpack.c.l.b16 %v2236
    %v2413 = vpack.c.b16 %v2302, %v2301
    %v2414 = vpack.c.b16 %v2304, %v2303
    %v2415 = vpack.c.b16 %v2306, %v2305
    %v2416 = vpack.c.b16 %v2308, %v2307
    %v2417 = vpack.c.b16 %v2310, %v2309
    %v2418 = vpack.c.b16 %v2312, %v2311
    %v2419 = vpack.c.b16 %v2314, %v2313
    %v2420 = vpack.c.b16 %v2316, %v2315
    %v2421 = vpack.c.b16 %v2318, %v2317
    %v2422 = vpack.c.b16 %v2320, %v2319
    %v2423 = vpack.c.b16 %v2322, %v2321
    %v2424 = vpack.c.b16 %v2324, %v2323
    %v2425 = vpack.c.b16 %v2326, %v2325
    %v2426 = vpack.c.b16 %v2328, %v2327
    %v2427 = vpack.c.b16 %v2330, %v2329
    %v2428 = vpack.c.b16 %v2332, %v2331
    %v2429 = vpack.c.b16 %v2334, %v2333
    %v2430 = vpack.c.b16 %v2336, %v2335
    %v2431 = vpack.c.b16 %v2338, %v2337
    %v2432 = vpack.c.b16 %v2340, %v2339
    %v2433 = vpack.c.b16 %v2342, %v2341
    %v2434 = vpack.c.b16 %v2344, %v2343
    %v2435 = vpack.c.b16 %v2346, %v2345
    %v2436 = vpack.c.b16 %v2348, %v2347
    %v2437 = vpack.c.b16 %v2350, %v2349
    %v2438 = vpack.c.b16 %v2352, %v2351
    %v2439 = vpack.c.b16 %v2354, %v2353
    %v2440 = vpack.c.b16 %v2356, %v2355
    %v2441 = vpack.c.b16 %v2358, %v2357
    %v2442 = vpack.c.b16 %v2360, %v2359
    %v2443 = vpack.c.b16 %v2362, %v2361
    %v2444 = vpack.c.b16 %v2364, %v2363
    %v2445 = vpack.c.b16 %v2366, %v2365
    %v2446 = vpack.c.b16 %v2368, %v2367
    %v2447 = vpack.c.b16 %v2370, %v2369
    %v2448 = vpack.c.b16 %v2372, %v2371
    %v2449 = vpack.c.b16 %v2374, %v2373
    %v2450 = vpack.c.b16 %v2376, %v2375
    %v2451 = vpack.c.b16 %v2378, %v2377
    %v2452 = vpack.c.b16 %v2380, %v2379
    %v2453 = vpack.c.b16 %v2382, %v2381
    %v2454 = vpack.c.b16 %v2384, %v2383
    %v2455 = vpack.c.b16 %v2386, %v2385
    %v2456 = vpack.c.b16 %v2388, %v2387
    %v2457 = vpack.c.b16 %v2390, %v2389
    %v2458 = vpack.c.b16 %v2392, %v2391
    %v2459 = vpack.c.b16 %v2394, %v2393
    %v2460 = vpack.c.b16 %v2396, %v2395
    %v2461 = vpack.c.b16 %v2398, %v2397
    %v2462 = vpack.c.b16 %v2400, %v2399
    %v2463 = vpack.c.b16 %v2402, %v2401
    %v2464 = vpack.c.b16 %v2404, %v2403
    %v2465 = vpack.c.b16 %v2406, %v2405
    %v2466 = vpack.c.b16 %v2408, %v2407
    %v2467 = vpack.c.b16 %v2410, %v2409
    %v2468 = vpack.c.b16 %v2412, %v2411
    %2525 = vst [vmem:[%s2] sm:$0xff] %v2413
    %2526 = vst [vmem:[%s2 + $0x8] sm:$0xff] %v2414
    %2527 = vst [vmem:[%s2 + $0x10] sm:$0xff] %v2415
    %2528 = vst [vmem:[%s2 + $0x18] sm:$0xff] %v2416
    %2529 = vst [vmem:[%s2 + $0x20] sm:$0xff] %v2417
    %2530 = vst [vmem:[%s2 + $0x28] sm:$0xff] %v2418
    %2531 = vst [vmem:[%s2 + $0x30] sm:$0xff] %v2419
    %2532 = vst [vmem:[%s2 + $0x38] sm:$0xff] %v2420
    %2533 = vst [vmem:[%s2 + $0x40] sm:$0xff] %v2421
    %2534 = vst [vmem:[%s2 + $0x48] sm:$0xff] %v2422
    %2535 = vst [vmem:[%s2 + $0x50] sm:$0xff] %v2423
    %2536 = vst [vmem:[%s2 + $0x58] sm:$0xff] %v2424
    %2537 = vst [vmem:[%s2 + $0x60] sm:$0xff] %v2425
    %2538 = vst [vmem:[%s2 + $0x68] sm:$0xff] %v2426
    %2539 = vst [vmem:[%s2 + $0x70] sm:$0xff] %v2427
    %2540 = vst [vmem:[%s2 + $0x78] sm:$0xff] %v2428
    %2541 = vst [vmem:[%s2 + $0x80] sm:$0xff] %v2429
    %2542 = vst [vmem:[%s2 + $0x88] sm:$0xff] %v2430
    %2543 = vst [vmem:[%s2 + $0x90] sm:$0xff] %v2431
    %2544 = vst [vmem:[%s2 + $0x98] sm:$0xff] %v2432
    %2545 = vst [vmem:[%s2 + $0xa0] sm:$0xff] %v2433
    %2546 = vst [vmem:[%s2 + $0xa8] sm:$0xff] %v2434
    %2547 = vst [vmem:[%s2 + $0xb0] sm:$0xff] %v2435
    %2548 = vst [vmem:[%s2 + $0xb8] sm:$0xff] %v2436
    %2549 = vst [vmem:[%s2 + $0xc0] sm:$0xff] %v2437
    %2550 = vst [vmem:[%s2 + $0xc8] sm:$0xff] %v2438
    %2551 = vst [vmem:[%s2 + $0xd0] sm:$0xff] %v2439
    %2552 = vst [vmem:[%s2 + $0xd8] sm:$0xff] %v2440
    %2553 = vst [vmem:[%s2 + $0xe0] sm:$0xff] %v2441
    %2554 = vst [vmem:[%s2 + $0xe8] sm:$0xff] %v2442
    %2555 = vst [vmem:[%s2 + $0xf0] sm:$0xff] %v2443
    %2556 = vst [vmem:[%s2 + $0xf8] sm:$0xff] %v2444
    %2557 = vst [vmem:[%s2 + $0x100] sm:$0xff] %v2445
    %2558 = vst [vmem:[%s2 + $0x108] sm:$0xff] %v2446
    %2559 = vst [vmem:[%s2 + $0x110] sm:$0xff] %v2447
    %2560 = vst [vmem:[%s2 + $0x118] sm:$0xff] %v2448
    %2561 = vst [vmem:[%s2 + $0x120] sm:$0xff] %v2449
    %2562 = vst [vmem:[%s2 + $0x128] sm:$0xff] %v2450
    %2563 = vst [vmem:[%s2 + $0x130] sm:$0xff] %v2451
    %2564 = vst [vmem:[%s2 + $0x138] sm:$0xff] %v2452
    %2565 = vst [vmem:[%s2 + $0x140] sm:$0xff] %v2453
    %2566 = vst [vmem:[%s2 + $0x148] sm:$0xff] %v2454
    %2567 = vst [vmem:[%s2 + $0x150] sm:$0xff] %v2455
    %2568 = vst [vmem:[%s2 + $0x158] sm:$0xff] %v2456
    %2569 = vst [vmem:[%s2 + $0x160] sm:$0xff] %v2457
    %2570 = vst [vmem:[%s2 + $0x168] sm:$0xff] %v2458
    %2571 = vst [vmem:[%s2 + $0x170] sm:$0xff] %v2459
    %2572 = vst [vmem:[%s2 + $0x178] sm:$0xff] %v2460
    %2573 = vst [vmem:[%s2 + $0x180] sm:$0xff] %v2461
    %2574 = vst [vmem:[%s2 + $0x188] sm:$0xff] %v2462
    %2575 = vst [vmem:[%s2 + $0x190] sm:$0xff] %v2463
    %2576 = vst [vmem:[%s2 + $0x198] sm:$0xff] %v2464
    %2577 = vst [vmem:[%s2 + $0x1a0] sm:$0xff] %v2465
    %2578 = vst [vmem:[%s2 + $0x1a8] sm:$0xff] %v2466
    %2579 = vst [vmem:[%s2 + $0x1b0] sm:$0xff] %v2467
    %2580 = vst [vmem:[%s2 + $0x1b8] sm:$0xff] %v2468
    // Predicated region
    $region14: #{decoder_a_forward.10} parent=1 // pred_check
      _
    $region15: #{decoder_a_forward.10} parent=1 // pred_check_branch
      %2582 = sbr.rel (0) target = $region17
    $region16: #{decoder_a_forward.10} parent=1 // pred_region
      _
    $region17: #{decoder_a_forward.10} parent=1 // pred_fallthru
      _
    // Predicated region
    $region18: #{decoder_a_forward.10} parent=1 // pred_check
      _
    $region19: #{decoder_a_forward.10} parent=1 // pred_check_branch
      %2584 = sbr.rel (0) target = $region21
    $region20: #{decoder_a_forward.10} parent=1 // pred_region
      _
    $region21: #{decoder_a_forward.10} parent=1 // pred_fallthru
      _
    %2585 = vsyncpa [#allocation3], 1

// kernel: decoder_a_forward.11
$region0: #{decoder_a_forward.11}
  #allocation0 [shape = 'u32[]', space=smem, size = 0x4, offset = 0x4, fixed_abs, tag = 'smem constant byte address 0x4 - core index']
  #allocation1 [shape = 'u32[144,128]{1,0:T(1,128)}', space=vmem, size = 0x12000, scoped, tag = 'internal scratch']
  %s0 = inlined_call_operand.vmem [shape: bf16[16,1024], index: 0, kind: input, shape index: {}]
  %s1 = inlined_call_operand.vmem [shape: f32[1,1024], index: 1, kind: output, shape index: {0}]
  %s2 = inlined_call_operand.vmem [shape: f32[1,1024], index: 2, kind: output, shape index: {1}]
  %3 = xla_tuple %s1, %s2
  %s4 = sld [smem:[#allocation0]]
  $region26: #{decoder_a_forward.11} parent=0
    _
  %s6 = ssub.s32 1, %s4
  %s7 = scalar_select 0, %s6, %s4
  // Predicated region
  $region2: #{decoder_a_forward.11} parent=0 // pred_check
    _
  $region3: #{decoder_a_forward.11} parent=0 // pred_check_branch
    %9 = sbr.rel (0) target = $region5
  $region4: #{decoder_a_forward.11} parent=0 // pred_region
    _
  $region5: #{decoder_a_forward.11} parent=0 // pred_fallthru
    _
  %p10 = scmp.eq.s32.totalorder 0, 0
  // Predicated region
  $region6: #{decoder_a_forward.11} parent=0 // pred_check
    %p11 = pneg %p10
  $region7: #{decoder_a_forward.11} parent=0 // pred_check_branch
    %13 = sbr.rel (%p11) target = $region9
  $region8: #{decoder_a_forward.11} parent=0 // pred_region
    %14 = vst [vmem:[%s1] sm:$0xff] 0.0
    %15 = vst [vmem:[%s2] sm:$0xff] 0.0
  $region9: #{decoder_a_forward.11} parent=0 // pred_fallthru
    _
  %v16 = vld [vmem:[%s0] sm:$0xff]
  %v17 = vld [vmem:[%s0 + $0x8] sm:$0xff]
  %v18 = vld [vmem:[%s0 + $0x10] sm:$0xff]
  %v19 = vld [vmem:[%s0 + $0x18] sm:$0xff]
  %v20 = vld [vmem:[%s0 + $0x20] sm:$0xff]
  %v21 = vld [vmem:[%s0 + $0x28] sm:$0xff]
  %v22 = vld [vmem:[%s0 + $0x30] sm:$0xff]
  %v23 = vld [vmem:[%s0 + $0x38] sm:$0xff]
  %v24 = vunpack.c.l.bf16 %v16
  %v25 = vunpack.c.h.bf16 %v16
  %v26 = vunpack.c.l.bf16 %v17
  %v27 = vunpack.c.h.bf16 %v17
  %v28 = vunpack.c.l.bf16 %v18
  %v29 = vunpack.c.h.bf16 %v18
  %v30 = vunpack.c.l.bf16 %v19
  %v31 = vunpack.c.h.bf16 %v19
  %v32 = vunpack.c.l.bf16 %v20
  %v33 = vunpack.c.h.bf16 %v20
  %v34 = vunpack.c.l.bf16 %v21
  %v35 = vunpack.c.h.bf16 %v21
  %v36 = vunpack.c.l.bf16 %v22
  %v37 = vunpack.c.h.bf16 %v22
  %v38 = vunpack.c.l.bf16 %v23
  %v39 = vunpack.c.h.bf16 %v23
  %v40 = vld [vmem:[%s1] sm:$0xff]
  %v41 = vadd.f32 %v24, %v32
  %v42 = vrot.slane %v41, 4
  %v43 = vadd.f32 %v41, %v42
  %v44 = vrot.slane %v43, 2
  %v45 = vadd.f32 %v43, %v44
  %v46 = vrot.slane %v45, 1
  %v47 = vadd.f32 %v45, %v46
  %v48 = vadd.f32 %v25, %v33
  %v49 = vrot.slane %v48, 4
  %v50 = vadd.f32 %v48, %v49
  %v51 = vrot.slane %v50, 2
  %v52 = vadd.f32 %v50, %v51
  %v53 = vrot.slane %v52, 1
  %v54 = vadd.f32 %v52, %v53
  %v55 = vadd.f32 %v26, %v34
  %v56 = vrot.slane %v55, 4
  %v57 = vadd.f32 %v55, %v56
  %v58 = vrot.slane %v57, 2
  %v59 = vadd.f32 %v57, %v58
  %v60 = vrot.slane %v59, 1
  %v61 = vadd.f32 %v59, %v60
  %v62 = vadd.f32 %v27, %v35
  %v63 = vrot.slane %v62, 4
  %v64 = vadd.f32 %v62, %v63
  %v65 = vrot.slane %v64, 2
  %v66 = vadd.f32 %v64, %v65
  %v67 = vrot.slane %v66, 1
  %v68 = vadd.f32 %v66, %v67
  %v69 = vadd.f32 %v28, %v36
  %v70 = vrot.slane %v69, 4
  %v71 = vadd.f32 %v69, %v70
  %v72 = vrot.slane %v71, 2
  %v73 = vadd.f32 %v71, %v72
  %v74 = vrot.slane %v73, 1
  %v75 = vadd.f32 %v73, %v74
  %v76 = vadd.f32 %v29, %v37
  %v77 = vrot.slane %v76, 4
  %v78 = vadd.f32 %v76, %v77
  %v79 = vrot.slane %v78, 2
  %v80 = vadd.f32 %v78, %v79
  %v81 = vrot.slane %v80, 1
  %v82 = vadd.f32 %v80, %v81
  %v83 = vadd.f32 %v30, %v38
  %v84 = vrot.slane %v83, 4
  %v85 = vadd.f32 %v83, %v84
  %v86 = vrot.slane %v85, 2
  %v87 = vadd.f32 %v85, %v86
  %v88 = vrot.slane %v87, 1
  %v89 = vadd.f32 %v87, %v88
  %v90 = vadd.f32 %v31, %v39
  %v91 = vrot.slane %v90, 4
  %v92 = vadd.f32 %v90, %v91
  %v93 = vrot.slane %v92, 2
  %v94 = vadd.f32 %v92, %v93
  %v95 = vrot.slane %v94, 1
  %v96 = vadd.f32 %v94, %v95
  %v105 = vcombine.low %v47, %v54
  %v106 = vcombine.low %v61, %v68
  %v107 = vcombine.low %v75, %v82
  %v108 = vcombine.low %v89, %v96
  %v110 = vunpack.c.l.s4 1966171168
  %v111 = vunpack.c.0.s8 %v110
  %v112 = vlaneseq
  %v113 = vshrl.u32 %v112, 7
  %v114 = vsub.s32 %v111, %v113
  %v115 = vrot.slane %v105, %v114
  %v117 = vunpack.c.l.s4 1966171168
  %v118 = vunpack.c.0.s8 %v117
  %v119 = vlaneseq
  %v120 = vshrl.u32 %v119, 7
  %v121 = vsub.s32 %v118, %v120
  %v122 = vrot.slane %v106, %v121
  %v124 = vunpack.c.l.s4 1966171168
  %v125 = vunpack.c.0.s8 %v124
  %v126 = vlaneseq
  %v127 = vshrl.u32 %v126, 7
  %v128 = vsub.s32 %v125, %v127
  %v129 = vrot.slane %v107, %v128
  %v131 = vunpack.c.l.s4 1966171168
  %v132 = vunpack.c.0.s8 %v131
  %v133 = vlaneseq
  %v134 = vshrl.u32 %v133, 7
  %v135 = vsub.s32 %v132, %v134
  %v136 = vrot.slane %v108, %v135
  %v137 = vcombine.low %v115, %v122
  %v138 = vcombine.low %v129, %v136
  %v140 = vunpack.c.l.s4 1966171168
  %v141 = vunpack.c.0.s8 %v140
  %v142 = vlaneseq
  %v143 = vshrl.u32 %v142, 7
  %v144 = vsub.s32 %v141, %v143
  %v145 = vrot.slane %v137, %v144
  %v147 = vunpack.c.l.s4 1966171168
  %v148 = vunpack.c.0.s8 %v147
  %v149 = vlaneseq
  %v150 = vshrl.u32 %v149, 7
  %v151 = vsub.s32 %v148, %v150
  %v152 = vrot.slane %v138, %v151
  %v153 = vcombine.low %v145, %v152
  %v155 = vadd.f32 %v40, %v153
  %156 = vst [vmem:[%s1] sm:$0xff] %v155
  %v157 = vld [vmem:[%s2] sm:$0xff]
  %v158 = vmul.f32 %v24, %v24
  %v159 = vmul.f32 %v25, %v25
  %v160 = vmul.f32 %v26, %v26
  %v161 = vmul.f32 %v27, %v27
  %v162 = vmul.f32 %v28, %v28
  %v163 = vmul.f32 %v29, %v29
  %v164 = vmul.f32 %v30, %v30
  %v165 = vmul.f32 %v31, %v31
  %v166 = vmul.f32 %v32, %v32
  %v167 = vmul.f32 %v33, %v33
  %v168 = vmul.f32 %v34, %v34
  %v169 = vmul.f32 %v35, %v35
  %v170 = vmul.f32 %v36, %v36
  %v171 = vmul.f32 %v37, %v37
  %v172 = vmul.f32 %v38, %v38
  %v173 = vmul.f32 %v39, %v39
  %v174 = vadd.f32 %v158, %v166
  %v175 = vrot.slane %v174, 4
  %v176 = vadd.f32 %v174, %v175
  %v177 = vrot.slane %v176, 2
  %v178 = vadd.f32 %v176, %v177
  %v179 = vrot.slane %v178, 1
  %v180 = vadd.f32 %v178, %v179
  %v181 = vadd.f32 %v159, %v167
  %v182 = vrot.slane %v181, 4
  %v183 = vadd.f32 %v181, %v182
  %v184 = vrot.slane %v183, 2
  %v185 = vadd.f32 %v183, %v184
  %v186 = vrot.slane %v185, 1
  %v187 = vadd.f32 %v185, %v186
  %v188 = vadd.f32 %v160, %v168
  %v189 = vrot.slane %v188, 4
  %v190 = vadd.f32 %v188, %v189
  %v191 = vrot.slane %v190, 2
  %v192 = vadd.f32 %v190, %v191
  %v193 = vrot.slane %v192, 1
  %v194 = vadd.f32 %v192, %v193
  %v195 = vadd.f32 %v161, %v169
  %v196 = vrot.slane %v195, 4
  %v197 = vadd.f32 %v195, %v196
  %v198 = vrot.slane %v197, 2
  %v199 = vadd.f32 %v197, %v198
  %v200 = vrot.slane %v199, 1
  %v201 = vadd.f32 %v199, %v200
  %v202 = vadd.f32 %v162, %v170
  %v203 = vrot.slane %v202, 4
  %v204 = vadd.f32 %v202, %v203
  %v205 = vrot.slane %v204, 2
  %v206 = vadd.f32 %v204, %v205
  %v207 = vrot.slane %v206, 1
  %v208 = vadd.f32 %v206, %v207
  %v209 = vadd.f32 %v163, %v171
  %v210 = vrot.slane %v209, 4
  %v211 = vadd.f32 %v209, %v210
  %v212 = vrot.slane %v211, 2
  %v213 = vadd.f32 %v211, %v212
  %v214 = vrot.slane %v213, 1
  %v215 = vadd.f32 %v213, %v214
  %v216 = vadd.f32 %v164, %v172
  %v217 = vrot.slane %v216, 4
  %v218 = vadd.f32 %v216, %v217
  %v219 = vrot.slane %v218, 2
  %v220 = vadd.f32 %v218, %v219
  %v221 = vrot.slane %v220, 1
  %v222 = vadd.f32 %v220, %v221
  %v223 = vadd.f32 %v165, %v173
  %v224 = vrot.slane %v223, 4
  %v225 = vadd.f32 %v223, %v224
  %v226 = vrot.slane %v225, 2
  %v227 = vadd.f32 %v225, %v226
  %v228 = vrot.slane %v227, 1
  %v229 = vadd.f32 %v227, %v228
  %v238 = vcombine.low %v180, %v187
  %v239 = vcombine.low %v194, %v201
  %v240 = vcombine.low %v208, %v215
  %v241 = vcombine.low %v222, %v229
  %v243 = vunpack.c.l.s4 1966171168
  %v244 = vunpack.c.0.s8 %v243
  %v245 = vlaneseq
  %v246 = vshrl.u32 %v245, 7
  %v247 = vsub.s32 %v244, %v246
  %v248 = vrot.slane %v238, %v247
  %v250 = vunpack.c.l.s4 1966171168
  %v251 = vunpack.c.0.s8 %v250
  %v252 = vlaneseq
  %v253 = vshrl.u32 %v252, 7
  %v254 = vsub.s32 %v251, %v253
  %v255 = vrot.slane %v239, %v254
  %v257 = vunpack.c.l.s4 1966171168
  %v258 = vunpack.c.0.s8 %v257
  %v259 = vlaneseq
  %v260 = vshrl.u32 %v259, 7
  %v261 = vsub.s32 %v258, %v260
  %v262 = vrot.slane %v240, %v261
  %v264 = vunpack.c.l.s4 1966171168
  %v265 = vunpack.c.0.s8 %v264
  %v266 = vlaneseq
  %v267 = vshrl.u32 %v266, 7
  %v268 = vsub.s32 %v265, %v267
  %v269 = vrot.slane %v241, %v268
  %v270 = vcombine.low %v248, %v255
  %v271 = vcombine.low %v262, %v269
  %v273 = vunpack.c.l.s4 1966171168
  %v274 = vunpack.c.0.s8 %v273
  %v275 = vlaneseq
  %v276 = vshrl.u32 %v275, 7
  %v277 = vsub.s32 %v274, %v276
  %v278 = vrot.slane %v270, %v277
  %v280 = vunpack.c.l.s4 1966171168
  %v281 = vunpack.c.0.s8 %v280
  %v282 = vlaneseq
  %v283 = vshrl.u32 %v282, 7
  %v284 = vsub.s32 %v281, %v283
  %v285 = vrot.slane %v271, %v284
  %v286 = vcombine.low %v278, %v285
  %v288 = vadd.f32 %v157, %v286
  %289 = vst [vmem:[%s2] sm:$0xff] %v288
  // Predicated region
  $region10: #{decoder_a_forward.11} parent=0 // pred_check
    _
  $region11: #{decoder_a_forward.11} parent=0 // pred_check_branch
    %291 = sbr.rel (0) target = $region13
  $region12: #{decoder_a_forward.11} parent=0 // pred_region
    _
  $region13: #{decoder_a_forward.11} parent=0 // pred_fallthru
    _
  // Predicated region
  $region14: #{decoder_a_forward.11} parent=0 // pred_check
    _
  $region15: #{decoder_a_forward.11} parent=0 // pred_check_branch
    %293 = sbr.rel (0) target = $region17
  $region16: #{decoder_a_forward.11} parent=0 // pred_region
    _
  $region17: #{decoder_a_forward.11} parent=0 // pred_fallthru
    _
  // Predicated region
  $region18: #{decoder_a_forward.11} parent=0 // pred_check
    _
  $region19: #{decoder_a_forward.11} parent=0 // pred_check_branch
    %295 = sbr.rel (0) target = $region21
  $region20: #{decoder_a_forward.11} parent=0 // pred_region
    _
  $region21: #{decoder_a_forward.11} parent=0 // pred_fallthru
    _
  // Predicated region
  $region22: #{decoder_a_forward.11} parent=0 // pred_check
    _
  $region23: #{decoder_a_forward.11} parent=0 // pred_check_branch
    %297 = sbr.rel (0) target = $region25
  $region24: #{decoder_a_forward.11} parent=0 // pred_region
    _
  $region25: #{decoder_a_forward.11} parent=0 // pred_fallthru
    _

// kernel: decoder_a_forward.12
$region0: #{decoder_a_forward.12}
  #allocation0 [shape = 'u32[]', space=smem, size = 0x4, offset = 0x4, fixed_abs, tag = 'smem constant byte address 0x4 - core index']
  #allocation1 [shape = 'u32[144,128]{1,0:T(1,128)}', space=vmem, size = 0x12000, scoped, tag = 'internal scratch']
  %s0 = inlined_call_operand.vmem [shape: bf16[128,128], index: 0, kind: input, shape index: {}]
  %s1 = inlined_call_operand.vmem [shape: bf16[128,1024], index: 1, kind: input, shape index: {}]
  %s2 = inlined_call_operand.vmem [shape: f32[1,128], index: 2, kind: input, shape index: {}]
  %s3 = inlined_call_operand.vmem [shape: f32[1,128], index: 3, kind: input, shape index: {}]
  %s4 = inlined_call_operand.vmem [shape: bf16[128,1024], index: 4, kind: output, shape index: {}]
  %s5 = sld [smem:[#allocation0]]
  $region26: #{decoder_a_forward.12} parent=0
    _
  %s7 = ssub.s32 1, %s5
  %s8 = scalar_select 0, %s7, %s5
  // Predicated region
  $region2: #{decoder_a_forward.12} parent=0 // pred_check
    _
  $region3: #{decoder_a_forward.12} parent=0 // pred_check_branch
    %10 = sbr.rel (0) target = $region5
  $region4: #{decoder_a_forward.12} parent=0 // pred_region
    _
  $region5: #{decoder_a_forward.12} parent=0 // pred_fallthru
    _
  // Predicated region
  $region6: #{decoder_a_forward.12} parent=0 // pred_check
    _
  $region7: #{decoder_a_forward.12} parent=0 // pred_check_branch
    %12 = sbr.rel (0) target = $region9
  $region8: #{decoder_a_forward.12} parent=0 // pred_region
    _
  $region9: #{decoder_a_forward.12} parent=0 // pred_fallthru
    _
  // Predicated region
  $region10: #{decoder_a_forward.12} parent=0 // pred_check
    _
  $region11: #{decoder_a_forward.12} parent=0 // pred_check_branch
    %14 = sbr.rel (0) target = $region13
  $region12: #{decoder_a_forward.12} parent=0 // pred_region
    _
  $region13: #{decoder_a_forward.12} parent=0 // pred_fallthru
    _
  // Predicated region
  $region14: #{decoder_a_forward.12} parent=0 // pred_check
    _
  $region15: #{decoder_a_forward.12} parent=0 // pred_check_branch
    %16 = sbr.rel (0) target = $region17
  $region16: #{decoder_a_forward.12} parent=0 // pred_region
    _
  $region17: #{decoder_a_forward.12} parent=0 // pred_fallthru
    _
  %v18 = vld [vmem:[%s0] sm:$0xf]
  %v19 = vld [vmem:[%s0 + $0x4] sm:$0xf]
  %v20 = vld [vmem:[%s0 + $0x8] sm:$0xf]
  %v21 = vld [vmem:[%s0 + $0xc] sm:$0xf]
  %v22 = vld [vmem:[%s0 + $0x10] sm:$0xf]
  %v23 = vld [vmem:[%s0 + $0x14] sm:$0xf]
  %v24 = vld [vmem:[%s0 + $0x18] sm:$0xf]
  %v25 = vld [vmem:[%s0 + $0x1c] sm:$0xf]
  %v26 = vld [vmem:[%s0 + $0x20] sm:$0xf]
  %v27 = vld [vmem:[%s0 + $0x24] sm:$0xf]
  %v28 = vld [vmem:[%s0 + $0x28] sm:$0xf]
  %v29 = vld [vmem:[%s0 + $0x2c] sm:$0xf]
  %v30 = vld [vmem:[%s0 + $0x30] sm:$0xf]
  %v31 = vld [vmem:[%s0 + $0x34] sm:$0xf]
  %v32 = vld [vmem:[%s0 + $0x38] sm:$0xf]
  %v33 = vld [vmem:[%s0 + $0x3c] sm:$0xf]
  %v34 = vunpack.c.l.bf16 %v18
  %v35 = vunpack.c.l.bf16 %v19
  %v36 = vunpack.c.l.bf16 %v20
  %v37 = vunpack.c.l.bf16 %v21
  %v38 = vunpack.c.l.bf16 %v22
  %v39 = vunpack.c.l.bf16 %v23
  %v40 = vunpack.c.l.bf16 %v24
  %v41 = vunpack.c.l.bf16 %v25
  %v42 = vunpack.c.l.bf16 %v26
  %v43 = vunpack.c.l.bf16 %v27
  %v44 = vunpack.c.l.bf16 %v28
  %v45 = vunpack.c.l.bf16 %v29
  %v46 = vunpack.c.l.bf16 %v30
  %v47 = vunpack.c.l.bf16 %v31
  %v48 = vunpack.c.l.bf16 %v32
  %v49 = vunpack.c.l.bf16 %v33
  %v50 = vld [vmem:[%s2] sm:$0x1]
  %v52 = vlaneseq
  %v53 = vshrl.u32 %v52, 7
  %v54 = vsub.s32 0, %v53
  %v55 = vrot.slane %v50, %v54
  %v57 = vmul.f32 %v34, %v55
  %v58 = vmul.f32 %v35, %v55
  %v59 = vmul.f32 %v36, %v55
  %v60 = vmul.f32 %v37, %v55
  %v61 = vmul.f32 %v38, %v55
  %v62 = vmul.f32 %v39, %v55
  %v63 = vmul.f32 %v40, %v55
  %v64 = vmul.f32 %v41, %v55
  %v65 = vmul.f32 %v42, %v55
  %v66 = vmul.f32 %v43, %v55
  %v67 = vmul.f32 %v44, %v55
  %v68 = vmul.f32 %v45, %v55
  %v69 = vmul.f32 %v46, %v55
  %v70 = vmul.f32 %v47, %v55
  %v71 = vmul.f32 %v48, %v55
  %v72 = vmul.f32 %v49, %v55
  %v73 = vld [vmem:[%s3] sm:$0x1]
  %v75 = vlaneseq
  %v76 = vshrl.u32 %v75, 7
  %v77 = vsub.s32 0, %v76
  %v78 = vrot.slane %v73, %v77
  %v80 = vadd.f32 %v57, %v78
  %v81 = vadd.f32 %v58, %v78
  %v82 = vadd.f32 %v59, %v78
  %v83 = vadd.f32 %v60, %v78
  %v84 = vadd.f32 %v61, %v78
  %v85 = vadd.f32 %v62, %v78
  %v86 = vadd.f32 %v63, %v78
  %v87 = vadd.f32 %v64, %v78
  %v88 = vadd.f32 %v65, %v78
  %v89 = vadd.f32 %v66, %v78
  %v90 = vadd.f32 %v67, %v78
  %v91 = vadd.f32 %v68, %v78
  %v92 = vadd.f32 %v69, %v78
  %v93 = vadd.f32 %v70, %v78
  %v94 = vadd.f32 %v71, %v78
  %v95 = vadd.f32 %v72, %v78
  %v96 = vmax.f32 %v80, 0.0
  %v97 = vmax.f32 %v81, 0.0
  %v98 = vmax.f32 %v82, 0.0
  %v99 = vmax.f32 %v83, 0.0
  %v100 = vmax.f32 %v84, 0.0
  %v101 = vmax.f32 %v85, 0.0
  %v102 = vmax.f32 %v86, 0.0
  %v103 = vmax.f32 %v87, 0.0
  %v104 = vmax.f32 %v88, 0.0
  %v105 = vmax.f32 %v89, 0.0
  %v106 = vmax.f32 %v90, 0.0
  %v107 = vmax.f32 %v91, 0.0
  %v108 = vmax.f32 %v92, 0.0
  %v109 = vmax.f32 %v93, 0.0
  %v110 = vmax.f32 %v94, 0.0
  %v111 = vmax.f32 %v95, 0.0
  %v112 = vpack.c.bf16 %v97, %v96
  %v113 = vpack.c.bf16 %v99, %v98
  %v114 = vpack.c.bf16 %v101, %v100
  %v115 = vpack.c.bf16 %v103, %v102
  %v116 = vpack.c.bf16 %v105, %v104
  %v117 = vpack.c.bf16 %v107, %v106
  %v118 = vpack.c.bf16 %v109, %v108
  %v119 = vpack.c.bf16 %v111, %v110
  %v120 = vld [vmem:[%s1] sm:$0xff]
  %v121 = vld [vmem:[%s1 + $0x8] sm:$0xff]
  %v122 = vld [vmem:[%s1 + $0x10] sm:$0xff]
  %v123 = vld [vmem:[%s1 + $0x18] sm:$0xff]
  %v124 = vld [vmem:[%s1 + $0x20] sm:$0xff]
  %v125 = vld [vmem:[%s1 + $0x28] sm:$0xff]
  %v126 = vld [vmem:[%s1 + $0x30] sm:$0xff]
  %v127 = vld [vmem:[%s1 + $0x38] sm:$0xff]
  %v128 = vld [vmem:[%s1 + $0x40] sm:$0xff]
  %v129 = vld [vmem:[%s1 + $0x48] sm:$0xff]
  %v130 = vld [vmem:[%s1 + $0x50] sm:$0xff]
  %v131 = vld [vmem:[%s1 + $0x58] sm:$0xff]
  %v132 = vld [vmem:[%s1 + $0x60] sm:$0xff]
  %v133 = vld [vmem:[%s1 + $0x68] sm:$0xff]
  %v134 = vld [vmem:[%s1 + $0x70] sm:$0xff]
  %v135 = vld [vmem:[%s1 + $0x78] sm:$0xff]
  %v136 = vld [vmem:[%s1 + $0x80] sm:$0xff]
  %v137 = vld [vmem:[%s1 + $0x88] sm:$0xff]
  %v138 = vld [vmem:[%s1 + $0x90] sm:$0xff]
  %v139 = vld [vmem:[%s1 + $0x98] sm:$0xff]
  %v140 = vld [vmem:[%s1 + $0xa0] sm:$0xff]
  %v141 = vld [vmem:[%s1 + $0xa8] sm:$0xff]
  %v142 = vld [vmem:[%s1 + $0xb0] sm:$0xff]
  %v143 = vld [vmem:[%s1 + $0xb8] sm:$0xff]
  %v144 = vld [vmem:[%s1 + $0xc0] sm:$0xff]
  %v145 = vld [vmem:[%s1 + $0xc8] sm:$0xff]
  %v146 = vld [vmem:[%s1 + $0xd0] sm:$0xff]
  %v147 = vld [vmem:[%s1 + $0xd8] sm:$0xff]
  %v148 = vld [vmem:[%s1 + $0xe0] sm:$0xff]
  %v149 = vld [vmem:[%s1 + $0xe8] sm:$0xff]
  %v150 = vld [vmem:[%s1 + $0xf0] sm:$0xff]
  %v151 = vld [vmem:[%s1 + $0xf8] sm:$0xff]
  %v152 = vld [vmem:[%s1 + $0x100] sm:$0xff]
  %v153 = vld [vmem:[%s1 + $0x108] sm:$0xff]
  %v154 = vld [vmem:[%s1 + $0x110] sm:$0xff]
  %v155 = vld [vmem:[%s1 + $0x118] sm:$0xff]
  %v156 = vld [vmem:[%s1 + $0x120] sm:$0xff]
  %v157 = vld [vmem:[%s1 + $0x128] sm:$0xff]
  %v158 = vld [vmem:[%s1 + $0x130] sm:$0xff]
  %v159 = vld [vmem:[%s1 + $0x138] sm:$0xff]
  %v160 = vld [vmem:[%s1 + $0x140] sm:$0xff]
  %v161 = vld [vmem:[%s1 + $0x148] sm:$0xff]
  %v162 = vld [vmem:[%s1 + $0x150] sm:$0xff]
  %v163 = vld [vmem:[%s1 + $0x158] sm:$0xff]
  %v164 = vld [vmem:[%s1 + $0x160] sm:$0xff]
  %v165 = vld [vmem:[%s1 + $0x168] sm:$0xff]
  %v166 = vld [vmem:[%s1 + $0x170] sm:$0xff]
  %v167 = vld [vmem:[%s1 + $0x178] sm:$0xff]
  %v168 = vld [vmem:[%s1 + $0x180] sm:$0xff]
  %v169 = vld [vmem:[%s1 + $0x188] sm:$0xff]
  %v170 = vld [vmem:[%s1 + $0x190] sm:$0xff]
  %v171 = vld [vmem:[%s1 + $0x198] sm:$0xff]
  %v172 = vld [vmem:[%s1 + $0x1a0] sm:$0xff]
  %v173 = vld [vmem:[%s1 + $0x1a8] sm:$0xff]
  %v174 = vld [vmem:[%s1 + $0x1b0] sm:$0xff]
  %v175 = vld [vmem:[%s1 + $0x1b8] sm:$0xff]
  %v176 = vld [vmem:[%s1 + $0x1c0] sm:$0xff]
  %v177 = vld [vmem:[%s1 + $0x1c8] sm:$0xff]
  %v178 = vld [vmem:[%s1 + $0x1d0] sm:$0xff]
  %v179 = vld [vmem:[%s1 + $0x1d8] sm:$0xff]
  %v180 = vld [vmem:[%s1 + $0x1e0] sm:$0xff]
  %v181 = vld [vmem:[%s1 + $0x1e8] sm:$0xff]
  %v182 = vld [vmem:[%s1 + $0x1f0] sm:$0xff]
  %v183 = vld [vmem:[%s1 + $0x1f8] sm:$0xff]
  %v248 = vunpack.c.l.b16 %v120
  %v249 = vunpack.c.h.b16 %v120
  %v250 = vunpack.c.l.b16 %v121
  %v251 = vunpack.c.h.b16 %v121
  %v252 = vunpack.c.l.b16 %v122
  %v253 = vunpack.c.h.b16 %v122
  %v254 = vunpack.c.l.b16 %v123
  %v255 = vunpack.c.h.b16 %v123
  %v256 = vunpack.c.l.b16 %v124
  %v257 = vunpack.c.h.b16 %v124
  %v258 = vunpack.c.l.b16 %v125
  %v259 = vunpack.c.h.b16 %v125
  %v260 = vunpack.c.l.b16 %v126
  %v261 = vunpack.c.h.b16 %v126
  %v262 = vunpack.c.l.b16 %v127
  %v263 = vunpack.c.h.b16 %v127
  %v264 = vunpack.c.l.b16 %v128
  %v265 = vunpack.c.h.b16 %v128
  %v266 = vunpack.c.l.b16 %v129
  %v267 = vunpack.c.h.b16 %v129
  %v268 = vunpack.c.l.b16 %v130
  %v269 = vunpack.c.h.b16 %v130
  %v270 = vunpack.c.l.b16 %v131
  %v271 = vunpack.c.h.b16 %v131
  %v272 = vunpack.c.l.b16 %v132
  %v273 = vunpack.c.h.b16 %v132
  %v274 = vunpack.c.l.b16 %v133
  %v275 = vunpack.c.h.b16 %v133
  %v276 = vunpack.c.l.b16 %v134
  %v277 = vunpack.c.h.b16 %v134
  %v278 = vunpack.c.l.b16 %v135
  %v279 = vunpack.c.h.b16 %v135
  %v280 = vunpack.c.l.b16 %v136
  %v281 = vunpack.c.h.b16 %v136
  %v282 = vunpack.c.l.b16 %v137
  %v283 = vunpack.c.h.b16 %v137
  %v284 = vunpack.c.l.b16 %v138
  %v285 = vunpack.c.h.b16 %v138
  %v286 = vunpack.c.l.b16 %v139
  %v287 = vunpack.c.h.b16 %v139
  %v288 = vunpack.c.l.b16 %v140
  %v289 = vunpack.c.h.b16 %v140
  %v290 = vunpack.c.l.b16 %v141
  %v291 = vunpack.c.h.b16 %v141
  %v292 = vunpack.c.l.b16 %v142
  %v293 = vunpack.c.h.b16 %v142
  %v294 = vunpack.c.l.b16 %v143
  %v295 = vunpack.c.h.b16 %v143
  %v296 = vunpack.c.l.b16 %v144
  %v297 = vunpack.c.h.b16 %v144
  %v298 = vunpack.c.l.b16 %v145
  %v299 = vunpack.c.h.b16 %v145
  %v300 = vunpack.c.l.b16 %v146
  %v301 = vunpack.c.h.b16 %v146
  %v302 = vunpack.c.l.b16 %v147
  %v303 = vunpack.c.h.b16 %v147
  %v304 = vunpack.c.l.b16 %v148
  %v305 = vunpack.c.h.b16 %v148
  %v306 = vunpack.c.l.b16 %v149
  %v307 = vunpack.c.h.b16 %v149
  %v308 = vunpack.c.l.b16 %v150
  %v309 = vunpack.c.h.b16 %v150
  %v310 = vunpack.c.l.b16 %v151
  %v311 = vunpack.c.h.b16 %v151
  %v312 = vunpack.c.l.b16 %v152
  %v313 = vunpack.c.h.b16 %v152
  %v314 = vunpack.c.l.b16 %v153
  %v315 = vunpack.c.h.b16 %v153
  %v316 = vunpack.c.l.b16 %v154
  %v317 = vunpack.c.h.b16 %v154
  %v318 = vunpack.c.l.b16 %v155
  %v319 = vunpack.c.h.b16 %v155
  %v320 = vunpack.c.l.b16 %v156
  %v321 = vunpack.c.h.b16 %v156
  %v322 = vunpack.c.l.b16 %v157
  %v323 = vunpack.c.h.b16 %v157
  %v324 = vunpack.c.l.b16 %v158
  %v325 = vunpack.c.h.b16 %v158
  %v326 = vunpack.c.l.b16 %v159
  %v327 = vunpack.c.h.b16 %v159
  %v328 = vunpack.c.l.b16 %v160
  %v329 = vunpack.c.h.b16 %v160
  %v330 = vunpack.c.l.b16 %v161
  %v331 = vunpack.c.h.b16 %v161
  %v332 = vunpack.c.l.b16 %v162
  %v333 = vunpack.c.h.b16 %v162
  %v334 = vunpack.c.l.b16 %v163
  %v335 = vunpack.c.h.b16 %v163
  %v336 = vunpack.c.l.b16 %v164
  %v337 = vunpack.c.h.b16 %v164
  %v338 = vunpack.c.l.b16 %v165
  %v339 = vunpack.c.h.b16 %v165
  %v340 = vunpack.c.l.b16 %v166
  %v341 = vunpack.c.h.b16 %v166
  %v342 = vunpack.c.l.b16 %v167
  %v343 = vunpack.c.h.b16 %v167
  %v344 = vunpack.c.l.b16 %v168
  %v345 = vunpack.c.h.b16 %v168
  %v346 = vunpack.c.l.b16 %v169
  %v347 = vunpack.c.h.b16 %v169
  %v348 = vunpack.c.l.b16 %v170
  %v349 = vunpack.c.h.b16 %v170
  %v350 = vunpack.c.l.b16 %v171
  %v351 = vunpack.c.h.b16 %v171
  %v352 = vunpack.c.l.b16 %v172
  %v353 = vunpack.c.h.b16 %v172
  %v354 = vunpack.c.l.b16 %v173
  %v355 = vunpack.c.h.b16 %v173
  %v356 = vunpack.c.l.b16 %v174
  %v357 = vunpack.c.h.b16 %v174
  %v358 = vunpack.c.l.b16 %v175
  %v359 = vunpack.c.h.b16 %v175
  %v360 = vunpack.c.l.b16 %v176
  %v361 = vunpack.c.h.b16 %v176
  %v362 = vunpack.c.l.b16 %v177
  %v363 = vunpack.c.h.b16 %v177
  %v364 = vunpack.c.l.b16 %v178
  %v365 = vunpack.c.h.b16 %v178
  %v366 = vunpack.c.l.b16 %v179
  %v367 = vunpack.c.h.b16 %v179
  %v368 = vunpack.c.l.b16 %v180
  %v369 = vunpack.c.h.b16 %v180
  %v370 = vunpack.c.l.b16 %v181
  %v371 = vunpack.c.h.b16 %v181
  %v372 = vunpack.c.l.b16 %v182
  %v373 = vunpack.c.h.b16 %v182
  %v374 = vunpack.c.l.b16 %v183
  %v375 = vunpack.c.h.b16 %v183
  %v376 = vpack.c.b16 %v256, %v248
  %v377 = vpack.c.b16 %v257, %v249
  %v378 = vpack.c.b16 %v258, %v250
  %v379 = vpack.c.b16 %v259, %v251
  %v380 = vpack.c.b16 %v260, %v252
  %v381 = vpack.c.b16 %v261, %v253
  %v382 = vpack.c.b16 %v262, %v254
  %v383 = vpack.c.b16 %v263, %v255
  %v384 = vpack.c.b16 %v272, %v264
  %v385 = vpack.c.b16 %v273, %v265
  %v386 = vpack.c.b16 %v274, %v266
  %v387 = vpack.c.b16 %v275, %v267
  %v388 = vpack.c.b16 %v276, %v268
  %v389 = vpack.c.b16 %v277, %v269
  %v390 = vpack.c.b16 %v278, %v270
  %v391 = vpack.c.b16 %v279, %v271
  %v392 = vpack.c.b16 %v288, %v280
  %v393 = vpack.c.b16 %v289, %v281
  %v394 = vpack.c.b16 %v290, %v282
  %v395 = vpack.c.b16 %v291, %v283
  %v396 = vpack.c.b16 %v292, %v284
  %v397 = vpack.c.b16 %v293, %v285
  %v398 = vpack.c.b16 %v294, %v286
  %v399 = vpack.c.b16 %v295, %v287
  %v400 = vpack.c.b16 %v304, %v296
  %v401 = vpack.c.b16 %v305, %v297
  %v402 = vpack.c.b16 %v306, %v298
  %v403 = vpack.c.b16 %v307, %v299
  %v404 = vpack.c.b16 %v308, %v300
  %v405 = vpack.c.b16 %v309, %v301
  %v406 = vpack.c.b16 %v310, %v302
  %v407 = vpack.c.b16 %v311, %v303
  %v408 = vpack.c.b16 %v320, %v312
  %v409 = vpack.c.b16 %v321, %v313
  %v410 = vpack.c.b16 %v322, %v314
  %v411 = vpack.c.b16 %v323, %v315
  %v412 = vpack.c.b16 %v324, %v316
  %v413 = vpack.c.b16 %v325, %v317
  %v414 = vpack.c.b16 %v326, %v318
  %v415 = vpack.c.b16 %v327, %v319
  %v416 = vpack.c.b16 %v336, %v328
  %v417 = vpack.c.b16 %v337, %v329
  %v418 = vpack.c.b16 %v338, %v330
  %v419 = vpack.c.b16 %v339, %v331
  %v420 = vpack.c.b16 %v340, %v332
  %v421 = vpack.c.b16 %v341, %v333
  %v422 = vpack.c.b16 %v342, %v334
  %v423 = vpack.c.b16 %v343, %v335
  %v424 = vpack.c.b16 %v352, %v344
  %v425 = vpack.c.b16 %v353, %v345
  %v426 = vpack.c.b16 %v354, %v346
  %v427 = vpack.c.b16 %v355, %v347
  %v428 = vpack.c.b16 %v356, %v348
  %v429 = vpack.c.b16 %v357, %v349
  %v430 = vpack.c.b16 %v358, %v350
  %v431 = vpack.c.b16 %v359, %v351
  %v432 = vpack.c.b16 %v368, %v360
  %v433 = vpack.c.b16 %v369, %v361
  %v434 = vpack.c.b16 %v370, %v362
  %v435 = vpack.c.b16 %v371, %v363
  %v436 = vpack.c.b16 %v372, %v364
  %v437 = vpack.c.b16 %v373, %v365
  %v438 = vpack.c.b16 %v374, %v366
  %v439 = vpack.c.b16 %v375, %v367
  %504 = vmatprep.subr.bf16.mxu0 %v377
  %505 = vmatpush1.bf16.msra.mxu0 %v376
  %506 = vmatprep.subr.bf16.mxu0 %v385
  %507 = vmatpush1.bf16.msra.mxu0 %v384
  %508 = vmatprep.subr.bf16.mxu0 %v393
  %509 = vmatpush1.bf16.msra.mxu0 %v392
  %510 = vmatprep.subr.bf16.mxu0 %v401
  %511 = vmatpush1.bf16.msra.mxu0 %v400
  %512 = vmatprep.subr.bf16.mxu0 %v409
  %513 = vmatpush1.bf16.msra.mxu0 %v408
  %514 = vmatprep.subr.bf16.mxu0 %v417
  %515 = vmatpush1.bf16.msra.mxu0 %v416
  %516 = vmatprep.subr.bf16.mxu0 %v425
  %517 = vmatpush1.bf16.msra.mxu0 %v424
  %518 = vmatprep.subr.bf16.mxu0 %v433
  %519 = vmatpush1.bf16.msra.mxu0 %v432
  %520 = vmatprep.subr.bf16.mxu0 0
  %521 = vmatpush1.bf16.msra.mxu0 0
  %522 = vmatprep.subr.bf16.mxu0 0
  %523 = vmatpush1.bf16.msra.mxu0 0
  %524 = vmatprep.subr.bf16.mxu0 0
  %525 = vmatpush1.bf16.msra.mxu0 0
  %526 = vmatprep.subr.bf16.mxu0 0
  %527 = vmatpush1.bf16.msra.mxu0 0
  %528 = vmatprep.subr.bf16.mxu0 0
  %529 = vmatpush1.bf16.msra.mxu0 0
  %530 = vmatprep.subr.bf16.mxu0 0
  %531 = vmatpush1.bf16.msra.mxu0 0
  %532 = vmatprep.subr.bf16.mxu0 0
  %533 = vmatpush1.bf16.msra.mxu0 0
  %534 = vmatprep.subr.bf16.mxu0 0
  %535 = vmatpush1.bf16.msra.mxu0 0
  %536 = vmatprep.mubr.bf16.mxu0 0
  %537 = vmatmul.mubr.bf16.gmra.mrb[0].mxu0 %v112
  %v538 = vpop.f32.mrb[0].mxu0
  %v539 = vadd.f32 0.0, %v538
  %v540 = vpop.f32.mrb[0].mxu0
  %v541 = vadd.f32 0.0, %v540
  %v542 = vpop.f32.mrb[0].mxu0
  %v543 = vadd.f32 0.0, %v542
  %v544 = vpop.f32.mrb[0].mxu0
  %v545 = vadd.f32 0.0, %v544
  %546 = vmatprep.mubr.bf16.mxu0 0
  %547 = vmatmul.mubr.bf16.gmra.mrb[0].mxu0 %v113
  %v548 = vpop.f32.mrb[0].mxu0
  %v549 = vadd.f32 0.0, %v548
  %v550 = vpop.f32.mrb[0].mxu0
  %v551 = vadd.f32 0.0, %v550
  %v552 = vpop.f32.mrb[0].mxu0
  %v553 = vadd.f32 0.0, %v552
  %v554 = vpop.f32.mrb[0].mxu0
  %v555 = vadd.f32 0.0, %v554
  %556 = vmatprep.mubr.bf16.mxu0 0
  %557 = vmatmul.mubr.bf16.gmra.mrb[0].mxu0 %v114
  %v558 = vpop.f32.mrb[0].mxu0
  %v559 = vadd.f32 0.0, %v558
  %v560 = vpop.f32.mrb[0].mxu0
  %v561 = vadd.f32 0.0, %v560
  %v562 = vpop.f32.mrb[0].mxu0
  %v563 = vadd.f32 0.0, %v562
  %v564 = vpop.f32.mrb[0].mxu0
  %v565 = vadd.f32 0.0, %v564
  %566 = vmatprep.mubr.bf16.mxu0 0
  %567 = vmatmul.mubr.bf16.gmra.mrb[0].mxu0 %v115
  %v568 = vpop.f32.mrb[0].mxu0
  %v569 = vadd.f32 0.0, %v568
  %v570 = vpop.f32.mrb[0].mxu0
  %v571 = vadd.f32 0.0, %v570
  %v572 = vpop.f32.mrb[0].mxu0
  %v573 = vadd.f32 0.0, %v572
  %v574 = vpop.f32.mrb[0].mxu0
  %v575 = vadd.f32 0.0, %v574
  %576 = vmatprep.mubr.bf16.mxu0 0
  %577 = vmatmul.mubr.bf16.gmra.mrb[0].mxu0 %v116
  %v578 = vpop.f32.mrb[0].mxu0
  %v579 = vadd.f32 0.0, %v578
  %v580 = vpop.f32.mrb[0].mxu0
  %v581 = vadd.f32 0.0, %v580
  %v582 = vpop.f32.mrb[0].mxu0
  %v583 = vadd.f32 0.0, %v582
  %v584 = vpop.f32.mrb[0].mxu0
  %v585 = vadd.f32 0.0, %v584
  %586 = vmatprep.mubr.bf16.mxu0 0
  %587 = vmatmul.mubr.bf16.gmra.mrb[0].mxu0 %v117
  %v588 = vpop.f32.mrb[0].mxu0
  %v589 = vadd.f32 0.0, %v588
  %v590 = vpop.f32.mrb[0].mxu0
  %v591 = vadd.f32 0.0, %v590
  %v592 = vpop.f32.mrb[0].mxu0
  %v593 = vadd.f32 0.0, %v592
  %v594 = vpop.f32.mrb[0].mxu0
  %v595 = vadd.f32 0.0, %v594
  %596 = vmatprep.mubr.bf16.mxu0 0
  %597 = vmatmul.mubr.bf16.gmra.mrb[0].mxu0 %v118
  %v598 = vpop.f32.mrb[0].mxu0
  %v599 = vadd.f32 0.0, %v598
  %v600 = vpop.f32.mrb[0].mxu0
  %v601 = vadd.f32 0.0, %v600
  %v602 = vpop.f32.mrb[0].mxu0
  %v603 = vadd.f32 0.0, %v602
  %v604 = vpop.f32.mrb[0].mxu0
  %v605 = vadd.f32 0.0, %v604
  %606 = vmatprep.mubr.bf16.mxu0 0
  %607 = vmatmul.mubr.bf16.gmra.mrb[0].mxu0 %v119
  %v608 = vpop.f32.mrb[0].mxu0
  %v609 = vadd.f32 0.0, %v608
  %v610 = vpop.f32.mrb[0].mxu0
  %v611 = vadd.f32 0.0, %v610
  %v612 = vpop.f32.mrb[0].mxu0
  %v613 = vadd.f32 0.0, %v612
  %v614 = vpop.f32.mrb[0].mxu0
  %v615 = vadd.f32 0.0, %v614
  %616 = vdwg.mxu0
  %617 = vmatprep.subr.bf16.mxu0 %v379
  %618 = vmatpush1.bf16.msra.mxu0 %v378
  %619 = vmatprep.subr.bf16.mxu0 %v387
  %620 = vmatpush1.bf16.msra.mxu0 %v386
  %621 = vmatprep.subr.bf16.mxu0 %v395
  %622 = vmatpush1.bf16.msra.mxu0 %v394
  %623 = vmatprep.subr.bf16.mxu0 %v403
  %624 = vmatpush1.bf16.msra.mxu0 %v402
  %625 = vmatprep.subr.bf16.mxu0 %v411
  %626 = vmatpush1.bf16.msra.mxu0 %v410
  %627 = vmatprep.subr.bf16.mxu0 %v419
  %628 = vmatpush1.bf16.msra.mxu0 %v418
  %629 = vmatprep.subr.bf16.mxu0 %v427
  %630 = vmatpush1.bf16.msra.mxu0 %v426
  %631 = vmatprep.subr.bf16.mxu0 %v435
  %632 = vmatpush1.bf16.msra.mxu0 %v434
  %633 = vmatprep.subr.bf16.mxu0 0
  %634 = vmatpush1.bf16.msra.mxu0 0
  %635 = vmatprep.subr.bf16.mxu0 0
  %636 = vmatpush1.bf16.msra.mxu0 0
  %637 = vmatprep.subr.bf16.mxu0 0
  %638 = vmatpush1.bf16.msra.mxu0 0
  %639 = vmatprep.subr.bf16.mxu0 0
  %640 = vmatpush1.bf16.msra.mxu0 0
  %641 = vmatprep.subr.bf16.mxu0 0
  %642 = vmatpush1.bf16.msra.mxu0 0
  %643 = vmatprep.subr.bf16.mxu0 0
  %644 = vmatpush1.bf16.msra.mxu0 0
  %645 = vmatprep.subr.bf16.mxu0 0
  %646 = vmatpush1.bf16.msra.mxu0 0
  %647 = vmatprep.subr.bf16.mxu0 0
  %648 = vmatpush1.bf16.msra.mxu0 0
  %649 = vmatprep.mubr.bf16.mxu0 0
  %650 = vmatmul.mubr.bf16.gmra.mrb[0].mxu0 %v112
  %v651 = vpop.f32.mrb[0].mxu0
  %v652 = vadd.f32 0.0, %v651
  %v653 = vpop.f32.mrb[0].mxu0
  %v654 = vadd.f32 0.0, %v653
  %v655 = vpop.f32.mrb[0].mxu0
  %v656 = vadd.f32 0.0, %v655
  %v657 = vpop.f32.mrb[0].mxu0
  %v658 = vadd.f32 0.0, %v657
  %659 = vmatprep.mubr.bf16.mxu0 0
  %660 = vmatmul.mubr.bf16.gmra.mrb[0].mxu0 %v113
  %v661 = vpop.f32.mrb[0].mxu0
  %v662 = vadd.f32 0.0, %v661
  %v663 = vpop.f32.mrb[0].mxu0
  %v664 = vadd.f32 0.0, %v663
  %v665 = vpop.f32.mrb[0].mxu0
  %v666 = vadd.f32 0.0, %v665
  %v667 = vpop.f32.mrb[0].mxu0
  %v668 = vadd.f32 0.0, %v667
  %669 = vmatprep.mubr.bf16.mxu0 0
  %670 = vmatmul.mubr.bf16.gmra.mrb[0].mxu0 %v114
  %v671 = vpop.f32.mrb[0].mxu0
  %v672 = vadd.f32 0.0, %v671
  %v673 = vpop.f32.mrb[0].mxu0
  %v674 = vadd.f32 0.0, %v673
  %v675 = vpop.f32.mrb[0].mxu0
  %v676 = vadd.f32 0.0, %v675
  %v677 = vpop.f32.mrb[0].mxu0
  %v678 = vadd.f32 0.0, %v677
  %679 = vmatprep.mubr.bf16.mxu0 0
  %680 = vmatmul.mubr.bf16.gmra.mrb[0].mxu0 %v115
  %v681 = vpop.f32.mrb[0].mxu0
  %v682 = vadd.f32 0.0, %v681
  %v683 = vpop.f32.mrb[0].mxu0
  %v684 = vadd.f32 0.0, %v683
  %v685 = vpop.f32.mrb[0].mxu0
  %v686 = vadd.f32 0.0, %v685
  %v687 = vpop.f32.mrb[0].mxu0
  %v688 = vadd.f32 0.0, %v687
  %689 = vmatprep.mubr.bf16.mxu0 0
  %690 = vmatmul.mubr.bf16.gmra.mrb[0].mxu0 %v116
  %v691 = vpop.f32.mrb[0].mxu0
  %v692 = vadd.f32 0.0, %v691
  %v693 = vpop.f32.mrb[0].mxu0
  %v694 = vadd.f32 0.0, %v693
  %v695 = vpop.f32.mrb[0].mxu0
  %v696 = vadd.f32 0.0, %v695
  %v697 = vpop.f32.mrb[0].mxu0
  %v698 = vadd.f32 0.0, %v697
  %699 = vmatprep.mubr.bf16.mxu0 0
  %700 = vmatmul.mubr.bf16.gmra.mrb[0].mxu0 %v117
  %v701 = vpop.f32.mrb[0].mxu0
  %v702 = vadd.f32 0.0, %v701
  %v703 = vpop.f32.mrb[0].mxu0
  %v704 = vadd.f32 0.0, %v703
  %v705 = vpop.f32.mrb[0].mxu0
  %v706 = vadd.f32 0.0, %v705
  %v707 = vpop.f32.mrb[0].mxu0
  %v708 = vadd.f32 0.0, %v707
  %709 = vmatprep.mubr.bf16.mxu0 0
  %710 = vmatmul.mubr.bf16.gmra.mrb[0].mxu0 %v118
  %v711 = vpop.f32.mrb[0].mxu0
  %v712 = vadd.f32 0.0, %v711
  %v713 = vpop.f32.mrb[0].mxu0
  %v714 = vadd.f32 0.0, %v713
  %v715 = vpop.f32.mrb[0].mxu0
  %v716 = vadd.f32 0.0, %v715
  %v717 = vpop.f32.mrb[0].mxu0
  %v718 = vadd.f32 0.0, %v717
  %719 = vmatprep.mubr.bf16.mxu0 0
  %720 = vmatmul.mubr.bf16.gmra.mrb[0].mxu0 %v119
  %v721 = vpop.f32.mrb[0].mxu0
  %v722 = vadd.f32 0.0, %v721
  %v723 = vpop.f32.mrb[0].mxu0
  %v724 = vadd.f32 0.0, %v723
  %v725 = vpop.f32.mrb[0].mxu0
  %v726 = vadd.f32 0.0, %v725
  %v727 = vpop.f32.mrb[0].mxu0
  %v728 = vadd.f32 0.0, %v727
  %729 = vdwg.mxu0
  %730 = vmatprep.subr.bf16.mxu0 %v381
  %731 = vmatpush1.bf16.msra.mxu0 %v380
  %732 = vmatprep.subr.bf16.mxu0 %v389
  %733 = vmatpush1.bf16.msra.mxu0 %v388
  %734 = vmatprep.subr.bf16.mxu0 %v397
  %735 = vmatpush1.bf16.msra.mxu0 %v396
  %736 = vmatprep.subr.bf16.mxu0 %v405
  %737 = vmatpush1.bf16.msra.mxu0 %v404
  %738 = vmatprep.subr.bf16.mxu0 %v413
  %739 = vmatpush1.bf16.msra.mxu0 %v412
  %740 = vmatprep.subr.bf16.mxu0 %v421
  %741 = vmatpush1.bf16.msra.mxu0 %v420
  %742 = vmatprep.subr.bf16.mxu0 %v429
  %743 = vmatpush1.bf16.msra.mxu0 %v428
  %744 = vmatprep.subr.bf16.mxu0 %v437
  %745 = vmatpush1.bf16.msra.mxu0 %v436
  %746 = vmatprep.subr.bf16.mxu0 0
  %747 = vmatpush1.bf16.msra.mxu0 0
  %748 = vmatprep.subr.bf16.mxu0 0
  %749 = vmatpush1.bf16.msra.mxu0 0
  %750 = vmatprep.subr.bf16.mxu0 0
  %751 = vmatpush1.bf16.msra.mxu0 0
  %752 = vmatprep.subr.bf16.mxu0 0
  %753 = vmatpush1.bf16.msra.mxu0 0
  %754 = vmatprep.subr.bf16.mxu0 0
  %755 = vmatpush1.bf16.msra.mxu0 0
  %756 = vmatprep.subr.bf16.mxu0 0
  %757 = vmatpush1.bf16.msra.mxu0 0
  %758 = vmatprep.subr.bf16.mxu0 0
  %759 = vmatpush1.bf16.msra.mxu0 0
  %760 = vmatprep.subr.bf16.mxu0 0
  %761 = vmatpush1.bf16.msra.mxu0 0
  %762 = vmatprep.mubr.bf16.mxu0 0
  %763 = vmatmul.mubr.bf16.gmra.mrb[0].mxu0 %v112
  %v764 = vpop.f32.mrb[0].mxu0
  %v765 = vadd.f32 0.0, %v764
  %v766 = vpop.f32.mrb[0].mxu0
  %v767 = vadd.f32 0.0, %v766
  %v768 = vpop.f32.mrb[0].mxu0
  %v769 = vadd.f32 0.0, %v768
  %v770 = vpop.f32.mrb[0].mxu0
  %v771 = vadd.f32 0.0, %v770
  %772 = vmatprep.mubr.bf16.mxu0 0
  %773 = vmatmul.mubr.bf16.gmra.mrb[0].mxu0 %v113
  %v774 = vpop.f32.mrb[0].mxu0
  %v775 = vadd.f32 0.0, %v774
  %v776 = vpop.f32.mrb[0].mxu0
  %v777 = vadd.f32 0.0, %v776
  %v778 = vpop.f32.mrb[0].mxu0
  %v779 = vadd.f32 0.0, %v778
  %v780 = vpop.f32.mrb[0].mxu0
  %v781 = vadd.f32 0.0, %v780
  %782 = vmatprep.mubr.bf16.mxu0 0
  %783 = vmatmul.mubr.bf16.gmra.mrb[0].mxu0 %v114
  %v784 = vpop.f32.mrb[0].mxu0
  %v785 = vadd.f32 0.0, %v784
  %v786 = vpop.f32.mrb[0].mxu0
  %v787 = vadd.f32 0.0, %v786
  %v788 = vpop.f32.mrb[0].mxu0
  %v789 = vadd.f32 0.0, %v788
  %v790 = vpop.f32.mrb[0].mxu0
  %v791 = vadd.f32 0.0, %v790
  %792 = vmatprep.mubr.bf16.mxu0 0
  %793 = vmatmul.mubr.bf16.gmra.mrb[0].mxu0 %v115
  %v794 = vpop.f32.mrb[0].mxu0
  %v795 = vadd.f32 0.0, %v794
  %v796 = vpop.f32.mrb[0].mxu0
  %v797 = vadd.f32 0.0, %v796
  %v798 = vpop.f32.mrb[0].mxu0
  %v799 = vadd.f32 0.0, %v798
  %v800 = vpop.f32.mrb[0].mxu0
  %v801 = vadd.f32 0.0, %v800
  %802 = vmatprep.mubr.bf16.mxu0 0
  %803 = vmatmul.mubr.bf16.gmra.mrb[0].mxu0 %v116
  %v804 = vpop.f32.mrb[0].mxu0
  %v805 = vadd.f32 0.0, %v804
  %v806 = vpop.f32.mrb[0].mxu0
  %v807 = vadd.f32 0.0, %v806
  %v808 = vpop.f32.mrb[0].mxu0
  %v809 = vadd.f32 0.0, %v808
  %v810 = vpop.f32.mrb[0].mxu0
  %v811 = vadd.f32 0.0, %v810
  %812 = vmatprep.mubr.bf16.mxu0 0
  %813 = vmatmul.mubr.bf16.gmra.mrb[0].mxu0 %v117
  %v814 = vpop.f32.mrb[0].mxu0
  %v815 = vadd.f32 0.0, %v814
  %v816 = vpop.f32.mrb[0].mxu0
  %v817 = vadd.f32 0.0, %v816
  %v818 = vpop.f32.mrb[0].mxu0
  %v819 = vadd.f32 0.0, %v818
  %v820 = vpop.f32.mrb[0].mxu0
  %v821 = vadd.f32 0.0, %v820
  %822 = vmatprep.mubr.bf16.mxu0 0
  %823 = vmatmul.mubr.bf16.gmra.mrb[0].mxu0 %v118
  %v824 = vpop.f32.mrb[0].mxu0
  %v825 = vadd.f32 0.0, %v824
  %v826 = vpop.f32.mrb[0].mxu0
  %v827 = vadd.f32 0.0, %v826
  %v828 = vpop.f32.mrb[0].mxu0
  %v829 = vadd.f32 0.0, %v828
  %v830 = vpop.f32.mrb[0].mxu0
  %v831 = vadd.f32 0.0, %v830
  %832 = vmatprep.mubr.bf16.mxu0 0
  %833 = vmatmul.mubr.bf16.gmra.mrb[0].mxu0 %v119
  %v834 = vpop.f32.mrb[0].mxu0
  %v835 = vadd.f32 0.0, %v834
  %v836 = vpop.f32.mrb[0].mxu0
  %v837 = vadd.f32 0.0, %v836
  %v838 = vpop.f32.mrb[0].mxu0
  %v839 = vadd.f32 0.0, %v838
  %v840 = vpop.f32.mrb[0].mxu0
  %v841 = vadd.f32 0.0, %v840
  %842 = vdwg.mxu0
  %843 = vmatprep.subr.bf16.mxu0 %v383
  %844 = vmatpush1.bf16.msra.mxu0 %v382
  %845 = vmatprep.subr.bf16.mxu0 %v391
  %846 = vmatpush1.bf16.msra.mxu0 %v390
  %847 = vmatprep.subr.bf16.mxu0 %v399
  %848 = vmatpush1.bf16.msra.mxu0 %v398
  %849 = vmatprep.subr.bf16.mxu0 %v407
  %850 = vmatpush1.bf16.msra.mxu0 %v406
  %851 = vmatprep.subr.bf16.mxu0 %v415
  %852 = vmatpush1.bf16.msra.mxu0 %v414
  %853 = vmatprep.subr.bf16.mxu0 %v423
  %854 = vmatpush1.bf16.msra.mxu0 %v422
  %855 = vmatprep.subr.bf16.mxu0 %v431
  %856 = vmatpush1.bf16.msra.mxu0 %v430
  %857 = vmatprep.subr.bf16.mxu0 %v439
  %858 = vmatpush1.bf16.msra.mxu0 %v438
  %859 = vmatprep.subr.bf16.mxu0 0
  %860 = vmatpush1.bf16.msra.mxu0 0
  %861 = vmatprep.subr.bf16.mxu0 0
  %862 = vmatpush1.bf16.msra.mxu0 0
  %863 = vmatprep.subr.bf16.mxu0 0
  %864 = vmatpush1.bf16.msra.mxu0 0
  %865 = vmatprep.subr.bf16.mxu0 0
  %866 = vmatpush1.bf16.msra.mxu0 0
  %867 = vmatprep.subr.bf16.mxu0 0
  %868 = vmatpush1.bf16.msra.mxu0 0
  %869 = vmatprep.subr.bf16.mxu0 0
  %870 = vmatpush1.bf16.msra.mxu0 0
  %871 = vmatprep.subr.bf16.mxu0 0
  %872 = vmatpush1.bf16.msra.mxu0 0
  %873 = vmatprep.subr.bf16.mxu0 0
  %874 = vmatpush1.bf16.msra.mxu0 0
  %875 = vmatprep.mubr.bf16.mxu0 0
  %876 = vmatmul.mubr.bf16.gmra.mrb[0].mxu0 %v112
  %v877 = vpop.f32.mrb[0].mxu0
  %v878 = vadd.f32 0.0, %v877
  %v879 = vpop.f32.mrb[0].mxu0
  %v880 = vadd.f32 0.0, %v879
  %v881 = vpop.f32.mrb[0].mxu0
  %v882 = vadd.f32 0.0, %v881
  %v883 = vpop.f32.mrb[0].mxu0
  %v884 = vadd.f32 0.0, %v883
  %885 = vmatprep.mubr.bf16.mxu0 0
  %886 = vmatmul.mubr.bf16.gmra.mrb[0].mxu0 %v113
  %v887 = vpop.f32.mrb[0].mxu0
  %v888 = vadd.f32 0.0, %v887
  %v889 = vpop.f32.mrb[0].mxu0
  %v890 = vadd.f32 0.0, %v889
  %v891 = vpop.f32.mrb[0].mxu0
  %v892 = vadd.f32 0.0, %v891
  %v893 = vpop.f32.mrb[0].mxu0
  %v894 = vadd.f32 0.0, %v893
  %895 = vmatprep.mubr.bf16.mxu0 0
  %896 = vmatmul.mubr.bf16.gmra.mrb[0].mxu0 %v114
  %v897 = vpop.f32.mrb[0].mxu0
  %v898 = vadd.f32 0.0, %v897
  %v899 = vpop.f32.mrb[0].mxu0
  %v900 = vadd.f32 0.0, %v899
  %v901 = vpop.f32.mrb[0].mxu0
  %v902 = vadd.f32 0.0, %v901
  %v903 = vpop.f32.mrb[0].mxu0
  %v904 = vadd.f32 0.0, %v903
  %905 = vmatprep.mubr.bf16.mxu0 0
  %906 = vmatmul.mubr.bf16.gmra.mrb[0].mxu0 %v115
  %v907 = vpop.f32.mrb[0].mxu0
  %v908 = vadd.f32 0.0, %v907
  %v909 = vpop.f32.mrb[0].mxu0
  %v910 = vadd.f32 0.0, %v909
  %v911 = vpop.f32.mrb[0].mxu0
  %v912 = vadd.f32 0.0, %v911
  %v913 = vpop.f32.mrb[0].mxu0
  %v914 = vadd.f32 0.0, %v913
  %915 = vmatprep.mubr.bf16.mxu0 0
  %916 = vmatmul.mubr.bf16.gmra.mrb[0].mxu0 %v116
  %v917 = vpop.f32.mrb[0].mxu0
  %v918 = vadd.f32 0.0, %v917
  %v919 = vpop.f32.mrb[0].mxu0
  %v920 = vadd.f32 0.0, %v919
  %v921 = vpop.f32.mrb[0].mxu0
  %v922 = vadd.f32 0.0, %v921
  %v923 = vpop.f32.mrb[0].mxu0
  %v924 = vadd.f32 0.0, %v923
  %925 = vmatprep.mubr.bf16.mxu0 0
  %926 = vmatmul.mubr.bf16.gmra.mrb[0].mxu0 %v117
  %v927 = vpop.f32.mrb[0].mxu0
  %v928 = vadd.f32 0.0, %v927
  %v929 = vpop.f32.mrb[0].mxu0
  %v930 = vadd.f32 0.0, %v929
  %v931 = vpop.f32.mrb[0].mxu0
  %v932 = vadd.f32 0.0, %v931
  %v933 = vpop.f32.mrb[0].mxu0
  %v934 = vadd.f32 0.0, %v933
  %935 = vmatprep.mubr.bf16.mxu0 0
  %936 = vmatmul.mubr.bf16.gmra.mrb[0].mxu0 %v118
  %v937 = vpop.f32.mrb[0].mxu0
  %v938 = vadd.f32 0.0, %v937
  %v939 = vpop.f32.mrb[0].mxu0
  %v940 = vadd.f32 0.0, %v939
  %v941 = vpop.f32.mrb[0].mxu0
  %v942 = vadd.f32 0.0, %v941
  %v943 = vpop.f32.mrb[0].mxu0
  %v944 = vadd.f32 0.0, %v943
  %945 = vmatprep.mubr.bf16.mxu0 0
  %946 = vmatmul.mubr.bf16.gmra.mrb[0].mxu0 %v119
  %v947 = vpop.f32.mrb[0].mxu0
  %v948 = vadd.f32 0.0, %v947
  %v949 = vpop.f32.mrb[0].mxu0
  %v950 = vadd.f32 0.0, %v949
  %v951 = vpop.f32.mrb[0].mxu0
  %v952 = vadd.f32 0.0, %v951
  %v953 = vpop.f32.mrb[0].mxu0
  %v954 = vadd.f32 0.0, %v953
  %955 = vdwg.mxu0
  %v956 = vpack.c.bf16 %v543, %v539
  %v957 = vpack.c.bf16 %v545, %v541
  %v958 = vpack.c.bf16 %v656, %v652
  %v959 = vpack.c.bf16 %v658, %v654
  %v960 = vpack.c.bf16 %v769, %v765
  %v961 = vpack.c.bf16 %v771, %v767
  %v962 = vpack.c.bf16 %v882, %v878
  %v963 = vpack.c.bf16 %v884, %v880
  %v964 = vpack.c.bf16 %v553, %v549
  %v965 = vpack.c.bf16 %v555, %v551
  %v966 = vpack.c.bf16 %v666, %v662
  %v967 = vpack.c.bf16 %v668, %v664
  %v968 = vpack.c.bf16 %v779, %v775
  %v969 = vpack.c.bf16 %v781, %v777
  %v970 = vpack.c.bf16 %v892, %v888
  %v971 = vpack.c.bf16 %v894, %v890
  %v972 = vpack.c.bf16 %v563, %v559
  %v973 = vpack.c.bf16 %v565, %v561
  %v974 = vpack.c.bf16 %v676, %v672
  %v975 = vpack.c.bf16 %v678, %v674
  %v976 = vpack.c.bf16 %v789, %v785
  %v977 = vpack.c.bf16 %v791, %v787
  %v978 = vpack.c.bf16 %v902, %v898
  %v979 = vpack.c.bf16 %v904, %v900
  %v980 = vpack.c.bf16 %v573, %v569
  %v981 = vpack.c.bf16 %v575, %v571
  %v982 = vpack.c.bf16 %v686, %v682
  %v983 = vpack.c.bf16 %v688, %v684
  %v984 = vpack.c.bf16 %v799, %v795
  %v985 = vpack.c.bf16 %v801, %v797
  %v986 = vpack.c.bf16 %v912, %v908
  %v987 = vpack.c.bf16 %v914, %v910
  %v988 = vpack.c.bf16 %v583, %v579
  %v989 = vpack.c.bf16 %v585, %v581
  %v990 = vpack.c.bf16 %v696, %v692
  %v991 = vpack.c.bf16 %v698, %v694
  %v992 = vpack.c.bf16 %v809, %v805
  %v993 = vpack.c.bf16 %v811, %v807
  %v994 = vpack.c.bf16 %v922, %v918
  %v995 = vpack.c.bf16 %v924, %v920
  %v996 = vpack.c.bf16 %v593, %v589
  %v997 = vpack.c.bf16 %v595, %v591
  %v998 = vpack.c.bf16 %v706, %v702
  %v999 = vpack.c.bf16 %v708, %v704
  %v1000 = vpack.c.bf16 %v819, %v815
  %v1001 = vpack.c.bf16 %v821, %v817
  %v1002 = vpack.c.bf16 %v932, %v928
  %v1003 = vpack.c.bf16 %v934, %v930
  %v1004 = vpack.c.bf16 %v603, %v599
  %v1005 = vpack.c.bf16 %v605, %v601
  %v1006 = vpack.c.bf16 %v716, %v712
  %v1007 = vpack.c.bf16 %v718, %v714
  %v1008 = vpack.c.bf16 %v829, %v825
  %v1009 = vpack.c.bf16 %v831, %v827
  %v1010 = vpack.c.bf16 %v942, %v938
  %v1011 = vpack.c.bf16 %v944, %v940
  %v1012 = vpack.c.bf16 %v613, %v609
  %v1013 = vpack.c.bf16 %v615, %v611
  %v1014 = vpack.c.bf16 %v726, %v722
  %v1015 = vpack.c.bf16 %v728, %v724
  %v1016 = vpack.c.bf16 %v839, %v835
  %v1017 = vpack.c.bf16 %v841, %v837
  %v1018 = vpack.c.bf16 %v952, %v948
  %v1019 = vpack.c.bf16 %v954, %v950
  %v1084 = vunpack.c.l.b16 %v956
  %v1085 = vunpack.c.l.b16 %v957
  %v1086 = vunpack.c.l.b16 %v958
  %v1087 = vunpack.c.l.b16 %v959
  %v1088 = vunpack.c.l.b16 %v960
  %v1089 = vunpack.c.l.b16 %v961
  %v1090 = vunpack.c.l.b16 %v962
  %v1091 = vunpack.c.l.b16 %v963
  %v1092 = vunpack.c.h.b16 %v956
  %v1093 = vunpack.c.h.b16 %v957
  %v1094 = vunpack.c.h.b16 %v958
  %v1095 = vunpack.c.h.b16 %v959
  %v1096 = vunpack.c.h.b16 %v960
  %v1097 = vunpack.c.h.b16 %v961
  %v1098 = vunpack.c.h.b16 %v962
  %v1099 = vunpack.c.h.b16 %v963
  %v1100 = vunpack.c.l.b16 %v964
  %v1101 = vunpack.c.l.b16 %v965
  %v1102 = vunpack.c.l.b16 %v966
  %v1103 = vunpack.c.l.b16 %v967
  %v1104 = vunpack.c.l.b16 %v968
  %v1105 = vunpack.c.l.b16 %v969
  %v1106 = vunpack.c.l.b16 %v970
  %v1107 = vunpack.c.l.b16 %v971
  %v1108 = vunpack.c.h.b16 %v964
  %v1109 = vunpack.c.h.b16 %v965
  %v1110 = vunpack.c.h.b16 %v966
  %v1111 = vunpack.c.h.b16 %v967
  %v1112 = vunpack.c.h.b16 %v968
  %v1113 = vunpack.c.h.b16 %v969
  %v1114 = vunpack.c.h.b16 %v970
  %v1115 = vunpack.c.h.b16 %v971
  %v1116 = vunpack.c.l.b16 %v972
  %v1117 = vunpack.c.l.b16 %v973
  %v1118 = vunpack.c.l.b16 %v974
  %v1119 = vunpack.c.l.b16 %v975
  %v1120 = vunpack.c.l.b16 %v976
  %v1121 = vunpack.c.l.b16 %v977
  %v1122 = vunpack.c.l.b16 %v978
  %v1123 = vunpack.c.l.b16 %v979
  %v1124 = vunpack.c.h.b16 %v972
  %v1125 = vunpack.c.h.b16 %v973
  %v1126 = vunpack.c.h.b16 %v974
  %v1127 = vunpack.c.h.b16 %v975
  %v1128 = vunpack.c.h.b16 %v976
  %v1129 = vunpack.c.h.b16 %v977
  %v1130 = vunpack.c.h.b16 %v978
  %v1131 = vunpack.c.h.b16 %v979
  %v1132 = vunpack.c.l.b16 %v980
  %v1133 = vunpack.c.l.b16 %v981
  %v1134 = vunpack.c.l.b16 %v982
  %v1135 = vunpack.c.l.b16 %v983
  %v1136 = vunpack.c.l.b16 %v984
  %v1137 = vunpack.c.l.b16 %v985
  %v1138 = vunpack.c.l.b16 %v986
  %v1139 = vunpack.c.l.b16 %v987
  %v1140 = vunpack.c.h.b16 %v980
  %v1141 = vunpack.c.h.b16 %v981
  %v1142 = vunpack.c.h.b16 %v982
  %v1143 = vunpack.c.h.b16 %v983
  %v1144 = vunpack.c.h.b16 %v984
  %v1145 = vunpack.c.h.b16 %v985
  %v1146 = vunpack.c.h.b16 %v986
  %v1147 = vunpack.c.h.b16 %v987
  %v1148 = vunpack.c.l.b16 %v988
  %v1149 = vunpack.c.l.b16 %v989
  %v1150 = vunpack.c.l.b16 %v990
  %v1151 = vunpack.c.l.b16 %v991
  %v1152 = vunpack.c.l.b16 %v992
  %v1153 = vunpack.c.l.b16 %v993
  %v1154 = vunpack.c.l.b16 %v994
  %v1155 = vunpack.c.l.b16 %v995
  %v1156 = vunpack.c.h.b16 %v988
  %v1157 = vunpack.c.h.b16 %v989
  %v1158 = vunpack.c.h.b16 %v990
  %v1159 = vunpack.c.h.b16 %v991
  %v1160 = vunpack.c.h.b16 %v992
  %v1161 = vunpack.c.h.b16 %v993
  %v1162 = vunpack.c.h.b16 %v994
  %v1163 = vunpack.c.h.b16 %v995
  %v1164 = vunpack.c.l.b16 %v996
  %v1165 = vunpack.c.l.b16 %v997
  %v1166 = vunpack.c.l.b16 %v998
  %v1167 = vunpack.c.l.b16 %v999
  %v1168 = vunpack.c.l.b16 %v1000
  %v1169 = vunpack.c.l.b16 %v1001
  %v1170 = vunpack.c.l.b16 %v1002
  %v1171 = vunpack.c.l.b16 %v1003
  %v1172 = vunpack.c.h.b16 %v996
  %v1173 = vunpack.c.h.b16 %v997
  %v1174 = vunpack.c.h.b16 %v998
  %v1175 = vunpack.c.h.b16 %v999
  %v1176 = vunpack.c.h.b16 %v1000
  %v1177 = vunpack.c.h.b16 %v1001
  %v1178 = vunpack.c.h.b16 %v1002
  %v1179 = vunpack.c.h.b16 %v1003
  %v1180 = vunpack.c.l.b16 %v1004
  %v1181 = vunpack.c.l.b16 %v1005
  %v1182 = vunpack.c.l.b16 %v1006
  %v1183 = vunpack.c.l.b16 %v1007
  %v1184 = vunpack.c.l.b16 %v1008
  %v1185 = vunpack.c.l.b16 %v1009
  %v1186 = vunpack.c.l.b16 %v1010
  %v1187 = vunpack.c.l.b16 %v1011
  %v1188 = vunpack.c.h.b16 %v1004
  %v1189 = vunpack.c.h.b16 %v1005
  %v1190 = vunpack.c.h.b16 %v1006
  %v1191 = vunpack.c.h.b16 %v1007
  %v1192 = vunpack.c.h.b16 %v1008
  %v1193 = vunpack.c.h.b16 %v1009
  %v1194 = vunpack.c.h.b16 %v1010
  %v1195 = vunpack.c.h.b16 %v1011
  %v1196 = vunpack.c.l.b16 %v1012
  %v1197 = vunpack.c.l.b16 %v1013
  %v1198 = vunpack.c.l.b16 %v1014
  %v1199 = vunpack.c.l.b16 %v1015
  %v1200 = vunpack.c.l.b16 %v1016
  %v1201 = vunpack.c.l.b16 %v1017
  %v1202 = vunpack.c.l.b16 %v1018
  %v1203 = vunpack.c.l.b16 %v1019
  %v1204 = vunpack.c.h.b16 %v1012
  %v1205 = vunpack.c.h.b16 %v1013
  %v1206 = vunpack.c.h.b16 %v1014
  %v1207 = vunpack.c.h.b16 %v1015
  %v1208 = vunpack.c.h.b16 %v1016
  %v1209 = vunpack.c.h.b16 %v1017
  %v1210 = vunpack.c.h.b16 %v1018
  %v1211 = vunpack.c.h.b16 %v1019
  %v1212 = vpack.c.b16 %v1085, %v1084
  %v1213 = vpack.c.b16 %v1087, %v1086
  %v1214 = vpack.c.b16 %v1089, %v1088
  %v1215 = vpack.c.b16 %v1091, %v1090
  %v1216 = vpack.c.b16 %v1093, %v1092
  %v1217 = vpack.c.b16 %v1095, %v1094
  %v1218 = vpack.c.b16 %v1097, %v1096
  %v1219 = vpack.c.b16 %v1099, %v1098
  %v1220 = vpack.c.b16 %v1101, %v1100
  %v1221 = vpack.c.b16 %v1103, %v1102
  %v1222 = vpack.c.b16 %v1105, %v1104
  %v1223 = vpack.c.b16 %v1107, %v1106
  %v1224 = vpack.c.b16 %v1109, %v1108
  %v1225 = vpack.c.b16 %v1111, %v1110
  %v1226 = vpack.c.b16 %v1113, %v1112
  %v1227 = vpack.c.b16 %v1115, %v1114
  %v1228 = vpack.c.b16 %v1117, %v1116
  %v1229 = vpack.c.b16 %v1119, %v1118
  %v1230 = vpack.c.b16 %v1121, %v1120
  %v1231 = vpack.c.b16 %v1123, %v1122
  %v1232 = vpack.c.b16 %v1125, %v1124
  %v1233 = vpack.c.b16 %v1127, %v1126
  %v1234 = vpack.c.b16 %v1129, %v1128
  %v1235 = vpack.c.b16 %v1131, %v1130
  %v1236 = vpack.c.b16 %v1133, %v1132
  %v1237 = vpack.c.b16 %v1135, %v1134
  %v1238 = vpack.c.b16 %v1137, %v1136
  %v1239 = vpack.c.b16 %v1139, %v1138
  %v1240 = vpack.c.b16 %v1141, %v1140
  %v1241 = vpack.c.b16 %v1143, %v1142
  %v1242 = vpack.c.b16 %v1145, %v1144
  %v1243 = vpack.c.b16 %v1147, %v1146
  %v1244 = vpack.c.b16 %v1149, %v1148
  %v1245 = vpack.c.b16 %v1151, %v1150
  %v1246 = vpack.c.b16 %v1153, %v1152
  %v1247 = vpack.c.b16 %v1155, %v1154
  %v1248 = vpack.c.b16 %v1157, %v1156
  %v1249 = vpack.c.b16 %v1159, %v1158
  %v1250 = vpack.c.b16 %v1161, %v1160
  %v1251 = vpack.c.b16 %v1163, %v1162
  %v1252 = vpack.c.b16 %v1165, %v1164
  %v1253 = vpack.c.b16 %v1167, %v1166
  %v1254 = vpack.c.b16 %v1169, %v1168
  %v1255 = vpack.c.b16 %v1171, %v1170
  %v1256 = vpack.c.b16 %v1173, %v1172
  %v1257 = vpack.c.b16 %v1175, %v1174
  %v1258 = vpack.c.b16 %v1177, %v1176
  %v1259 = vpack.c.b16 %v1179, %v1178
  %v1260 = vpack.c.b16 %v1181, %v1180
  %v1261 = vpack.c.b16 %v1183, %v1182
  %v1262 = vpack.c.b16 %v1185, %v1184
  %v1263 = vpack.c.b16 %v1187, %v1186
  %v1264 = vpack.c.b16 %v1189, %v1188
  %v1265 = vpack.c.b16 %v1191, %v1190
  %v1266 = vpack.c.b16 %v1193, %v1192
  %v1267 = vpack.c.b16 %v1195, %v1194
  %v1268 = vpack.c.b16 %v1197, %v1196
  %v1269 = vpack.c.b16 %v1199, %v1198
  %v1270 = vpack.c.b16 %v1201, %v1200
  %v1271 = vpack.c.b16 %v1203, %v1202
  %v1272 = vpack.c.b16 %v1205, %v1204
  %v1273 = vpack.c.b16 %v1207, %v1206
  %v1274 = vpack.c.b16 %v1209, %v1208
  %v1275 = vpack.c.b16 %v1211, %v1210
  %1340 = vst [vmem:[%s4] sm:$0xff] %v1212
  %1341 = vst [vmem:[%s4 + $0x8] sm:$0xff] %v1213
  %1342 = vst [vmem:[%s4 + $0x10] sm:$0xff] %v1214
  %1343 = vst [vmem:[%s4 + $0x18] sm:$0xff] %v1215
  %1344 = vst [vmem:[%s4 + $0x20] sm:$0xff] %v1216
  %1345 = vst [vmem:[%s4 + $0x28] sm:$0xff] %v1217
  %1346 = vst [vmem:[%s4 + $0x30] sm:$0xff] %v1218
  %1347 = vst [vmem:[%s4 + $0x38] sm:$0xff] %v1219
  %1348 = vst [vmem:[%s4 + $0x40] sm:$0xff] %v1220
  %1349 = vst [vmem:[%s4 + $0x48] sm:$0xff] %v1221
  %1350 = vst [vmem:[%s4 + $0x50] sm:$0xff] %v1222
  %1351 = vst [vmem:[%s4 + $0x58] sm:$0xff] %v1223
  %1352 = vst [vmem:[%s4 + $0x60] sm:$0xff] %v1224
  %1353 = vst [vmem:[%s4 + $0x68] sm:$0xff] %v1225
  %1354 = vst [vmem:[%s4 + $0x70] sm:$0xff] %v1226
  %1355 = vst [vmem:[%s4 + $0x78] sm:$0xff] %v1227
  %1356 = vst [vmem:[%s4 + $0x80] sm:$0xff] %v1228
  %1357 = vst [vmem:[%s4 + $0x88] sm:$0xff] %v1229
  %1358 = vst [vmem:[%s4 + $0x90] sm:$0xff] %v1230
  %1359 = vst [vmem:[%s4 + $0x98] sm:$0xff] %v1231
  %1360 = vst [vmem:[%s4 + $0xa0] sm:$0xff] %v1232
  %1361 = vst [vmem:[%s4 + $0xa8] sm:$0xff] %v1233
  %1362 = vst [vmem:[%s4 + $0xb0] sm:$0xff] %v1234
  %1363 = vst [vmem:[%s4 + $0xb8] sm:$0xff] %v1235
  %1364 = vst [vmem:[%s4 + $0xc0] sm:$0xff] %v1236
  %1365 = vst [vmem:[%s4 + $0xc8] sm:$0xff] %v1237
  %1366 = vst [vmem:[%s4 + $0xd0] sm:$0xff] %v1238
  %1367 = vst [vmem:[%s4 + $0xd8] sm:$0xff] %v1239
  %1368 = vst [vmem:[%s4 + $0xe0] sm:$0xff] %v1240
  %1369 = vst [vmem:[%s4 + $0xe8] sm:$0xff] %v1241
  %1370 = vst [vmem:[%s4 + $0xf0] sm:$0xff] %v1242
  %1371 = vst [vmem:[%s4 + $0xf8] sm:$0xff] %v1243
  %1372 = vst [vmem:[%s4 + $0x100] sm:$0xff] %v1244
  %1373 = vst [vmem:[%s4 + $0x108] sm:$0xff] %v1245
  %1374 = vst [vmem:[%s4 + $0x110] sm:$0xff] %v1246
  %1375 = vst [vmem:[%s4 + $0x118] sm:$0xff] %v1247
  %1376 = vst [vmem:[%s4 + $0x120] sm:$0xff] %v1248
  %1377 = vst [vmem:[%s4 + $0x128] sm:$0xff] %v1249
  %1378 = vst [vmem:[%s4 + $0x130] sm:$0xff] %v1250
  %1379 = vst [vmem:[%s4 + $0x138] sm:$0xff] %v1251
  %1380 = vst [vmem:[%s4 + $0x140] sm:$0xff] %v1252
  %1381 = vst [vmem:[%s4 + $0x148] sm:$0xff] %v1253
  %1382 = vst [vmem:[%s4 + $0x150] sm:$0xff] %v1254
  %1383 = vst [vmem:[%s4 + $0x158] sm:$0xff] %v1255
  %1384 = vst [vmem:[%s4 + $0x160] sm:$0xff] %v1256
  %1385 = vst [vmem:[%s4 + $0x168] sm:$0xff] %v1257
  %1386 = vst [vmem:[%s4 + $0x170] sm:$0xff] %v1258
  %1387 = vst [vmem:[%s4 + $0x178] sm:$0xff] %v1259
  %1388 = vst [vmem:[%s4 + $0x180] sm:$0xff] %v1260
  %1389 = vst [vmem:[%s4 + $0x188] sm:$0xff] %v1261
  %1390 = vst [vmem:[%s4 + $0x190] sm:$0xff] %v1262
  %1391 = vst [vmem:[%s4 + $0x198] sm:$0xff] %v1263
  %1392 = vst [vmem:[%s4 + $0x1a0] sm:$0xff] %v1264
  %1393 = vst [vmem:[%s4 + $0x1a8] sm:$0xff] %v1265
  %1394 = vst [vmem:[%s4 + $0x1b0] sm:$0xff] %v1266
  %1395 = vst [vmem:[%s4 + $0x1b8] sm:$0xff] %v1267
  %1396 = vst [vmem:[%s4 + $0x1c0] sm:$0xff] %v1268
  %1397 = vst [vmem:[%s4 + $0x1c8] sm:$0xff] %v1269
  %1398 = vst [vmem:[%s4 + $0x1d0] sm:$0xff] %v1270
  %1399 = vst [vmem:[%s4 + $0x1d8] sm:$0xff] %v1271
  %1400 = vst [vmem:[%s4 + $0x1e0] sm:$0xff] %v1272
  %1401 = vst [vmem:[%s4 + $0x1e8] sm:$0xff] %v1273
  %1402 = vst [vmem:[%s4 + $0x1f0] sm:$0xff] %v1274
  %1403 = vst [vmem:[%s4 + $0x1f8] sm:$0xff] %v1275
  // Predicated region
  $region18: #{decoder_a_forward.12} parent=0 // pred_check
    _
  $region19: #{decoder_a_forward.12} parent=0 // pred_check_branch
    %1405 = sbr.rel (0) target = $region21
  $region20: #{decoder_a_forward.12} parent=0 // pred_region
    _
  $region21: #{decoder_a_forward.12} parent=0 // pred_fallthru
    _
  // Predicated region
  $region22: #{decoder_a_forward.12} parent=0 // pred_check
    _
  $region23: #{decoder_a_forward.12} parent=0 // pred_check_branch
    %1407 = sbr.rel (0) target = $region25
  $region24: #{decoder_a_forward.12} parent=0 // pred_region
    _
  $region25: #{decoder_a_forward.12} parent=0 // pred_fallthru
    _

// kernel: decoder_a_forward.13
$region0: #{decoder_a_forward.13}
  #allocation0 [shape = 'u32[]', space=smem, size = 0x4, offset = 0x4, fixed_abs, tag = 'smem constant byte address 0x4 - core index']
  #allocation1 [shape = 'u32[144,128]{1,0:T(1,128)}', space=vmem, size = 0x12000, scoped, tag = 'internal scratch']
  %s0 = inlined_call_operand.vmem [shape: bf16[32,1024], index: 0, kind: input, shape index: {}]
  %s1 = inlined_call_operand.vmem [shape: f32[1,1024], index: 1, kind: output, shape index: {0}]
  %s2 = inlined_call_operand.vmem [shape: f32[1,1024], index: 2, kind: output, shape index: {1}]
  %3 = xla_tuple %s1, %s2
  %s4 = sld [smem:[#allocation0]]
  $region26: #{decoder_a_forward.13} parent=0
    _
  %s6 = ssub.s32 1, %s4
  %s7 = scalar_select 0, %s6, %s4
  // Predicated region
  $region2: #{decoder_a_forward.13} parent=0 // pred_check
    _
  $region3: #{decoder_a_forward.13} parent=0 // pred_check_branch
    %9 = sbr.rel (0) target = $region5
  $region4: #{decoder_a_forward.13} parent=0 // pred_region
    _
  $region5: #{decoder_a_forward.13} parent=0 // pred_fallthru
    _
  %p10 = scmp.eq.s32.totalorder 0, 0
  // Predicated region
  $region6: #{decoder_a_forward.13} parent=0 // pred_check
    %p11 = pneg %p10
  $region7: #{decoder_a_forward.13} parent=0 // pred_check_branch
    %13 = sbr.rel (%p11) target = $region9
  $region8: #{decoder_a_forward.13} parent=0 // pred_region
    %14 = vst [vmem:[%s1] sm:$0xff] 0.0
    %15 = vst [vmem:[%s2] sm:$0xff] 0.0
  $region9: #{decoder_a_forward.13} parent=0 // pred_fallthru
    _
  %v16 = vld [vmem:[%s0] sm:$0xff]
  %v17 = vld [vmem:[%s0 + $0x8] sm:$0xff]
  %v18 = vld [vmem:[%s0 + $0x10] sm:$0xff]
  %v19 = vld [vmem:[%s0 + $0x18] sm:$0xff]
  %v20 = vld [vmem:[%s0 + $0x20] sm:$0xff]
  %v21 = vld [vmem:[%s0 + $0x28] sm:$0xff]
  %v22 = vld [vmem:[%s0 + $0x30] sm:$0xff]
  %v23 = vld [vmem:[%s0 + $0x38] sm:$0xff]
  %v24 = vld [vmem:[%s0 + $0x40] sm:$0xff]
  %v25 = vld [vmem:[%s0 + $0x48] sm:$0xff]
  %v26 = vld [vmem:[%s0 + $0x50] sm:$0xff]
  %v27 = vld [vmem:[%s0 + $0x58] sm:$0xff]
  %v28 = vld [vmem:[%s0 + $0x60] sm:$0xff]
  %v29 = vld [vmem:[%s0 + $0x68] sm:$0xff]
  %v30 = vld [vmem:[%s0 + $0x70] sm:$0xff]
  %v31 = vld [vmem:[%s0 + $0x78] sm:$0xff]
  %v32 = vunpack.c.l.bf16 %v16
  %v33 = vunpack.c.h.bf16 %v16
  %v34 = vunpack.c.l.bf16 %v17
  %v35 = vunpack.c.h.bf16 %v17
  %v36 = vunpack.c.l.bf16 %v18
  %v37 = vunpack.c.h.bf16 %v18
  %v38 = vunpack.c.l.bf16 %v19
  %v39 = vunpack.c.h.bf16 %v19
  %v40 = vunpack.c.l.bf16 %v20
  %v41 = vunpack.c.h.bf16 %v20
  %v42 = vunpack.c.l.bf16 %v21
  %v43 = vunpack.c.h.bf16 %v21
  %v44 = vunpack.c.l.bf16 %v22
  %v45 = vunpack.c.h.bf16 %v22
  %v46 = vunpack.c.l.bf16 %v23
  %v47 = vunpack.c.h.bf16 %v23
  %v48 = vunpack.c.l.bf16 %v24
  %v49 = vunpack.c.h.bf16 %v24
  %v50 = vunpack.c.l.bf16 %v25
  %v51 = vunpack.c.h.bf16 %v25
  %v52 = vunpack.c.l.bf16 %v26
  %v53 = vunpack.c.h.bf16 %v26
  %v54 = vunpack.c.l.bf16 %v27
  %v55 = vunpack.c.h.bf16 %v27
  %v56 = vunpack.c.l.bf16 %v28
  %v57 = vunpack.c.h.bf16 %v28
  %v58 = vunpack.c.l.bf16 %v29
  %v59 = vunpack.c.h.bf16 %v29
  %v60 = vunpack.c.l.bf16 %v30
  %v61 = vunpack.c.h.bf16 %v30
  %v62 = vunpack.c.l.bf16 %v31
  %v63 = vunpack.c.h.bf16 %v31
  %v64 = vld [vmem:[%s1] sm:$0xff]
  %v65 = vadd.f32 %v32, %v40
  %v66 = vadd.f32 %v65, %v48
  %v67 = vadd.f32 %v66, %v56
  %v68 = vrot.slane %v67, 4
  %v69 = vadd.f32 %v67, %v68
  %v70 = vrot.slane %v69, 2
  %v71 = vadd.f32 %v69, %v70
  %v72 = vrot.slane %v71, 1
  %v73 = vadd.f32 %v71, %v72
  %v74 = vadd.f32 %v33, %v41
  %v75 = vadd.f32 %v74, %v49
  %v76 = vadd.f32 %v75, %v57
  %v77 = vrot.slane %v76, 4
  %v78 = vadd.f32 %v76, %v77
  %v79 = vrot.slane %v78, 2
  %v80 = vadd.f32 %v78, %v79
  %v81 = vrot.slane %v80, 1
  %v82 = vadd.f32 %v80, %v81
  %v83 = vadd.f32 %v34, %v42
  %v84 = vadd.f32 %v83, %v50
  %v85 = vadd.f32 %v84, %v58
  %v86 = vrot.slane %v85, 4
  %v87 = vadd.f32 %v85, %v86
  %v88 = vrot.slane %v87, 2
  %v89 = vadd.f32 %v87, %v88
  %v90 = vrot.slane %v89, 1
  %v91 = vadd.f32 %v89, %v90
  %v92 = vadd.f32 %v35, %v43
  %v93 = vadd.f32 %v92, %v51
  %v94 = vadd.f32 %v93, %v59
  %v95 = vrot.slane %v94, 4
  %v96 = vadd.f32 %v94, %v95
  %v97 = vrot.slane %v96, 2
  %v98 = vadd.f32 %v96, %v97
  %v99 = vrot.slane %v98, 1
  %v100 = vadd.f32 %v98, %v99
  %v101 = vadd.f32 %v36, %v44
  %v102 = vadd.f32 %v101, %v52
  %v103 = vadd.f32 %v102, %v60
  %v104 = vrot.slane %v103, 4
  %v105 = vadd.f32 %v103, %v104
  %v106 = vrot.slane %v105, 2
  %v107 = vadd.f32 %v105, %v106
  %v108 = vrot.slane %v107, 1
  %v109 = vadd.f32 %v107, %v108
  %v110 = vadd.f32 %v37, %v45
  %v111 = vadd.f32 %v110, %v53
  %v112 = vadd.f32 %v111, %v61
  %v113 = vrot.slane %v112, 4
  %v114 = vadd.f32 %v112, %v113
  %v115 = vrot.slane %v114, 2
  %v116 = vadd.f32 %v114, %v115
  %v117 = vrot.slane %v116, 1
  %v118 = vadd.f32 %v116, %v117
  %v119 = vadd.f32 %v38, %v46
  %v120 = vadd.f32 %v119, %v54
  %v121 = vadd.f32 %v120, %v62
  %v122 = vrot.slane %v121, 4
  %v123 = vadd.f32 %v121, %v122
  %v124 = vrot.slane %v123, 2
  %v125 = vadd.f32 %v123, %v124
  %v126 = vrot.slane %v125, 1
  %v127 = vadd.f32 %v125, %v126
  %v128 = vadd.f32 %v39, %v47
  %v129 = vadd.f32 %v128, %v55
  %v130 = vadd.f32 %v129, %v63
  %v131 = vrot.slane %v130, 4
  %v132 = vadd.f32 %v130, %v131
  %v133 = vrot.slane %v132, 2
  %v134 = vadd.f32 %v132, %v133
  %v135 = vrot.slane %v134, 1
  %v136 = vadd.f32 %v134, %v135
  %v145 = vcombine.low %v73, %v82
  %v146 = vcombine.low %v91, %v100
  %v147 = vcombine.low %v109, %v118
  %v148 = vcombine.low %v127, %v136
  %v150 = vunpack.c.l.s4 1966171168
  %v151 = vunpack.c.0.s8 %v150
  %v152 = vlaneseq
  %v153 = vshrl.u32 %v152, 7
  %v154 = vsub.s32 %v151, %v153
  %v155 = vrot.slane %v145, %v154
  %v157 = vunpack.c.l.s4 1966171168
  %v158 = vunpack.c.0.s8 %v157
  %v159 = vlaneseq
  %v160 = vshrl.u32 %v159, 7
  %v161 = vsub.s32 %v158, %v160
  %v162 = vrot.slane %v146, %v161
  %v164 = vunpack.c.l.s4 1966171168
  %v165 = vunpack.c.0.s8 %v164
  %v166 = vlaneseq
  %v167 = vshrl.u32 %v166, 7
  %v168 = vsub.s32 %v165, %v167
  %v169 = vrot.slane %v147, %v168
  %v171 = vunpack.c.l.s4 1966171168
  %v172 = vunpack.c.0.s8 %v171
  %v173 = vlaneseq
  %v174 = vshrl.u32 %v173, 7
  %v175 = vsub.s32 %v172, %v174
  %v176 = vrot.slane %v148, %v175
  %v177 = vcombine.low %v155, %v162
  %v178 = vcombine.low %v169, %v176
  %v180 = vunpack.c.l.s4 1966171168
  %v181 = vunpack.c.0.s8 %v180
  %v182 = vlaneseq
  %v183 = vshrl.u32 %v182, 7
  %v184 = vsub.s32 %v181, %v183
  %v185 = vrot.slane %v177, %v184
  %v187 = vunpack.c.l.s4 1966171168
  %v188 = vunpack.c.0.s8 %v187
  %v189 = vlaneseq
  %v190 = vshrl.u32 %v189, 7
  %v191 = vsub.s32 %v188, %v190
  %v192 = vrot.slane %v178, %v191
  %v193 = vcombine.low %v185, %v192
  %v195 = vadd.f32 %v64, %v193
  %196 = vst [vmem:[%s1] sm:$0xff] %v195
  %v197 = vld [vmem:[%s2] sm:$0xff]
  %v198 = vmul.f32 %v32, %v32
  %v199 = vmul.f32 %v33, %v33
  %v200 = vmul.f32 %v34, %v34
  %v201 = vmul.f32 %v35, %v35
  %v202 = vmul.f32 %v36, %v36
  %v203 = vmul.f32 %v37, %v37
  %v204 = vmul.f32 %v38, %v38
  %v205 = vmul.f32 %v39, %v39
  %v206 = vmul.f32 %v40, %v40
  %v207 = vmul.f32 %v41, %v41
  %v208 = vmul.f32 %v42, %v42
  %v209 = vmul.f32 %v43, %v43
  %v210 = vmul.f32 %v44, %v44
  %v211 = vmul.f32 %v45, %v45
  %v212 = vmul.f32 %v46, %v46
  %v213 = vmul.f32 %v47, %v47
  %v214 = vmul.f32 %v48, %v48
  %v215 = vmul.f32 %v49, %v49
  %v216 = vmul.f32 %v50, %v50
  %v217 = vmul.f32 %v51, %v51
  %v218 = vmul.f32 %v52, %v52
  %v219 = vmul.f32 %v53, %v53
  %v220 = vmul.f32 %v54, %v54
  %v221 = vmul.f32 %v55, %v55
  %v222 = vmul.f32 %v56, %v56
  %v223 = vmul.f32 %v57, %v57
  %v224 = vmul.f32 %v58, %v58
  %v225 = vmul.f32 %v59, %v59
  %v226 = vmul.f32 %v60, %v60
  %v227 = vmul.f32 %v61, %v61
  %v228 = vmul.f32 %v62, %v62
  %v229 = vmul.f32 %v63, %v63
  %v230 = vadd.f32 %v198, %v206
  %v231 = vadd.f32 %v230, %v214
  %v232 = vadd.f32 %v231, %v222
  %v233 = vrot.slane %v232, 4
  %v234 = vadd.f32 %v232, %v233
  %v235 = vrot.slane %v234, 2
  %v236 = vadd.f32 %v234, %v235
  %v237 = vrot.slane %v236, 1
  %v238 = vadd.f32 %v236, %v237
  %v239 = vadd.f32 %v199, %v207
  %v240 = vadd.f32 %v239, %v215
  %v241 = vadd.f32 %v240, %v223
  %v242 = vrot.slane %v241, 4
  %v243 = vadd.f32 %v241, %v242
  %v244 = vrot.slane %v243, 2
  %v245 = vadd.f32 %v243, %v244
  %v246 = vrot.slane %v245, 1
  %v247 = vadd.f32 %v245, %v246
  %v248 = vadd.f32 %v200, %v208
  %v249 = vadd.f32 %v248, %v216
  %v250 = vadd.f32 %v249, %v224
  %v251 = vrot.slane %v250, 4
  %v252 = vadd.f32 %v250, %v251
  %v253 = vrot.slane %v252, 2
  %v254 = vadd.f32 %v252, %v253
  %v255 = vrot.slane %v254, 1
  %v256 = vadd.f32 %v254, %v255
  %v257 = vadd.f32 %v201, %v209
  %v258 = vadd.f32 %v257, %v217
  %v259 = vadd.f32 %v258, %v225
  %v260 = vrot.slane %v259, 4
  %v261 = vadd.f32 %v259, %v260
  %v262 = vrot.slane %v261, 2
  %v263 = vadd.f32 %v261, %v262
  %v264 = vrot.slane %v263, 1
  %v265 = vadd.f32 %v263, %v264
  %v266 = vadd.f32 %v202, %v210
  %v267 = vadd.f32 %v266, %v218
  %v268 = vadd.f32 %v267, %v226
  %v269 = vrot.slane %v268, 4
  %v270 = vadd.f32 %v268, %v269
  %v271 = vrot.slane %v270, 2
  %v272 = vadd.f32 %v270, %v271
  %v273 = vrot.slane %v272, 1
  %v274 = vadd.f32 %v272, %v273
  %v275 = vadd.f32 %v203, %v211
  %v276 = vadd.f32 %v275, %v219
  %v277 = vadd.f32 %v276, %v227
  %v278 = vrot.slane %v277, 4
  %v279 = vadd.f32 %v277, %v278
  %v280 = vrot.slane %v279, 2
  %v281 = vadd.f32 %v279, %v280
  %v282 = vrot.slane %v281, 1
  %v283 = vadd.f32 %v281, %v282
  %v284 = vadd.f32 %v204, %v212
  %v285 = vadd.f32 %v284, %v220
  %v286 = vadd.f32 %v285, %v228
  %v287 = vrot.slane %v286, 4
  %v288 = vadd.f32 %v286, %v287
  %v289 = vrot.slane %v288, 2
  %v290 = vadd.f32 %v288, %v289
  %v291 = vrot.slane %v290, 1
  %v292 = vadd.f32 %v290, %v291
  %v293 = vadd.f32 %v205, %v213
  %v294 = vadd.f32 %v293, %v221
  %v295 = vadd.f32 %v294, %v229
  %v296 = vrot.slane %v295, 4
  %v297 = vadd.f32 %v295, %v296
  %v298 = vrot.slane %v297, 2
  %v299 = vadd.f32 %v297, %v298
  %v300 = vrot.slane %v299, 1
  %v301 = vadd.f32 %v299, %v300
  %v310 = vcombine.low %v238, %v247
  %v311 = vcombine.low %v256, %v265
  %v312 = vcombine.low %v274, %v283
  %v313 = vcombine.low %v292, %v301
  %v315 = vunpack.c.l.s4 1966171168
  %v316 = vunpack.c.0.s8 %v315
  %v317 = vlaneseq
  %v318 = vshrl.u32 %v317, 7
  %v319 = vsub.s32 %v316, %v318
  %v320 = vrot.slane %v310, %v319
  %v322 = vunpack.c.l.s4 1966171168
  %v323 = vunpack.c.0.s8 %v322
  %v324 = vlaneseq
  %v325 = vshrl.u32 %v324, 7
  %v326 = vsub.s32 %v323, %v325
  %v327 = vrot.slane %v311, %v326
  %v329 = vunpack.c.l.s4 1966171168
  %v330 = vunpack.c.0.s8 %v329
  %v331 = vlaneseq
  %v332 = vshrl.u32 %v331, 7
  %v333 = vsub.s32 %v330, %v332
  %v334 = vrot.slane %v312, %v333
  %v336 = vunpack.c.l.s4 1966171168
  %v337 = vunpack.c.0.s8 %v336
  %v338 = vlaneseq
  %v339 = vshrl.u32 %v338, 7
  %v340 = vsub.s32 %v337, %v339
  %v341 = vrot.slane %v313, %v340
  %v342 = vcombine.low %v320, %v327
  %v343 = vcombine.low %v334, %v341
  %v345 = vunpack.c.l.s4 1966171168
  %v346 = vunpack.c.0.s8 %v345
  %v347 = vlaneseq
  %v348 = vshrl.u32 %v347, 7
  %v349 = vsub.s32 %v346, %v348
  %v350 = vrot.slane %v342, %v349
  %v352 = vunpack.c.l.s4 1966171168
  %v353 = vunpack.c.0.s8 %v352
  %v354 = vlaneseq
  %v355 = vshrl.u32 %v354, 7
  %v356 = vsub.s32 %v353, %v355
  %v357 = vrot.slane %v343, %v356
  %v358 = vcombine.low %v350, %v357
  %v360 = vadd.f32 %v197, %v358
  %361 = vst [vmem:[%s2] sm:$0xff] %v360
  // Predicated region
  $region10: #{decoder_a_forward.13} parent=0 // pred_check
    _
  $region11: #{decoder_a_forward.13} parent=0 // pred_check_branch
    %363 = sbr.rel (0) target = $region13
  $region12: #{decoder_a_forward.13} parent=0 // pred_region
    _
  $region13: #{decoder_a_forward.13} parent=0 // pred_fallthru
    _
  // Predicated region
  $region14: #{decoder_a_forward.13} parent=0 // pred_check
    _
  $region15: #{decoder_a_forward.13} parent=0 // pred_check_branch
    %365 = sbr.rel (0) target = $region17
  $region16: #{decoder_a_forward.13} parent=0 // pred_region
    _
  $region17: #{decoder_a_forward.13} parent=0 // pred_fallthru
    _
  // Predicated region
  $region18: #{decoder_a_forward.13} parent=0 // pred_check
    _
  $region19: #{decoder_a_forward.13} parent=0 // pred_check_branch
    %367 = sbr.rel (0) target = $region21
  $region20: #{decoder_a_forward.13} parent=0 // pred_region
    _
  $region21: #{decoder_a_forward.13} parent=0 // pred_fallthru
    _
  // Predicated region
  $region22: #{decoder_a_forward.13} parent=0 // pred_check
    _
  $region23: #{decoder_a_forward.13} parent=0 // pred_check_branch
    %369 = sbr.rel (0) target = $region25
  $region24: #{decoder_a_forward.13} parent=0 // pred_region
    _
  $region25: #{decoder_a_forward.13} parent=0 // pred_fallthru
    _

// kernel: decoder_a_forward.14
$region0: #{decoder_a_forward.14}
  #allocation0 [shape = 'u32[]', space=smem, size = 0x4, offset = 0x4, fixed_abs, tag = 'smem constant byte address 0x4 - core index']
  #allocation1 [shape = 'u32[144,128]{1,0:T(1,128)}', space=vmem, size = 0x12000, scoped, tag = 'internal scratch']
  %s0 = inlined_call_operand.vmem [shape: bf16[512,64], index: 0, kind: input, shape index: {}]
  %s1 = inlined_call_operand.vmem [shape: bf16[64,512], index: 1, kind: input, shape index: {}]
  %s2 = inlined_call_operand.vmem [shape: f32[1,64], index: 2, kind: input, shape index: {}]
  %s3 = inlined_call_operand.vmem [shape: f32[1,64], index: 3, kind: input, shape index: {}]
  %s4 = inlined_call_operand.vmem [shape: bf16[512,512], index: 4, kind: output, shape index: {}]
  %s5 = sld [smem:[#allocation0]]
  $region26: #{decoder_a_forward.14} parent=0
    _
  %s7 = ssub.s32 1, %s5
  %s8 = scalar_select 0, %s7, %s5
  // Predicated region
  $region2: #{decoder_a_forward.14} parent=0 // pred_check
    _
  $region3: #{decoder_a_forward.14} parent=0 // pred_check_branch
    %10 = sbr.rel (0) target = $region5
  $region4: #{decoder_a_forward.14} parent=0 // pred_region
    _
  $region5: #{decoder_a_forward.14} parent=0 // pred_fallthru
    _
  // Predicated region
  $region6: #{decoder_a_forward.14} parent=0 // pred_check
    _
  $region7: #{decoder_a_forward.14} parent=0 // pred_check_branch
    %12 = sbr.rel (0) target = $region9
  $region8: #{decoder_a_forward.14} parent=0 // pred_region
    _
  $region9: #{decoder_a_forward.14} parent=0 // pred_fallthru
    _
  // Predicated region
  $region10: #{decoder_a_forward.14} parent=0 // pred_check
    _
  $region11: #{decoder_a_forward.14} parent=0 // pred_check_branch
    %14 = sbr.rel (0) target = $region13
  $region12: #{decoder_a_forward.14} parent=0 // pred_region
    _
  $region13: #{decoder_a_forward.14} parent=0 // pred_fallthru
    _
  // Predicated region
  $region14: #{decoder_a_forward.14} parent=0 // pred_check
    _
  $region15: #{decoder_a_forward.14} parent=0 // pred_check_branch
    %16 = sbr.rel (0) target = $region17
  $region16: #{decoder_a_forward.14} parent=0 // pred_region
    _
  $region17: #{decoder_a_forward.14} parent=0 // pred_fallthru
    _
  %v18 = vld [vmem:[%s0] sm:$0xf]
  %v19 = vld [vmem:[%s0 + $0x4] sm:$0xf]
  %v20 = vld [vmem:[%s0 + $0x8] sm:$0xf]
  %v21 = vld [vmem:[%s0 + $0xc] sm:$0xf]
  %v22 = vld [vmem:[%s0 + $0x10] sm:$0xf]
  %v23 = vld [vmem:[%s0 + $0x14] sm:$0xf]
  %v24 = vld [vmem:[%s0 + $0x18] sm:$0xf]
  %v25 = vld [vmem:[%s0 + $0x1c] sm:$0xf]
  %v26 = vld [vmem:[%s0 + $0x20] sm:$0xf]
  %v27 = vld [vmem:[%s0 + $0x24] sm:$0xf]
  %v28 = vld [vmem:[%s0 + $0x28] sm:$0xf]
  %v29 = vld [vmem:[%s0 + $0x2c] sm:$0xf]
  %v30 = vld [vmem:[%s0 + $0x30] sm:$0xf]
  %v31 = vld [vmem:[%s0 + $0x34] sm:$0xf]
  %v32 = vld [vmem:[%s0 + $0x38] sm:$0xf]
  %v33 = vld [vmem:[%s0 + $0x3c] sm:$0xf]
  %v34 = vld [vmem:[%s0 + $0x40] sm:$0xf]
  %v35 = vld [vmem:[%s0 + $0x44] sm:$0xf]
  %v36 = vld [vmem:[%s0 + $0x48] sm:$0xf]
  %v37 = vld [vmem:[%s0 + $0x4c] sm:$0xf]
  %v38 = vld [vmem:[%s0 + $0x50] sm:$0xf]
  %v39 = vld [vmem:[%s0 + $0x54] sm:$0xf]
  %v40 = vld [vmem:[%s0 + $0x58] sm:$0xf]
  %v41 = vld [vmem:[%s0 + $0x5c] sm:$0xf]
  %v42 = vld [vmem:[%s0 + $0x60] sm:$0xf]
  %v43 = vld [vmem:[%s0 + $0x64] sm:$0xf]
  %v44 = vld [vmem:[%s0 + $0x68] sm:$0xf]
  %v45 = vld [vmem:[%s0 + $0x6c] sm:$0xf]
  %v46 = vld [vmem:[%s0 + $0x70] sm:$0xf]
  %v47 = vld [vmem:[%s0 + $0x74] sm:$0xf]
  %v48 = vld [vmem:[%s0 + $0x78] sm:$0xf]
  %v49 = vld [vmem:[%s0 + $0x7c] sm:$0xf]
  %v50 = vld [vmem:[%s0 + $0x80] sm:$0xf]
  %v51 = vld [vmem:[%s0 + $0x84] sm:$0xf]
  %v52 = vld [vmem:[%s0 + $0x88] sm:$0xf]
  %v53 = vld [vmem:[%s0 + $0x8c] sm:$0xf]
  %v54 = vld [vmem:[%s0 + $0x90] sm:$0xf]
  %v55 = vld [vmem:[%s0 + $0x94] sm:$0xf]
  %v56 = vld [vmem:[%s0 + $0x98] sm:$0xf]
  %v57 = vld [vmem:[%s0 + $0x9c] sm:$0xf]
  %v58 = vld [vmem:[%s0 + $0xa0] sm:$0xf]
  %v59 = vld [vmem:[%s0 + $0xa4] sm:$0xf]
  %v60 = vld [vmem:[%s0 + $0xa8] sm:$0xf]
  %v61 = vld [vmem:[%s0 + $0xac] sm:$0xf]
  %v62 = vld [vmem:[%s0 + $0xb0] sm:$0xf]
  %v63 = vld [vmem:[%s0 + $0xb4] sm:$0xf]
  %v64 = vld [vmem:[%s0 + $0xb8] sm:$0xf]
  %v65 = vld [vmem:[%s0 + $0xbc] sm:$0xf]
  %v66 = vld [vmem:[%s0 + $0xc0] sm:$0xf]
  %v67 = vld [vmem:[%s0 + $0xc4] sm:$0xf]
  %v68 = vld [vmem:[%s0 + $0xc8] sm:$0xf]
  %v69 = vld [vmem:[%s0 + $0xcc] sm:$0xf]
  %v70 = vld [vmem:[%s0 + $0xd0] sm:$0xf]
  %v71 = vld [vmem:[%s0 + $0xd4] sm:$0xf]
  %v72 = vld [vmem:[%s0 + $0xd8] sm:$0xf]
  %v73 = vld [vmem:[%s0 + $0xdc] sm:$0xf]
  %v74 = vld [vmem:[%s0 + $0xe0] sm:$0xf]
  %v75 = vld [vmem:[%s0 + $0xe4] sm:$0xf]
  %v76 = vld [vmem:[%s0 + $0xe8] sm:$0xf]
  %v77 = vld [vmem:[%s0 + $0xec] sm:$0xf]
  %v78 = vld [vmem:[%s0 + $0xf0] sm:$0xf]
  %v79 = vld [vmem:[%s0 + $0xf4] sm:$0xf]
  %v80 = vld [vmem:[%s0 + $0xf8] sm:$0xf]
  %v81 = vld [vmem:[%s0 + $0xfc] sm:$0xf]
  %v82 = vunpack.c.l.bf16 %v18
  %v83 = vunpack.c.l.bf16 %v19
  %v84 = vunpack.c.l.bf16 %v20
  %v85 = vunpack.c.l.bf16 %v21
  %v86 = vunpack.c.l.bf16 %v22
  %v87 = vunpack.c.l.bf16 %v23
  %v88 = vunpack.c.l.bf16 %v24
  %v89 = vunpack.c.l.bf16 %v25
  %v90 = vunpack.c.l.bf16 %v26
  %v91 = vunpack.c.l.bf16 %v27
  %v92 = vunpack.c.l.bf16 %v28
  %v93 = vunpack.c.l.bf16 %v29
  %v94 = vunpack.c.l.bf16 %v30
  %v95 = vunpack.c.l.bf16 %v31
  %v96 = vunpack.c.l.bf16 %v32
  %v97 = vunpack.c.l.bf16 %v33
  %v98 = vunpack.c.l.bf16 %v34
  %v99 = vunpack.c.l.bf16 %v35
  %v100 = vunpack.c.l.bf16 %v36
  %v101 = vunpack.c.l.bf16 %v37
  %v102 = vunpack.c.l.bf16 %v38
  %v103 = vunpack.c.l.bf16 %v39
  %v104 = vunpack.c.l.bf16 %v40
  %v105 = vunpack.c.l.bf16 %v41
  %v106 = vunpack.c.l.bf16 %v42
  %v107 = vunpack.c.l.bf16 %v43
  %v108 = vunpack.c.l.bf16 %v44
  %v109 = vunpack.c.l.bf16 %v45
  %v110 = vunpack.c.l.bf16 %v46
  %v111 = vunpack.c.l.bf16 %v47
  %v112 = vunpack.c.l.bf16 %v48
  %v113 = vunpack.c.l.bf16 %v49
  %v114 = vunpack.c.l.bf16 %v50
  %v115 = vunpack.c.l.bf16 %v51
  %v116 = vunpack.c.l.bf16 %v52
  %v117 = vunpack.c.l.bf16 %v53
  %v118 = vunpack.c.l.bf16 %v54
  %v119 = vunpack.c.l.bf16 %v55
  %v120 = vunpack.c.l.bf16 %v56
  %v121 = vunpack.c.l.bf16 %v57
  %v122 = vunpack.c.l.bf16 %v58
  %v123 = vunpack.c.l.bf16 %v59
  %v124 = vunpack.c.l.bf16 %v60
  %v125 = vunpack.c.l.bf16 %v61
  %v126 = vunpack.c.l.bf16 %v62
  %v127 = vunpack.c.l.bf16 %v63
  %v128 = vunpack.c.l.bf16 %v64
  %v129 = vunpack.c.l.bf16 %v65
  %v130 = vunpack.c.l.bf16 %v66
  %v131 = vunpack.c.l.bf16 %v67
  %v132 = vunpack.c.l.bf16 %v68
  %v133 = vunpack.c.l.bf16 %v69
  %v134 = vunpack.c.l.bf16 %v70
  %v135 = vunpack.c.l.bf16 %v71
  %v136 = vunpack.c.l.bf16 %v72
  %v137 = vunpack.c.l.bf16 %v73
  %v138 = vunpack.c.l.bf16 %v74
  %v139 = vunpack.c.l.bf16 %v75
  %v140 = vunpack.c.l.bf16 %v76
  %v141 = vunpack.c.l.bf16 %v77
  %v142 = vunpack.c.l.bf16 %v78
  %v143 = vunpack.c.l.bf16 %v79
  %v144 = vunpack.c.l.bf16 %v80
  %v145 = vunpack.c.l.bf16 %v81
  %v146 = vld [vmem:[%s2] sm:$0x1]
  %v148 = vlaneseq
  %v149 = vshrl.u32 %v148, 7
  %v150 = vsub.s32 0, %v149
  %v151 = vrot.slane %v146, %v150
  %v153 = vmul.f32 %v82, %v151
  %v154 = vmul.f32 %v83, %v151
  %v155 = vmul.f32 %v84, %v151
  %v156 = vmul.f32 %v85, %v151
  %v157 = vmul.f32 %v86, %v151
  %v158 = vmul.f32 %v87, %v151
  %v159 = vmul.f32 %v88, %v151
  %v160 = vmul.f32 %v89, %v151
  %v161 = vmul.f32 %v90, %v151
  %v162 = vmul.f32 %v91, %v151
  %v163 = vmul.f32 %v92, %v151
  %v164 = vmul.f32 %v93, %v151
  %v165 = vmul.f32 %v94, %v151
  %v166 = vmul.f32 %v95, %v151
  %v167 = vmul.f32 %v96, %v151
  %v168 = vmul.f32 %v97, %v151
  %v169 = vmul.f32 %v98, %v151
  %v170 = vmul.f32 %v99, %v151
  %v171 = vmul.f32 %v100, %v151
  %v172 = vmul.f32 %v101, %v151
  %v173 = vmul.f32 %v102, %v151
  %v174 = vmul.f32 %v103, %v151
  %v175 = vmul.f32 %v104, %v151
  %v176 = vmul.f32 %v105, %v151
  %v177 = vmul.f32 %v106, %v151
  %v178 = vmul.f32 %v107, %v151
  %v179 = vmul.f32 %v108, %v151
  %v180 = vmul.f32 %v109, %v151
  %v181 = vmul.f32 %v110, %v151
  %v182 = vmul.f32 %v111, %v151
  %v183 = vmul.f32 %v112, %v151
  %v184 = vmul.f32 %v113, %v151
  %v185 = vmul.f32 %v114, %v151
  %v186 = vmul.f32 %v115, %v151
  %v187 = vmul.f32 %v116, %v151
  %v188 = vmul.f32 %v117, %v151
  %v189 = vmul.f32 %v118, %v151
  %v190 = vmul.f32 %v119, %v151
  %v191 = vmul.f32 %v120, %v151
  %v192 = vmul.f32 %v121, %v151
  %v193 = vmul.f32 %v122, %v151
  %v194 = vmul.f32 %v123, %v151
  %v195 = vmul.f32 %v124, %v151
  %v196 = vmul.f32 %v125, %v151
  %v197 = vmul.f32 %v126, %v151
  %v198 = vmul.f32 %v127, %v151
  %v199 = vmul.f32 %v128, %v151
  %v200 = vmul.f32 %v129, %v151
  %v201 = vmul.f32 %v130, %v151
  %v202 = vmul.f32 %v131, %v151
  %v203 = vmul.f32 %v132, %v151
  %v204 = vmul.f32 %v133, %v151
  %v205 = vmul.f32 %v134, %v151
  %v206 = vmul.f32 %v135, %v151
  %v207 = vmul.f32 %v136, %v151
  %v208 = vmul.f32 %v137, %v151
  %v209 = vmul.f32 %v138, %v151
  %v210 = vmul.f32 %v139, %v151
  %v211 = vmul.f32 %v140, %v151
  %v212 = vmul.f32 %v141, %v151
  %v213 = vmul.f32 %v142, %v151
  %v214 = vmul.f32 %v143, %v151
  %v215 = vmul.f32 %v144, %v151
  %v216 = vmul.f32 %v145, %v151
  %v217 = vld [vmem:[%s3] sm:$0x1]
  %v219 = vlaneseq
  %v220 = vshrl.u32 %v219, 7
  %v221 = vsub.s32 0, %v220
  %v222 = vrot.slane %v217, %v221
  %v224 = vadd.f32 %v153, %v222
  %v225 = vadd.f32 %v154, %v222
  %v226 = vadd.f32 %v155, %v222
  %v227 = vadd.f32 %v156, %v222
  %v228 = vadd.f32 %v157, %v222
  %v229 = vadd.f32 %v158, %v222
  %v230 = vadd.f32 %v159, %v222
  %v231 = vadd.f32 %v160, %v222
  %v232 = vadd.f32 %v161, %v222
  %v233 = vadd.f32 %v162, %v222
  %v234 = vadd.f32 %v163, %v222
  %v235 = vadd.f32 %v164, %v222
  %v236 = vadd.f32 %v165, %v222
  %v237 = vadd.f32 %v166, %v222
  %v238 = vadd.f32 %v167, %v222
  %v239 = vadd.f32 %v168, %v222
  %v240 = vadd.f32 %v169, %v222
  %v241 = vadd.f32 %v170, %v222
  %v242 = vadd.f32 %v171, %v222
  %v243 = vadd.f32 %v172, %v222
  %v244 = vadd.f32 %v173, %v222
  %v245 = vadd.f32 %v174, %v222
  %v246 = vadd.f32 %v175, %v222
  %v247 = vadd.f32 %v176, %v222
  %v248 = vadd.f32 %v177, %v222
  %v249 = vadd.f32 %v178, %v222
  %v250 = vadd.f32 %v179, %v222
  %v251 = vadd.f32 %v180, %v222
  %v252 = vadd.f32 %v181, %v222
  %v253 = vadd.f32 %v182, %v222
  %v254 = vadd.f32 %v183, %v222
  %v255 = vadd.f32 %v184, %v222
  %v256 = vadd.f32 %v185, %v222
  %v257 = vadd.f32 %v186, %v222
  %v258 = vadd.f32 %v187, %v222
  %v259 = vadd.f32 %v188, %v222
  %v260 = vadd.f32 %v189, %v222
  %v261 = vadd.f32 %v190, %v222
  %v262 = vadd.f32 %v191, %v222
  %v263 = vadd.f32 %v192, %v222
  %v264 = vadd.f32 %v193, %v222
  %v265 = vadd.f32 %v194, %v222
  %v266 = vadd.f32 %v195, %v222
  %v267 = vadd.f32 %v196, %v222
  %v268 = vadd.f32 %v197, %v222
  %v269 = vadd.f32 %v198, %v222
  %v270 = vadd.f32 %v199, %v222
  %v271 = vadd.f32 %v200, %v222
  %v272 = vadd.f32 %v201, %v222
  %v273 = vadd.f32 %v202, %v222
  %v274 = vadd.f32 %v203, %v222
  %v275 = vadd.f32 %v204, %v222
  %v276 = vadd.f32 %v205, %v222
  %v277 = vadd.f32 %v206, %v222
  %v278 = vadd.f32 %v207, %v222
  %v279 = vadd.f32 %v208, %v222
  %v280 = vadd.f32 %v209, %v222
  %v281 = vadd.f32 %v210, %v222
  %v282 = vadd.f32 %v211, %v222
  %v283 = vadd.f32 %v212, %v222
  %v284 = vadd.f32 %v213, %v222
  %v285 = vadd.f32 %v214, %v222
  %v286 = vadd.f32 %v215, %v222
  %v287 = vadd.f32 %v216, %v222
  %v288 = vmax.f32 %v224, 0.0
  %v289 = vmax.f32 %v225, 0.0
  %v290 = vmax.f32 %v226, 0.0
  %v291 = vmax.f32 %v227, 0.0
  %v292 = vmax.f32 %v228, 0.0
  %v293 = vmax.f32 %v229, 0.0
  %v294 = vmax.f32 %v230, 0.0
  %v295 = vmax.f32 %v231, 0.0
  %v296 = vmax.f32 %v232, 0.0
  %v297 = vmax.f32 %v233, 0.0
  %v298 = vmax.f32 %v234, 0.0
  %v299 = vmax.f32 %v235, 0.0
  %v300 = vmax.f32 %v236, 0.0
  %v301 = vmax.f32 %v237, 0.0
  %v302 = vmax.f32 %v238, 0.0
  %v303 = vmax.f32 %v239, 0.0
  %v304 = vmax.f32 %v240, 0.0
  %v305 = vmax.f32 %v241, 0.0
  %v306 = vmax.f32 %v242, 0.0
  %v307 = vmax.f32 %v243, 0.0
  %v308 = vmax.f32 %v244, 0.0
  %v309 = vmax.f32 %v245, 0.0
  %v310 = vmax.f32 %v246, 0.0
  %v311 = vmax.f32 %v247, 0.0
  %v312 = vmax.f32 %v248, 0.0
  %v313 = vmax.f32 %v249, 0.0
  %v314 = vmax.f32 %v250, 0.0
  %v315 = vmax.f32 %v251, 0.0
  %v316 = vmax.f32 %v252, 0.0
  %v317 = vmax.f32 %v253, 0.0
  %v318 = vmax.f32 %v254, 0.0
  %v319 = vmax.f32 %v255, 0.0
  %v320 = vmax.f32 %v256, 0.0
  %v321 = vmax.f32 %v257, 0.0
  %v322 = vmax.f32 %v258, 0.0
  %v323 = vmax.f32 %v259, 0.0
  %v324 = vmax.f32 %v260, 0.0
  %v325 = vmax.f32 %v261, 0.0
  %v326 = vmax.f32 %v262, 0.0
  %v327 = vmax.f32 %v263, 0.0
  %v328 = vmax.f32 %v264, 0.0
  %v329 = vmax.f32 %v265, 0.0
  %v330 = vmax.f32 %v266, 0.0
  %v331 = vmax.f32 %v267, 0.0
  %v332 = vmax.f32 %v268, 0.0
  %v333 = vmax.f32 %v269, 0.0
  %v334 = vmax.f32 %v270, 0.0
  %v335 = vmax.f32 %v271, 0.0
  %v336 = vmax.f32 %v272, 0.0
  %v337 = vmax.f32 %v273, 0.0
  %v338 = vmax.f32 %v274, 0.0
  %v339 = vmax.f32 %v275, 0.0
  %v340 = vmax.f32 %v276, 0.0
  %v341 = vmax.f32 %v277, 0.0
  %v342 = vmax.f32 %v278, 0.0
  %v343 = vmax.f32 %v279, 0.0
  %v344 = vmax.f32 %v280, 0.0
  %v345 = vmax.f32 %v281, 0.0
  %v346 = vmax.f32 %v282, 0.0
  %v347 = vmax.f32 %v283, 0.0
  %v348 = vmax.f32 %v284, 0.0
  %v349 = vmax.f32 %v285, 0.0
  %v350 = vmax.f32 %v286, 0.0
  %v351 = vmax.f32 %v287, 0.0
  %v352 = vpack.c.bf16 %v289, %v288
  %v353 = vpack.c.bf16 %v291, %v290
  %v354 = vpack.c.bf16 %v293, %v292
  %v355 = vpack.c.bf16 %v295, %v294
  %v356 = vpack.c.bf16 %v297, %v296
  %v357 = vpack.c.bf16 %v299, %v298
  %v358 = vpack.c.bf16 %v301, %v300
  %v359 = vpack.c.bf16 %v303, %v302
  %v360 = vpack.c.bf16 %v305, %v304
  %v361 = vpack.c.bf16 %v307, %v306
  %v362 = vpack.c.bf16 %v309, %v308
  %v363 = vpack.c.bf16 %v311, %v310
  %v364 = vpack.c.bf16 %v313, %v312
  %v365 = vpack.c.bf16 %v315, %v314
  %v366 = vpack.c.bf16 %v317, %v316
  %v367 = vpack.c.bf16 %v319, %v318
  %v368 = vpack.c.bf16 %v321, %v320
  %v369 = vpack.c.bf16 %v323, %v322
  %v370 = vpack.c.bf16 %v325, %v324
  %v371 = vpack.c.bf16 %v327, %v326
  %v372 = vpack.c.bf16 %v329, %v328
  %v373 = vpack.c.bf16 %v331, %v330
  %v374 = vpack.c.bf16 %v333, %v332
  %v375 = vpack.c.bf16 %v335, %v334
  %v376 = vpack.c.bf16 %v337, %v336
  %v377 = vpack.c.bf16 %v339, %v338
  %v378 = vpack.c.bf16 %v341, %v340
  %v379 = vpack.c.bf16 %v343, %v342
  %v380 = vpack.c.bf16 %v345, %v344
  %v381 = vpack.c.bf16 %v347, %v346
  %v382 = vpack.c.bf16 %v349, %v348
  %v383 = vpack.c.bf16 %v351, %v350
  %v384 = vld [vmem:[%s1] sm:$0xff]
  %v385 = vld [vmem:[%s1 + $0x8] sm:$0xff]
  %v386 = vld [vmem:[%s1 + $0x10] sm:$0xff]
  %v387 = vld [vmem:[%s1 + $0x18] sm:$0xff]
  %v388 = vld [vmem:[%s1 + $0x20] sm:$0xff]
  %v389 = vld [vmem:[%s1 + $0x28] sm:$0xff]
  %v390 = vld [vmem:[%s1 + $0x30] sm:$0xff]
  %v391 = vld [vmem:[%s1 + $0x38] sm:$0xff]
  %v392 = vld [vmem:[%s1 + $0x40] sm:$0xff]
  %v393 = vld [vmem:[%s1 + $0x48] sm:$0xff]
  %v394 = vld [vmem:[%s1 + $0x50] sm:$0xff]
  %v395 = vld [vmem:[%s1 + $0x58] sm:$0xff]
  %v396 = vld [vmem:[%s1 + $0x60] sm:$0xff]
  %v397 = vld [vmem:[%s1 + $0x68] sm:$0xff]
  %v398 = vld [vmem:[%s1 + $0x70] sm:$0xff]
  %v399 = vld [vmem:[%s1 + $0x78] sm:$0xff]
  %v416 = vunpack.c.l.b16 %v384
  %v417 = vunpack.c.h.b16 %v384
  %v418 = vunpack.c.l.b16 %v385
  %v419 = vunpack.c.h.b16 %v385
  %v420 = vunpack.c.l.b16 %v386
  %v421 = vunpack.c.h.b16 %v386
  %v422 = vunpack.c.l.b16 %v387
  %v423 = vunpack.c.h.b16 %v387
  %v424 = vunpack.c.l.b16 %v388
  %v425 = vunpack.c.h.b16 %v388
  %v426 = vunpack.c.l.b16 %v389
  %v427 = vunpack.c.h.b16 %v389
  %v428 = vunpack.c.l.b16 %v390
  %v429 = vunpack.c.h.b16 %v390
  %v430 = vunpack.c.l.b16 %v391
  %v431 = vunpack.c.h.b16 %v391
  %v432 = vunpack.c.l.b16 %v392
  %v433 = vunpack.c.h.b16 %v392
  %v434 = vunpack.c.l.b16 %v393
  %v435 = vunpack.c.h.b16 %v393
  %v436 = vunpack.c.l.b16 %v394
  %v437 = vunpack.c.h.b16 %v394
  %v438 = vunpack.c.l.b16 %v395
  %v439 = vunpack.c.h.b16 %v395
  %v440 = vunpack.c.l.b16 %v396
  %v441 = vunpack.c.h.b16 %v396
  %v442 = vunpack.c.l.b16 %v397
  %v443 = vunpack.c.h.b16 %v397
  %v444 = vunpack.c.l.b16 %v398
  %v445 = vunpack.c.h.b16 %v398
  %v446 = vunpack.c.l.b16 %v399
  %v447 = vunpack.c.h.b16 %v399
  %v448 = vpack.c.b16 %v420, %v416
  %v449 = vpack.c.b16 %v421, %v417
  %v450 = vpack.c.b16 %v422, %v418
  %v451 = vpack.c.b16 %v423, %v419
  %v452 = vpack.c.b16 %v428, %v424
  %v453 = vpack.c.b16 %v429, %v425
  %v454 = vpack.c.b16 %v430, %v426
  %v455 = vpack.c.b16 %v431, %v427
  %v456 = vpack.c.b16 %v436, %v432
  %v457 = vpack.c.b16 %v437, %v433
  %v458 = vpack.c.b16 %v438, %v434
  %v459 = vpack.c.b16 %v439, %v435
  %v460 = vpack.c.b16 %v444, %v440
  %v461 = vpack.c.b16 %v445, %v441
  %v462 = vpack.c.b16 %v446, %v442
  %v463 = vpack.c.b16 %v447, %v443
  %vm480 = vcmask 523264
  %v482 = vsel %vm480, %v352, 0
  %v485 = vsel %vm480, %v353, 0
  %v488 = vsel %vm480, %v354, 0
  %v491 = vsel %vm480, %v355, 0
  %v494 = vsel %vm480, %v356, 0
  %v497 = vsel %vm480, %v357, 0
  %v500 = vsel %vm480, %v358, 0
  %v503 = vsel %vm480, %v359, 0
  %v506 = vsel %vm480, %v360, 0
  %v509 = vsel %vm480, %v361, 0
  %v512 = vsel %vm480, %v362, 0
  %v515 = vsel %vm480, %v363, 0
  %v518 = vsel %vm480, %v364, 0
  %v521 = vsel %vm480, %v365, 0
  %v524 = vsel %vm480, %v366, 0
  %v527 = vsel %vm480, %v367, 0
  %v530 = vsel %vm480, %v368, 0
  %v533 = vsel %vm480, %v369, 0
  %v536 = vsel %vm480, %v370, 0
  %v539 = vsel %vm480, %v371, 0
  %v542 = vsel %vm480, %v372, 0
  %v545 = vsel %vm480, %v373, 0
  %v548 = vsel %vm480, %v374, 0
  %v551 = vsel %vm480, %v375, 0
  %v554 = vsel %vm480, %v376, 0
  %v557 = vsel %vm480, %v377, 0
  %v560 = vsel %vm480, %v378, 0
  %v563 = vsel %vm480, %v379, 0
  %v566 = vsel %vm480, %v380, 0
  %v569 = vsel %vm480, %v381, 0
  %v572 = vsel %vm480, %v382, 0
  %v575 = vsel %vm480, %v383, 0
  %577 = vmatprep.subr.bf16.mxu0 %v449
  %578 = vmatpush1.bf16.msra.mxu0 %v448
  %579 = vmatprep.subr.bf16.mxu0 %v453
  %580 = vmatpush1.bf16.msra.mxu0 %v452
  %581 = vmatprep.subr.bf16.mxu0 %v457
  %582 = vmatpush1.bf16.msra.mxu0 %v456
  %583 = vmatprep.subr.bf16.mxu0 %v461
  %584 = vmatpush1.bf16.msra.mxu0 %v460
  %585 = vmatprep.subr.bf16.mxu0 0
  %586 = vmatpush1.bf16.msra.mxu0 0
  %587 = vmatprep.subr.bf16.mxu0 0
  %588 = vmatpush1.bf16.msra.mxu0 0
  %589 = vmatprep.subr.bf16.mxu0 0
  %590 = vmatpush1.bf16.msra.mxu0 0
  %591 = vmatprep.subr.bf16.mxu0 0
  %592 = vmatpush1.bf16.msra.mxu0 0
  %593 = vmatprep.subr.bf16.mxu0 0
  %594 = vmatpush1.bf16.msra.mxu0 0
  %595 = vmatprep.subr.bf16.mxu0 0
  %596 = vmatpush1.bf16.msra.mxu0 0
  %597 = vmatprep.subr.bf16.mxu0 0
  %598 = vmatpush1.bf16.msra.mxu0 0
  %599 = vmatprep.subr.bf16.mxu0 0
  %600 = vmatpush1.bf16.msra.mxu0 0
  %601 = vmatprep.subr.bf16.mxu0 0
  %602 = vmatpush1.bf16.msra.mxu0 0
  %603 = vmatprep.subr.bf16.mxu0 0
  %604 = vmatpush1.bf16.msra.mxu0 0
  %605 = vmatprep.subr.bf16.mxu0 0
  %606 = vmatpush1.bf16.msra.mxu0 0
  %607 = vmatprep.subr.bf16.mxu0 0
  %608 = vmatpush1.bf16.msra.mxu0 0
  %609 = vmatprep.mubr.bf16.mxu0 0
  %610 = vmatmul.mubr.bf16.gmra.mrb[0].mxu0 %v482
  %v611 = vpop.f32.mrb[0].mxu0
  %v612 = vadd.f32 0.0, %v611
  %v613 = vpop.f32.mrb[0].mxu0
  %v614 = vadd.f32 0.0, %v613
  %v615 = vpop.f32.mrb[0].mxu0
  %v616 = vadd.f32 0.0, %v615
  %v617 = vpop.f32.mrb[0].mxu0
  %v618 = vadd.f32 0.0, %v617
  %619 = vmatprep.mubr.bf16.mxu0 0
  %620 = vmatmul.mubr.bf16.gmra.mrb[0].mxu0 %v485
  %v621 = vpop.f32.mrb[0].mxu0
  %v622 = vadd.f32 0.0, %v621
  %v623 = vpop.f32.mrb[0].mxu0
  %v624 = vadd.f32 0.0, %v623
  %v625 = vpop.f32.mrb[0].mxu0
  %v626 = vadd.f32 0.0, %v625
  %v627 = vpop.f32.mrb[0].mxu0
  %v628 = vadd.f32 0.0, %v627
  %629 = vmatprep.mubr.bf16.mxu0 0
  %630 = vmatmul.mubr.bf16.gmra.mrb[0].mxu0 %v488
  %v631 = vpop.f32.mrb[0].mxu0
  %v632 = vadd.f32 0.0, %v631
  %v633 = vpop.f32.mrb[0].mxu0
  %v634 = vadd.f32 0.0, %v633
  %v635 = vpop.f32.mrb[0].mxu0
  %v636 = vadd.f32 0.0, %v635
  %v637 = vpop.f32.mrb[0].mxu0
  %v638 = vadd.f32 0.0, %v637
  %639 = vmatprep.mubr.bf16.mxu0 0
  %640 = vmatmul.mubr.bf16.gmra.mrb[0].mxu0 %v491
  %v641 = vpop.f32.mrb[0].mxu0
  %v642 = vadd.f32 0.0, %v641
  %v643 = vpop.f32.mrb[0].mxu0
  %v644 = vadd.f32 0.0, %v643
  %v645 = vpop.f32.mrb[0].mxu0
  %v646 = vadd.f32 0.0, %v645
  %v647 = vpop.f32.mrb[0].mxu0
  %v648 = vadd.f32 0.0, %v647
  %649 = vmatprep.mubr.bf16.mxu0 0
  %650 = vmatmul.mubr.bf16.gmra.mrb[0].mxu0 %v494
  %v651 = vpop.f32.mrb[0].mxu0
  %v652 = vadd.f32 0.0, %v651
  %v653 = vpop.f32.mrb[0].mxu0
  %v654 = vadd.f32 0.0, %v653
  %v655 = vpop.f32.mrb[0].mxu0
  %v656 = vadd.f32 0.0, %v655
  %v657 = vpop.f32.mrb[0].mxu0
  %v658 = vadd.f32 0.0, %v657
  %659 = vmatprep.mubr.bf16.mxu0 0
  %660 = vmatmul.mubr.bf16.gmra.mrb[0].mxu0 %v497
  %v661 = vpop.f32.mrb[0].mxu0
  %v662 = vadd.f32 0.0, %v661
  %v663 = vpop.f32.mrb[0].mxu0
  %v664 = vadd.f32 0.0, %v663
  %v665 = vpop.f32.mrb[0].mxu0
  %v666 = vadd.f32 0.0, %v665
  %v667 = vpop.f32.mrb[0].mxu0
  %v668 = vadd.f32 0.0, %v667
  %669 = vmatprep.mubr.bf16.mxu0 0
  %670 = vmatmul.mubr.bf16.gmra.mrb[0].mxu0 %v500
  %v671 = vpop.f32.mrb[0].mxu0
  %v672 = vadd.f32 0.0, %v671
  %v673 = vpop.f32.mrb[0].mxu0
  %v674 = vadd.f32 0.0, %v673
  %v675 = vpop.f32.mrb[0].mxu0
  %v676 = vadd.f32 0.0, %v675
  %v677 = vpop.f32.mrb[0].mxu0
  %v678 = vadd.f32 0.0, %v677
  %679 = vmatprep.mubr.bf16.mxu0 0
  %680 = vmatmul.mubr.bf16.gmra.mrb[0].mxu0 %v503
  %v681 = vpop.f32.mrb[0].mxu0
  %v682 = vadd.f32 0.0, %v681
  %v683 = vpop.f32.mrb[0].mxu0
  %v684 = vadd.f32 0.0, %v683
  %v685 = vpop.f32.mrb[0].mxu0
  %v686 = vadd.f32 0.0, %v685
  %v687 = vpop.f32.mrb[0].mxu0
  %v688 = vadd.f32 0.0, %v687
  %689 = vmatprep.mubr.bf16.mxu0 0
  %690 = vmatmul.mubr.bf16.gmra.mrb[0].mxu0 %v506
  %v691 = vpop.f32.mrb[0].mxu0
  %v692 = vadd.f32 0.0, %v691
  %v693 = vpop.f32.mrb[0].mxu0
  %v694 = vadd.f32 0.0, %v693
  %v695 = vpop.f32.mrb[0].mxu0
  %v696 = vadd.f32 0.0, %v695
  %v697 = vpop.f32.mrb[0].mxu0
  %v698 = vadd.f32 0.0, %v697
  %699 = vmatprep.mubr.bf16.mxu0 0
  %700 = vmatmul.mubr.bf16.gmra.mrb[0].mxu0 %v509
  %v701 = vpop.f32.mrb[0].mxu0
  %v702 = vadd.f32 0.0, %v701
  %v703 = vpop.f32.mrb[0].mxu0
  %v704 = vadd.f32 0.0, %v703
  %v705 = vpop.f32.mrb[0].mxu0
  %v706 = vadd.f32 0.0, %v705
  %v707 = vpop.f32.mrb[0].mxu0
  %v708 = vadd.f32 0.0, %v707
  %709 = vmatprep.mubr.bf16.mxu0 0
  %710 = vmatmul.mubr.bf16.gmra.mrb[0].mxu0 %v512
  %v711 = vpop.f32.mrb[0].mxu0
  %v712 = vadd.f32 0.0, %v711
  %v713 = vpop.f32.mrb[0].mxu0
  %v714 = vadd.f32 0.0, %v713
  %v715 = vpop.f32.mrb[0].mxu0
  %v716 = vadd.f32 0.0, %v715
  %v717 = vpop.f32.mrb[0].mxu0
  %v718 = vadd.f32 0.0, %v717
  %719 = vmatprep.mubr.bf16.mxu0 0
  %720 = vmatmul.mubr.bf16.gmra.mrb[0].mxu0 %v515
  %v721 = vpop.f32.mrb[0].mxu0
  %v722 = vadd.f32 0.0, %v721
  %v723 = vpop.f32.mrb[0].mxu0
  %v724 = vadd.f32 0.0, %v723
  %v725 = vpop.f32.mrb[0].mxu0
  %v726 = vadd.f32 0.0, %v725
  %v727 = vpop.f32.mrb[0].mxu0
  %v728 = vadd.f32 0.0, %v727
  %729 = vmatprep.mubr.bf16.mxu0 0
  %730 = vmatmul.mubr.bf16.gmra.mrb[0].mxu0 %v518
  %v731 = vpop.f32.mrb[0].mxu0
  %v732 = vadd.f32 0.0, %v731
  %v733 = vpop.f32.mrb[0].mxu0
  %v734 = vadd.f32 0.0, %v733
  %v735 = vpop.f32.mrb[0].mxu0
  %v736 = vadd.f32 0.0, %v735
  %v737 = vpop.f32.mrb[0].mxu0
  %v738 = vadd.f32 0.0, %v737
  %739 = vmatprep.mubr.bf16.mxu0 0
  %740 = vmatmul.mubr.bf16.gmra.mrb[0].mxu0 %v521
  %v741 = vpop.f32.mrb[0].mxu0
  %v742 = vadd.f32 0.0, %v741
  %v743 = vpop.f32.mrb[0].mxu0
  %v744 = vadd.f32 0.0, %v743
  %v745 = vpop.f32.mrb[0].mxu0
  %v746 = vadd.f32 0.0, %v745
  %v747 = vpop.f32.mrb[0].mxu0
  %v748 = vadd.f32 0.0, %v747
  %749 = vmatprep.mubr.bf16.mxu0 0
  %750 = vmatmul.mubr.bf16.gmra.mrb[0].mxu0 %v524
  %v751 = vpop.f32.mrb[0].mxu0
  %v752 = vadd.f32 0.0, %v751
  %v753 = vpop.f32.mrb[0].mxu0
  %v754 = vadd.f32 0.0, %v753
  %v755 = vpop.f32.mrb[0].mxu0
  %v756 = vadd.f32 0.0, %v755
  %v757 = vpop.f32.mrb[0].mxu0
  %v758 = vadd.f32 0.0, %v757
  %759 = vmatprep.mubr.bf16.mxu0 0
  %760 = vmatmul.mubr.bf16.gmra.mrb[0].mxu0 %v527
  %v761 = vpop.f32.mrb[0].mxu0
  %v762 = vadd.f32 0.0, %v761
  %v763 = vpop.f32.mrb[0].mxu0
  %v764 = vadd.f32 0.0, %v763
  %v765 = vpop.f32.mrb[0].mxu0
  %v766 = vadd.f32 0.0, %v765
  %v767 = vpop.f32.mrb[0].mxu0
  %v768 = vadd.f32 0.0, %v767
  %769 = vmatprep.mubr.bf16.mxu0 0
  %770 = vmatmul.mubr.bf16.gmra.mrb[0].mxu0 %v530
  %v771 = vpop.f32.mrb[0].mxu0
  %v772 = vadd.f32 0.0, %v771
  %v773 = vpop.f32.mrb[0].mxu0
  %v774 = vadd.f32 0.0, %v773
  %v775 = vpop.f32.mrb[0].mxu0
  %v776 = vadd.f32 0.0, %v775
  %v777 = vpop.f32.mrb[0].mxu0
  %v778 = vadd.f32 0.0, %v777
  %779 = vmatprep.mubr.bf16.mxu0 0
  %780 = vmatmul.mubr.bf16.gmra.mrb[0].mxu0 %v533
  %v781 = vpop.f32.mrb[0].mxu0
  %v782 = vadd.f32 0.0, %v781
  %v783 = vpop.f32.mrb[0].mxu0
  %v784 = vadd.f32 0.0, %v783
  %v785 = vpop.f32.mrb[0].mxu0
  %v786 = vadd.f32 0.0, %v785
  %v787 = vpop.f32.mrb[0].mxu0
  %v788 = vadd.f32 0.0, %v787
  %789 = vmatprep.mubr.bf16.mxu0 0
  %790 = vmatmul.mubr.bf16.gmra.mrb[0].mxu0 %v536
  %v791 = vpop.f32.mrb[0].mxu0
  %v792 = vadd.f32 0.0, %v791
  %v793 = vpop.f32.mrb[0].mxu0
  %v794 = vadd.f32 0.0, %v793
  %v795 = vpop.f32.mrb[0].mxu0
  %v796 = vadd.f32 0.0, %v795
  %v797 = vpop.f32.mrb[0].mxu0
  %v798 = vadd.f32 0.0, %v797
  %799 = vmatprep.mubr.bf16.mxu0 0
  %800 = vmatmul.mubr.bf16.gmra.mrb[0].mxu0 %v539
  %v801 = vpop.f32.mrb[0].mxu0
  %v802 = vadd.f32 0.0, %v801
  %v803 = vpop.f32.mrb[0].mxu0
  %v804 = vadd.f32 0.0, %v803
  %v805 = vpop.f32.mrb[0].mxu0
  %v806 = vadd.f32 0.0, %v805
  %v807 = vpop.f32.mrb[0].mxu0
  %v808 = vadd.f32 0.0, %v807
  %809 = vmatprep.mubr.bf16.mxu0 0
  %810 = vmatmul.mubr.bf16.gmra.mrb[0].mxu0 %v542
  %v811 = vpop.f32.mrb[0].mxu0
  %v812 = vadd.f32 0.0, %v811
  %v813 = vpop.f32.mrb[0].mxu0
  %v814 = vadd.f32 0.0, %v813
  %v815 = vpop.f32.mrb[0].mxu0
  %v816 = vadd.f32 0.0, %v815
  %v817 = vpop.f32.mrb[0].mxu0
  %v818 = vadd.f32 0.0, %v817
  %819 = vmatprep.mubr.bf16.mxu0 0
  %820 = vmatmul.mubr.bf16.gmra.mrb[0].mxu0 %v545
  %v821 = vpop.f32.mrb[0].mxu0
  %v822 = vadd.f32 0.0, %v821
  %v823 = vpop.f32.mrb[0].mxu0
  %v824 = vadd.f32 0.0, %v823
  %v825 = vpop.f32.mrb[0].mxu0
  %v826 = vadd.f32 0.0, %v825
  %v827 = vpop.f32.mrb[0].mxu0
  %v828 = vadd.f32 0.0, %v827
  %829 = vmatprep.mubr.bf16.mxu0 0
  %830 = vmatmul.mubr.bf16.gmra.mrb[0].mxu0 %v548
  %v831 = vpop.f32.mrb[0].mxu0
  %v832 = vadd.f32 0.0, %v831
  %v833 = vpop.f32.mrb[0].mxu0
  %v834 = vadd.f32 0.0, %v833
  %v835 = vpop.f32.mrb[0].mxu0
  %v836 = vadd.f32 0.0, %v835
  %v837 = vpop.f32.mrb[0].mxu0
  %v838 = vadd.f32 0.0, %v837
  %839 = vmatprep.mubr.bf16.mxu0 0
  %840 = vmatmul.mubr.bf16.gmra.mrb[0].mxu0 %v551
  %v841 = vpop.f32.mrb[0].mxu0
  %v842 = vadd.f32 0.0, %v841
  %v843 = vpop.f32.mrb[0].mxu0
  %v844 = vadd.f32 0.0, %v843
  %v845 = vpop.f32.mrb[0].mxu0
  %v846 = vadd.f32 0.0, %v845
  %v847 = vpop.f32.mrb[0].mxu0
  %v848 = vadd.f32 0.0, %v847
  %849 = vmatprep.mubr.bf16.mxu0 0
  %850 = vmatmul.mubr.bf16.gmra.mrb[0].mxu0 %v554
  %v851 = vpop.f32.mrb[0].mxu0
  %v852 = vadd.f32 0.0, %v851
  %v853 = vpop.f32.mrb[0].mxu0
  %v854 = vadd.f32 0.0, %v853
  %v855 = vpop.f32.mrb[0].mxu0
  %v856 = vadd.f32 0.0, %v855
  %v857 = vpop.f32.mrb[0].mxu0
  %v858 = vadd.f32 0.0, %v857
  %859 = vmatprep.mubr.bf16.mxu0 0
  %860 = vmatmul.mubr.bf16.gmra.mrb[0].mxu0 %v557
  %v861 = vpop.f32.mrb[0].mxu0
  %v862 = vadd.f32 0.0, %v861
  %v863 = vpop.f32.mrb[0].mxu0
  %v864 = vadd.f32 0.0, %v863
  %v865 = vpop.f32.mrb[0].mxu0
  %v866 = vadd.f32 0.0, %v865
  %v867 = vpop.f32.mrb[0].mxu0
  %v868 = vadd.f32 0.0, %v867
  %869 = vmatprep.mubr.bf16.mxu0 0
  %870 = vmatmul.mubr.bf16.gmra.mrb[0].mxu0 %v560
  %v871 = vpop.f32.mrb[0].mxu0
  %v872 = vadd.f32 0.0, %v871
  %v873 = vpop.f32.mrb[0].mxu0
  %v874 = vadd.f32 0.0, %v873
  %v875 = vpop.f32.mrb[0].mxu0
  %v876 = vadd.f32 0.0, %v875
  %v877 = vpop.f32.mrb[0].mxu0
  %v878 = vadd.f32 0.0, %v877
  %879 = vmatprep.mubr.bf16.mxu0 0
  %880 = vmatmul.mubr.bf16.gmra.mrb[0].mxu0 %v563
  %v881 = vpop.f32.mrb[0].mxu0
  %v882 = vadd.f32 0.0, %v881
  %v883 = vpop.f32.mrb[0].mxu0
  %v884 = vadd.f32 0.0, %v883
  %v885 = vpop.f32.mrb[0].mxu0
  %v886 = vadd.f32 0.0, %v885
  %v887 = vpop.f32.mrb[0].mxu0
  %v888 = vadd.f32 0.0, %v887
  %889 = vmatprep.mubr.bf16.mxu0 0
  %890 = vmatmul.mubr.bf16.gmra.mrb[0].mxu0 %v566
  %v891 = vpop.f32.mrb[0].mxu0
  %v892 = vadd.f32 0.0, %v891
  %v893 = vpop.f32.mrb[0].mxu0
  %v894 = vadd.f32 0.0, %v893
  %v895 = vpop.f32.mrb[0].mxu0
  %v896 = vadd.f32 0.0, %v895
  %v897 = vpop.f32.mrb[0].mxu0
  %v898 = vadd.f32 0.0, %v897
  %899 = vmatprep.mubr.bf16.mxu0 0
  %900 = vmatmul.mubr.bf16.gmra.mrb[0].mxu0 %v569
  %v901 = vpop.f32.mrb[0].mxu0
  %v902 = vadd.f32 0.0, %v901
  %v903 = vpop.f32.mrb[0].mxu0
  %v904 = vadd.f32 0.0, %v903
  %v905 = vpop.f32.mrb[0].mxu0
  %v906 = vadd.f32 0.0, %v905
  %v907 = vpop.f32.mrb[0].mxu0
  %v908 = vadd.f32 0.0, %v907
  %909 = vmatprep.mubr.bf16.mxu0 0
  %910 = vmatmul.mubr.bf16.gmra.mrb[0].mxu0 %v572
  %v911 = vpop.f32.mrb[0].mxu0
  %v912 = vadd.f32 0.0, %v911
  %v913 = vpop.f32.mrb[0].mxu0
  %v914 = vadd.f32 0.0, %v913
  %v915 = vpop.f32.mrb[0].mxu0
  %v916 = vadd.f32 0.0, %v915
  %v917 = vpop.f32.mrb[0].mxu0
  %v918 = vadd.f32 0.0, %v917
  %919 = vmatprep.mubr.bf16.mxu0 0
  %920 = vmatmul.mubr.bf16.gmra.mrb[0].mxu0 %v575
  %v921 = vpop.f32.mrb[0].mxu0
  %v922 = vadd.f32 0.0, %v921
  %v923 = vpop.f32.mrb[0].mxu0
  %v924 = vadd.f32 0.0, %v923
  %v925 = vpop.f32.mrb[0].mxu0
  %v926 = vadd.f32 0.0, %v925
  %v927 = vpop.f32.mrb[0].mxu0
  %v928 = vadd.f32 0.0, %v927
  %929 = vdwg.mxu0
  %930 = vmatprep.subr.bf16.mxu0 %v451
  %931 = vmatpush1.bf16.msra.mxu0 %v450
  %932 = vmatprep.subr.bf16.mxu0 %v455
  %933 = vmatpush1.bf16.msra.mxu0 %v454
  %934 = vmatprep.subr.bf16.mxu0 %v459
  %935 = vmatpush1.bf16.msra.mxu0 %v458
  %936 = vmatprep.subr.bf16.mxu0 %v463
  %937 = vmatpush1.bf16.msra.mxu0 %v462
  %938 = vmatprep.subr.bf16.mxu0 0
  %939 = vmatpush1.bf16.msra.mxu0 0
  %940 = vmatprep.subr.bf16.mxu0 0
  %941 = vmatpush1.bf16.msra.mxu0 0
  %942 = vmatprep.subr.bf16.mxu0 0
  %943 = vmatpush1.bf16.msra.mxu0 0
  %944 = vmatprep.subr.bf16.mxu0 0
  %945 = vmatpush1.bf16.msra.mxu0 0
  %946 = vmatprep.subr.bf16.mxu0 0
  %947 = vmatpush1.bf16.msra.mxu0 0
  %948 = vmatprep.subr.bf16.mxu0 0
  %949 = vmatpush1.bf16.msra.mxu0 0
  %950 = vmatprep.subr.bf16.mxu0 0
  %951 = vmatpush1.bf16.msra.mxu0 0
  %952 = vmatprep.subr.bf16.mxu0 0
  %953 = vmatpush1.bf16.msra.mxu0 0
  %954 = vmatprep.subr.bf16.mxu0 0
  %955 = vmatpush1.bf16.msra.mxu0 0
  %956 = vmatprep.subr.bf16.mxu0 0
  %957 = vmatpush1.bf16.msra.mxu0 0
  %958 = vmatprep.subr.bf16.mxu0 0
  %959 = vmatpush1.bf16.msra.mxu0 0
  %960 = vmatprep.subr.bf16.mxu0 0
  %961 = vmatpush1.bf16.msra.mxu0 0
  %962 = vmatprep.mubr.bf16.mxu0 0
  %963 = vmatmul.mubr.bf16.gmra.mrb[0].mxu0 %v482
  %v964 = vpop.f32.mrb[0].mxu0
  %v965 = vadd.f32 0.0, %v964
  %v966 = vpop.f32.mrb[0].mxu0
  %v967 = vadd.f32 0.0, %v966
  %v968 = vpop.f32.mrb[0].mxu0
  %v969 = vadd.f32 0.0, %v968
  %v970 = vpop.f32.mrb[0].mxu0
  %v971 = vadd.f32 0.0, %v970
  %972 = vmatprep.mubr.bf16.mxu0 0
  %973 = vmatmul.mubr.bf16.gmra.mrb[0].mxu0 %v485
  %v974 = vpop.f32.mrb[0].mxu0
  %v975 = vadd.f32 0.0, %v974
  %v976 = vpop.f32.mrb[0].mxu0
  %v977 = vadd.f32 0.0, %v976
  %v978 = vpop.f32.mrb[0].mxu0
  %v979 = vadd.f32 0.0, %v978
  %v980 = vpop.f32.mrb[0].mxu0
  %v981 = vadd.f32 0.0, %v980
  %982 = vmatprep.mubr.bf16.mxu0 0
  %983 = vmatmul.mubr.bf16.gmra.mrb[0].mxu0 %v488
  %v984 = vpop.f32.mrb[0].mxu0
  %v985 = vadd.f32 0.0, %v984
  %v986 = vpop.f32.mrb[0].mxu0
  %v987 = vadd.f32 0.0, %v986
  %v988 = vpop.f32.mrb[0].mxu0
  %v989 = vadd.f32 0.0, %v988
  %v990 = vpop.f32.mrb[0].mxu0
  %v991 = vadd.f32 0.0, %v990
  %992 = vmatprep.mubr.bf16.mxu0 0
  %993 = vmatmul.mubr.bf16.gmra.mrb[0].mxu0 %v491
  %v994 = vpop.f32.mrb[0].mxu0
  %v995 = vadd.f32 0.0, %v994
  %v996 = vpop.f32.mrb[0].mxu0
  %v997 = vadd.f32 0.0, %v996
  %v998 = vpop.f32.mrb[0].mxu0
  %v999 = vadd.f32 0.0, %v998
  %v1000 = vpop.f32.mrb[0].mxu0
  %v1001 = vadd.f32 0.0, %v1000
  %1002 = vmatprep.mubr.bf16.mxu0 0
  %1003 = vmatmul.mubr.bf16.gmra.mrb[0].mxu0 %v494
  %v1004 = vpop.f32.mrb[0].mxu0
  %v1005 = vadd.f32 0.0, %v1004
  %v1006 = vpop.f32.mrb[0].mxu0
  %v1007 = vadd.f32 0.0, %v1006
  %v1008 = vpop.f32.mrb[0].mxu0
  %v1009 = vadd.f32 0.0, %v1008
  %v1010 = vpop.f32.mrb[0].mxu0
  %v1011 = vadd.f32 0.0, %v1010
  %1012 = vmatprep.mubr.bf16.mxu0 0
  %1013 = vmatmul.mubr.bf16.gmra.mrb[0].mxu0 %v497
  %v1014 = vpop.f32.mrb[0].mxu0
  %v1015 = vadd.f32 0.0, %v1014
  %v1016 = vpop.f32.mrb[0].mxu0
  %v1017 = vadd.f32 0.0, %v1016
  %v1018 = vpop.f32.mrb[0].mxu0
  %v1019 = vadd.f32 0.0, %v1018
  %v1020 = vpop.f32.mrb[0].mxu0
  %v1021 = vadd.f32 0.0, %v1020
  %1022 = vmatprep.mubr.bf16.mxu0 0
  %1023 = vmatmul.mubr.bf16.gmra.mrb[0].mxu0 %v500
  %v1024 = vpop.f32.mrb[0].mxu0
  %v1025 = vadd.f32 0.0, %v1024
  %v1026 = vpop.f32.mrb[0].mxu0
  %v1027 = vadd.f32 0.0, %v1026
  %v1028 = vpop.f32.mrb[0].mxu0
  %v1029 = vadd.f32 0.0, %v1028
  %v1030 = vpop.f32.mrb[0].mxu0
  %v1031 = vadd.f32 0.0, %v1030
  %1032 = vmatprep.mubr.bf16.mxu0 0
  %1033 = vmatmul.mubr.bf16.gmra.mrb[0].mxu0 %v503
  %v1034 = vpop.f32.mrb[0].mxu0
  %v1035 = vadd.f32 0.0, %v1034
  %v1036 = vpop.f32.mrb[0].mxu0
  %v1037 = vadd.f32 0.0, %v1036
  %v1038 = vpop.f32.mrb[0].mxu0
  %v1039 = vadd.f32 0.0, %v1038
  %v1040 = vpop.f32.mrb[0].mxu0
  %v1041 = vadd.f32 0.0, %v1040
  %1042 = vmatprep.mubr.bf16.mxu0 0
  %1043 = vmatmul.mubr.bf16.gmra.mrb[0].mxu0 %v506
  %v1044 = vpop.f32.mrb[0].mxu0
  %v1045 = vadd.f32 0.0, %v1044
  %v1046 = vpop.f32.mrb[0].mxu0
  %v1047 = vadd.f32 0.0, %v1046
  %v1048 = vpop.f32.mrb[0].mxu0
  %v1049 = vadd.f32 0.0, %v1048
  %v1050 = vpop.f32.mrb[0].mxu0
  %v1051 = vadd.f32 0.0, %v1050
  %1052 = vmatprep.mubr.bf16.mxu0 0
  %1053 = vmatmul.mubr.bf16.gmra.mrb[0].mxu0 %v509
  %v1054 = vpop.f32.mrb[0].mxu0
  %v1055 = vadd.f32 0.0, %v1054
  %v1056 = vpop.f32.mrb[0].mxu0
  %v1057 = vadd.f32 0.0, %v1056
  %v1058 = vpop.f32.mrb[0].mxu0
  %v1059 = vadd.f32 0.0, %v1058
  %v1060 = vpop.f32.mrb[0].mxu0
  %v1061 = vadd.f32 0.0, %v1060
  %1062 = vmatprep.mubr.bf16.mxu0 0
  %1063 = vmatmul.mubr.bf16.gmra.mrb[0].mxu0 %v512
  %v1064 = vpop.f32.mrb[0].mxu0
  %v1065 = vadd.f32 0.0, %v1064
  %v1066 = vpop.f32.mrb[0].mxu0
  %v1067 = vadd.f32 0.0, %v1066
  %v1068 = vpop.f32.mrb[0].mxu0
  %v1069 = vadd.f32 0.0, %v1068
  %v1070 = vpop.f32.mrb[0].mxu0
  %v1071 = vadd.f32 0.0, %v1070
  %1072 = vmatprep.mubr.bf16.mxu0 0
  %1073 = vmatmul.mubr.bf16.gmra.mrb[0].mxu0 %v515
  %v1074 = vpop.f32.mrb[0].mxu0
  %v1075 = vadd.f32 0.0, %v1074
  %v1076 = vpop.f32.mrb[0].mxu0
  %v1077 = vadd.f32 0.0, %v1076
  %v1078 = vpop.f32.mrb[0].mxu0
  %v1079 = vadd.f32 0.0, %v1078
  %v1080 = vpop.f32.mrb[0].mxu0
  %v1081 = vadd.f32 0.0, %v1080
  %1082 = vmatprep.mubr.bf16.mxu0 0
  %1083 = vmatmul.mubr.bf16.gmra.mrb[0].mxu0 %v518
  %v1084 = vpop.f32.mrb[0].mxu0
  %v1085 = vadd.f32 0.0, %v1084
  %v1086 = vpop.f32.mrb[0].mxu0
  %v1087 = vadd.f32 0.0, %v1086
  %v1088 = vpop.f32.mrb[0].mxu0
  %v1089 = vadd.f32 0.0, %v1088
  %v1090 = vpop.f32.mrb[0].mxu0
  %v1091 = vadd.f32 0.0, %v1090
  %1092 = vmatprep.mubr.bf16.mxu0 0
  %1093 = vmatmul.mubr.bf16.gmra.mrb[0].mxu0 %v521
  %v1094 = vpop.f32.mrb[0].mxu0
  %v1095 = vadd.f32 0.0, %v1094
  %v1096 = vpop.f32.mrb[0].mxu0
  %v1097 = vadd.f32 0.0, %v1096
  %v1098 = vpop.f32.mrb[0].mxu0
  %v1099 = vadd.f32 0.0, %v1098
  %v1100 = vpop.f32.mrb[0].mxu0
  %v1101 = vadd.f32 0.0, %v1100
  %1102 = vmatprep.mubr.bf16.mxu0 0
  %1103 = vmatmul.mubr.bf16.gmra.mrb[0].mxu0 %v524
  %v1104 = vpop.f32.mrb[0].mxu0
  %v1105 = vadd.f32 0.0, %v1104
  %v1106 = vpop.f32.mrb[0].mxu0
  %v1107 = vadd.f32 0.0, %v1106
  %v1108 = vpop.f32.mrb[0].mxu0
  %v1109 = vadd.f32 0.0, %v1108
  %v1110 = vpop.f32.mrb[0].mxu0
  %v1111 = vadd.f32 0.0, %v1110
  %1112 = vmatprep.mubr.bf16.mxu0 0
  %1113 = vmatmul.mubr.bf16.gmra.mrb[0].mxu0 %v527
  %v1114 = vpop.f32.mrb[0].mxu0
  %v1115 = vadd.f32 0.0, %v1114
  %v1116 = vpop.f32.mrb[0].mxu0
  %v1117 = vadd.f32 0.0, %v1116
  %v1118 = vpop.f32.mrb[0].mxu0
  %v1119 = vadd.f32 0.0, %v1118
  %v1120 = vpop.f32.mrb[0].mxu0
  %v1121 = vadd.f32 0.0, %v1120
  %1122 = vmatprep.mubr.bf16.mxu0 0
  %1123 = vmatmul.mubr.bf16.gmra.mrb[0].mxu0 %v530
  %v1124 = vpop.f32.mrb[0].mxu0
  %v1125 = vadd.f32 0.0, %v1124
  %v1126 = vpop.f32.mrb[0].mxu0
  %v1127 = vadd.f32 0.0, %v1126
  %v1128 = vpop.f32.mrb[0].mxu0
  %v1129 = vadd.f32 0.0, %v1128
  %v1130 = vpop.f32.mrb[0].mxu0
  %v1131 = vadd.f32 0.0, %v1130
  %1132 = vmatprep.mubr.bf16.mxu0 0
  %1133 = vmatmul.mubr.bf16.gmra.mrb[0].mxu0 %v533
  %v1134 = vpop.f32.mrb[0].mxu0
  %v1135 = vadd.f32 0.0, %v1134
  %v1136 = vpop.f32.mrb[0].mxu0
  %v1137 = vadd.f32 0.0, %v1136
  %v1138 = vpop.f32.mrb[0].mxu0
  %v1139 = vadd.f32 0.0, %v1138
  %v1140 = vpop.f32.mrb[0].mxu0
  %v1141 = vadd.f32 0.0, %v1140
  %1142 = vmatprep.mubr.bf16.mxu0 0
  %1143 = vmatmul.mubr.bf16.gmra.mrb[0].mxu0 %v536
  %v1144 = vpop.f32.mrb[0].mxu0
  %v1145 = vadd.f32 0.0, %v1144
  %v1146 = vpop.f32.mrb[0].mxu0
  %v1147 = vadd.f32 0.0, %v1146
  %v1148 = vpop.f32.mrb[0].mxu0
  %v1149 = vadd.f32 0.0, %v1148
  %v1150 = vpop.f32.mrb[0].mxu0
  %v1151 = vadd.f32 0.0, %v1150
  %1152 = vmatprep.mubr.bf16.mxu0 0
  %1153 = vmatmul.mubr.bf16.gmra.mrb[0].mxu0 %v539
  %v1154 = vpop.f32.mrb[0].mxu0
  %v1155 = vadd.f32 0.0, %v1154
  %v1156 = vpop.f32.mrb[0].mxu0
  %v1157 = vadd.f32 0.0, %v1156
  %v1158 = vpop.f32.mrb[0].mxu0
  %v1159 = vadd.f32 0.0, %v1158
  %v1160 = vpop.f32.mrb[0].mxu0
  %v1161 = vadd.f32 0.0, %v1160
  %1162 = vmatprep.mubr.bf16.mxu0 0
  %1163 = vmatmul.mubr.bf16.gmra.mrb[0].mxu0 %v542
  %v1164 = vpop.f32.mrb[0].mxu0
  %v1165 = vadd.f32 0.0, %v1164
  %v1166 = vpop.f32.mrb[0].mxu0
  %v1167 = vadd.f32 0.0, %v1166
  %v1168 = vpop.f32.mrb[0].mxu0
  %v1169 = vadd.f32 0.0, %v1168
  %v1170 = vpop.f32.mrb[0].mxu0
  %v1171 = vadd.f32 0.0, %v1170
  %1172 = vmatprep.mubr.bf16.mxu0 0
  %1173 = vmatmul.mubr.bf16.gmra.mrb[0].mxu0 %v545
  %v1174 = vpop.f32.mrb[0].mxu0
  %v1175 = vadd.f32 0.0, %v1174
  %v1176 = vpop.f32.mrb[0].mxu0
  %v1177 = vadd.f32 0.0, %v1176
  %v1178 = vpop.f32.mrb[0].mxu0
  %v1179 = vadd.f32 0.0, %v1178
  %v1180 = vpop.f32.mrb[0].mxu0
  %v1181 = vadd.f32 0.0, %v1180
  %1182 = vmatprep.mubr.bf16.mxu0 0
  %1183 = vmatmul.mubr.bf16.gmra.mrb[0].mxu0 %v548
  %v1184 = vpop.f32.mrb[0].mxu0
  %v1185 = vadd.f32 0.0, %v1184
  %v1186 = vpop.f32.mrb[0].mxu0
  %v1187 = vadd.f32 0.0, %v1186
  %v1188 = vpop.f32.mrb[0].mxu0
  %v1189 = vadd.f32 0.0, %v1188
  %v1190 = vpop.f32.mrb[0].mxu0
  %v1191 = vadd.f32 0.0, %v1190
  %1192 = vmatprep.mubr.bf16.mxu0 0
  %1193 = vmatmul.mubr.bf16.gmra.mrb[0].mxu0 %v551
  %v1194 = vpop.f32.mrb[0].mxu0
  %v1195 = vadd.f32 0.0, %v1194
  %v1196 = vpop.f32.mrb[0].mxu0
  %v1197 = vadd.f32 0.0, %v1196
  %v1198 = vpop.f32.mrb[0].mxu0
  %v1199 = vadd.f32 0.0, %v1198
  %v1200 = vpop.f32.mrb[0].mxu0
  %v1201 = vadd.f32 0.0, %v1200
  %1202 = vmatprep.mubr.bf16.mxu0 0
  %1203 = vmatmul.mubr.bf16.gmra.mrb[0].mxu0 %v554
  %v1204 = vpop.f32.mrb[0].mxu0
  %v1205 = vadd.f32 0.0, %v1204
  %v1206 = vpop.f32.mrb[0].mxu0
  %v1207 = vadd.f32 0.0, %v1206
  %v1208 = vpop.f32.mrb[0].mxu0
  %v1209 = vadd.f32 0.0, %v1208
  %v1210 = vpop.f32.mrb[0].mxu0
  %v1211 = vadd.f32 0.0, %v1210
  %1212 = vmatprep.mubr.bf16.mxu0 0
  %1213 = vmatmul.mubr.bf16.gmra.mrb[0].mxu0 %v557
  %v1214 = vpop.f32.mrb[0].mxu0
  %v1215 = vadd.f32 0.0, %v1214
  %v1216 = vpop.f32.mrb[0].mxu0
  %v1217 = vadd.f32 0.0, %v1216
  %v1218 = vpop.f32.mrb[0].mxu0
  %v1219 = vadd.f32 0.0, %v1218
  %v1220 = vpop.f32.mrb[0].mxu0
  %v1221 = vadd.f32 0.0, %v1220
  %1222 = vmatprep.mubr.bf16.mxu0 0
  %1223 = vmatmul.mubr.bf16.gmra.mrb[0].mxu0 %v560
  %v1224 = vpop.f32.mrb[0].mxu0
  %v1225 = vadd.f32 0.0, %v1224
  %v1226 = vpop.f32.mrb[0].mxu0
  %v1227 = vadd.f32 0.0, %v1226
  %v1228 = vpop.f32.mrb[0].mxu0
  %v1229 = vadd.f32 0.0, %v1228
  %v1230 = vpop.f32.mrb[0].mxu0
  %v1231 = vadd.f32 0.0, %v1230
  %1232 = vmatprep.mubr.bf16.mxu0 0
  %1233 = vmatmul.mubr.bf16.gmra.mrb[0].mxu0 %v563
  %v1234 = vpop.f32.mrb[0].mxu0
  %v1235 = vadd.f32 0.0, %v1234
  %v1236 = vpop.f32.mrb[0].mxu0
  %v1237 = vadd.f32 0.0, %v1236
  %v1238 = vpop.f32.mrb[0].mxu0
  %v1239 = vadd.f32 0.0, %v1238
  %v1240 = vpop.f32.mrb[0].mxu0
  %v1241 = vadd.f32 0.0, %v1240
  %1242 = vmatprep.mubr.bf16.mxu0 0
  %1243 = vmatmul.mubr.bf16.gmra.mrb[0].mxu0 %v566
  %v1244 = vpop.f32.mrb[0].mxu0
  %v1245 = vadd.f32 0.0, %v1244
  %v1246 = vpop.f32.mrb[0].mxu0
  %v1247 = vadd.f32 0.0, %v1246
  %v1248 = vpop.f32.mrb[0].mxu0
  %v1249 = vadd.f32 0.0, %v1248
  %v1250 = vpop.f32.mrb[0].mxu0
  %v1251 = vadd.f32 0.0, %v1250
  %1252 = vmatprep.mubr.bf16.mxu0 0
  %1253 = vmatmul.mubr.bf16.gmra.mrb[0].mxu0 %v569
  %v1254 = vpop.f32.mrb[0].mxu0
  %v1255 = vadd.f32 0.0, %v1254
  %v1256 = vpop.f32.mrb[0].mxu0
  %v1257 = vadd.f32 0.0, %v1256
  %v1258 = vpop.f32.mrb[0].mxu0
  %v1259 = vadd.f32 0.0, %v1258
  %v1260 = vpop.f32.mrb[0].mxu0
  %v1261 = vadd.f32 0.0, %v1260
  %1262 = vmatprep.mubr.bf16.mxu0 0
  %1263 = vmatmul.mubr.bf16.gmra.mrb[0].mxu0 %v572
  %v1264 = vpop.f32.mrb[0].mxu0
  %v1265 = vadd.f32 0.0, %v1264
  %v1266 = vpop.f32.mrb[0].mxu0
  %v1267 = vadd.f32 0.0, %v1266
  %v1268 = vpop.f32.mrb[0].mxu0
  %v1269 = vadd.f32 0.0, %v1268
  %v1270 = vpop.f32.mrb[0].mxu0
  %v1271 = vadd.f32 0.0, %v1270
  %1272 = vmatprep.mubr.bf16.mxu0 0
  %1273 = vmatmul.mubr.bf16.gmra.mrb[0].mxu0 %v575
  %v1274 = vpop.f32.mrb[0].mxu0
  %v1275 = vadd.f32 0.0, %v1274
  %v1276 = vpop.f32.mrb[0].mxu0
  %v1277 = vadd.f32 0.0, %v1276
  %v1278 = vpop.f32.mrb[0].mxu0
  %v1279 = vadd.f32 0.0, %v1278
  %v1280 = vpop.f32.mrb[0].mxu0
  %v1281 = vadd.f32 0.0, %v1280
  %1282 = vdwg.mxu0
  %v1283 = vpack.c.bf16 %v616, %v612
  %v1284 = vpack.c.bf16 %v618, %v614
  %v1285 = vpack.c.bf16 %v969, %v965
  %v1286 = vpack.c.bf16 %v971, %v967
  %v1287 = vpack.c.bf16 %v626, %v622
  %v1288 = vpack.c.bf16 %v628, %v624
  %v1289 = vpack.c.bf16 %v979, %v975
  %v1290 = vpack.c.bf16 %v981, %v977
  %v1291 = vpack.c.bf16 %v636, %v632
  %v1292 = vpack.c.bf16 %v638, %v634
  %v1293 = vpack.c.bf16 %v989, %v985
  %v1294 = vpack.c.bf16 %v991, %v987
  %v1295 = vpack.c.bf16 %v646, %v642
  %v1296 = vpack.c.bf16 %v648, %v644
  %v1297 = vpack.c.bf16 %v999, %v995
  %v1298 = vpack.c.bf16 %v1001, %v997
  %v1299 = vpack.c.bf16 %v656, %v652
  %v1300 = vpack.c.bf16 %v658, %v654
  %v1301 = vpack.c.bf16 %v1009, %v1005
  %v1302 = vpack.c.bf16 %v1011, %v1007
  %v1303 = vpack.c.bf16 %v666, %v662
  %v1304 = vpack.c.bf16 %v668, %v664
  %v1305 = vpack.c.bf16 %v1019, %v1015
  %v1306 = vpack.c.bf16 %v1021, %v1017
  %v1307 = vpack.c.bf16 %v676, %v672
  %v1308 = vpack.c.bf16 %v678, %v674
  %v1309 = vpack.c.bf16 %v1029, %v1025
  %v1310 = vpack.c.bf16 %v1031, %v1027
  %v1311 = vpack.c.bf16 %v686, %v682
  %v1312 = vpack.c.bf16 %v688, %v684
  %v1313 = vpack.c.bf16 %v1039, %v1035
  %v1314 = vpack.c.bf16 %v1041, %v1037
  %v1315 = vpack.c.bf16 %v696, %v692
  %v1316 = vpack.c.bf16 %v698, %v694
  %v1317 = vpack.c.bf16 %v1049, %v1045
  %v1318 = vpack.c.bf16 %v1051, %v1047
  %v1319 = vpack.c.bf16 %v706, %v702
  %v1320 = vpack.c.bf16 %v708, %v704
  %v1321 = vpack.c.bf16 %v1059, %v1055
  %v1322 = vpack.c.bf16 %v1061, %v1057
  %v1323 = vpack.c.bf16 %v716, %v712
  %v1324 = vpack.c.bf16 %v718, %v714
  %v1325 = vpack.c.bf16 %v1069, %v1065
  %v1326 = vpack.c.bf16 %v1071, %v1067
  %v1327 = vpack.c.bf16 %v726, %v722
  %v1328 = vpack.c.bf16 %v728, %v724
  %v1329 = vpack.c.bf16 %v1079, %v1075
  %v1330 = vpack.c.bf16 %v1081, %v1077
  %v1331 = vpack.c.bf16 %v736, %v732
  %v1332 = vpack.c.bf16 %v738, %v734
  %v1333 = vpack.c.bf16 %v1089, %v1085
  %v1334 = vpack.c.bf16 %v1091, %v1087
  %v1335 = vpack.c.bf16 %v746, %v742
  %v1336 = vpack.c.bf16 %v748, %v744
  %v1337 = vpack.c.bf16 %v1099, %v1095
  %v1338 = vpack.c.bf16 %v1101, %v1097
  %v1339 = vpack.c.bf16 %v756, %v752
  %v1340 = vpack.c.bf16 %v758, %v754
  %v1341 = vpack.c.bf16 %v1109, %v1105
  %v1342 = vpack.c.bf16 %v1111, %v1107
  %v1343 = vpack.c.bf16 %v766, %v762
  %v1344 = vpack.c.bf16 %v768, %v764
  %v1345 = vpack.c.bf16 %v1119, %v1115
  %v1346 = vpack.c.bf16 %v1121, %v1117
  %v1347 = vpack.c.bf16 %v776, %v772
  %v1348 = vpack.c.bf16 %v778, %v774
  %v1349 = vpack.c.bf16 %v1129, %v1125
  %v1350 = vpack.c.bf16 %v1131, %v1127
  %v1351 = vpack.c.bf16 %v786, %v782
  %v1352 = vpack.c.bf16 %v788, %v784
  %v1353 = vpack.c.bf16 %v1139, %v1135
  %v1354 = vpack.c.bf16 %v1141, %v1137
  %v1355 = vpack.c.bf16 %v796, %v792
  %v1356 = vpack.c.bf16 %v798, %v794
  %v1357 = vpack.c.bf16 %v1149, %v1145
  %v1358 = vpack.c.bf16 %v1151, %v1147
  %v1359 = vpack.c.bf16 %v806, %v802
  %v1360 = vpack.c.bf16 %v808, %v804
  %v1361 = vpack.c.bf16 %v1159, %v1155
  %v1362 = vpack.c.bf16 %v1161, %v1157
  %v1363 = vpack.c.bf16 %v816, %v812
  %v1364 = vpack.c.bf16 %v818, %v814
  %v1365 = vpack.c.bf16 %v1169, %v1165
  %v1366 = vpack.c.bf16 %v1171, %v1167
  %v1367 = vpack.c.bf16 %v826, %v822
  %v1368 = vpack.c.bf16 %v828, %v824
  %v1369 = vpack.c.bf16 %v1179, %v1175
  %v1370 = vpack.c.bf16 %v1181, %v1177
  %v1371 = vpack.c.bf16 %v836, %v832
  %v1372 = vpack.c.bf16 %v838, %v834
  %v1373 = vpack.c.bf16 %v1189, %v1185
  %v1374 = vpack.c.bf16 %v1191, %v1187
  %v1375 = vpack.c.bf16 %v846, %v842
  %v1376 = vpack.c.bf16 %v848, %v844
  %v1377 = vpack.c.bf16 %v1199, %v1195
  %v1378 = vpack.c.bf16 %v1201, %v1197
  %v1379 = vpack.c.bf16 %v856, %v852
  %v1380 = vpack.c.bf16 %v858, %v854
  %v1381 = vpack.c.bf16 %v1209, %v1205
  %v1382 = vpack.c.bf16 %v1211, %v1207
  %v1383 = vpack.c.bf16 %v866, %v862
  %v1384 = vpack.c.bf16 %v868, %v864
  %v1385 = vpack.c.bf16 %v1219, %v1215
  %v1386 = vpack.c.bf16 %v1221, %v1217
  %v1387 = vpack.c.bf16 %v876, %v872
  %v1388 = vpack.c.bf16 %v878, %v874
  %v1389 = vpack.c.bf16 %v1229, %v1225
  %v1390 = vpack.c.bf16 %v1231, %v1227
  %v1391 = vpack.c.bf16 %v886, %v882
  %v1392 = vpack.c.bf16 %v888, %v884
  %v1393 = vpack.c.bf16 %v1239, %v1235
  %v1394 = vpack.c.bf16 %v1241, %v1237
  %v1395 = vpack.c.bf16 %v896, %v892
  %v1396 = vpack.c.bf16 %v898, %v894
  %v1397 = vpack.c.bf16 %v1249, %v1245
  %v1398 = vpack.c.bf16 %v1251, %v1247
  %v1399 = vpack.c.bf16 %v906, %v902
  %v1400 = vpack.c.bf16 %v908, %v904
  %v1401 = vpack.c.bf16 %v1259, %v1255
  %v1402 = vpack.c.bf16 %v1261, %v1257
  %v1403 = vpack.c.bf16 %v916, %v912
  %v1404 = vpack.c.bf16 %v918, %v914
  %v1405 = vpack.c.bf16 %v1269, %v1265
  %v1406 = vpack.c.bf16 %v1271, %v1267
  %v1407 = vpack.c.bf16 %v926, %v922
  %v1408 = vpack.c.bf16 %v928, %v924
  %v1409 = vpack.c.bf16 %v1279, %v1275
  %v1410 = vpack.c.bf16 %v1281, %v1277
  %v1539 = vunpack.c.l.b16 %v1283
  %v1540 = vunpack.c.l.b16 %v1284
  %v1541 = vunpack.c.l.b16 %v1285
  %v1542 = vunpack.c.l.b16 %v1286
  %v1543 = vunpack.c.h.b16 %v1283
  %v1544 = vunpack.c.h.b16 %v1284
  %v1545 = vunpack.c.h.b16 %v1285
  %v1546 = vunpack.c.h.b16 %v1286
  %v1547 = vunpack.c.l.b16 %v1287
  %v1548 = vunpack.c.l.b16 %v1288
  %v1549 = vunpack.c.l.b16 %v1289
  %v1550 = vunpack.c.l.b16 %v1290
  %v1551 = vunpack.c.h.b16 %v1287
  %v1552 = vunpack.c.h.b16 %v1288
  %v1553 = vunpack.c.h.b16 %v1289
  %v1554 = vunpack.c.h.b16 %v1290
  %v1555 = vunpack.c.l.b16 %v1291
  %v1556 = vunpack.c.l.b16 %v1292
  %v1557 = vunpack.c.l.b16 %v1293
  %v1558 = vunpack.c.l.b16 %v1294
  %v1559 = vunpack.c.h.b16 %v1291
  %v1560 = vunpack.c.h.b16 %v1292
  %v1561 = vunpack.c.h.b16 %v1293
  %v1562 = vunpack.c.h.b16 %v1294
  %v1563 = vunpack.c.l.b16 %v1295
  %v1564 = vunpack.c.l.b16 %v1296
  %v1565 = vunpack.c.l.b16 %v1297
  %v1566 = vunpack.c.l.b16 %v1298
  %v1567 = vunpack.c.h.b16 %v1295
  %v1568 = vunpack.c.h.b16 %v1296
  %v1569 = vunpack.c.h.b16 %v1297
  %v1570 = vunpack.c.h.b16 %v1298
  %v1571 = vunpack.c.l.b16 %v1299
  %v1572 = vunpack.c.l.b16 %v1300
  %v1573 = vunpack.c.l.b16 %v1301
  %v1574 = vunpack.c.l.b16 %v1302
  %v1575 = vunpack.c.h.b16 %v1299
  %v1576 = vunpack.c.h.b16 %v1300
  %v1577 = vunpack.c.h.b16 %v1301
  %v1578 = vunpack.c.h.b16 %v1302
  %v1579 = vunpack.c.l.b16 %v1303
  %v1580 = vunpack.c.l.b16 %v1304
  %v1581 = vunpack.c.l.b16 %v1305
  %v1582 = vunpack.c.l.b16 %v1306
  %v1583 = vunpack.c.h.b16 %v1303
  %v1584 = vunpack.c.h.b16 %v1304
  %v1585 = vunpack.c.h.b16 %v1305
  %v1586 = vunpack.c.h.b16 %v1306
  %v1587 = vunpack.c.l.b16 %v1307
  %v1588 = vunpack.c.l.b16 %v1308
  %v1589 = vunpack.c.l.b16 %v1309
  %v1590 = vunpack.c.l.b16 %v1310
  %v1591 = vunpack.c.h.b16 %v1307
  %v1592 = vunpack.c.h.b16 %v1308
  %v1593 = vunpack.c.h.b16 %v1309
  %v1594 = vunpack.c.h.b16 %v1310
  %v1595 = vunpack.c.l.b16 %v1311
  %v1596 = vunpack.c.l.b16 %v1312
  %v1597 = vunpack.c.l.b16 %v1313
  %v1598 = vunpack.c.l.b16 %v1314
  %v1599 = vunpack.c.h.b16 %v1311
  %v1600 = vunpack.c.h.b16 %v1312
  %v1601 = vunpack.c.h.b16 %v1313
  %v1602 = vunpack.c.h.b16 %v1314
  %v1603 = vunpack.c.l.b16 %v1315
  %v1604 = vunpack.c.l.b16 %v1316
  %v1605 = vunpack.c.l.b16 %v1317
  %v1606 = vunpack.c.l.b16 %v1318
  %v1607 = vunpack.c.h.b16 %v1315
  %v1608 = vunpack.c.h.b16 %v1316
  %v1609 = vunpack.c.h.b16 %v1317
  %v1610 = vunpack.c.h.b16 %v1318
  %v1611 = vunpack.c.l.b16 %v1319
  %v1612 = vunpack.c.l.b16 %v1320
  %v1613 = vunpack.c.l.b16 %v1321
  %v1614 = vunpack.c.l.b16 %v1322
  %v1615 = vunpack.c.h.b16 %v1319
  %v1616 = vunpack.c.h.b16 %v1320
  %v1617 = vunpack.c.h.b16 %v1321
  %v1618 = vunpack.c.h.b16 %v1322
  %v1619 = vunpack.c.l.b16 %v1323
  %v1620 = vunpack.c.l.b16 %v1324
  %v1621 = vunpack.c.l.b16 %v1325
  %v1622 = vunpack.c.l.b16 %v1326
  %v1623 = vunpack.c.h.b16 %v1323
  %v1624 = vunpack.c.h.b16 %v1324
  %v1625 = vunpack.c.h.b16 %v1325
  %v1626 = vunpack.c.h.b16 %v1326
  %v1627 = vunpack.c.l.b16 %v1327
  %v1628 = vunpack.c.l.b16 %v1328
  %v1629 = vunpack.c.l.b16 %v1329
  %v1630 = vunpack.c.l.b16 %v1330
  %v1631 = vunpack.c.h.b16 %v1327
  %v1632 = vunpack.c.h.b16 %v1328
  %v1633 = vunpack.c.h.b16 %v1329
  %v1634 = vunpack.c.h.b16 %v1330
  %v1635 = vunpack.c.l.b16 %v1331
  %v1636 = vunpack.c.l.b16 %v1332
  %v1637 = vunpack.c.l.b16 %v1333
  %v1638 = vunpack.c.l.b16 %v1334
  %v1639 = vunpack.c.h.b16 %v1331
  %v1640 = vunpack.c.h.b16 %v1332
  %v1641 = vunpack.c.h.b16 %v1333
  %v1642 = vunpack.c.h.b16 %v1334
  %v1643 = vunpack.c.l.b16 %v1335
  %v1644 = vunpack.c.l.b16 %v1336
  %v1645 = vunpack.c.l.b16 %v1337
  %v1646 = vunpack.c.l.b16 %v1338
  %v1647 = vunpack.c.h.b16 %v1335
  %v1648 = vunpack.c.h.b16 %v1336
  %v1649 = vunpack.c.h.b16 %v1337
  %v1650 = vunpack.c.h.b16 %v1338
  %v1651 = vunpack.c.l.b16 %v1339
  %v1652 = vunpack.c.l.b16 %v1340
  %v1653 = vunpack.c.l.b16 %v1341
  %v1654 = vunpack.c.l.b16 %v1342
  %v1655 = vunpack.c.h.b16 %v1339
  %v1656 = vunpack.c.h.b16 %v1340
  %v1657 = vunpack.c.h.b16 %v1341
  %v1658 = vunpack.c.h.b16 %v1342
  %v1659 = vunpack.c.l.b16 %v1343
  %v1660 = vunpack.c.l.b16 %v1344
  %v1661 = vunpack.c.l.b16 %v1345
  %v1662 = vunpack.c.l.b16 %v1346
  %v1663 = vunpack.c.h.b16 %v1343
  %v1664 = vunpack.c.h.b16 %v1344
  %v1665 = vunpack.c.h.b16 %v1345
  %v1666 = vunpack.c.h.b16 %v1346
  %v1667 = vunpack.c.l.b16 %v1347
  %v1668 = vunpack.c.l.b16 %v1348
  %v1669 = vunpack.c.l.b16 %v1349
  %v1670 = vunpack.c.l.b16 %v1350
  %v1671 = vunpack.c.h.b16 %v1347
  %v1672 = vunpack.c.h.b16 %v1348
  %v1673 = vunpack.c.h.b16 %v1349
  %v1674 = vunpack.c.h.b16 %v1350
  %v1675 = vunpack.c.l.b16 %v1351
  %v1676 = vunpack.c.l.b16 %v1352
  %v1677 = vunpack.c.l.b16 %v1353
  %v1678 = vunpack.c.l.b16 %v1354
  %v1679 = vunpack.c.h.b16 %v1351
  %v1680 = vunpack.c.h.b16 %v1352
  %v1681 = vunpack.c.h.b16 %v1353
  %v1682 = vunpack.c.h.b16 %v1354
  %v1683 = vunpack.c.l.b16 %v1355
  %v1684 = vunpack.c.l.b16 %v1356
  %v1685 = vunpack.c.l.b16 %v1357
  %v1686 = vunpack.c.l.b16 %v1358
  %v1687 = vunpack.c.h.b16 %v1355
  %v1688 = vunpack.c.h.b16 %v1356
  %v1689 = vunpack.c.h.b16 %v1357
  %v1690 = vunpack.c.h.b16 %v1358
  %v1691 = vunpack.c.l.b16 %v1359
  %v1692 = vunpack.c.l.b16 %v1360
  %v1693 = vunpack.c.l.b16 %v1361
  %v1694 = vunpack.c.l.b16 %v1362
  %v1695 = vunpack.c.h.b16 %v1359
  %v1696 = vunpack.c.h.b16 %v1360
  %v1697 = vunpack.c.h.b16 %v1361
  %v1698 = vunpack.c.h.b16 %v1362
  %v1699 = vunpack.c.l.b16 %v1363
  %v1700 = vunpack.c.l.b16 %v1364
  %v1701 = vunpack.c.l.b16 %v1365
  %v1702 = vunpack.c.l.b16 %v1366
  %v1703 = vunpack.c.h.b16 %v1363
  %v1704 = vunpack.c.h.b16 %v1364
  %v1705 = vunpack.c.h.b16 %v1365
  %v1706 = vunpack.c.h.b16 %v1366
  %v1707 = vunpack.c.l.b16 %v1367
  %v1708 = vunpack.c.l.b16 %v1368
  %v1709 = vunpack.c.l.b16 %v1369
  %v1710 = vunpack.c.l.b16 %v1370
  %v1711 = vunpack.c.h.b16 %v1367
  %v1712 = vunpack.c.h.b16 %v1368
  %v1713 = vunpack.c.h.b16 %v1369
  %v1714 = vunpack.c.h.b16 %v1370
  %v1715 = vunpack.c.l.b16 %v1371
  %v1716 = vunpack.c.l.b16 %v1372
  %v1717 = vunpack.c.l.b16 %v1373
  %v1718 = vunpack.c.l.b16 %v1374
  %v1719 = vunpack.c.h.b16 %v1371
  %v1720 = vunpack.c.h.b16 %v1372
  %v1721 = vunpack.c.h.b16 %v1373
  %v1722 = vunpack.c.h.b16 %v1374
  %v1723 = vunpack.c.l.b16 %v1375
  %v1724 = vunpack.c.l.b16 %v1376
  %v1725 = vunpack.c.l.b16 %v1377
  %v1726 = vunpack.c.l.b16 %v1378
  %v1727 = vunpack.c.h.b16 %v1375
  %v1728 = vunpack.c.h.b16 %v1376
  %v1729 = vunpack.c.h.b16 %v1377
  %v1730 = vunpack.c.h.b16 %v1378
  %v1731 = vunpack.c.l.b16 %v1379
  %v1732 = vunpack.c.l.b16 %v1380
  %v1733 = vunpack.c.l.b16 %v1381
  %v1734 = vunpack.c.l.b16 %v1382
  %v1735 = vunpack.c.h.b16 %v1379
  %v1736 = vunpack.c.h.b16 %v1380
  %v1737 = vunpack.c.h.b16 %v1381
  %v1738 = vunpack.c.h.b16 %v1382
  %v1739 = vunpack.c.l.b16 %v1383
  %v1740 = vunpack.c.l.b16 %v1384
  %v1741 = vunpack.c.l.b16 %v1385
  %v1742 = vunpack.c.l.b16 %v1386
  %v1743 = vunpack.c.h.b16 %v1383
  %v1744 = vunpack.c.h.b16 %v1384
  %v1745 = vunpack.c.h.b16 %v1385
  %v1746 = vunpack.c.h.b16 %v1386
  %v1747 = vunpack.c.l.b16 %v1387
  %v1748 = vunpack.c.l.b16 %v1388
  %v1749 = vunpack.c.l.b16 %v1389
  %v1750 = vunpack.c.l.b16 %v1390
  %v1751 = vunpack.c.h.b16 %v1387
  %v1752 = vunpack.c.h.b16 %v1388
  %v1753 = vunpack.c.h.b16 %v1389
  %v1754 = vunpack.c.h.b16 %v1390
  %v1755 = vunpack.c.l.b16 %v1391
  %v1756 = vunpack.c.l.b16 %v1392
  %v1757 = vunpack.c.l.b16 %v1393
  %v1758 = vunpack.c.l.b16 %v1394
  %v1759 = vunpack.c.h.b16 %v1391
  %v1760 = vunpack.c.h.b16 %v1392
  %v1761 = vunpack.c.h.b16 %v1393
  %v1762 = vunpack.c.h.b16 %v1394
  %v1763 = vunpack.c.l.b16 %v1395
  %v1764 = vunpack.c.l.b16 %v1396
  %v1765 = vunpack.c.l.b16 %v1397
  %v1766 = vunpack.c.l.b16 %v1398
  %v1767 = vunpack.c.h.b16 %v1395
  %v1768 = vunpack.c.h.b16 %v1396
  %v1769 = vunpack.c.h.b16 %v1397
  %v1770 = vunpack.c.h.b16 %v1398
  %v1771 = vunpack.c.l.b16 %v1399
  %v1772 = vunpack.c.l.b16 %v1400
  %v1773 = vunpack.c.l.b16 %v1401
  %v1774 = vunpack.c.l.b16 %v1402
  %v1775 = vunpack.c.h.b16 %v1399
  %v1776 = vunpack.c.h.b16 %v1400
  %v1777 = vunpack.c.h.b16 %v1401
  %v1778 = vunpack.c.h.b16 %v1402
  %v1779 = vunpack.c.l.b16 %v1403
  %v1780 = vunpack.c.l.b16 %v1404
  %v1781 = vunpack.c.l.b16 %v1405
  %v1782 = vunpack.c.l.b16 %v1406
  %v1783 = vunpack.c.h.b16 %v1403
  %v1784 = vunpack.c.h.b16 %v1404
  %v1785 = vunpack.c.h.b16 %v1405
  %v1786 = vunpack.c.h.b16 %v1406
  %v1787 = vunpack.c.l.b16 %v1407
  %v1788 = vunpack.c.l.b16 %v1408
  %v1789 = vunpack.c.l.b16 %v1409
  %v1790 = vunpack.c.l.b16 %v1410
  %v1791 = vunpack.c.h.b16 %v1407
  %v1792 = vunpack.c.h.b16 %v1408
  %v1793 = vunpack.c.h.b16 %v1409
  %v1794 = vunpack.c.h.b16 %v1410
  %v1795 = vpack.c.b16 %v1540, %v1539
  %v1796 = vpack.c.b16 %v1542, %v1541
  %v1797 = vpack.c.b16 %v1544, %v1543
  %v1798 = vpack.c.b16 %v1546, %v1545
  %v1799 = vpack.c.b16 %v1548, %v1547
  %v1800 = vpack.c.b16 %v1550, %v1549
  %v1801 = vpack.c.b16 %v1552, %v1551
  %v1802 = vpack.c.b16 %v1554, %v1553
  %v1803 = vpack.c.b16 %v1556, %v1555
  %v1804 = vpack.c.b16 %v1558, %v1557
  %v1805 = vpack.c.b16 %v1560, %v1559
  %v1806 = vpack.c.b16 %v1562, %v1561
  %v1807 = vpack.c.b16 %v1564, %v1563
  %v1808 = vpack.c.b16 %v1566, %v1565
  %v1809 = vpack.c.b16 %v1568, %v1567
  %v1810 = vpack.c.b16 %v1570, %v1569
  %v1811 = vpack.c.b16 %v1572, %v1571
  %v1812 = vpack.c.b16 %v1574, %v1573
  %v1813 = vpack.c.b16 %v1576, %v1575
  %v1814 = vpack.c.b16 %v1578, %v1577
  %v1815 = vpack.c.b16 %v1580, %v1579
  %v1816 = vpack.c.b16 %v1582, %v1581
  %v1817 = vpack.c.b16 %v1584, %v1583
  %v1818 = vpack.c.b16 %v1586, %v1585
  %v1819 = vpack.c.b16 %v1588, %v1587
  %v1820 = vpack.c.b16 %v1590, %v1589
  %v1821 = vpack.c.b16 %v1592, %v1591
  %v1822 = vpack.c.b16 %v1594, %v1593
  %v1823 = vpack.c.b16 %v1596, %v1595
  %v1824 = vpack.c.b16 %v1598, %v1597
  %v1825 = vpack.c.b16 %v1600, %v1599
  %v1826 = vpack.c.b16 %v1602, %v1601
  %v1827 = vpack.c.b16 %v1604, %v1603
  %v1828 = vpack.c.b16 %v1606, %v1605
  %v1829 = vpack.c.b16 %v1608, %v1607
  %v1830 = vpack.c.b16 %v1610, %v1609
  %v1831 = vpack.c.b16 %v1612, %v1611
  %v1832 = vpack.c.b16 %v1614, %v1613
  %v1833 = vpack.c.b16 %v1616, %v1615
  %v1834 = vpack.c.b16 %v1618, %v1617
  %v1835 = vpack.c.b16 %v1620, %v1619
  %v1836 = vpack.c.b16 %v1622, %v1621
  %v1837 = vpack.c.b16 %v1624, %v1623
  %v1838 = vpack.c.b16 %v1626, %v1625
  %v1839 = vpack.c.b16 %v1628, %v1627
  %v1840 = vpack.c.b16 %v1630, %v1629
  %v1841 = vpack.c.b16 %v1632, %v1631
  %v1842 = vpack.c.b16 %v1634, %v1633
  %v1843 = vpack.c.b16 %v1636, %v1635
  %v1844 = vpack.c.b16 %v1638, %v1637
  %v1845 = vpack.c.b16 %v1640, %v1639
  %v1846 = vpack.c.b16 %v1642, %v1641
  %v1847 = vpack.c.b16 %v1644, %v1643
  %v1848 = vpack.c.b16 %v1646, %v1645
  %v1849 = vpack.c.b16 %v1648, %v1647
  %v1850 = vpack.c.b16 %v1650, %v1649
  %v1851 = vpack.c.b16 %v1652, %v1651
  %v1852 = vpack.c.b16 %v1654, %v1653
  %v1853 = vpack.c.b16 %v1656, %v1655
  %v1854 = vpack.c.b16 %v1658, %v1657
  %v1855 = vpack.c.b16 %v1660, %v1659
  %v1856 = vpack.c.b16 %v1662, %v1661
  %v1857 = vpack.c.b16 %v1664, %v1663
  %v1858 = vpack.c.b16 %v1666, %v1665
  %v1859 = vpack.c.b16 %v1668, %v1667
  %v1860 = vpack.c.b16 %v1670, %v1669
  %v1861 = vpack.c.b16 %v1672, %v1671
  %v1862 = vpack.c.b16 %v1674, %v1673
  %v1863 = vpack.c.b16 %v1676, %v1675
  %v1864 = vpack.c.b16 %v1678, %v1677
  %v1865 = vpack.c.b16 %v1680, %v1679
  %v1866 = vpack.c.b16 %v1682, %v1681
  %v1867 = vpack.c.b16 %v1684, %v1683
  %v1868 = vpack.c.b16 %v1686, %v1685
  %v1869 = vpack.c.b16 %v1688, %v1687
  %v1870 = vpack.c.b16 %v1690, %v1689
  %v1871 = vpack.c.b16 %v1692, %v1691
  %v1872 = vpack.c.b16 %v1694, %v1693
  %v1873 = vpack.c.b16 %v1696, %v1695
  %v1874 = vpack.c.b16 %v1698, %v1697
  %v1875 = vpack.c.b16 %v1700, %v1699
  %v1876 = vpack.c.b16 %v1702, %v1701
  %v1877 = vpack.c.b16 %v1704, %v1703
  %v1878 = vpack.c.b16 %v1706, %v1705
  %v1879 = vpack.c.b16 %v1708, %v1707
  %v1880 = vpack.c.b16 %v1710, %v1709
  %v1881 = vpack.c.b16 %v1712, %v1711
  %v1882 = vpack.c.b16 %v1714, %v1713
  %v1883 = vpack.c.b16 %v1716, %v1715
  %v1884 = vpack.c.b16 %v1718, %v1717
  %v1885 = vpack.c.b16 %v1720, %v1719
  %v1886 = vpack.c.b16 %v1722, %v1721
  %v1887 = vpack.c.b16 %v1724, %v1723
  %v1888 = vpack.c.b16 %v1726, %v1725
  %v1889 = vpack.c.b16 %v1728, %v1727
  %v1890 = vpack.c.b16 %v1730, %v1729
  %v1891 = vpack.c.b16 %v1732, %v1731
  %v1892 = vpack.c.b16 %v1734, %v1733
  %v1893 = vpack.c.b16 %v1736, %v1735
  %v1894 = vpack.c.b16 %v1738, %v1737
  %v1895 = vpack.c.b16 %v1740, %v1739
  %v1896 = vpack.c.b16 %v1742, %v1741
  %v1897 = vpack.c.b16 %v1744, %v1743
  %v1898 = vpack.c.b16 %v1746, %v1745
  %v1899 = vpack.c.b16 %v1748, %v1747
  %v1900 = vpack.c.b16 %v1750, %v1749
  %v1901 = vpack.c.b16 %v1752, %v1751
  %v1902 = vpack.c.b16 %v1754, %v1753
  %v1903 = vpack.c.b16 %v1756, %v1755
  %v1904 = vpack.c.b16 %v1758, %v1757
  %v1905 = vpack.c.b16 %v1760, %v1759
  %v1906 = vpack.c.b16 %v1762, %v1761
  %v1907 = vpack.c.b16 %v1764, %v1763
  %v1908 = vpack.c.b16 %v1766, %v1765
  %v1909 = vpack.c.b16 %v1768, %v1767
  %v1910 = vpack.c.b16 %v1770, %v1769
  %v1911 = vpack.c.b16 %v1772, %v1771
  %v1912 = vpack.c.b16 %v1774, %v1773
  %v1913 = vpack.c.b16 %v1776, %v1775
  %v1914 = vpack.c.b16 %v1778, %v1777
  %v1915 = vpack.c.b16 %v1780, %v1779
  %v1916 = vpack.c.b16 %v1782, %v1781
  %v1917 = vpack.c.b16 %v1784, %v1783
  %v1918 = vpack.c.b16 %v1786, %v1785
  %v1919 = vpack.c.b16 %v1788, %v1787
  %v1920 = vpack.c.b16 %v1790, %v1789
  %v1921 = vpack.c.b16 %v1792, %v1791
  %v1922 = vpack.c.b16 %v1794, %v1793
  %2051 = vst [vmem:[%s4] sm:$0xff] %v1795
  %2052 = vst [vmem:[%s4 + $0x8] sm:$0xff] %v1796
  %2053 = vst [vmem:[%s4 + $0x10] sm:$0xff] %v1797
  %2054 = vst [vmem:[%s4 + $0x18] sm:$0xff] %v1798
  %2055 = vst [vmem:[%s4 + $0x20] sm:$0xff] %v1799
  %2056 = vst [vmem:[%s4 + $0x28] sm:$0xff] %v1800
  %2057 = vst [vmem:[%s4 + $0x30] sm:$0xff] %v1801
  %2058 = vst [vmem:[%s4 + $0x38] sm:$0xff] %v1802
  %2059 = vst [vmem:[%s4 + $0x40] sm:$0xff] %v1803
  %2060 = vst [vmem:[%s4 + $0x48] sm:$0xff] %v1804
  %2061 = vst [vmem:[%s4 + $0x50] sm:$0xff] %v1805
  %2062 = vst [vmem:[%s4 + $0x58] sm:$0xff] %v1806
  %2063 = vst [vmem:[%s4 + $0x60] sm:$0xff] %v1807
  %2064 = vst [vmem:[%s4 + $0x68] sm:$0xff] %v1808
  %2065 = vst [vmem:[%s4 + $0x70] sm:$0xff] %v1809
  %2066 = vst [vmem:[%s4 + $0x78] sm:$0xff] %v1810
  %2067 = vst [vmem:[%s4 + $0x80] sm:$0xff] %v1811
  %2068 = vst [vmem:[%s4 + $0x88] sm:$0xff] %v1812
  %2069 = vst [vmem:[%s4 + $0x90] sm:$0xff] %v1813
  %2070 = vst [vmem:[%s4 + $0x98] sm:$0xff] %v1814
  %2071 = vst [vmem:[%s4 + $0xa0] sm:$0xff] %v1815
  %2072 = vst [vmem:[%s4 + $0xa8] sm:$0xff] %v1816
  %2073 = vst [vmem:[%s4 + $0xb0] sm:$0xff] %v1817
  %2074 = vst [vmem:[%s4 + $0xb8] sm:$0xff] %v1818
  %2075 = vst [vmem:[%s4 + $0xc0] sm:$0xff] %v1819
  %2076 = vst [vmem:[%s4 + $0xc8] sm:$0xff] %v1820
  %2077 = vst [vmem:[%s4 + $0xd0] sm:$0xff] %v1821
  %2078 = vst [vmem:[%s4 + $0xd8] sm:$0xff] %v1822
  %2079 = vst [vmem:[%s4 + $0xe0] sm:$0xff] %v1823
  %2080 = vst [vmem:[%s4 + $0xe8] sm:$0xff] %v1824
  %2081 = vst [vmem:[%s4 + $0xf0] sm:$0xff] %v1825
  %2082 = vst [vmem:[%s4 + $0xf8] sm:$0xff] %v1826
  %2083 = vst [vmem:[%s4 + $0x100] sm:$0xff] %v1827
  %2084 = vst [vmem:[%s4 + $0x108] sm:$0xff] %v1828
  %2085 = vst [vmem:[%s4 + $0x110] sm:$0xff] %v1829
  %2086 = vst [vmem:[%s4 + $0x118] sm:$0xff] %v1830
  %2087 = vst [vmem:[%s4 + $0x120] sm:$0xff] %v1831
  %2088 = vst [vmem:[%s4 + $0x128] sm:$0xff] %v1832
  %2089 = vst [vmem:[%s4 + $0x130] sm:$0xff] %v1833
  %2090 = vst [vmem:[%s4 + $0x138] sm:$0xff] %v1834
  %2091 = vst [vmem:[%s4 + $0x140] sm:$0xff] %v1835
  %2092 = vst [vmem:[%s4 + $0x148] sm:$0xff] %v1836
  %2093 = vst [vmem:[%s4 + $0x150] sm:$0xff] %v1837
  %2094 = vst [vmem:[%s4 + $0x158] sm:$0xff] %v1838
  %2095 = vst [vmem:[%s4 + $0x160] sm:$0xff] %v1839
  %2096 = vst [vmem:[%s4 + $0x168] sm:$0xff] %v1840
  %2097 = vst [vmem:[%s4 + $0x170] sm:$0xff] %v1841
  %2098 = vst [vmem:[%s4 + $0x178] sm:$0xff] %v1842
  %2099 = vst [vmem:[%s4 + $0x180] sm:$0xff] %v1843
  %2100 = vst [vmem:[%s4 + $0x188] sm:$0xff] %v1844
  %2101 = vst [vmem:[%s4 + $0x190] sm:$0xff] %v1845
  %2102 = vst [vmem:[%s4 + $0x198] sm:$0xff] %v1846
  %2103 = vst [vmem:[%s4 + $0x1a0] sm:$0xff] %v1847
  %2104 = vst [vmem:[%s4 + $0x1a8] sm:$0xff] %v1848
  %2105 = vst [vmem:[%s4 + $0x1b0] sm:$0xff] %v1849
  %2106 = vst [vmem:[%s4 + $0x1b8] sm:$0xff] %v1850
  %2107 = vst [vmem:[%s4 + $0x1c0] sm:$0xff] %v1851
  %2108 = vst [vmem:[%s4 + $0x1c8] sm:$0xff] %v1852
  %2109 = vst [vmem:[%s4 + $0x1d0] sm:$0xff] %v1853
  %2110 = vst [vmem:[%s4 + $0x1d8] sm:$0xff] %v1854
  %2111 = vst [vmem:[%s4 + $0x1e0] sm:$0xff] %v1855
  %2112 = vst [vmem:[%s4 + $0x1e8] sm:$0xff] %v1856
  %2113 = vst [vmem:[%s4 + $0x1f0] sm:$0xff] %v1857
  %2114 = vst [vmem:[%s4 + $0x1f8] sm:$0xff] %v1858
  %2115 = vst [vmem:[%s4 + $0x200] sm:$0xff] %v1859
  %2116 = vst [vmem:[%s4 + $0x208] sm:$0xff] %v1860
  %2117 = vst [vmem:[%s4 + $0x210] sm:$0xff] %v1861
  %2118 = vst [vmem:[%s4 + $0x218] sm:$0xff] %v1862
  %2119 = vst [vmem:[%s4 + $0x220] sm:$0xff] %v1863
  %2120 = vst [vmem:[%s4 + $0x228] sm:$0xff] %v1864
  %2121 = vst [vmem:[%s4 + $0x230] sm:$0xff] %v1865
  %2122 = vst [vmem:[%s4 + $0x238] sm:$0xff] %v1866
  %2123 = vst [vmem:[%s4 + $0x240] sm:$0xff] %v1867
  %2124 = vst [vmem:[%s4 + $0x248] sm:$0xff] %v1868
  %2125 = vst [vmem:[%s4 + $0x250] sm:$0xff] %v1869
  %2126 = vst [vmem:[%s4 + $0x258] sm:$0xff] %v1870
  %2127 = vst [vmem:[%s4 + $0x260] sm:$0xff] %v1871
  %2128 = vst [vmem:[%s4 + $0x268] sm:$0xff] %v1872
  %2129 = vst [vmem:[%s4 + $0x270] sm:$0xff] %v1873
  %2130 = vst [vmem:[%s4 + $0x278] sm:$0xff] %v1874
  %2131 = vst [vmem:[%s4 + $0x280] sm:$0xff] %v1875
  %2132 = vst [vmem:[%s4 + $0x288] sm:$0xff] %v1876
  %2133 = vst [vmem:[%s4 + $0x290] sm:$0xff] %v1877
  %2134 = vst [vmem:[%s4 + $0x298] sm:$0xff] %v1878
  %2135 = vst [vmem:[%s4 + $0x2a0] sm:$0xff] %v1879
  %2136 = vst [vmem:[%s4 + $0x2a8] sm:$0xff] %v1880
  %2137 = vst [vmem:[%s4 + $0x2b0] sm:$0xff] %v1881
  %2138 = vst [vmem:[%s4 + $0x2b8] sm:$0xff] %v1882
  %2139 = vst [vmem:[%s4 + $0x2c0] sm:$0xff] %v1883
  %2140 = vst [vmem:[%s4 + $0x2c8] sm:$0xff] %v1884
  %2141 = vst [vmem:[%s4 + $0x2d0] sm:$0xff] %v1885
  %2142 = vst [vmem:[%s4 + $0x2d8] sm:$0xff] %v1886
  %2143 = vst [vmem:[%s4 + $0x2e0] sm:$0xff] %v1887
  %2144 = vst [vmem:[%s4 + $0x2e8] sm:$0xff] %v1888
  %2145 = vst [vmem:[%s4 + $0x2f0] sm:$0xff] %v1889
  %2146 = vst [vmem:[%s4 + $0x2f8] sm:$0xff] %v1890
  %2147 = vst [vmem:[%s4 + $0x300] sm:$0xff] %v1891
  %2148 = vst [vmem:[%s4 + $0x308] sm:$0xff] %v1892
  %2149 = vst [vmem:[%s4 + $0x310] sm:$0xff] %v1893
  %2150 = vst [vmem:[%s4 + $0x318] sm:$0xff] %v1894
  %2151 = vst [vmem:[%s4 + $0x320] sm:$0xff] %v1895
  %2152 = vst [vmem:[%s4 + $0x328] sm:$0xff] %v1896
  %2153 = vst [vmem:[%s4 + $0x330] sm:$0xff] %v1897
  %2154 = vst [vmem:[%s4 + $0x338] sm:$0xff] %v1898
  %2155 = vst [vmem:[%s4 + $0x340] sm:$0xff] %v1899
  %2156 = vst [vmem:[%s4 + $0x348] sm:$0xff] %v1900
  %2157 = vst [vmem:[%s4 + $0x350] sm:$0xff] %v1901
  %2158 = vst [vmem:[%s4 + $0x358] sm:$0xff] %v1902
  %2159 = vst [vmem:[%s4 + $0x360] sm:$0xff] %v1903
  %2160 = vst [vmem:[%s4 + $0x368] sm:$0xff] %v1904
  %2161 = vst [vmem:[%s4 + $0x370] sm:$0xff] %v1905
  %2162 = vst [vmem:[%s4 + $0x378] sm:$0xff] %v1906
  %2163 = vst [vmem:[%s4 + $0x380] sm:$0xff] %v1907
  %2164 = vst [vmem:[%s4 + $0x388] sm:$0xff] %v1908
  %2165 = vst [vmem:[%s4 + $0x390] sm:$0xff] %v1909
  %2166 = vst [vmem:[%s4 + $0x398] sm:$0xff] %v1910
  %2167 = vst [vmem:[%s4 + $0x3a0] sm:$0xff] %v1911
  %2168 = vst [vmem:[%s4 + $0x3a8] sm:$0xff] %v1912
  %2169 = vst [vmem:[%s4 + $0x3b0] sm:$0xff] %v1913
  %2170 = vst [vmem:[%s4 + $0x3b8] sm:$0xff] %v1914
  %2171 = vst [vmem:[%s4 + $0x3c0] sm:$0xff] %v1915
  %2172 = vst [vmem:[%s4 + $0x3c8] sm:$0xff] %v1916
  %2173 = vst [vmem:[%s4 + $0x3d0] sm:$0xff] %v1917
  %2174 = vst [vmem:[%s4 + $0x3d8] sm:$0xff] %v1918
  %2175 = vst [vmem:[%s4 + $0x3e0] sm:$0xff] %v1919
  %2176 = vst [vmem:[%s4 + $0x3e8] sm:$0xff] %v1920
  %2177 = vst [vmem:[%s4 + $0x3f0] sm:$0xff] %v1921
  %2178 = vst [vmem:[%s4 + $0x3f8] sm:$0xff] %v1922
  // Predicated region
  $region18: #{decoder_a_forward.14} parent=0 // pred_check
    _
  $region19: #{decoder_a_forward.14} parent=0 // pred_check_branch
    %2180 = sbr.rel (0) target = $region21
  $region20: #{decoder_a_forward.14} parent=0 // pred_region
    _
  $region21: #{decoder_a_forward.14} parent=0 // pred_fallthru
    _
  // Predicated region
  $region22: #{decoder_a_forward.14} parent=0 // pred_check
    _
  $region23: #{decoder_a_forward.14} parent=0 // pred_check_branch
    %2182 = sbr.rel (0) target = $region25
  $region24: #{decoder_a_forward.14} parent=0 // pred_region
    _
  $region25: #{decoder_a_forward.14} parent=0 // pred_fallthru
    _

// kernel: decoder_a_forward.15
$region0: #{decoder_a_forward.15}
  #allocation0 [shape = 'u32[]', space=smem, size = 0x4, offset = 0x4, fixed_abs, tag = 'smem constant byte address 0x4 - core index']
  #allocation1 [shape = 'u32[144,128]{1,0:T(1,128)}', space=vmem, size = 0x12000, scoped, tag = 'internal scratch']
  %s0 = inlined_call_operand.vmem [shape: bf16[64,1024], index: 0, kind: input, shape index: {}]
  %s1 = inlined_call_operand.vmem [shape: f32[1,1024], index: 1, kind: output, shape index: {0}]
  %s2 = inlined_call_operand.vmem [shape: f32[1,1024], index: 2, kind: output, shape index: {1}]
  %3 = xla_tuple %s1, %s2
  %s4 = sld [smem:[#allocation0]]
  $region26: #{decoder_a_forward.15} parent=0
    _
  %s6 = ssub.s32 1, %s4
  %s7 = scalar_select 0, %s6, %s4
  // Predicated region
  $region2: #{decoder_a_forward.15} parent=0 // pred_check
    _
  $region3: #{decoder_a_forward.15} parent=0 // pred_check_branch
    %9 = sbr.rel (0) target = $region5
  $region4: #{decoder_a_forward.15} parent=0 // pred_region
    _
  $region5: #{decoder_a_forward.15} parent=0 // pred_fallthru
    _
  %p10 = scmp.eq.s32.totalorder 0, 0
  // Predicated region
  $region6: #{decoder_a_forward.15} parent=0 // pred_check
    %p11 = pneg %p10
  $region7: #{decoder_a_forward.15} parent=0 // pred_check_branch
    %13 = sbr.rel (%p11) target = $region9
  $region8: #{decoder_a_forward.15} parent=0 // pred_region
    %14 = vst [vmem:[%s1] sm:$0xff] 0.0
    %15 = vst [vmem:[%s2] sm:$0xff] 0.0
  $region9: #{decoder_a_forward.15} parent=0 // pred_fallthru
    _
  %v16 = vld [vmem:[%s0] sm:$0xff]
  %v17 = vld [vmem:[%s0 + $0x8] sm:$0xff]
  %v18 = vld [vmem:[%s0 + $0x10] sm:$0xff]
  %v19 = vld [vmem:[%s0 + $0x18] sm:$0xff]
  %v20 = vld [vmem:[%s0 + $0x20] sm:$0xff]
  %v21 = vld [vmem:[%s0 + $0x28] sm:$0xff]
  %v22 = vld [vmem:[%s0 + $0x30] sm:$0xff]
  %v23 = vld [vmem:[%s0 + $0x38] sm:$0xff]
  %v24 = vld [vmem:[%s0 + $0x40] sm:$0xff]
  %v25 = vld [vmem:[%s0 + $0x48] sm:$0xff]
  %v26 = vld [vmem:[%s0 + $0x50] sm:$0xff]
  %v27 = vld [vmem:[%s0 + $0x58] sm:$0xff]
  %v28 = vld [vmem:[%s0 + $0x60] sm:$0xff]
  %v29 = vld [vmem:[%s0 + $0x68] sm:$0xff]
  %v30 = vld [vmem:[%s0 + $0x70] sm:$0xff]
  %v31 = vld [vmem:[%s0 + $0x78] sm:$0xff]
  %v32 = vld [vmem:[%s0 + $0x80] sm:$0xff]
  %v33 = vld [vmem:[%s0 + $0x88] sm:$0xff]
  %v34 = vld [vmem:[%s0 + $0x90] sm:$0xff]
  %v35 = vld [vmem:[%s0 + $0x98] sm:$0xff]
  %v36 = vld [vmem:[%s0 + $0xa0] sm:$0xff]
  %v37 = vld [vmem:[%s0 + $0xa8] sm:$0xff]
  %v38 = vld [vmem:[%s0 + $0xb0] sm:$0xff]
  %v39 = vld [vmem:[%s0 + $0xb8] sm:$0xff]
  %v40 = vld [vmem:[%s0 + $0xc0] sm:$0xff]
  %v41 = vld [vmem:[%s0 + $0xc8] sm:$0xff]
  %v42 = vld [vmem:[%s0 + $0xd0] sm:$0xff]
  %v43 = vld [vmem:[%s0 + $0xd8] sm:$0xff]
  %v44 = vld [vmem:[%s0 + $0xe0] sm:$0xff]
  %v45 = vld [vmem:[%s0 + $0xe8] sm:$0xff]
  %v46 = vld [vmem:[%s0 + $0xf0] sm:$0xff]
  %v47 = vld [vmem:[%s0 + $0xf8] sm:$0xff]
  %v48 = vunpack.c.l.bf16 %v16
  %v49 = vunpack.c.h.bf16 %v16
  %v50 = vunpack.c.l.bf16 %v17
  %v51 = vunpack.c.h.bf16 %v17
  %v52 = vunpack.c.l.bf16 %v18
  %v53 = vunpack.c.h.bf16 %v18
  %v54 = vunpack.c.l.bf16 %v19
  %v55 = vunpack.c.h.bf16 %v19
  %v56 = vunpack.c.l.bf16 %v20
  %v57 = vunpack.c.h.bf16 %v20
  %v58 = vunpack.c.l.bf16 %v21
  %v59 = vunpack.c.h.bf16 %v21
  %v60 = vunpack.c.l.bf16 %v22
  %v61 = vunpack.c.h.bf16 %v22
  %v62 = vunpack.c.l.bf16 %v23
  %v63 = vunpack.c.h.bf16 %v23
  %v64 = vunpack.c.l.bf16 %v24
  %v65 = vunpack.c.h.bf16 %v24
  %v66 = vunpack.c.l.bf16 %v25
  %v67 = vunpack.c.h.bf16 %v25
  %v68 = vunpack.c.l.bf16 %v26
  %v69 = vunpack.c.h.bf16 %v26
  %v70 = vunpack.c.l.bf16 %v27
  %v71 = vunpack.c.h.bf16 %v27
  %v72 = vunpack.c.l.bf16 %v28
  %v73 = vunpack.c.h.bf16 %v28
  %v74 = vunpack.c.l.bf16 %v29
  %v75 = vunpack.c.h.bf16 %v29
  %v76 = vunpack.c.l.bf16 %v30
  %v77 = vunpack.c.h.bf16 %v30
  %v78 = vunpack.c.l.bf16 %v31
  %v79 = vunpack.c.h.bf16 %v31
  %v80 = vunpack.c.l.bf16 %v32
  %v81 = vunpack.c.h.bf16 %v32
  %v82 = vunpack.c.l.bf16 %v33
  %v83 = vunpack.c.h.bf16 %v33
  %v84 = vunpack.c.l.bf16 %v34
  %v85 = vunpack.c.h.bf16 %v34
  %v86 = vunpack.c.l.bf16 %v35
  %v87 = vunpack.c.h.bf16 %v35
  %v88 = vunpack.c.l.bf16 %v36
  %v89 = vunpack.c.h.bf16 %v36
  %v90 = vunpack.c.l.bf16 %v37
  %v91 = vunpack.c.h.bf16 %v37
  %v92 = vunpack.c.l.bf16 %v38
  %v93 = vunpack.c.h.bf16 %v38
  %v94 = vunpack.c.l.bf16 %v39
  %v95 = vunpack.c.h.bf16 %v39
  %v96 = vunpack.c.l.bf16 %v40
  %v97 = vunpack.c.h.bf16 %v40
  %v98 = vunpack.c.l.bf16 %v41
  %v99 = vunpack.c.h.bf16 %v41
  %v100 = vunpack.c.l.bf16 %v42
  %v101 = vunpack.c.h.bf16 %v42
  %v102 = vunpack.c.l.bf16 %v43
  %v103 = vunpack.c.h.bf16 %v43
  %v104 = vunpack.c.l.bf16 %v44
  %v105 = vunpack.c.h.bf16 %v44
  %v106 = vunpack.c.l.bf16 %v45
  %v107 = vunpack.c.h.bf16 %v45
  %v108 = vunpack.c.l.bf16 %v46
  %v109 = vunpack.c.h.bf16 %v46
  %v110 = vunpack.c.l.bf16 %v47
  %v111 = vunpack.c.h.bf16 %v47
  %v112 = vld [vmem:[%s1] sm:$0xff]
  %v113 = vadd.f32 %v48, %v56
  %v114 = vadd.f32 %v113, %v64
  %v115 = vadd.f32 %v114, %v72
  %v116 = vadd.f32 %v115, %v80
  %v117 = vadd.f32 %v116, %v88
  %v118 = vadd.f32 %v117, %v96
  %v119 = vadd.f32 %v118, %v104
  %v120 = vrot.slane %v119, 4
  %v121 = vadd.f32 %v119, %v120
  %v122 = vrot.slane %v121, 2
  %v123 = vadd.f32 %v121, %v122
  %v124 = vrot.slane %v123, 1
  %v125 = vadd.f32 %v123, %v124
  %v126 = vadd.f32 %v49, %v57
  %v127 = vadd.f32 %v126, %v65
  %v128 = vadd.f32 %v127, %v73
  %v129 = vadd.f32 %v128, %v81
  %v130 = vadd.f32 %v129, %v89
  %v131 = vadd.f32 %v130, %v97
  %v132 = vadd.f32 %v131, %v105
  %v133 = vrot.slane %v132, 4
  %v134 = vadd.f32 %v132, %v133
  %v135 = vrot.slane %v134, 2
  %v136 = vadd.f32 %v134, %v135
  %v137 = vrot.slane %v136, 1
  %v138 = vadd.f32 %v136, %v137
  %v139 = vadd.f32 %v50, %v58
  %v140 = vadd.f32 %v139, %v66
  %v141 = vadd.f32 %v140, %v74
  %v142 = vadd.f32 %v141, %v82
  %v143 = vadd.f32 %v142, %v90
  %v144 = vadd.f32 %v143, %v98
  %v145 = vadd.f32 %v144, %v106
  %v146 = vrot.slane %v145, 4
  %v147 = vadd.f32 %v145, %v146
  %v148 = vrot.slane %v147, 2
  %v149 = vadd.f32 %v147, %v148
  %v150 = vrot.slane %v149, 1
  %v151 = vadd.f32 %v149, %v150
  %v152 = vadd.f32 %v51, %v59
  %v153 = vadd.f32 %v152, %v67
  %v154 = vadd.f32 %v153, %v75
  %v155 = vadd.f32 %v154, %v83
  %v156 = vadd.f32 %v155, %v91
  %v157 = vadd.f32 %v156, %v99
  %v158 = vadd.f32 %v157, %v107
  %v159 = vrot.slane %v158, 4
  %v160 = vadd.f32 %v158, %v159
  %v161 = vrot.slane %v160, 2
  %v162 = vadd.f32 %v160, %v161
  %v163 = vrot.slane %v162, 1
  %v164 = vadd.f32 %v162, %v163
  %v165 = vadd.f32 %v52, %v60
  %v166 = vadd.f32 %v165, %v68
  %v167 = vadd.f32 %v166, %v76
  %v168 = vadd.f32 %v167, %v84
  %v169 = vadd.f32 %v168, %v92
  %v170 = vadd.f32 %v169, %v100
  %v171 = vadd.f32 %v170, %v108
  %v172 = vrot.slane %v171, 4
  %v173 = vadd.f32 %v171, %v172
  %v174 = vrot.slane %v173, 2
  %v175 = vadd.f32 %v173, %v174
  %v176 = vrot.slane %v175, 1
  %v177 = vadd.f32 %v175, %v176
  %v178 = vadd.f32 %v53, %v61
  %v179 = vadd.f32 %v178, %v69
  %v180 = vadd.f32 %v179, %v77
  %v181 = vadd.f32 %v180, %v85
  %v182 = vadd.f32 %v181, %v93
  %v183 = vadd.f32 %v182, %v101
  %v184 = vadd.f32 %v183, %v109
  %v185 = vrot.slane %v184, 4
  %v186 = vadd.f32 %v184, %v185
  %v187 = vrot.slane %v186, 2
  %v188 = vadd.f32 %v186, %v187
  %v189 = vrot.slane %v188, 1
  %v190 = vadd.f32 %v188, %v189
  %v191 = vadd.f32 %v54, %v62
  %v192 = vadd.f32 %v191, %v70
  %v193 = vadd.f32 %v192, %v78
  %v194 = vadd.f32 %v193, %v86
  %v195 = vadd.f32 %v194, %v94
  %v196 = vadd.f32 %v195, %v102
  %v197 = vadd.f32 %v196, %v110
  %v198 = vrot.slane %v197, 4
  %v199 = vadd.f32 %v197, %v198
  %v200 = vrot.slane %v199, 2
  %v201 = vadd.f32 %v199, %v200
  %v202 = vrot.slane %v201, 1
  %v203 = vadd.f32 %v201, %v202
  %v204 = vadd.f32 %v55, %v63
  %v205 = vadd.f32 %v204, %v71
  %v206 = vadd.f32 %v205, %v79
  %v207 = vadd.f32 %v206, %v87
  %v208 = vadd.f32 %v207, %v95
  %v209 = vadd.f32 %v208, %v103
  %v210 = vadd.f32 %v209, %v111
  %v211 = vrot.slane %v210, 4
  %v212 = vadd.f32 %v210, %v211
  %v213 = vrot.slane %v212, 2
  %v214 = vadd.f32 %v212, %v213
  %v215 = vrot.slane %v214, 1
  %v216 = vadd.f32 %v214, %v215
  %v225 = vcombine.low %v125, %v138
  %v226 = vcombine.low %v151, %v164
  %v227 = vcombine.low %v177, %v190
  %v228 = vcombine.low %v203, %v216
  %v230 = vunpack.c.l.s4 1966171168
  %v231 = vunpack.c.0.s8 %v230
  %v232 = vlaneseq
  %v233 = vshrl.u32 %v232, 7
  %v234 = vsub.s32 %v231, %v233
  %v235 = vrot.slane %v225, %v234
  %v237 = vunpack.c.l.s4 1966171168
  %v238 = vunpack.c.0.s8 %v237
  %v239 = vlaneseq
  %v240 = vshrl.u32 %v239, 7
  %v241 = vsub.s32 %v238, %v240
  %v242 = vrot.slane %v226, %v241
  %v244 = vunpack.c.l.s4 1966171168
  %v245 = vunpack.c.0.s8 %v244
  %v246 = vlaneseq
  %v247 = vshrl.u32 %v246, 7
  %v248 = vsub.s32 %v245, %v247
  %v249 = vrot.slane %v227, %v248
  %v251 = vunpack.c.l.s4 1966171168
  %v252 = vunpack.c.0.s8 %v251
  %v253 = vlaneseq
  %v254 = vshrl.u32 %v253, 7
  %v255 = vsub.s32 %v252, %v254
  %v256 = vrot.slane %v228, %v255
  %v257 = vcombine.low %v235, %v242
  %v258 = vcombine.low %v249, %v256
  %v260 = vunpack.c.l.s4 1966171168
  %v261 = vunpack.c.0.s8 %v260
  %v262 = vlaneseq
  %v263 = vshrl.u32 %v262, 7
  %v264 = vsub.s32 %v261, %v263
  %v265 = vrot.slane %v257, %v264
  %v267 = vunpack.c.l.s4 1966171168
  %v268 = vunpack.c.0.s8 %v267
  %v269 = vlaneseq
  %v270 = vshrl.u32 %v269, 7
  %v271 = vsub.s32 %v268, %v270
  %v272 = vrot.slane %v258, %v271
  %v273 = vcombine.low %v265, %v272
  %v275 = vadd.f32 %v112, %v273
  %276 = vst [vmem:[%s1] sm:$0xff] %v275
  %v277 = vld [vmem:[%s2] sm:$0xff]
  %v278 = vmul.f32 %v48, %v48
  %v279 = vmul.f32 %v49, %v49
  %v280 = vmul.f32 %v50, %v50
  %v281 = vmul.f32 %v51, %v51
  %v282 = vmul.f32 %v52, %v52
  %v283 = vmul.f32 %v53, %v53
  %v284 = vmul.f32 %v54, %v54
  %v285 = vmul.f32 %v55, %v55
  %v286 = vmul.f32 %v56, %v56
  %v287 = vmul.f32 %v57, %v57
  %v288 = vmul.f32 %v58, %v58
  %v289 = vmul.f32 %v59, %v59
  %v290 = vmul.f32 %v60, %v60
  %v291 = vmul.f32 %v61, %v61
  %v292 = vmul.f32 %v62, %v62
  %v293 = vmul.f32 %v63, %v63
  %v294 = vmul.f32 %v64, %v64
  %v295 = vmul.f32 %v65, %v65
  %v296 = vmul.f32 %v66, %v66
  %v297 = vmul.f32 %v67, %v67
  %v298 = vmul.f32 %v68, %v68
  %v299 = vmul.f32 %v69, %v69
  %v300 = vmul.f32 %v70, %v70
  %v301 = vmul.f32 %v71, %v71
  %v302 = vmul.f32 %v72, %v72
  %v303 = vmul.f32 %v73, %v73
  %v304 = vmul.f32 %v74, %v74
  %v305 = vmul.f32 %v75, %v75
  %v306 = vmul.f32 %v76, %v76
  %v307 = vmul.f32 %v77, %v77
  %v308 = vmul.f32 %v78, %v78
  %v309 = vmul.f32 %v79, %v79
  %v310 = vmul.f32 %v80, %v80
  %v311 = vmul.f32 %v81, %v81
  %v312 = vmul.f32 %v82, %v82
  %v313 = vmul.f32 %v83, %v83
  %v314 = vmul.f32 %v84, %v84
  %v315 = vmul.f32 %v85, %v85
  %v316 = vmul.f32 %v86, %v86
  %v317 = vmul.f32 %v87, %v87
  %v318 = vmul.f32 %v88, %v88
  %v319 = vmul.f32 %v89, %v89
  %v320 = vmul.f32 %v90, %v90
  %v321 = vmul.f32 %v91, %v91
  %v322 = vmul.f32 %v92, %v92
  %v323 = vmul.f32 %v93, %v93
  %v324 = vmul.f32 %v94, %v94
  %v325 = vmul.f32 %v95, %v95
  %v326 = vmul.f32 %v96, %v96
  %v327 = vmul.f32 %v97, %v97
  %v328 = vmul.f32 %v98, %v98
  %v329 = vmul.f32 %v99, %v99
  %v330 = vmul.f32 %v100, %v100
  %v331 = vmul.f32 %v101, %v101
  %v332 = vmul.f32 %v102, %v102
  %v333 = vmul.f32 %v103, %v103
  %v334 = vmul.f32 %v104, %v104
  %v335 = vmul.f32 %v105, %v105
  %v336 = vmul.f32 %v106, %v106
  %v337 = vmul.f32 %v107, %v107
  %v338 = vmul.f32 %v108, %v108
  %v339 = vmul.f32 %v109, %v109
  %v340 = vmul.f32 %v110, %v110
  %v341 = vmul.f32 %v111, %v111
  %v342 = vadd.f32 %v278, %v286
  %v343 = vadd.f32 %v342, %v294
  %v344 = vadd.f32 %v343, %v302
  %v345 = vadd.f32 %v344, %v310
  %v346 = vadd.f32 %v345, %v318
  %v347 = vadd.f32 %v346, %v326
  %v348 = vadd.f32 %v347, %v334
  %v349 = vrot.slane %v348, 4
  %v350 = vadd.f32 %v348, %v349
  %v351 = vrot.slane %v350, 2
  %v352 = vadd.f32 %v350, %v351
  %v353 = vrot.slane %v352, 1
  %v354 = vadd.f32 %v352, %v353
  %v355 = vadd.f32 %v279, %v287
  %v356 = vadd.f32 %v355, %v295
  %v357 = vadd.f32 %v356, %v303
  %v358 = vadd.f32 %v357, %v311
  %v359 = vadd.f32 %v358, %v319
  %v360 = vadd.f32 %v359, %v327
  %v361 = vadd.f32 %v360, %v335
  %v362 = vrot.slane %v361, 4
  %v363 = vadd.f32 %v361, %v362
  %v364 = vrot.slane %v363, 2
  %v365 = vadd.f32 %v363, %v364
  %v366 = vrot.slane %v365, 1
  %v367 = vadd.f32 %v365, %v366
  %v368 = vadd.f32 %v280, %v288
  %v369 = vadd.f32 %v368, %v296
  %v370 = vadd.f32 %v369, %v304
  %v371 = vadd.f32 %v370, %v312
  %v372 = vadd.f32 %v371, %v320
  %v373 = vadd.f32 %v372, %v328
  %v374 = vadd.f32 %v373, %v336
  %v375 = vrot.slane %v374, 4
  %v376 = vadd.f32 %v374, %v375
  %v377 = vrot.slane %v376, 2
  %v378 = vadd.f32 %v376, %v377
  %v379 = vrot.slane %v378, 1
  %v380 = vadd.f32 %v378, %v379
  %v381 = vadd.f32 %v281, %v289
  %v382 = vadd.f32 %v381, %v297
  %v383 = vadd.f32 %v382, %v305
  %v384 = vadd.f32 %v383, %v313
  %v385 = vadd.f32 %v384, %v321
  %v386 = vadd.f32 %v385, %v329
  %v387 = vadd.f32 %v386, %v337
  %v388 = vrot.slane %v387, 4
  %v389 = vadd.f32 %v387, %v388
  %v390 = vrot.slane %v389, 2
  %v391 = vadd.f32 %v389, %v390
  %v392 = vrot.slane %v391, 1
  %v393 = vadd.f32 %v391, %v392
  %v394 = vadd.f32 %v282, %v290
  %v395 = vadd.f32 %v394, %v298
  %v396 = vadd.f32 %v395, %v306
  %v397 = vadd.f32 %v396, %v314
  %v398 = vadd.f32 %v397, %v322
  %v399 = vadd.f32 %v398, %v330
  %v400 = vadd.f32 %v399, %v338
  %v401 = vrot.slane %v400, 4
  %v402 = vadd.f32 %v400, %v401
  %v403 = vrot.slane %v402, 2
  %v404 = vadd.f32 %v402, %v403
  %v405 = vrot.slane %v404, 1
  %v406 = vadd.f32 %v404, %v405
  %v407 = vadd.f32 %v283, %v291
  %v408 = vadd.f32 %v407, %v299
  %v409 = vadd.f32 %v408, %v307
  %v410 = vadd.f32 %v409, %v315
  %v411 = vadd.f32 %v410, %v323
  %v412 = vadd.f32 %v411, %v331
  %v413 = vadd.f32 %v412, %v339
  %v414 = vrot.slane %v413, 4
  %v415 = vadd.f32 %v413, %v414
  %v416 = vrot.slane %v415, 2
  %v417 = vadd.f32 %v415, %v416
  %v418 = vrot.slane %v417, 1
  %v419 = vadd.f32 %v417, %v418
  %v420 = vadd.f32 %v284, %v292
  %v421 = vadd.f32 %v420, %v300
  %v422 = vadd.f32 %v421, %v308
  %v423 = vadd.f32 %v422, %v316
  %v424 = vadd.f32 %v423, %v324
  %v425 = vadd.f32 %v424, %v332
  %v426 = vadd.f32 %v425, %v340
  %v427 = vrot.slane %v426, 4
  %v428 = vadd.f32 %v426, %v427
  %v429 = vrot.slane %v428, 2
  %v430 = vadd.f32 %v428, %v429
  %v431 = vrot.slane %v430, 1
  %v432 = vadd.f32 %v430, %v431
  %v433 = vadd.f32 %v285, %v293
  %v434 = vadd.f32 %v433, %v301
  %v435 = vadd.f32 %v434, %v309
  %v436 = vadd.f32 %v435, %v317
  %v437 = vadd.f32 %v436, %v325
  %v438 = vadd.f32 %v437, %v333
  %v439 = vadd.f32 %v438, %v341
  %v440 = vrot.slane %v439, 4
  %v441 = vadd.f32 %v439, %v440
  %v442 = vrot.slane %v441, 2
  %v443 = vadd.f32 %v441, %v442
  %v444 = vrot.slane %v443, 1
  %v445 = vadd.f32 %v443, %v444
  %v454 = vcombine.low %v354, %v367
  %v455 = vcombine.low %v380, %v393
  %v456 = vcombine.low %v406, %v419
  %v457 = vcombine.low %v432, %v445
  %v459 = vunpack.c.l.s4 1966171168
  %v460 = vunpack.c.0.s8 %v459
  %v461 = vlaneseq
  %v462 = vshrl.u32 %v461, 7
  %v463 = vsub.s32 %v460, %v462
  %v464 = vrot.slane %v454, %v463
  %v466 = vunpack.c.l.s4 1966171168
  %v467 = vunpack.c.0.s8 %v466
  %v468 = vlaneseq
  %v469 = vshrl.u32 %v468, 7
  %v470 = vsub.s32 %v467, %v469
  %v471 = vrot.slane %v455, %v470
  %v473 = vunpack.c.l.s4 1966171168
  %v474 = vunpack.c.0.s8 %v473
  %v475 = vlaneseq
  %v476 = vshrl.u32 %v475, 7
  %v477 = vsub.s32 %v474, %v476
  %v478 = vrot.slane %v456, %v477
  %v480 = vunpack.c.l.s4 1966171168
  %v481 = vunpack.c.0.s8 %v480
  %v482 = vlaneseq
  %v483 = vshrl.u32 %v482, 7
  %v484 = vsub.s32 %v481, %v483
  %v485 = vrot.slane %v457, %v484
  %v486 = vcombine.low %v464, %v471
  %v487 = vcombine.low %v478, %v485
  %v489 = vunpack.c.l.s4 1966171168
  %v490 = vunpack.c.0.s8 %v489
  %v491 = vlaneseq
  %v492 = vshrl.u32 %v491, 7
  %v493 = vsub.s32 %v490, %v492
  %v494 = vrot.slane %v486, %v493
  %v496 = vunpack.c.l.s4 1966171168
  %v497 = vunpack.c.0.s8 %v496
  %v498 = vlaneseq
  %v499 = vshrl.u32 %v498, 7
  %v500 = vsub.s32 %v497, %v499
  %v501 = vrot.slane %v487, %v500
  %v502 = vcombine.low %v494, %v501
  %v504 = vadd.f32 %v277, %v502
  %505 = vst [vmem:[%s2] sm:$0xff] %v504
  // Predicated region
  $region10: #{decoder_a_forward.15} parent=0 // pred_check
    _
  $region11: #{decoder_a_forward.15} parent=0 // pred_check_branch
    %507 = sbr.rel (0) target = $region13
  $region12: #{decoder_a_forward.15} parent=0 // pred_region
    _
  $region13: #{decoder_a_forward.15} parent=0 // pred_fallthru
    _
  // Predicated region
  $region14: #{decoder_a_forward.15} parent=0 // pred_check
    _
  $region15: #{decoder_a_forward.15} parent=0 // pred_check_branch
    %509 = sbr.rel (0) target = $region17
  $region16: #{decoder_a_forward.15} parent=0 // pred_region
    _
  $region17: #{decoder_a_forward.15} parent=0 // pred_fallthru
    _
  // Predicated region
  $region18: #{decoder_a_forward.15} parent=0 // pred_check
    _
  $region19: #{decoder_a_forward.15} parent=0 // pred_check_branch
    %511 = sbr.rel (0) target = $region21
  $region20: #{decoder_a_forward.15} parent=0 // pred_region
    _
  $region21: #{decoder_a_forward.15} parent=0 // pred_fallthru
    _
  // Predicated region
  $region22: #{decoder_a_forward.15} parent=0 // pred_check
    _
  $region23: #{decoder_a_forward.15} parent=0 // pred_check_branch
    %513 = sbr.rel (0) target = $region25
  $region24: #{decoder_a_forward.15} parent=0 // pred_region
    _
  $region25: #{decoder_a_forward.15} parent=0 // pred_fallthru
    _

// kernel: decoder_a_forward.16
$region0: #{decoder_a_forward.16}
  #allocation0 [shape = 'u32[]', space=smem, size = 0x4, offset = 0x4, fixed_abs, tag = 'smem constant byte address 0x4 - core index']
  #allocation1 [shape = 'u32[144,128]{1,0:T(1,128)}', space=vmem, size = 0x12000, scoped, tag = 'internal scratch']
  %s0 = inlined_call_operand.vmem [shape: bf16[2048,32], index: 0, kind: input, shape index: {}]
  %s1 = inlined_call_operand.vmem [shape: bf16[32,48], index: 1, kind: input, shape index: {}]
  %s2 = inlined_call_operand.vmem [shape: f32[1,32], index: 2, kind: input, shape index: {}]
  %s3 = inlined_call_operand.vmem [shape: f32[1,32], index: 3, kind: input, shape index: {}]
  %s4 = inlined_call_operand.vmem [shape: bf16[2048,48], index: 4, kind: output, shape index: {}]
  %s5 = sld [smem:[#allocation0]]
  $region49: #{decoder_a_forward.16} parent=0
    _
  %s7 = ssub.s32 1, %s5
  %s8 = scalar_select 0, %s7, %s5
  loop: start=0, step=1, limit=6
  $region2: #{decoder_a_forward.16} parent=0 // loop_pre_header
    _
  $region3: #{decoder_a_forward.16} parent=0 // loop_header
    %s10 = sphi 0, %s14
    %p11 = scmp.ge.s32.totalorder %s10, 6
    %s20 = sphi 0, %s22
    %s23 = sphi 0, %s20
    %s24 = sphi 0, %s23
    %s40 = sphi 0, %s24
    %s44 = sphi 0, %s44
    %s46 = sphi 0, %s44
    %s47 = sphi 0, %s46
    %s61 = sphi 0, %s47
    %s65 = sphi 0, %s65
    %s67 = sphi 0, %s65
    %s68 = sphi 0, %s67
    %s82 = sphi 0, %s68
    %s86 = sphi 0, %s86
    %s88 = sphi 0, %s86
    %s89 = sphi 0, %s88
    %s103 = sphi 0, %s89
    %s109 = sphi 0, %s111
    %s112 = sphi 0, %s109
    %s113 = sphi 0, %s112
    %s129 = sphi 0, %s113
  $region4: #{decoder_a_forward.16} parent=0 // loop_header_branch
    %13 = sbr.rel (%p11) target = $region8
  $region5: #{decoder_a_forward.16} parent=0 // loop_body
    %s15 = ssub.s32 %s10, 1
    %s16 = ssub.s32 %s10, 2
    %s17 = sadd.s32 %s10, 1
    %s18 = ssub.s32 %s10, %s17
    %p19 = scmp.eq.s32.totalorder %s18, 0
    %s21 = sadd.s32 %s20, 1
    %s22 = scalar_select %p19, %s20, %s21
    %p25 = pneg %p19
    %p26 = scmp.eq.s32.totalorder %s10, 3
    %p27 = por %p25, %p26
    %p28 = scmp.ne.s32.totalorder %s20, %s23
    %p29 = scmp.eq.s32.totalorder %s10, 0
    %p30 = por %p28, %p29
    %p31 = scmp.ne.s32.totalorder %s20, %s23
    %p32 = scmp.eq.s32.totalorder %s15, 3
    %p33 = por %p31, %p32
    %p34 = scmp.ne.s32.totalorder %s23, %s24
    %p35 = scmp.eq.s32.totalorder %s15, 0
    %p36 = por %p34, %p35
    %p37 = scmp.ne.s32.totalorder %s23, %s24
    %p38 = scmp.eq.s32.totalorder %s16, 3
    %p39 = por %p37, %p38
    %p41 = scmp.ne.s32.totalorder %s24, %s40
    %p42 = scmp.eq.s32.totalorder %s16, 0
    %p43 = por %p41, %p42
    %s45 = sadd.s32 %s44, 1
    %p48 = scmp.eq.s32.totalorder %s10, 3
    %p49 = scmp.ne.s32.totalorder %s44, %s46
    %p50 = scmp.eq.s32.totalorder %s10, 0
    %p51 = por %p49, %p50
    %p52 = scmp.ne.s32.totalorder %s44, %s46
    %p53 = scmp.eq.s32.totalorder %s15, 3
    %p54 = por %p52, %p53
    %p55 = scmp.ne.s32.totalorder %s46, %s47
    %p56 = scmp.eq.s32.totalorder %s15, 0
    %p57 = por %p55, %p56
    %p58 = scmp.ne.s32.totalorder %s46, %s47
    %p59 = scmp.eq.s32.totalorder %s16, 3
    %p60 = por %p58, %p59
    %p62 = scmp.ne.s32.totalorder %s47, %s61
    %p63 = scmp.eq.s32.totalorder %s16, 0
    %p64 = por %p62, %p63
    %s66 = sadd.s32 %s65, 1
    %p69 = scmp.eq.s32.totalorder %s10, 3
    %p70 = scmp.ne.s32.totalorder %s65, %s67
    %p71 = scmp.eq.s32.totalorder %s10, 0
    %p72 = por %p70, %p71
    %p73 = scmp.ne.s32.totalorder %s65, %s67
    %p74 = scmp.eq.s32.totalorder %s15, 3
    %p75 = por %p73, %p74
    %p76 = scmp.ne.s32.totalorder %s67, %s68
    %p77 = scmp.eq.s32.totalorder %s15, 0
    %p78 = por %p76, %p77
    %p79 = scmp.ne.s32.totalorder %s67, %s68
    %p80 = scmp.eq.s32.totalorder %s16, 3
    %p81 = por %p79, %p80
    %p83 = scmp.ne.s32.totalorder %s68, %s82
    %p84 = scmp.eq.s32.totalorder %s16, 0
    %p85 = por %p83, %p84
    %s87 = sadd.s32 %s86, 1
    %p90 = scmp.eq.s32.totalorder %s10, 3
    %p91 = scmp.ne.s32.totalorder %s86, %s88
    %p92 = scmp.eq.s32.totalorder %s10, 0
    %p93 = por %p91, %p92
    %p94 = scmp.ne.s32.totalorder %s86, %s88
    %p95 = scmp.eq.s32.totalorder %s15, 3
    %p96 = por %p94, %p95
    %p97 = scmp.ne.s32.totalorder %s88, %s89
    %p98 = scmp.eq.s32.totalorder %s15, 0
    %p99 = por %p97, %p98
    %p100 = scmp.ne.s32.totalorder %s88, %s89
    %p101 = scmp.eq.s32.totalorder %s16, 3
    %p102 = por %p100, %p101
    %p104 = scmp.ne.s32.totalorder %s89, %s103
    %p105 = scmp.eq.s32.totalorder %s16, 0
    %p106 = por %p104, %p105
    %s107 = ssub.s32 %s10, %s17
    %p108 = scmp.eq.s32.totalorder %s107, 0
    %s110 = sadd.s32 %s109, 1
    %s111 = scalar_select %p108, %s109, %s110
    %p114 = pneg %p108
    %p115 = scmp.eq.s32.totalorder %s10, 3
    %p116 = por %p114, %p115
    %p117 = scmp.ne.s32.totalorder %s109, %s112
    %p118 = scmp.eq.s32.totalorder %s10, 0
    %p119 = por %p117, %p118
    %p120 = scmp.ne.s32.totalorder %s109, %s112
    %p121 = scmp.eq.s32.totalorder %s15, 3
    %p122 = por %p120, %p121
    %p123 = scmp.ne.s32.totalorder %s112, %s113
    %p124 = scmp.eq.s32.totalorder %s15, 0
    %p125 = por %p123, %p124
    %p126 = scmp.ne.s32.totalorder %s112, %s113
    %p127 = scmp.eq.s32.totalorder %s16, 3
    %p128 = por %p126, %p127
    %p130 = scmp.ne.s32.totalorder %s113, %s129
    %p131 = scmp.eq.s32.totalorder %s16, 0
    %p132 = por %p130, %p131
    %p133 = scmp.le.s32.totalorder 1, %s10
    %p134 = scmp.lt.s32.totalorder %s10, 5
    %p135 = pnand %p133, %p134
    %p136 = pneg %p135
    // Predicated region
    $region9: #{decoder_a_forward.16} parent=5 // pred_check
      _
    $region10: #{decoder_a_forward.16} parent=5 // pred_check_branch
      %138 = sbr.rel (%p135) target = $region12
    $region11: #{decoder_a_forward.16} parent=5 // pred_region
      %s139 = ssub.s32 %s10, 1
      // Predicated region
      $region13: #{decoder_a_forward.16} parent=11 // pred_check
        %p140 = pneg %p57
      $region14: #{decoder_a_forward.16} parent=11 // pred_check_branch
        %142 = sbr.rel (%p140) target = $region16
      $region15: #{decoder_a_forward.16} parent=11 // pred_region
        _
      $region16: #{decoder_a_forward.16} parent=11 // pred_fallthru
        _
      // Predicated region
      $region17: #{decoder_a_forward.16} parent=11 // pred_check
        %p143 = pneg %p78
      $region18: #{decoder_a_forward.16} parent=11 // pred_check_branch
        %145 = sbr.rel (%p143) target = $region20
      $region19: #{decoder_a_forward.16} parent=11 // pred_region
        _
      $region20: #{decoder_a_forward.16} parent=11 // pred_fallthru
        _
      // Predicated region
      $region21: #{decoder_a_forward.16} parent=11 // pred_check
        %p146 = pneg %p99
      $region22: #{decoder_a_forward.16} parent=11 // pred_check_branch
        %148 = sbr.rel (%p146) target = $region24
      $region23: #{decoder_a_forward.16} parent=11 // pred_region
        _
      $region24: #{decoder_a_forward.16} parent=11 // pred_fallthru
        _
    $region12: #{decoder_a_forward.16} parent=5 // pred_fallthru
      _
    %p149 = scmp.lt.s32.totalorder %s10, 4
    // Predicated region
    $region25: #{decoder_a_forward.16} parent=5 // pred_check
      %p150 = pneg %p149
    $region26: #{decoder_a_forward.16} parent=5 // pred_check_branch
      %152 = sbr.rel (%p150) target = $region28
    $region27: #{decoder_a_forward.16} parent=5 // pred_region
      // Predicated region
      $region29: #{decoder_a_forward.16} parent=27 // pred_check
        %p153 = pneg %p30
      $region30: #{decoder_a_forward.16} parent=27 // pred_check_branch
        %155 = sbr.rel (%p153) target = $region32
      $region31: #{decoder_a_forward.16} parent=27 // pred_region
        %s156 = smul.u32 64, %s10
        %p157 = scmp.lt.s32.totalorder %s156, 255
        %s158 = scalar_select %p157, %s156, 255
        %s159 = smul.addr %s158, 4
        %s160 = scalar_lea.vmem %s0, %s159
        %s161 = smul.u32 64, %s10
      $region32: #{decoder_a_forward.16} parent=27 // pred_fallthru
        _
    $region28: #{decoder_a_forward.16} parent=5 // pred_fallthru
      _
    %p162 = scmp.le.s32.totalorder 1, %s10
    %p163 = scmp.lt.s32.totalorder %s10, 5
    %p164 = pnand %p162, %p163
    %p165 = pneg %p164
    // Predicated region
    $region33: #{decoder_a_forward.16} parent=5 // pred_check
      _
    $region34: #{decoder_a_forward.16} parent=5 // pred_check_branch
      %167 = sbr.rel (%p164) target = $region36
    $region35: #{decoder_a_forward.16} parent=5 // pred_region
      %s168 = ssub.s32 %s10, 1
      %s169 = smul.u32 64, %s15
      %p170 = scmp.lt.s32.totalorder %s169, 255
      %s171 = scalar_select %p170, %s169, 255
      %s172 = smul.addr %s171, 4
      %s173 = scalar_lea.vmem %s0, %s172
      %p174 = pneg %p36
      %p175 = pneg %p33
      %p176 = pneg %p57
      %p177 = pneg %p54
      %p178 = pneg %p78
      %p179 = pneg %p75
      %p180 = pneg %p99
      %p181 = pneg %p96
      %p182 = pneg %p125
      %p183 = pneg %p122
      %s184 = smul.u32 64, %s15
      %p185 = scmp.lt.s32.totalorder %s184, 255
      %s186 = scalar_select %p185, %s184, 255
      %s187 = smul.addr %s186, 4
      %s188 = scalar_lea.vmem %s4, %s187
      %s189 = smul.u32 64, %s15
      %p190 = scmp.lt.s32.totalorder %s189, 255
      %s191 = scalar_select %p190, %s189, 255
      %s192 = smul.addr %s191, 4
      %s193 = scalar_lea.vmem %s0, %s192
      %s194 = smul.u32 64, %s15
      %s195 = smul.u32 64, %s15
      %p196 = scmp.lt.s32.totalorder %s195, 255
      %s197 = scalar_select %p196, %s195, 255
      %s198 = smul.addr %s197, 4
      %s199 = scalar_lea.vmem %s4, %s198
      %s200 = smul.u32 64, %s15
      %v202 = vld [vmem:[%s193] sm:$0xf]
      %v203 = vld [vmem:[%s193 + $0x4] sm:$0xf]
      %v204 = vld [vmem:[%s193 + $0x8] sm:$0xf]
      %v205 = vld [vmem:[%s193 + $0xc] sm:$0xf]
      %v206 = vld [vmem:[%s193 + $0x10] sm:$0xf]
      %v207 = vld [vmem:[%s193 + $0x14] sm:$0xf]
      %v208 = vld [vmem:[%s193 + $0x18] sm:$0xf]
      %v209 = vld [vmem:[%s193 + $0x1c] sm:$0xf]
      %v210 = vld [vmem:[%s193 + $0x20] sm:$0xf]
      %v211 = vld [vmem:[%s193 + $0x24] sm:$0xf]
      %v212 = vld [vmem:[%s193 + $0x28] sm:$0xf]
      %v213 = vld [vmem:[%s193 + $0x2c] sm:$0xf]
      %v214 = vld [vmem:[%s193 + $0x30] sm:$0xf]
      %v215 = vld [vmem:[%s193 + $0x34] sm:$0xf]
      %v216 = vld [vmem:[%s193 + $0x38] sm:$0xf]
      %v217 = vld [vmem:[%s193 + $0x3c] sm:$0xf]
      %v218 = vld [vmem:[%s193 + $0x40] sm:$0xf]
      %v219 = vld [vmem:[%s193 + $0x44] sm:$0xf]
      %v220 = vld [vmem:[%s193 + $0x48] sm:$0xf]
      %v221 = vld [vmem:[%s193 + $0x4c] sm:$0xf]
      %v222 = vld [vmem:[%s193 + $0x50] sm:$0xf]
      %v223 = vld [vmem:[%s193 + $0x54] sm:$0xf]
      %v224 = vld [vmem:[%s193 + $0x58] sm:$0xf]
      %v225 = vld [vmem:[%s193 + $0x5c] sm:$0xf]
      %v226 = vld [vmem:[%s193 + $0x60] sm:$0xf]
      %v227 = vld [vmem:[%s193 + $0x64] sm:$0xf]
      %v228 = vld [vmem:[%s193 + $0x68] sm:$0xf]
      %v229 = vld [vmem:[%s193 + $0x6c] sm:$0xf]
      %v230 = vld [vmem:[%s193 + $0x70] sm:$0xf]
      %v231 = vld [vmem:[%s193 + $0x74] sm:$0xf]
      %v232 = vld [vmem:[%s193 + $0x78] sm:$0xf]
      %v233 = vld [vmem:[%s193 + $0x7c] sm:$0xf]
      %v234 = vld [vmem:[%s193 + $0x80] sm:$0xf]
      %v235 = vld [vmem:[%s193 + $0x84] sm:$0xf]
      %v236 = vld [vmem:[%s193 + $0x88] sm:$0xf]
      %v237 = vld [vmem:[%s193 + $0x8c] sm:$0xf]
      %v238 = vld [vmem:[%s193 + $0x90] sm:$0xf]
      %v239 = vld [vmem:[%s193 + $0x94] sm:$0xf]
      %v240 = vld [vmem:[%s193 + $0x98] sm:$0xf]
      %v241 = vld [vmem:[%s193 + $0x9c] sm:$0xf]
      %v242 = vld [vmem:[%s193 + $0xa0] sm:$0xf]
      %v243 = vld [vmem:[%s193 + $0xa4] sm:$0xf]
      %v244 = vld [vmem:[%s193 + $0xa8] sm:$0xf]
      %v245 = vld [vmem:[%s193 + $0xac] sm:$0xf]
      %v246 = vld [vmem:[%s193 + $0xb0] sm:$0xf]
      %v247 = vld [vmem:[%s193 + $0xb4] sm:$0xf]
      %v248 = vld [vmem:[%s193 + $0xb8] sm:$0xf]
      %v249 = vld [vmem:[%s193 + $0xbc] sm:$0xf]
      %v250 = vld [vmem:[%s193 + $0xc0] sm:$0xf]
      %v251 = vld [vmem:[%s193 + $0xc4] sm:$0xf]
      %v252 = vld [vmem:[%s193 + $0xc8] sm:$0xf]
      %v253 = vld [vmem:[%s193 + $0xcc] sm:$0xf]
      %v254 = vld [vmem:[%s193 + $0xd0] sm:$0xf]
      %v255 = vld [vmem:[%s193 + $0xd4] sm:$0xf]
      %v256 = vld [vmem:[%s193 + $0xd8] sm:$0xf]
      %v257 = vld [vmem:[%s193 + $0xdc] sm:$0xf]
      %v258 = vld [vmem:[%s193 + $0xe0] sm:$0xf]
      %v259 = vld [vmem:[%s193 + $0xe4] sm:$0xf]
      %v260 = vld [vmem:[%s193 + $0xe8] sm:$0xf]
      %v261 = vld [vmem:[%s193 + $0xec] sm:$0xf]
      %v262 = vld [vmem:[%s193 + $0xf0] sm:$0xf]
      %v263 = vld [vmem:[%s193 + $0xf4] sm:$0xf]
      %v264 = vld [vmem:[%s193 + $0xf8] sm:$0xf]
      %v265 = vld [vmem:[%s193 + $0xfc] sm:$0xf]
      %v266 = vunpack.c.l.bf16 %v202
      %v267 = vunpack.c.l.bf16 %v203
      %v268 = vunpack.c.l.bf16 %v204
      %v269 = vunpack.c.l.bf16 %v205
      %v270 = vunpack.c.l.bf16 %v206
      %v271 = vunpack.c.l.bf16 %v207
      %v272 = vunpack.c.l.bf16 %v208
      %v273 = vunpack.c.l.bf16 %v209
      %v274 = vunpack.c.l.bf16 %v210
      %v275 = vunpack.c.l.bf16 %v211
      %v276 = vunpack.c.l.bf16 %v212
      %v277 = vunpack.c.l.bf16 %v213
      %v278 = vunpack.c.l.bf16 %v214
      %v279 = vunpack.c.l.bf16 %v215
      %v280 = vunpack.c.l.bf16 %v216
      %v281 = vunpack.c.l.bf16 %v217
      %v282 = vunpack.c.l.bf16 %v218
      %v283 = vunpack.c.l.bf16 %v219
      %v284 = vunpack.c.l.bf16 %v220
      %v285 = vunpack.c.l.bf16 %v221
      %v286 = vunpack.c.l.bf16 %v222
      %v287 = vunpack.c.l.bf16 %v223
      %v288 = vunpack.c.l.bf16 %v224
      %v289 = vunpack.c.l.bf16 %v225
      %v290 = vunpack.c.l.bf16 %v226
      %v291 = vunpack.c.l.bf16 %v227
      %v292 = vunpack.c.l.bf16 %v228
      %v293 = vunpack.c.l.bf16 %v229
      %v294 = vunpack.c.l.bf16 %v230
      %v295 = vunpack.c.l.bf16 %v231
      %v296 = vunpack.c.l.bf16 %v232
      %v297 = vunpack.c.l.bf16 %v233
      %v298 = vunpack.c.l.bf16 %v234
      %v299 = vunpack.c.l.bf16 %v235
      %v300 = vunpack.c.l.bf16 %v236
      %v301 = vunpack.c.l.bf16 %v237
      %v302 = vunpack.c.l.bf16 %v238
      %v303 = vunpack.c.l.bf16 %v239
      %v304 = vunpack.c.l.bf16 %v240
      %v305 = vunpack.c.l.bf16 %v241
      %v306 = vunpack.c.l.bf16 %v242
      %v307 = vunpack.c.l.bf16 %v243
      %v308 = vunpack.c.l.bf16 %v244
      %v309 = vunpack.c.l.bf16 %v245
      %v310 = vunpack.c.l.bf16 %v246
      %v311 = vunpack.c.l.bf16 %v247
      %v312 = vunpack.c.l.bf16 %v248
      %v313 = vunpack.c.l.bf16 %v249
      %v314 = vunpack.c.l.bf16 %v250
      %v315 = vunpack.c.l.bf16 %v251
      %v316 = vunpack.c.l.bf16 %v252
      %v317 = vunpack.c.l.bf16 %v253
      %v318 = vunpack.c.l.bf16 %v254
      %v319 = vunpack.c.l.bf16 %v255
      %v320 = vunpack.c.l.bf16 %v256
      %v321 = vunpack.c.l.bf16 %v257
      %v322 = vunpack.c.l.bf16 %v258
      %v323 = vunpack.c.l.bf16 %v259
      %v324 = vunpack.c.l.bf16 %v260
      %v325 = vunpack.c.l.bf16 %v261
      %v326 = vunpack.c.l.bf16 %v262
      %v327 = vunpack.c.l.bf16 %v263
      %v328 = vunpack.c.l.bf16 %v264
      %v329 = vunpack.c.l.bf16 %v265
      %v330 = vld [vmem:[%s2] sm:$0x1]
      %v332 = vlaneseq
      %v333 = vshrl.u32 %v332, 7
      %v334 = vsub.s32 0, %v333
      %v335 = vrot.slane %v330, %v334
      %v337 = vmul.f32 %v266, %v335
      %v338 = vmul.f32 %v267, %v335
      %v339 = vmul.f32 %v268, %v335
      %v340 = vmul.f32 %v269, %v335
      %v341 = vmul.f32 %v270, %v335
      %v342 = vmul.f32 %v271, %v335
      %v343 = vmul.f32 %v272, %v335
      %v344 = vmul.f32 %v273, %v335
      %v345 = vmul.f32 %v274, %v335
      %v346 = vmul.f32 %v275, %v335
      %v347 = vmul.f32 %v276, %v335
      %v348 = vmul.f32 %v277, %v335
      %v349 = vmul.f32 %v278, %v335
      %v350 = vmul.f32 %v279, %v335
      %v351 = vmul.f32 %v280, %v335
      %v352 = vmul.f32 %v281, %v335
      %v353 = vmul.f32 %v282, %v335
      %v354 = vmul.f32 %v283, %v335
      %v355 = vmul.f32 %v284, %v335
      %v356 = vmul.f32 %v285, %v335
      %v357 = vmul.f32 %v286, %v335
      %v358 = vmul.f32 %v287, %v335
      %v359 = vmul.f32 %v288, %v335
      %v360 = vmul.f32 %v289, %v335
      %v361 = vmul.f32 %v290, %v335
      %v362 = vmul.f32 %v291, %v335
      %v363 = vmul.f32 %v292, %v335
      %v364 = vmul.f32 %v293, %v335
      %v365 = vmul.f32 %v294, %v335
      %v366 = vmul.f32 %v295, %v335
      %v367 = vmul.f32 %v296, %v335
      %v368 = vmul.f32 %v297, %v335
      %v369 = vmul.f32 %v298, %v335
      %v370 = vmul.f32 %v299, %v335
      %v371 = vmul.f32 %v300, %v335
      %v372 = vmul.f32 %v301, %v335
      %v373 = vmul.f32 %v302, %v335
      %v374 = vmul.f32 %v303, %v335
      %v375 = vmul.f32 %v304, %v335
      %v376 = vmul.f32 %v305, %v335
      %v377 = vmul.f32 %v306, %v335
      %v378 = vmul.f32 %v307, %v335
      %v379 = vmul.f32 %v308, %v335
      %v380 = vmul.f32 %v309, %v335
      %v381 = vmul.f32 %v310, %v335
      %v382 = vmul.f32 %v311, %v335
      %v383 = vmul.f32 %v312, %v335
      %v384 = vmul.f32 %v313, %v335
      %v385 = vmul.f32 %v314, %v335
      %v386 = vmul.f32 %v315, %v335
      %v387 = vmul.f32 %v316, %v335
      %v388 = vmul.f32 %v317, %v335
      %v389 = vmul.f32 %v318, %v335
      %v390 = vmul.f32 %v319, %v335
      %v391 = vmul.f32 %v320, %v335
      %v392 = vmul.f32 %v321, %v335
      %v393 = vmul.f32 %v322, %v335
      %v394 = vmul.f32 %v323, %v335
      %v395 = vmul.f32 %v324, %v335
      %v396 = vmul.f32 %v325, %v335
      %v397 = vmul.f32 %v326, %v335
      %v398 = vmul.f32 %v327, %v335
      %v399 = vmul.f32 %v328, %v335
      %v400 = vmul.f32 %v329, %v335
      %v401 = vld [vmem:[%s3] sm:$0x1]
      %v403 = vlaneseq
      %v404 = vshrl.u32 %v403, 7
      %v405 = vsub.s32 0, %v404
      %v406 = vrot.slane %v401, %v405
      %v408 = vadd.f32 %v337, %v406
      %v409 = vadd.f32 %v338, %v406
      %v410 = vadd.f32 %v339, %v406
      %v411 = vadd.f32 %v340, %v406
      %v412 = vadd.f32 %v341, %v406
      %v413 = vadd.f32 %v342, %v406
      %v414 = vadd.f32 %v343, %v406
      %v415 = vadd.f32 %v344, %v406
      %v416 = vadd.f32 %v345, %v406
      %v417 = vadd.f32 %v346, %v406
      %v418 = vadd.f32 %v347, %v406
      %v419 = vadd.f32 %v348, %v406
      %v420 = vadd.f32 %v349, %v406
      %v421 = vadd.f32 %v350, %v406
      %v422 = vadd.f32 %v351, %v406
      %v423 = vadd.f32 %v352, %v406
      %v424 = vadd.f32 %v353, %v406
      %v425 = vadd.f32 %v354, %v406
      %v426 = vadd.f32 %v355, %v406
      %v427 = vadd.f32 %v356, %v406
      %v428 = vadd.f32 %v357, %v406
      %v429 = vadd.f32 %v358, %v406
      %v430 = vadd.f32 %v359, %v406
      %v431 = vadd.f32 %v360, %v406
      %v432 = vadd.f32 %v361, %v406
      %v433 = vadd.f32 %v362, %v406
      %v434 = vadd.f32 %v363, %v406
      %v435 = vadd.f32 %v364, %v406
      %v436 = vadd.f32 %v365, %v406
      %v437 = vadd.f32 %v366, %v406
      %v438 = vadd.f32 %v367, %v406
      %v439 = vadd.f32 %v368, %v406
      %v440 = vadd.f32 %v369, %v406
      %v441 = vadd.f32 %v370, %v406
      %v442 = vadd.f32 %v371, %v406
      %v443 = vadd.f32 %v372, %v406
      %v444 = vadd.f32 %v373, %v406
      %v445 = vadd.f32 %v374, %v406
      %v446 = vadd.f32 %v375, %v406
      %v447 = vadd.f32 %v376, %v406
      %v448 = vadd.f32 %v377, %v406
      %v449 = vadd.f32 %v378, %v406
      %v450 = vadd.f32 %v379, %v406
      %v451 = vadd.f32 %v380, %v406
      %v452 = vadd.f32 %v381, %v406
      %v453 = vadd.f32 %v382, %v406
      %v454 = vadd.f32 %v383, %v406
      %v455 = vadd.f32 %v384, %v406
      %v456 = vadd.f32 %v385, %v406
      %v457 = vadd.f32 %v386, %v406
      %v458 = vadd.f32 %v387, %v406
      %v459 = vadd.f32 %v388, %v406
      %v460 = vadd.f32 %v389, %v406
      %v461 = vadd.f32 %v390, %v406
      %v462 = vadd.f32 %v391, %v406
      %v463 = vadd.f32 %v392, %v406
      %v464 = vadd.f32 %v393, %v406
      %v465 = vadd.f32 %v394, %v406
      %v466 = vadd.f32 %v395, %v406
      %v467 = vadd.f32 %v396, %v406
      %v468 = vadd.f32 %v397, %v406
      %v469 = vadd.f32 %v398, %v406
      %v470 = vadd.f32 %v399, %v406
      %v471 = vadd.f32 %v400, %v406
      %v472 = vmax.f32 %v408, 0.0
      %v473 = vmax.f32 %v409, 0.0
      %v474 = vmax.f32 %v410, 0.0
      %v475 = vmax.f32 %v411, 0.0
      %v476 = vmax.f32 %v412, 0.0
      %v477 = vmax.f32 %v413, 0.0
      %v478 = vmax.f32 %v414, 0.0
      %v479 = vmax.f32 %v415, 0.0
      %v480 = vmax.f32 %v416, 0.0
      %v481 = vmax.f32 %v417, 0.0
      %v482 = vmax.f32 %v418, 0.0
      %v483 = vmax.f32 %v419, 0.0
      %v484 = vmax.f32 %v420, 0.0
      %v485 = vmax.f32 %v421, 0.0
      %v486 = vmax.f32 %v422, 0.0
      %v487 = vmax.f32 %v423, 0.0
      %v488 = vmax.f32 %v424, 0.0
      %v489 = vmax.f32 %v425, 0.0
      %v490 = vmax.f32 %v426, 0.0
      %v491 = vmax.f32 %v427, 0.0
      %v492 = vmax.f32 %v428, 0.0
      %v493 = vmax.f32 %v429, 0.0
      %v494 = vmax.f32 %v430, 0.0
      %v495 = vmax.f32 %v431, 0.0
      %v496 = vmax.f32 %v432, 0.0
      %v497 = vmax.f32 %v433, 0.0
      %v498 = vmax.f32 %v434, 0.0
      %v499 = vmax.f32 %v435, 0.0
      %v500 = vmax.f32 %v436, 0.0
      %v501 = vmax.f32 %v437, 0.0
      %v502 = vmax.f32 %v438, 0.0
      %v503 = vmax.f32 %v439, 0.0
      %v504 = vmax.f32 %v440, 0.0
      %v505 = vmax.f32 %v441, 0.0
      %v506 = vmax.f32 %v442, 0.0
      %v507 = vmax.f32 %v443, 0.0
      %v508 = vmax.f32 %v444, 0.0
      %v509 = vmax.f32 %v445, 0.0
      %v510 = vmax.f32 %v446, 0.0
      %v511 = vmax.f32 %v447, 0.0
      %v512 = vmax.f32 %v448, 0.0
      %v513 = vmax.f32 %v449, 0.0
      %v514 = vmax.f32 %v450, 0.0
      %v515 = vmax.f32 %v451, 0.0
      %v516 = vmax.f32 %v452, 0.0
      %v517 = vmax.f32 %v453, 0.0
      %v518 = vmax.f32 %v454, 0.0
      %v519 = vmax.f32 %v455, 0.0
      %v520 = vmax.f32 %v456, 0.0
      %v521 = vmax.f32 %v457, 0.0
      %v522 = vmax.f32 %v458, 0.0
      %v523 = vmax.f32 %v459, 0.0
      %v524 = vmax.f32 %v460, 0.0
      %v525 = vmax.f32 %v461, 0.0
      %v526 = vmax.f32 %v462, 0.0
      %v527 = vmax.f32 %v463, 0.0
      %v528 = vmax.f32 %v464, 0.0
      %v529 = vmax.f32 %v465, 0.0
      %v530 = vmax.f32 %v466, 0.0
      %v531 = vmax.f32 %v467, 0.0
      %v532 = vmax.f32 %v468, 0.0
      %v533 = vmax.f32 %v469, 0.0
      %v534 = vmax.f32 %v470, 0.0
      %v535 = vmax.f32 %v471, 0.0
      %v536 = vpack.c.bf16 %v473, %v472
      %v537 = vpack.c.bf16 %v475, %v474
      %v538 = vpack.c.bf16 %v477, %v476
      %v539 = vpack.c.bf16 %v479, %v478
      %v540 = vpack.c.bf16 %v481, %v480
      %v541 = vpack.c.bf16 %v483, %v482
      %v542 = vpack.c.bf16 %v485, %v484
      %v543 = vpack.c.bf16 %v487, %v486
      %v544 = vpack.c.bf16 %v489, %v488
      %v545 = vpack.c.bf16 %v491, %v490
      %v546 = vpack.c.bf16 %v493, %v492
      %v547 = vpack.c.bf16 %v495, %v494
      %v548 = vpack.c.bf16 %v497, %v496
      %v549 = vpack.c.bf16 %v499, %v498
      %v550 = vpack.c.bf16 %v501, %v500
      %v551 = vpack.c.bf16 %v503, %v502
      %v552 = vpack.c.bf16 %v505, %v504
      %v553 = vpack.c.bf16 %v507, %v506
      %v554 = vpack.c.bf16 %v509, %v508
      %v555 = vpack.c.bf16 %v511, %v510
      %v556 = vpack.c.bf16 %v513, %v512
      %v557 = vpack.c.bf16 %v515, %v514
      %v558 = vpack.c.bf16 %v517, %v516
      %v559 = vpack.c.bf16 %v519, %v518
      %v560 = vpack.c.bf16 %v521, %v520
      %v561 = vpack.c.bf16 %v523, %v522
      %v562 = vpack.c.bf16 %v525, %v524
      %v563 = vpack.c.bf16 %v527, %v526
      %v564 = vpack.c.bf16 %v529, %v528
      %v565 = vpack.c.bf16 %v531, %v530
      %v566 = vpack.c.bf16 %v533, %v532
      %v567 = vpack.c.bf16 %v535, %v534
      %v568 = vld [vmem:[%s1] sm:$0xf]
      %v569 = vld [vmem:[%s1 + $0x4] sm:$0xf]
      %v570 = vld [vmem:[%s1 + $0x8] sm:$0xf]
      %v571 = vld [vmem:[%s1 + $0xc] sm:$0xf]
      %v576 = vunpack.c.l.b16 %v568
      %v577 = vunpack.c.l.b16 %v569
      %v578 = vunpack.c.l.b16 %v570
      %v579 = vunpack.c.l.b16 %v571
      %v580 = vpack.c.b16 %v577, %v576
      %v581 = vpack.c.b16 %v579, %v578
      %vm584 = vcmask 261120
      %v586 = vsel %vm584, %v536, 0
      %v589 = vsel %vm584, %v537, 0
      %v592 = vsel %vm584, %v538, 0
      %v595 = vsel %vm584, %v539, 0
      %v598 = vsel %vm584, %v540, 0
      %v601 = vsel %vm584, %v541, 0
      %v604 = vsel %vm584, %v542, 0
      %v607 = vsel %vm584, %v543, 0
      %v610 = vsel %vm584, %v544, 0
      %v613 = vsel %vm584, %v545, 0
      %v616 = vsel %vm584, %v546, 0
      %v619 = vsel %vm584, %v547, 0
      %v622 = vsel %vm584, %v548, 0
      %v625 = vsel %vm584, %v549, 0
      %v628 = vsel %vm584, %v550, 0
      %v631 = vsel %vm584, %v551, 0
      %v634 = vsel %vm584, %v552, 0
      %v637 = vsel %vm584, %v553, 0
      %v640 = vsel %vm584, %v554, 0
      %v643 = vsel %vm584, %v555, 0
      %v646 = vsel %vm584, %v556, 0
      %v649 = vsel %vm584, %v557, 0
      %v652 = vsel %vm584, %v558, 0
      %v655 = vsel %vm584, %v559, 0
      %v658 = vsel %vm584, %v560, 0
      %v661 = vsel %vm584, %v561, 0
      %v664 = vsel %vm584, %v562, 0
      %v667 = vsel %vm584, %v563, 0
      %v670 = vsel %vm584, %v564, 0
      %v673 = vsel %vm584, %v565, 0
      %v676 = vsel %vm584, %v566, 0
      %v679 = vsel %vm584, %v567, 0
      %681 = vmatprep.subr.bf16.mxu0 0
      %682 = vmatpush1.bf16.msra.mxu0 %v580
      %683 = vmatprep.subr.bf16.mxu0 0
      %684 = vmatpush1.bf16.msra.mxu0 %v581
      %685 = vmatprep.subr.bf16.mxu0 0
      %686 = vmatpush1.bf16.msra.mxu0 0
      %687 = vmatprep.subr.bf16.mxu0 0
      %688 = vmatpush1.bf16.msra.mxu0 0
      %689 = vmatprep.subr.bf16.mxu0 0
      %690 = vmatpush1.bf16.msra.mxu0 0
      %691 = vmatprep.subr.bf16.mxu0 0
      %692 = vmatpush1.bf16.msra.mxu0 0
      %693 = vmatprep.subr.bf16.mxu0 0
      %694 = vmatpush1.bf16.msra.mxu0 0
      %695 = vmatprep.subr.bf16.mxu0 0
      %696 = vmatpush1.bf16.msra.mxu0 0
      %697 = vmatprep.subr.bf16.mxu0 0
      %698 = vmatpush1.bf16.msra.mxu0 0
      %699 = vmatprep.subr.bf16.mxu0 0
      %700 = vmatpush1.bf16.msra.mxu0 0
      %701 = vmatprep.subr.bf16.mxu0 0
      %702 = vmatpush1.bf16.msra.mxu0 0
      %703 = vmatprep.subr.bf16.mxu0 0
      %704 = vmatpush1.bf16.msra.mxu0 0
      %705 = vmatprep.subr.bf16.mxu0 0
      %706 = vmatpush1.bf16.msra.mxu0 0
      %707 = vmatprep.subr.bf16.mxu0 0
      %708 = vmatpush1.bf16.msra.mxu0 0
      %709 = vmatprep.subr.bf16.mxu0 0
      %710 = vmatpush1.bf16.msra.mxu0 0
      %711 = vmatprep.subr.bf16.mxu0 0
      %712 = vmatpush1.bf16.msra.mxu0 0
      %713 = vmatprep.mubr.bf16.mxu0 0
      %714 = vmatmul.mubr.bf16.gmra.mrb[0].mxu0 %v586
      %v715 = vpop.f32.mrb[0].mxu0
      %v716 = vadd.f32 0.0, %v715
      %v717 = vpop.f32.mrb[0].mxu0
      %v718 = vpop.f32.mrb[0].mxu0
      %v719 = vadd.f32 0.0, %v718
      %v720 = vpop.f32.mrb[0].mxu0
      %721 = vmatprep.mubr.bf16.mxu0 0
      %722 = vmatmul.mubr.bf16.gmra.mrb[0].mxu0 %v589
      %v723 = vpop.f32.mrb[0].mxu0
      %v724 = vadd.f32 0.0, %v723
      %v725 = vpop.f32.mrb[0].mxu0
      %v726 = vpop.f32.mrb[0].mxu0
      %v727 = vadd.f32 0.0, %v726
      %v728 = vpop.f32.mrb[0].mxu0
      %729 = vmatprep.mubr.bf16.mxu0 0
      %730 = vmatmul.mubr.bf16.gmra.mrb[0].mxu0 %v592
      %v731 = vpop.f32.mrb[0].mxu0
      %v732 = vadd.f32 0.0, %v731
      %v733 = vpop.f32.mrb[0].mxu0
      %v734 = vpop.f32.mrb[0].mxu0
      %v735 = vadd.f32 0.0, %v734
      %v736 = vpop.f32.mrb[0].mxu0
      %737 = vmatprep.mubr.bf16.mxu0 0
      %738 = vmatmul.mubr.bf16.gmra.mrb[0].mxu0 %v595
      %v739 = vpop.f32.mrb[0].mxu0
      %v740 = vadd.f32 0.0, %v739
      %v741 = vpop.f32.mrb[0].mxu0
      %v742 = vpop.f32.mrb[0].mxu0
      %v743 = vadd.f32 0.0, %v742
      %v744 = vpop.f32.mrb[0].mxu0
      %745 = vmatprep.mubr.bf16.mxu0 0
      %746 = vmatmul.mubr.bf16.gmra.mrb[0].mxu0 %v598
      %v747 = vpop.f32.mrb[0].mxu0
      %v748 = vadd.f32 0.0, %v747
      %v749 = vpop.f32.mrb[0].mxu0
      %v750 = vpop.f32.mrb[0].mxu0
      %v751 = vadd.f32 0.0, %v750
      %v752 = vpop.f32.mrb[0].mxu0
      %753 = vmatprep.mubr.bf16.mxu0 0
      %754 = vmatmul.mubr.bf16.gmra.mrb[0].mxu0 %v601
      %v755 = vpop.f32.mrb[0].mxu0
      %v756 = vadd.f32 0.0, %v755
      %v757 = vpop.f32.mrb[0].mxu0
      %v758 = vpop.f32.mrb[0].mxu0
      %v759 = vadd.f32 0.0, %v758
      %v760 = vpop.f32.mrb[0].mxu0
      %761 = vmatprep.mubr.bf16.mxu0 0
      %762 = vmatmul.mubr.bf16.gmra.mrb[0].mxu0 %v604
      %v763 = vpop.f32.mrb[0].mxu0
      %v764 = vadd.f32 0.0, %v763
      %v765 = vpop.f32.mrb[0].mxu0
      %v766 = vpop.f32.mrb[0].mxu0
      %v767 = vadd.f32 0.0, %v766
      %v768 = vpop.f32.mrb[0].mxu0
      %769 = vmatprep.mubr.bf16.mxu0 0
      %770 = vmatmul.mubr.bf16.gmra.mrb[0].mxu0 %v607
      %v771 = vpop.f32.mrb[0].mxu0
      %v772 = vadd.f32 0.0, %v771
      %v773 = vpop.f32.mrb[0].mxu0
      %v774 = vpop.f32.mrb[0].mxu0
      %v775 = vadd.f32 0.0, %v774
      %v776 = vpop.f32.mrb[0].mxu0
      %777 = vmatprep.mubr.bf16.mxu0 0
      %778 = vmatmul.mubr.bf16.gmra.mrb[0].mxu0 %v610
      %v779 = vpop.f32.mrb[0].mxu0
      %v780 = vadd.f32 0.0, %v779
      %v781 = vpop.f32.mrb[0].mxu0
      %v782 = vpop.f32.mrb[0].mxu0
      %v783 = vadd.f32 0.0, %v782
      %v784 = vpop.f32.mrb[0].mxu0
      %785 = vmatprep.mubr.bf16.mxu0 0
      %786 = vmatmul.mubr.bf16.gmra.mrb[0].mxu0 %v613
      %v787 = vpop.f32.mrb[0].mxu0
      %v788 = vadd.f32 0.0, %v787
      %v789 = vpop.f32.mrb[0].mxu0
      %v790 = vpop.f32.mrb[0].mxu0
      %v791 = vadd.f32 0.0, %v790
      %v792 = vpop.f32.mrb[0].mxu0
      %793 = vmatprep.mubr.bf16.mxu0 0
      %794 = vmatmul.mubr.bf16.gmra.mrb[0].mxu0 %v616
      %v795 = vpop.f32.mrb[0].mxu0
      %v796 = vadd.f32 0.0, %v795
      %v797 = vpop.f32.mrb[0].mxu0
      %v798 = vpop.f32.mrb[0].mxu0
      %v799 = vadd.f32 0.0, %v798
      %v800 = vpop.f32.mrb[0].mxu0
      %801 = vmatprep.mubr.bf16.mxu0 0
      %802 = vmatmul.mubr.bf16.gmra.mrb[0].mxu0 %v619
      %v803 = vpop.f32.mrb[0].mxu0
      %v804 = vadd.f32 0.0, %v803
      %v805 = vpop.f32.mrb[0].mxu0
      %v806 = vpop.f32.mrb[0].mxu0
      %v807 = vadd.f32 0.0, %v806
      %v808 = vpop.f32.mrb[0].mxu0
      %809 = vmatprep.mubr.bf16.mxu0 0
      %810 = vmatmul.mubr.bf16.gmra.mrb[0].mxu0 %v622
      %v811 = vpop.f32.mrb[0].mxu0
      %v812 = vadd.f32 0.0, %v811
      %v813 = vpop.f32.mrb[0].mxu0
      %v814 = vpop.f32.mrb[0].mxu0
      %v815 = vadd.f32 0.0, %v814
      %v816 = vpop.f32.mrb[0].mxu0
      %817 = vmatprep.mubr.bf16.mxu0 0
      %818 = vmatmul.mubr.bf16.gmra.mrb[0].mxu0 %v625
      %v819 = vpop.f32.mrb[0].mxu0
      %v820 = vadd.f32 0.0, %v819
      %v821 = vpop.f32.mrb[0].mxu0
      %v822 = vpop.f32.mrb[0].mxu0
      %v823 = vadd.f32 0.0, %v822
      %v824 = vpop.f32.mrb[0].mxu0
      %825 = vmatprep.mubr.bf16.mxu0 0
      %826 = vmatmul.mubr.bf16.gmra.mrb[0].mxu0 %v628
      %v827 = vpop.f32.mrb[0].mxu0
      %v828 = vadd.f32 0.0, %v827
      %v829 = vpop.f32.mrb[0].mxu0
      %v830 = vpop.f32.mrb[0].mxu0
      %v831 = vadd.f32 0.0, %v830
      %v832 = vpop.f32.mrb[0].mxu0
      %833 = vmatprep.mubr.bf16.mxu0 0
      %834 = vmatmul.mubr.bf16.gmra.mrb[0].mxu0 %v631
      %v835 = vpop.f32.mrb[0].mxu0
      %v836 = vadd.f32 0.0, %v835
      %v837 = vpop.f32.mrb[0].mxu0
      %v838 = vpop.f32.mrb[0].mxu0
      %v839 = vadd.f32 0.0, %v838
      %v840 = vpop.f32.mrb[0].mxu0
      %841 = vmatprep.mubr.bf16.mxu0 0
      %842 = vmatmul.mubr.bf16.gmra.mrb[0].mxu0 %v634
      %v843 = vpop.f32.mrb[0].mxu0
      %v844 = vadd.f32 0.0, %v843
      %v845 = vpop.f32.mrb[0].mxu0
      %v846 = vpop.f32.mrb[0].mxu0
      %v847 = vadd.f32 0.0, %v846
      %v848 = vpop.f32.mrb[0].mxu0
      %849 = vmatprep.mubr.bf16.mxu0 0
      %850 = vmatmul.mubr.bf16.gmra.mrb[0].mxu0 %v637
      %v851 = vpop.f32.mrb[0].mxu0
      %v852 = vadd.f32 0.0, %v851
      %v853 = vpop.f32.mrb[0].mxu0
      %v854 = vpop.f32.mrb[0].mxu0
      %v855 = vadd.f32 0.0, %v854
      %v856 = vpop.f32.mrb[0].mxu0
      %857 = vmatprep.mubr.bf16.mxu0 0
      %858 = vmatmul.mubr.bf16.gmra.mrb[0].mxu0 %v640
      %v859 = vpop.f32.mrb[0].mxu0
      %v860 = vadd.f32 0.0, %v859
      %v861 = vpop.f32.mrb[0].mxu0
      %v862 = vpop.f32.mrb[0].mxu0
      %v863 = vadd.f32 0.0, %v862
      %v864 = vpop.f32.mrb[0].mxu0
      %865 = vmatprep.mubr.bf16.mxu0 0
      %866 = vmatmul.mubr.bf16.gmra.mrb[0].mxu0 %v643
      %v867 = vpop.f32.mrb[0].mxu0
      %v868 = vadd.f32 0.0, %v867
      %v869 = vpop.f32.mrb[0].mxu0
      %v870 = vpop.f32.mrb[0].mxu0
      %v871 = vadd.f32 0.0, %v870
      %v872 = vpop.f32.mrb[0].mxu0
      %873 = vmatprep.mubr.bf16.mxu0 0
      %874 = vmatmul.mubr.bf16.gmra.mrb[0].mxu0 %v646
      %v875 = vpop.f32.mrb[0].mxu0
      %v876 = vadd.f32 0.0, %v875
      %v877 = vpop.f32.mrb[0].mxu0
      %v878 = vpop.f32.mrb[0].mxu0
      %v879 = vadd.f32 0.0, %v878
      %v880 = vpop.f32.mrb[0].mxu0
      %881 = vmatprep.mubr.bf16.mxu0 0
      %882 = vmatmul.mubr.bf16.gmra.mrb[0].mxu0 %v649
      %v883 = vpop.f32.mrb[0].mxu0
      %v884 = vadd.f32 0.0, %v883
      %v885 = vpop.f32.mrb[0].mxu0
      %v886 = vpop.f32.mrb[0].mxu0
      %v887 = vadd.f32 0.0, %v886
      %v888 = vpop.f32.mrb[0].mxu0
      %889 = vmatprep.mubr.bf16.mxu0 0
      %890 = vmatmul.mubr.bf16.gmra.mrb[0].mxu0 %v652
      %v891 = vpop.f32.mrb[0].mxu0
      %v892 = vadd.f32 0.0, %v891
      %v893 = vpop.f32.mrb[0].mxu0
      %v894 = vpop.f32.mrb[0].mxu0
      %v895 = vadd.f32 0.0, %v894
      %v896 = vpop.f32.mrb[0].mxu0
      %897 = vmatprep.mubr.bf16.mxu0 0
      %898 = vmatmul.mubr.bf16.gmra.mrb[0].mxu0 %v655
      %v899 = vpop.f32.mrb[0].mxu0
      %v900 = vadd.f32 0.0, %v899
      %v901 = vpop.f32.mrb[0].mxu0
      %v902 = vpop.f32.mrb[0].mxu0
      %v903 = vadd.f32 0.0, %v902
      %v904 = vpop.f32.mrb[0].mxu0
      %905 = vmatprep.mubr.bf16.mxu0 0
      %906 = vmatmul.mubr.bf16.gmra.mrb[0].mxu0 %v658
      %v907 = vpop.f32.mrb[0].mxu0
      %v908 = vadd.f32 0.0, %v907
      %v909 = vpop.f32.mrb[0].mxu0
      %v910 = vpop.f32.mrb[0].mxu0
      %v911 = vadd.f32 0.0, %v910
      %v912 = vpop.f32.mrb[0].mxu0
      %913 = vmatprep.mubr.bf16.mxu0 0
      %914 = vmatmul.mubr.bf16.gmra.mrb[0].mxu0 %v661
      %v915 = vpop.f32.mrb[0].mxu0
      %v916 = vadd.f32 0.0, %v915
      %v917 = vpop.f32.mrb[0].mxu0
      %v918 = vpop.f32.mrb[0].mxu0
      %v919 = vadd.f32 0.0, %v918
      %v920 = vpop.f32.mrb[0].mxu0
      %921 = vmatprep.mubr.bf16.mxu0 0
      %922 = vmatmul.mubr.bf16.gmra.mrb[0].mxu0 %v664
      %v923 = vpop.f32.mrb[0].mxu0
      %v924 = vadd.f32 0.0, %v923
      %v925 = vpop.f32.mrb[0].mxu0
      %v926 = vpop.f32.mrb[0].mxu0
      %v927 = vadd.f32 0.0, %v926
      %v928 = vpop.f32.mrb[0].mxu0
      %929 = vmatprep.mubr.bf16.mxu0 0
      %930 = vmatmul.mubr.bf16.gmra.mrb[0].mxu0 %v667
      %v931 = vpop.f32.mrb[0].mxu0
      %v932 = vadd.f32 0.0, %v931
      %v933 = vpop.f32.mrb[0].mxu0
      %v934 = vpop.f32.mrb[0].mxu0
      %v935 = vadd.f32 0.0, %v934
      %v936 = vpop.f32.mrb[0].mxu0
      %937 = vmatprep.mubr.bf16.mxu0 0
      %938 = vmatmul.mubr.bf16.gmra.mrb[0].mxu0 %v670
      %v939 = vpop.f32.mrb[0].mxu0
      %v940 = vadd.f32 0.0, %v939
      %v941 = vpop.f32.mrb[0].mxu0
      %v942 = vpop.f32.mrb[0].mxu0
      %v943 = vadd.f32 0.0, %v942
      %v944 = vpop.f32.mrb[0].mxu0
      %945 = vmatprep.mubr.bf16.mxu0 0
      %946 = vmatmul.mubr.bf16.gmra.mrb[0].mxu0 %v673
      %v947 = vpop.f32.mrb[0].mxu0
      %v948 = vadd.f32 0.0, %v947
      %v949 = vpop.f32.mrb[0].mxu0
      %v950 = vpop.f32.mrb[0].mxu0
      %v951 = vadd.f32 0.0, %v950
      %v952 = vpop.f32.mrb[0].mxu0
      %953 = vmatprep.mubr.bf16.mxu0 0
      %954 = vmatmul.mubr.bf16.gmra.mrb[0].mxu0 %v676
      %v955 = vpop.f32.mrb[0].mxu0
      %v956 = vadd.f32 0.0, %v955
      %v957 = vpop.f32.mrb[0].mxu0
      %v958 = vpop.f32.mrb[0].mxu0
      %v959 = vadd.f32 0.0, %v958
      %v960 = vpop.f32.mrb[0].mxu0
      %961 = vmatprep.mubr.bf16.mxu0 0
      %962 = vmatmul.mubr.bf16.gmra.mrb[0].mxu0 %v679
      %v963 = vpop.f32.mrb[0].mxu0
      %v964 = vadd.f32 0.0, %v963
      %v965 = vpop.f32.mrb[0].mxu0
      %v966 = vpop.f32.mrb[0].mxu0
      %v967 = vadd.f32 0.0, %v966
      %v968 = vpop.f32.mrb[0].mxu0
      %969 = vdwg.mxu0
      %v970 = vpack.c.bf16 %v719, %v716
      %v971 = vpack.c.bf16 %v727, %v724
      %v972 = vpack.c.bf16 %v735, %v732
      %v973 = vpack.c.bf16 %v743, %v740
      %v974 = vpack.c.bf16 %v751, %v748
      %v975 = vpack.c.bf16 %v759, %v756
      %v976 = vpack.c.bf16 %v767, %v764
      %v977 = vpack.c.bf16 %v775, %v772
      %v978 = vpack.c.bf16 %v783, %v780
      %v979 = vpack.c.bf16 %v791, %v788
      %v980 = vpack.c.bf16 %v799, %v796
      %v981 = vpack.c.bf16 %v807, %v804
      %v982 = vpack.c.bf16 %v815, %v812
      %v983 = vpack.c.bf16 %v823, %v820
      %v984 = vpack.c.bf16 %v831, %v828
      %v985 = vpack.c.bf16 %v839, %v836
      %v986 = vpack.c.bf16 %v847, %v844
      %v987 = vpack.c.bf16 %v855, %v852
      %v988 = vpack.c.bf16 %v863, %v860
      %v989 = vpack.c.bf16 %v871, %v868
      %v990 = vpack.c.bf16 %v879, %v876
      %v991 = vpack.c.bf16 %v887, %v884
      %v992 = vpack.c.bf16 %v895, %v892
      %v993 = vpack.c.bf16 %v903, %v900
      %v994 = vpack.c.bf16 %v911, %v908
      %v995 = vpack.c.bf16 %v919, %v916
      %v996 = vpack.c.bf16 %v927, %v924
      %v997 = vpack.c.bf16 %v935, %v932
      %v998 = vpack.c.bf16 %v943, %v940
      %v999 = vpack.c.bf16 %v951, %v948
      %v1000 = vpack.c.bf16 %v959, %v956
      %v1001 = vpack.c.bf16 %v967, %v964
      %v1034 = vunpack.c.l.b16 %v970
      %v1035 = vunpack.c.h.b16 %v970
      %v1036 = vunpack.c.l.b16 %v971
      %v1037 = vunpack.c.h.b16 %v971
      %v1038 = vunpack.c.l.b16 %v972
      %v1039 = vunpack.c.h.b16 %v972
      %v1040 = vunpack.c.l.b16 %v973
      %v1041 = vunpack.c.h.b16 %v973
      %v1042 = vunpack.c.l.b16 %v974
      %v1043 = vunpack.c.h.b16 %v974
      %v1044 = vunpack.c.l.b16 %v975
      %v1045 = vunpack.c.h.b16 %v975
      %v1046 = vunpack.c.l.b16 %v976
      %v1047 = vunpack.c.h.b16 %v976
      %v1048 = vunpack.c.l.b16 %v977
      %v1049 = vunpack.c.h.b16 %v977
      %v1050 = vunpack.c.l.b16 %v978
      %v1051 = vunpack.c.h.b16 %v978
      %v1052 = vunpack.c.l.b16 %v979
      %v1053 = vunpack.c.h.b16 %v979
      %v1054 = vunpack.c.l.b16 %v980
      %v1055 = vunpack.c.h.b16 %v980
      %v1056 = vunpack.c.l.b16 %v981
      %v1057 = vunpack.c.h.b16 %v981
      %v1058 = vunpack.c.l.b16 %v982
      %v1059 = vunpack.c.h.b16 %v982
      %v1060 = vunpack.c.l.b16 %v983
      %v1061 = vunpack.c.h.b16 %v983
      %v1062 = vunpack.c.l.b16 %v984
      %v1063 = vunpack.c.h.b16 %v984
      %v1064 = vunpack.c.l.b16 %v985
      %v1065 = vunpack.c.h.b16 %v985
      %v1066 = vunpack.c.l.b16 %v986
      %v1067 = vunpack.c.h.b16 %v986
      %v1068 = vunpack.c.l.b16 %v987
      %v1069 = vunpack.c.h.b16 %v987
      %v1070 = vunpack.c.l.b16 %v988
      %v1071 = vunpack.c.h.b16 %v988
      %v1072 = vunpack.c.l.b16 %v989
      %v1073 = vunpack.c.h.b16 %v989
      %v1074 = vunpack.c.l.b16 %v990
      %v1075 = vunpack.c.h.b16 %v990
      %v1076 = vunpack.c.l.b16 %v991
      %v1077 = vunpack.c.h.b16 %v991
      %v1078 = vunpack.c.l.b16 %v992
      %v1079 = vunpack.c.h.b16 %v992
      %v1080 = vunpack.c.l.b16 %v993
      %v1081 = vunpack.c.h.b16 %v993
      %v1082 = vunpack.c.l.b16 %v994
      %v1083 = vunpack.c.h.b16 %v994
      %v1084 = vunpack.c.l.b16 %v995
      %v1085 = vunpack.c.h.b16 %v995
      %v1086 = vunpack.c.l.b16 %v996
      %v1087 = vunpack.c.h.b16 %v996
      %v1088 = vunpack.c.l.b16 %v997
      %v1089 = vunpack.c.h.b16 %v997
      %v1090 = vunpack.c.l.b16 %v998
      %v1091 = vunpack.c.h.b16 %v998
      %v1092 = vunpack.c.l.b16 %v999
      %v1093 = vunpack.c.h.b16 %v999
      %v1094 = vunpack.c.l.b16 %v1000
      %v1095 = vunpack.c.h.b16 %v1000
      %v1096 = vunpack.c.l.b16 %v1001
      %v1097 = vunpack.c.h.b16 %v1001
      %v1098 = vpack.c.b16 %v1034, %v1034
      %v1099 = vpack.c.b16 %v1035, %v1035
      %v1100 = vpack.c.b16 %v1036, %v1036
      %v1101 = vpack.c.b16 %v1037, %v1037
      %v1102 = vpack.c.b16 %v1038, %v1038
      %v1103 = vpack.c.b16 %v1039, %v1039
      %v1104 = vpack.c.b16 %v1040, %v1040
      %v1105 = vpack.c.b16 %v1041, %v1041
      %v1106 = vpack.c.b16 %v1042, %v1042
      %v1107 = vpack.c.b16 %v1043, %v1043
      %v1108 = vpack.c.b16 %v1044, %v1044
      %v1109 = vpack.c.b16 %v1045, %v1045
      %v1110 = vpack.c.b16 %v1046, %v1046
      %v1111 = vpack.c.b16 %v1047, %v1047
      %v1112 = vpack.c.b16 %v1048, %v1048
      %v1113 = vpack.c.b16 %v1049, %v1049
      %v1114 = vpack.c.b16 %v1050, %v1050
      %v1115 = vpack.c.b16 %v1051, %v1051
      %v1116 = vpack.c.b16 %v1052, %v1052
      %v1117 = vpack.c.b16 %v1053, %v1053
      %v1118 = vpack.c.b16 %v1054, %v1054
      %v1119 = vpack.c.b16 %v1055, %v1055
      %v1120 = vpack.c.b16 %v1056, %v1056
      %v1121 = vpack.c.b16 %v1057, %v1057
      %v1122 = vpack.c.b16 %v1058, %v1058
      %v1123 = vpack.c.b16 %v1059, %v1059
      %v1124 = vpack.c.b16 %v1060, %v1060
      %v1125 = vpack.c.b16 %v1061, %v1061
      %v1126 = vpack.c.b16 %v1062, %v1062
      %v1127 = vpack.c.b16 %v1063, %v1063
      %v1128 = vpack.c.b16 %v1064, %v1064
      %v1129 = vpack.c.b16 %v1065, %v1065
      %v1130 = vpack.c.b16 %v1066, %v1066
      %v1131 = vpack.c.b16 %v1067, %v1067
      %v1132 = vpack.c.b16 %v1068, %v1068
      %v1133 = vpack.c.b16 %v1069, %v1069
      %v1134 = vpack.c.b16 %v1070, %v1070
      %v1135 = vpack.c.b16 %v1071, %v1071
      %v1136 = vpack.c.b16 %v1072, %v1072
      %v1137 = vpack.c.b16 %v1073, %v1073
      %v1138 = vpack.c.b16 %v1074, %v1074
      %v1139 = vpack.c.b16 %v1075, %v1075
      %v1140 = vpack.c.b16 %v1076, %v1076
      %v1141 = vpack.c.b16 %v1077, %v1077
      %v1142 = vpack.c.b16 %v1078, %v1078
      %v1143 = vpack.c.b16 %v1079, %v1079
      %v1144 = vpack.c.b16 %v1080, %v1080
      %v1145 = vpack.c.b16 %v1081, %v1081
      %v1146 = vpack.c.b16 %v1082, %v1082
      %v1147 = vpack.c.b16 %v1083, %v1083
      %v1148 = vpack.c.b16 %v1084, %v1084
      %v1149 = vpack.c.b16 %v1085, %v1085
      %v1150 = vpack.c.b16 %v1086, %v1086
      %v1151 = vpack.c.b16 %v1087, %v1087
      %v1152 = vpack.c.b16 %v1088, %v1088
      %v1153 = vpack.c.b16 %v1089, %v1089
      %v1154 = vpack.c.b16 %v1090, %v1090
      %v1155 = vpack.c.b16 %v1091, %v1091
      %v1156 = vpack.c.b16 %v1092, %v1092
      %v1157 = vpack.c.b16 %v1093, %v1093
      %v1158 = vpack.c.b16 %v1094, %v1094
      %v1159 = vpack.c.b16 %v1095, %v1095
      %v1160 = vpack.c.b16 %v1096, %v1096
      %v1161 = vpack.c.b16 %v1097, %v1097
      %vm1226 = vcmask 388096
      %1227 = vst.msk [vmem:[%s199] sm:$0xf] %vm1226, %v1098
      %1228 = vst.msk [vmem:[%s199 + $0x4] sm:$0xf] %vm1226, %v1099
      %1229 = vst.msk [vmem:[%s199 + $0x8] sm:$0xf] %vm1226, %v1100
      %1230 = vst.msk [vmem:[%s199 + $0xc] sm:$0xf] %vm1226, %v1101
      %1231 = vst.msk [vmem:[%s199 + $0x10] sm:$0xf] %vm1226, %v1102
      %1232 = vst.msk [vmem:[%s199 + $0x14] sm:$0xf] %vm1226, %v1103
      %1233 = vst.msk [vmem:[%s199 + $0x18] sm:$0xf] %vm1226, %v1104
      %1234 = vst.msk [vmem:[%s199 + $0x1c] sm:$0xf] %vm1226, %v1105
      %1235 = vst.msk [vmem:[%s199 + $0x20] sm:$0xf] %vm1226, %v1106
      %1236 = vst.msk [vmem:[%s199 + $0x24] sm:$0xf] %vm1226, %v1107
      %1237 = vst.msk [vmem:[%s199 + $0x28] sm:$0xf] %vm1226, %v1108
      %1238 = vst.msk [vmem:[%s199 + $0x2c] sm:$0xf] %vm1226, %v1109
      %1239 = vst.msk [vmem:[%s199 + $0x30] sm:$0xf] %vm1226, %v1110
      %1240 = vst.msk [vmem:[%s199 + $0x34] sm:$0xf] %vm1226, %v1111
      %1241 = vst.msk [vmem:[%s199 + $0x38] sm:$0xf] %vm1226, %v1112
      %1242 = vst.msk [vmem:[%s199 + $0x3c] sm:$0xf] %vm1226, %v1113
      %1243 = vst.msk [vmem:[%s199 + $0x40] sm:$0xf] %vm1226, %v1114
      %1244 = vst.msk [vmem:[%s199 + $0x44] sm:$0xf] %vm1226, %v1115
      %1245 = vst.msk [vmem:[%s199 + $0x48] sm:$0xf] %vm1226, %v1116
      %1246 = vst.msk [vmem:[%s199 + $0x4c] sm:$0xf] %vm1226, %v1117
      %1247 = vst.msk [vmem:[%s199 + $0x50] sm:$0xf] %vm1226, %v1118
      %1248 = vst.msk [vmem:[%s199 + $0x54] sm:$0xf] %vm1226, %v1119
      %1249 = vst.msk [vmem:[%s199 + $0x58] sm:$0xf] %vm1226, %v1120
      %1250 = vst.msk [vmem:[%s199 + $0x5c] sm:$0xf] %vm1226, %v1121
      %1251 = vst.msk [vmem:[%s199 + $0x60] sm:$0xf] %vm1226, %v1122
      %1252 = vst.msk [vmem:[%s199 + $0x64] sm:$0xf] %vm1226, %v1123
      %1253 = vst.msk [vmem:[%s199 + $0x68] sm:$0xf] %vm1226, %v1124
      %1254 = vst.msk [vmem:[%s199 + $0x6c] sm:$0xf] %vm1226, %v1125
      %1255 = vst.msk [vmem:[%s199 + $0x70] sm:$0xf] %vm1226, %v1126
      %1256 = vst.msk [vmem:[%s199 + $0x74] sm:$0xf] %vm1226, %v1127
      %1257 = vst.msk [vmem:[%s199 + $0x78] sm:$0xf] %vm1226, %v1128
      %1258 = vst.msk [vmem:[%s199 + $0x7c] sm:$0xf] %vm1226, %v1129
      %1259 = vst.msk [vmem:[%s199 + $0x80] sm:$0xf] %vm1226, %v1130
      %1260 = vst.msk [vmem:[%s199 + $0x84] sm:$0xf] %vm1226, %v1131
      %1261 = vst.msk [vmem:[%s199 + $0x88] sm:$0xf] %vm1226, %v1132
      %1262 = vst.msk [vmem:[%s199 + $0x8c] sm:$0xf] %vm1226, %v1133
      %1263 = vst.msk [vmem:[%s199 + $0x90] sm:$0xf] %vm1226, %v1134
      %1264 = vst.msk [vmem:[%s199 + $0x94] sm:$0xf] %vm1226, %v1135
      %1265 = vst.msk [vmem:[%s199 + $0x98] sm:$0xf] %vm1226, %v1136
      %1266 = vst.msk [vmem:[%s199 + $0x9c] sm:$0xf] %vm1226, %v1137
      %1267 = vst.msk [vmem:[%s199 + $0xa0] sm:$0xf] %vm1226, %v1138
      %1268 = vst.msk [vmem:[%s199 + $0xa4] sm:$0xf] %vm1226, %v1139
      %1269 = vst.msk [vmem:[%s199 + $0xa8] sm:$0xf] %vm1226, %v1140
      %1270 = vst.msk [vmem:[%s199 + $0xac] sm:$0xf] %vm1226, %v1141
      %1271 = vst.msk [vmem:[%s199 + $0xb0] sm:$0xf] %vm1226, %v1142
      %1272 = vst.msk [vmem:[%s199 + $0xb4] sm:$0xf] %vm1226, %v1143
      %1273 = vst.msk [vmem:[%s199 + $0xb8] sm:$0xf] %vm1226, %v1144
      %1274 = vst.msk [vmem:[%s199 + $0xbc] sm:$0xf] %vm1226, %v1145
      %1275 = vst.msk [vmem:[%s199 + $0xc0] sm:$0xf] %vm1226, %v1146
      %1276 = vst.msk [vmem:[%s199 + $0xc4] sm:$0xf] %vm1226, %v1147
      %1277 = vst.msk [vmem:[%s199 + $0xc8] sm:$0xf] %vm1226, %v1148
      %1278 = vst.msk [vmem:[%s199 + $0xcc] sm:$0xf] %vm1226, %v1149
      %1279 = vst.msk [vmem:[%s199 + $0xd0] sm:$0xf] %vm1226, %v1150
      %1280 = vst.msk [vmem:[%s199 + $0xd4] sm:$0xf] %vm1226, %v1151
      %1281 = vst.msk [vmem:[%s199 + $0xd8] sm:$0xf] %vm1226, %v1152
      %1282 = vst.msk [vmem:[%s199 + $0xdc] sm:$0xf] %vm1226, %v1153
      %1283 = vst.msk [vmem:[%s199 + $0xe0] sm:$0xf] %vm1226, %v1154
      %1284 = vst.msk [vmem:[%s199 + $0xe4] sm:$0xf] %vm1226, %v1155
      %1285 = vst.msk [vmem:[%s199 + $0xe8] sm:$0xf] %vm1226, %v1156
      %1286 = vst.msk [vmem:[%s199 + $0xec] sm:$0xf] %vm1226, %v1157
      %1287 = vst.msk [vmem:[%s199 + $0xf0] sm:$0xf] %vm1226, %v1158
      %1288 = vst.msk [vmem:[%s199 + $0xf4] sm:$0xf] %vm1226, %v1159
      %1289 = vst.msk [vmem:[%s199 + $0xf8] sm:$0xf] %vm1226, %v1160
      %1290 = vst.msk [vmem:[%s199 + $0xfc] sm:$0xf] %vm1226, %v1161
      %s1291 = smul.u32 64, %s15
      %p1292 = scmp.lt.s32.totalorder %s1291, 255
      %s1293 = scalar_select %p1292, %s1291, 255
      %s1294 = smul.addr %s1293, 4
      %s1295 = scalar_lea.vmem %s4, %s1294
      // Predicated region
      $region37: #{decoder_a_forward.16} parent=35 // pred_check
        %p1296 = pneg %p122
      $region38: #{decoder_a_forward.16} parent=35 // pred_check_branch
        %1298 = sbr.rel (%p1296) target = $region40
      $region39: #{decoder_a_forward.16} parent=35 // pred_region
        %s1299 = smul.u32 64, %s15
      $region40: #{decoder_a_forward.16} parent=35 // pred_fallthru
        _
    $region36: #{decoder_a_forward.16} parent=5 // pred_fallthru
      _
    %p1300 = scmp.le.s32.totalorder 2, %s10
    // Predicated region
    $region41: #{decoder_a_forward.16} parent=5 // pred_check
      %p1301 = pneg %p1300
    $region42: #{decoder_a_forward.16} parent=5 // pred_check_branch
      %1303 = sbr.rel (%p1301) target = $region44
    $region43: #{decoder_a_forward.16} parent=5 // pred_region
      %s1304 = ssub.s32 %s10, 2
      // Predicated region
      $region45: #{decoder_a_forward.16} parent=43 // pred_check
        %p1305 = pneg %p128
      $region46: #{decoder_a_forward.16} parent=43 // pred_check_branch
        %1307 = sbr.rel (%p1305) target = $region48
      $region47: #{decoder_a_forward.16} parent=43 // pred_region
        %s1308 = smul.u32 64, %s16
        %p1309 = scmp.lt.s32.totalorder %s1308, 255
        %s1310 = scalar_select %p1309, %s1308, 255
        %s1311 = smul.addr %s1310, 4
        %s1312 = scalar_lea.vmem %s4, %s1311
      $region48: #{decoder_a_forward.16} parent=43 // pred_fallthru
        _
    $region44: #{decoder_a_forward.16} parent=5 // pred_fallthru
      _
  $region6: #{decoder_a_forward.16} parent=0 // loop_footer
    %s14 = sadd.s32 1, %s10
  $region7: #{decoder_a_forward.16} parent=0 // loop_footer_branch
    %9 = sbr.rel target = $region3
  $region8: #{decoder_a_forward.16} parent=0 // loop_exit
    _

// kernel: decoder_a_forward.17
$region0: #{decoder_a_forward.17}
  #allocation0 [shape = 'u32[]', space=smem, size = 0x4, offset = 0x4, fixed_abs, tag = 'smem constant byte address 0x4 - core index']
  #allocation1 [shape = 'u32[144,128]{1,0:T(1,128)}', space=vmem, size = 0x12000, scoped, tag = 'internal scratch']
  %s0 = inlined_call_operand.vmem [shape: bf16[8,4096], index: 0, kind: input, shape index: {}]
  %s1 = inlined_call_operand.vmem [shape: f32[8,4096], index: 1, kind: input, shape index: {}]
  %s2 = inlined_call_operand.vmem [shape: f32[4096,64], index: 2, kind: input, shape index: {}]
  %s3 = inlined_call_operand.vmem [shape: f32[8,4096], index: 3, kind: output, shape index: {0}]
  %s4 = inlined_call_operand.vmem [shape: f32[8,64], index: 4, kind: output, shape index: {1}]
  %5 = xla_tuple %s3, %s4
  %s6 = sld [smem:[#allocation0]]
  $region30: #{decoder_a_forward.17} parent=0
    _
  %s8 = ssub.s32 1, %s6
  %s9 = scalar_select 0, %s8, %s6
  // Predicated region
  $region2: #{decoder_a_forward.17} parent=0 // pred_check
    _
  $region3: #{decoder_a_forward.17} parent=0 // pred_check_branch
    %11 = sbr.rel (0) target = $region5
  $region4: #{decoder_a_forward.17} parent=0 // pred_region
    _
  $region5: #{decoder_a_forward.17} parent=0 // pred_fallthru
    _
  // Predicated region
  $region6: #{decoder_a_forward.17} parent=0 // pred_check
    _
  $region7: #{decoder_a_forward.17} parent=0 // pred_check_branch
    %13 = sbr.rel (0) target = $region9
  $region8: #{decoder_a_forward.17} parent=0 // pred_region
    _
  $region9: #{decoder_a_forward.17} parent=0 // pred_fallthru
    _
  // Predicated region
  $region10: #{decoder_a_forward.17} parent=0 // pred_check
    _
  $region11: #{decoder_a_forward.17} parent=0 // pred_check_branch
    %15 = sbr.rel (0) target = $region13
  $region12: #{decoder_a_forward.17} parent=0 // pred_region
    _
  $region13: #{decoder_a_forward.17} parent=0 // pred_fallthru
    _
  %v16 = vld [vmem:[%s0] sm:$0xff]
  %v17 = vld [vmem:[%s0 + $0x8] sm:$0xff]
  %v18 = vld [vmem:[%s0 + $0x10] sm:$0xff]
  %v19 = vld [vmem:[%s0 + $0x18] sm:$0xff]
  %v20 = vld [vmem:[%s0 + $0x20] sm:$0xff]
  %v21 = vld [vmem:[%s0 + $0x28] sm:$0xff]
  %v22 = vld [vmem:[%s0 + $0x30] sm:$0xff]
  %v23 = vld [vmem:[%s0 + $0x38] sm:$0xff]
  %v24 = vld [vmem:[%s0 + $0x40] sm:$0xff]
  %v25 = vld [vmem:[%s0 + $0x48] sm:$0xff]
  %v26 = vld [vmem:[%s0 + $0x50] sm:$0xff]
  %v27 = vld [vmem:[%s0 + $0x58] sm:$0xff]
  %v28 = vld [vmem:[%s0 + $0x60] sm:$0xff]
  %v29 = vld [vmem:[%s0 + $0x68] sm:$0xff]
  %v30 = vld [vmem:[%s0 + $0x70] sm:$0xff]
  %v31 = vld [vmem:[%s0 + $0x78] sm:$0xff]
  %v32 = vunpack.c.l.bf16 %v16
  %v33 = vunpack.c.h.bf16 %v16
  %v34 = vunpack.c.l.bf16 %v17
  %v35 = vunpack.c.h.bf16 %v17
  %v36 = vunpack.c.l.bf16 %v18
  %v37 = vunpack.c.h.bf16 %v18
  %v38 = vunpack.c.l.bf16 %v19
  %v39 = vunpack.c.h.bf16 %v19
  %v40 = vunpack.c.l.bf16 %v20
  %v41 = vunpack.c.h.bf16 %v20
  %v42 = vunpack.c.l.bf16 %v21
  %v43 = vunpack.c.h.bf16 %v21
  %v44 = vunpack.c.l.bf16 %v22
  %v45 = vunpack.c.h.bf16 %v22
  %v46 = vunpack.c.l.bf16 %v23
  %v47 = vunpack.c.h.bf16 %v23
  %v48 = vunpack.c.l.bf16 %v24
  %v49 = vunpack.c.h.bf16 %v24
  %v50 = vunpack.c.l.bf16 %v25
  %v51 = vunpack.c.h.bf16 %v25
  %v52 = vunpack.c.l.bf16 %v26
  %v53 = vunpack.c.h.bf16 %v26
  %v54 = vunpack.c.l.bf16 %v27
  %v55 = vunpack.c.h.bf16 %v27
  %v56 = vunpack.c.l.bf16 %v28
  %v57 = vunpack.c.h.bf16 %v28
  %v58 = vunpack.c.l.bf16 %v29
  %v59 = vunpack.c.h.bf16 %v29
  %v60 = vunpack.c.l.bf16 %v30
  %v61 = vunpack.c.h.bf16 %v30
  %v62 = vunpack.c.l.bf16 %v31
  %v63 = vunpack.c.h.bf16 %v31
  %v64 = vxor.u32 %v32, 2147483648
  %v65 = vxor.u32 %v33, 2147483648
  %v66 = vxor.u32 %v34, 2147483648
  %v67 = vxor.u32 %v35, 2147483648
  %v68 = vxor.u32 %v36, 2147483648
  %v69 = vxor.u32 %v37, 2147483648
  %v70 = vxor.u32 %v38, 2147483648
  %v71 = vxor.u32 %v39, 2147483648
  %v72 = vxor.u32 %v40, 2147483648
  %v73 = vxor.u32 %v41, 2147483648
  %v74 = vxor.u32 %v42, 2147483648
  %v75 = vxor.u32 %v43, 2147483648
  %v76 = vxor.u32 %v44, 2147483648
  %v77 = vxor.u32 %v45, 2147483648
  %v78 = vxor.u32 %v46, 2147483648
  %v79 = vxor.u32 %v47, 2147483648
  %v80 = vxor.u32 %v48, 2147483648
  %v81 = vxor.u32 %v49, 2147483648
  %v82 = vxor.u32 %v50, 2147483648
  %v83 = vxor.u32 %v51, 2147483648
  %v84 = vxor.u32 %v52, 2147483648
  %v85 = vxor.u32 %v53, 2147483648
  %v86 = vxor.u32 %v54, 2147483648
  %v87 = vxor.u32 %v55, 2147483648
  %v88 = vxor.u32 %v56, 2147483648
  %v89 = vxor.u32 %v57, 2147483648
  %v90 = vxor.u32 %v58, 2147483648
  %v91 = vxor.u32 %v59, 2147483648
  %v92 = vxor.u32 %v60, 2147483648
  %v93 = vxor.u32 %v61, 2147483648
  %v94 = vxor.u32 %v62, 2147483648
  %v95 = vxor.u32 %v63, 2147483648
  %v96 = vmul.f32 %v64, 1.442695
  %v97 = vpow.pop %v96
  %v98 = vmul.f32 %v65, 1.442695
  %v99 = vpow.pop %v98
  %v100 = vmul.f32 %v66, 1.442695
  %v101 = vpow.pop %v100
  %v102 = vmul.f32 %v67, 1.442695
  %v103 = vpow.pop %v102
  %v104 = vmul.f32 %v68, 1.442695
  %v105 = vpow.pop %v104
  %v106 = vmul.f32 %v69, 1.442695
  %v107 = vpow.pop %v106
  %v108 = vmul.f32 %v70, 1.442695
  %v109 = vpow.pop %v108
  %v110 = vmul.f32 %v71, 1.442695
  %v111 = vpow.pop %v110
  %v112 = vmul.f32 %v72, 1.442695
  %v113 = vpow.pop %v112
  %v114 = vmul.f32 %v73, 1.442695
  %v115 = vpow.pop %v114
  %v116 = vmul.f32 %v74, 1.442695
  %v117 = vpow.pop %v116
  %v118 = vmul.f32 %v75, 1.442695
  %v119 = vpow.pop %v118
  %v120 = vmul.f32 %v76, 1.442695
  %v121 = vpow.pop %v120
  %v122 = vmul.f32 %v77, 1.442695
  %v123 = vpow.pop %v122
  %v124 = vmul.f32 %v78, 1.442695
  %v125 = vpow.pop %v124
  %v126 = vmul.f32 %v79, 1.442695
  %v127 = vpow.pop %v126
  %v128 = vmul.f32 %v80, 1.442695
  %v129 = vpow.pop %v128
  %v130 = vmul.f32 %v81, 1.442695
  %v131 = vpow.pop %v130
  %v132 = vmul.f32 %v82, 1.442695
  %v133 = vpow.pop %v132
  %v134 = vmul.f32 %v83, 1.442695
  %v135 = vpow.pop %v134
  %v136 = vmul.f32 %v84, 1.442695
  %v137 = vpow.pop %v136
  %v138 = vmul.f32 %v85, 1.442695
  %v139 = vpow.pop %v138
  %v140 = vmul.f32 %v86, 1.442695
  %v141 = vpow.pop %v140
  %v142 = vmul.f32 %v87, 1.442695
  %v143 = vpow.pop %v142
  %v144 = vmul.f32 %v88, 1.442695
  %v145 = vpow.pop %v144
  %v146 = vmul.f32 %v89, 1.442695
  %v147 = vpow.pop %v146
  %v148 = vmul.f32 %v90, 1.442695
  %v149 = vpow.pop %v148
  %v150 = vmul.f32 %v91, 1.442695
  %v151 = vpow.pop %v150
  %v152 = vmul.f32 %v92, 1.442695
  %v153 = vpow.pop %v152
  %v154 = vmul.f32 %v93, 1.442695
  %v155 = vpow.pop %v154
  %v156 = vmul.f32 %v94, 1.442695
  %v157 = vpow.pop %v156
  %v158 = vmul.f32 %v95, 1.442695
  %v159 = vpow.pop %v158
  %v160 = vadd.f32 %v97, 1.0
  %v161 = vadd.f32 %v99, 1.0
  %v162 = vadd.f32 %v101, 1.0
  %v163 = vadd.f32 %v103, 1.0
  %v164 = vadd.f32 %v105, 1.0
  %v165 = vadd.f32 %v107, 1.0
  %v166 = vadd.f32 %v109, 1.0
  %v167 = vadd.f32 %v111, 1.0
  %v168 = vadd.f32 %v113, 1.0
  %v169 = vadd.f32 %v115, 1.0
  %v170 = vadd.f32 %v117, 1.0
  %v171 = vadd.f32 %v119, 1.0
  %v172 = vadd.f32 %v121, 1.0
  %v173 = vadd.f32 %v123, 1.0
  %v174 = vadd.f32 %v125, 1.0
  %v175 = vadd.f32 %v127, 1.0
  %v176 = vadd.f32 %v129, 1.0
  %v177 = vadd.f32 %v131, 1.0
  %v178 = vadd.f32 %v133, 1.0
  %v179 = vadd.f32 %v135, 1.0
  %v180 = vadd.f32 %v137, 1.0
  %v181 = vadd.f32 %v139, 1.0
  %v182 = vadd.f32 %v141, 1.0
  %v183 = vadd.f32 %v143, 1.0
  %v184 = vadd.f32 %v145, 1.0
  %v185 = vadd.f32 %v147, 1.0
  %v186 = vadd.f32 %v149, 1.0
  %v187 = vadd.f32 %v151, 1.0
  %v188 = vadd.f32 %v153, 1.0
  %v189 = vadd.f32 %v155, 1.0
  %v190 = vadd.f32 %v157, 1.0
  %v191 = vadd.f32 %v159, 1.0
  %v192 = vrcp.pop %v160
  %v193 = vmul.f32 1.0, %v192
  %v194 = vrcp.pop %v161
  %v195 = vmul.f32 1.0, %v194
  %v196 = vrcp.pop %v162
  %v197 = vmul.f32 1.0, %v196
  %v198 = vrcp.pop %v163
  %v199 = vmul.f32 1.0, %v198
  %v200 = vrcp.pop %v164
  %v201 = vmul.f32 1.0, %v200
  %v202 = vrcp.pop %v165
  %v203 = vmul.f32 1.0, %v202
  %v204 = vrcp.pop %v166
  %v205 = vmul.f32 1.0, %v204
  %v206 = vrcp.pop %v167
  %v207 = vmul.f32 1.0, %v206
  %v208 = vrcp.pop %v168
  %v209 = vmul.f32 1.0, %v208
  %v210 = vrcp.pop %v169
  %v211 = vmul.f32 1.0, %v210
  %v212 = vrcp.pop %v170
  %v213 = vmul.f32 1.0, %v212
  %v214 = vrcp.pop %v171
  %v215 = vmul.f32 1.0, %v214
  %v216 = vrcp.pop %v172
  %v217 = vmul.f32 1.0, %v216
  %v218 = vrcp.pop %v173
  %v219 = vmul.f32 1.0, %v218
  %v220 = vrcp.pop %v174
  %v221 = vmul.f32 1.0, %v220
  %v222 = vrcp.pop %v175
  %v223 = vmul.f32 1.0, %v222
  %v224 = vrcp.pop %v176
  %v225 = vmul.f32 1.0, %v224
  %v226 = vrcp.pop %v177
  %v227 = vmul.f32 1.0, %v226
  %v228 = vrcp.pop %v178
  %v229 = vmul.f32 1.0, %v228
  %v230 = vrcp.pop %v179
  %v231 = vmul.f32 1.0, %v230
  %v232 = vrcp.pop %v180
  %v233 = vmul.f32 1.0, %v232
  %v234 = vrcp.pop %v181
  %v235 = vmul.f32 1.0, %v234
  %v236 = vrcp.pop %v182
  %v237 = vmul.f32 1.0, %v236
  %v238 = vrcp.pop %v183
  %v239 = vmul.f32 1.0, %v238
  %v240 = vrcp.pop %v184
  %v241 = vmul.f32 1.0, %v240
  %v242 = vrcp.pop %v185
  %v243 = vmul.f32 1.0, %v242
  %v244 = vrcp.pop %v186
  %v245 = vmul.f32 1.0, %v244
  %v246 = vrcp.pop %v187
  %v247 = vmul.f32 1.0, %v246
  %v248 = vrcp.pop %v188
  %v249 = vmul.f32 1.0, %v248
  %v250 = vrcp.pop %v189
  %v251 = vmul.f32 1.0, %v250
  %v252 = vrcp.pop %v190
  %v253 = vmul.f32 1.0, %v252
  %v254 = vrcp.pop %v191
  %v255 = vmul.f32 1.0, %v254
  %v256 = vld [vmem:[%s1] sm:$0xff]
  %v257 = vld [vmem:[%s1 + $0x8] sm:$0xff]
  %v258 = vld [vmem:[%s1 + $0x10] sm:$0xff]
  %v259 = vld [vmem:[%s1 + $0x18] sm:$0xff]
  %v260 = vld [vmem:[%s1 + $0x20] sm:$0xff]
  %v261 = vld [vmem:[%s1 + $0x28] sm:$0xff]
  %v262 = vld [vmem:[%s1 + $0x30] sm:$0xff]
  %v263 = vld [vmem:[%s1 + $0x38] sm:$0xff]
  %v264 = vld [vmem:[%s1 + $0x40] sm:$0xff]
  %v265 = vld [vmem:[%s1 + $0x48] sm:$0xff]
  %v266 = vld [vmem:[%s1 + $0x50] sm:$0xff]
  %v267 = vld [vmem:[%s1 + $0x58] sm:$0xff]
  %v268 = vld [vmem:[%s1 + $0x60] sm:$0xff]
  %v269 = vld [vmem:[%s1 + $0x68] sm:$0xff]
  %v270 = vld [vmem:[%s1 + $0x70] sm:$0xff]
  %v271 = vld [vmem:[%s1 + $0x78] sm:$0xff]
  %v272 = vld [vmem:[%s1 + $0x80] sm:$0xff]
  %v273 = vld [vmem:[%s1 + $0x88] sm:$0xff]
  %v274 = vld [vmem:[%s1 + $0x90] sm:$0xff]
  %v275 = vld [vmem:[%s1 + $0x98] sm:$0xff]
  %v276 = vld [vmem:[%s1 + $0xa0] sm:$0xff]
  %v277 = vld [vmem:[%s1 + $0xa8] sm:$0xff]
  %v278 = vld [vmem:[%s1 + $0xb0] sm:$0xff]
  %v279 = vld [vmem:[%s1 + $0xb8] sm:$0xff]
  %v280 = vld [vmem:[%s1 + $0xc0] sm:$0xff]
  %v281 = vld [vmem:[%s1 + $0xc8] sm:$0xff]
  %v282 = vld [vmem:[%s1 + $0xd0] sm:$0xff]
  %v283 = vld [vmem:[%s1 + $0xd8] sm:$0xff]
  %v284 = vld [vmem:[%s1 + $0xe0] sm:$0xff]
  %v285 = vld [vmem:[%s1 + $0xe8] sm:$0xff]
  %v286 = vld [vmem:[%s1 + $0xf0] sm:$0xff]
  %v287 = vld [vmem:[%s1 + $0xf8] sm:$0xff]
  %v288 = vadd.f32 %v193, 1e-09
  %v289 = vadd.f32 %v195, 1e-09
  %v290 = vadd.f32 %v197, 1e-09
  %v291 = vadd.f32 %v199, 1e-09
  %v292 = vadd.f32 %v201, 1e-09
  %v293 = vadd.f32 %v203, 1e-09
  %v294 = vadd.f32 %v205, 1e-09
  %v295 = vadd.f32 %v207, 1e-09
  %v296 = vadd.f32 %v209, 1e-09
  %v297 = vadd.f32 %v211, 1e-09
  %v298 = vadd.f32 %v213, 1e-09
  %v299 = vadd.f32 %v215, 1e-09
  %v300 = vadd.f32 %v217, 1e-09
  %v301 = vadd.f32 %v219, 1e-09
  %v302 = vadd.f32 %v221, 1e-09
  %v303 = vadd.f32 %v223, 1e-09
  %v304 = vadd.f32 %v225, 1e-09
  %v305 = vadd.f32 %v227, 1e-09
  %v306 = vadd.f32 %v229, 1e-09
  %v307 = vadd.f32 %v231, 1e-09
  %v308 = vadd.f32 %v233, 1e-09
  %v309 = vadd.f32 %v235, 1e-09
  %v310 = vadd.f32 %v237, 1e-09
  %v311 = vadd.f32 %v239, 1e-09
  %v312 = vadd.f32 %v241, 1e-09
  %v313 = vadd.f32 %v243, 1e-09
  %v314 = vadd.f32 %v245, 1e-09
  %v315 = vadd.f32 %v247, 1e-09
  %v316 = vadd.f32 %v249, 1e-09
  %v317 = vadd.f32 %v251, 1e-09
  %v318 = vadd.f32 %v253, 1e-09
  %v319 = vadd.f32 %v255, 1e-09
  %v320 = vlog2.pop %v288
  %v321 = vmul.f32 %v320, 0.6931472
  %v322 = vlog2.pop %v289
  %v323 = vmul.f32 %v322, 0.6931472
  %v324 = vlog2.pop %v290
  %v325 = vmul.f32 %v324, 0.6931472
  %v326 = vlog2.pop %v291
  %v327 = vmul.f32 %v326, 0.6931472
  %v328 = vlog2.pop %v292
  %v329 = vmul.f32 %v328, 0.6931472
  %v330 = vlog2.pop %v293
  %v331 = vmul.f32 %v330, 0.6931472
  %v332 = vlog2.pop %v294
  %v333 = vmul.f32 %v332, 0.6931472
  %v334 = vlog2.pop %v295
  %v335 = vmul.f32 %v334, 0.6931472
  %v336 = vlog2.pop %v296
  %v337 = vmul.f32 %v336, 0.6931472
  %v338 = vlog2.pop %v297
  %v339 = vmul.f32 %v338, 0.6931472
  %v340 = vlog2.pop %v298
  %v341 = vmul.f32 %v340, 0.6931472
  %v342 = vlog2.pop %v299
  %v343 = vmul.f32 %v342, 0.6931472
  %v344 = vlog2.pop %v300
  %v345 = vmul.f32 %v344, 0.6931472
  %v346 = vlog2.pop %v301
  %v347 = vmul.f32 %v346, 0.6931472
  %v348 = vlog2.pop %v302
  %v349 = vmul.f32 %v348, 0.6931472
  %v350 = vlog2.pop %v303
  %v351 = vmul.f32 %v350, 0.6931472
  %v352 = vlog2.pop %v304
  %v353 = vmul.f32 %v352, 0.6931472
  %v354 = vlog2.pop %v305
  %v355 = vmul.f32 %v354, 0.6931472
  %v356 = vlog2.pop %v306
  %v357 = vmul.f32 %v356, 0.6931472
  %v358 = vlog2.pop %v307
  %v359 = vmul.f32 %v358, 0.6931472
  %v360 = vlog2.pop %v308
  %v361 = vmul.f32 %v360, 0.6931472
  %v362 = vlog2.pop %v309
  %v363 = vmul.f32 %v362, 0.6931472
  %v364 = vlog2.pop %v310
  %v365 = vmul.f32 %v364, 0.6931472
  %v366 = vlog2.pop %v311
  %v367 = vmul.f32 %v366, 0.6931472
  %v368 = vlog2.pop %v312
  %v369 = vmul.f32 %v368, 0.6931472
  %v370 = vlog2.pop %v313
  %v371 = vmul.f32 %v370, 0.6931472
  %v372 = vlog2.pop %v314
  %v373 = vmul.f32 %v372, 0.6931472
  %v374 = vlog2.pop %v315
  %v375 = vmul.f32 %v374, 0.6931472
  %v376 = vlog2.pop %v316
  %v377 = vmul.f32 %v376, 0.6931472
  %v378 = vlog2.pop %v317
  %v379 = vmul.f32 %v378, 0.6931472
  %v380 = vlog2.pop %v318
  %v381 = vmul.f32 %v380, 0.6931472
  %v382 = vlog2.pop %v319
  %v383 = vmul.f32 %v382, 0.6931472
  %v384 = vmul.f32 %v321, %v256
  %v385 = vmul.f32 %v323, %v257
  %v386 = vmul.f32 %v325, %v258
  %v387 = vmul.f32 %v327, %v259
  %v388 = vmul.f32 %v329, %v260
  %v389 = vmul.f32 %v331, %v261
  %v390 = vmul.f32 %v333, %v262
  %v391 = vmul.f32 %v335, %v263
  %v392 = vmul.f32 %v337, %v264
  %v393 = vmul.f32 %v339, %v265
  %v394 = vmul.f32 %v341, %v266
  %v395 = vmul.f32 %v343, %v267
  %v396 = vmul.f32 %v345, %v268
  %v397 = vmul.f32 %v347, %v269
  %v398 = vmul.f32 %v349, %v270
  %v399 = vmul.f32 %v351, %v271
  %v400 = vmul.f32 %v353, %v272
  %v401 = vmul.f32 %v355, %v273
  %v402 = vmul.f32 %v357, %v274
  %v403 = vmul.f32 %v359, %v275
  %v404 = vmul.f32 %v361, %v276
  %v405 = vmul.f32 %v363, %v277
  %v406 = vmul.f32 %v365, %v278
  %v407 = vmul.f32 %v367, %v279
  %v408 = vmul.f32 %v369, %v280
  %v409 = vmul.f32 %v371, %v281
  %v410 = vmul.f32 %v373, %v282
  %v411 = vmul.f32 %v375, %v283
  %v412 = vmul.f32 %v377, %v284
  %v413 = vmul.f32 %v379, %v285
  %v414 = vmul.f32 %v381, %v286
  %v415 = vmul.f32 %v383, %v287
  %v416 = vsub.f32 1.0, %v193
  %v417 = vsub.f32 1.0, %v195
  %v418 = vsub.f32 1.0, %v197
  %v419 = vsub.f32 1.0, %v199
  %v420 = vsub.f32 1.0, %v201
  %v421 = vsub.f32 1.0, %v203
  %v422 = vsub.f32 1.0, %v205
  %v423 = vsub.f32 1.0, %v207
  %v424 = vsub.f32 1.0, %v209
  %v425 = vsub.f32 1.0, %v211
  %v426 = vsub.f32 1.0, %v213
  %v427 = vsub.f32 1.0, %v215
  %v428 = vsub.f32 1.0, %v217
  %v429 = vsub.f32 1.0, %v219
  %v430 = vsub.f32 1.0, %v221
  %v431 = vsub.f32 1.0, %v223
  %v432 = vsub.f32 1.0, %v225
  %v433 = vsub.f32 1.0, %v227
  %v434 = vsub.f32 1.0, %v229
  %v435 = vsub.f32 1.0, %v231
  %v436 = vsub.f32 1.0, %v233
  %v437 = vsub.f32 1.0, %v235
  %v438 = vsub.f32 1.0, %v237
  %v439 = vsub.f32 1.0, %v239
  %v440 = vsub.f32 1.0, %v241
  %v441 = vsub.f32 1.0, %v243
  %v442 = vsub.f32 1.0, %v245
  %v443 = vsub.f32 1.0, %v247
  %v444 = vsub.f32 1.0, %v249
  %v445 = vsub.f32 1.0, %v251
  %v446 = vsub.f32 1.0, %v253
  %v447 = vsub.f32 1.0, %v255
  %v448 = vadd.f32 %v416, 1e-09
  %v449 = vadd.f32 %v417, 1e-09
  %v450 = vadd.f32 %v418, 1e-09
  %v451 = vadd.f32 %v419, 1e-09
  %v452 = vadd.f32 %v420, 1e-09
  %v453 = vadd.f32 %v421, 1e-09
  %v454 = vadd.f32 %v422, 1e-09
  %v455 = vadd.f32 %v423, 1e-09
  %v456 = vadd.f32 %v424, 1e-09
  %v457 = vadd.f32 %v425, 1e-09
  %v458 = vadd.f32 %v426, 1e-09
  %v459 = vadd.f32 %v427, 1e-09
  %v460 = vadd.f32 %v428, 1e-09
  %v461 = vadd.f32 %v429, 1e-09
  %v462 = vadd.f32 %v430, 1e-09
  %v463 = vadd.f32 %v431, 1e-09
  %v464 = vadd.f32 %v432, 1e-09
  %v465 = vadd.f32 %v433, 1e-09
  %v466 = vadd.f32 %v434, 1e-09
  %v467 = vadd.f32 %v435, 1e-09
  %v468 = vadd.f32 %v436, 1e-09
  %v469 = vadd.f32 %v437, 1e-09
  %v470 = vadd.f32 %v438, 1e-09
  %v471 = vadd.f32 %v439, 1e-09
  %v472 = vadd.f32 %v440, 1e-09
  %v473 = vadd.f32 %v441, 1e-09
  %v474 = vadd.f32 %v442, 1e-09
  %v475 = vadd.f32 %v443, 1e-09
  %v476 = vadd.f32 %v444, 1e-09
  %v477 = vadd.f32 %v445, 1e-09
  %v478 = vadd.f32 %v446, 1e-09
  %v479 = vadd.f32 %v447, 1e-09
  %v480 = vlog2.pop %v448
  %v481 = vmul.f32 %v480, 0.6931472
  %v482 = vlog2.pop %v449
  %v483 = vmul.f32 %v482, 0.6931472
  %v484 = vlog2.pop %v450
  %v485 = vmul.f32 %v484, 0.6931472
  %v486 = vlog2.pop %v451
  %v487 = vmul.f32 %v486, 0.6931472
  %v488 = vlog2.pop %v452
  %v489 = vmul.f32 %v488, 0.6931472
  %v490 = vlog2.pop %v453
  %v491 = vmul.f32 %v490, 0.6931472
  %v492 = vlog2.pop %v454
  %v493 = vmul.f32 %v492, 0.6931472
  %v494 = vlog2.pop %v455
  %v495 = vmul.f32 %v494, 0.6931472
  %v496 = vlog2.pop %v456
  %v497 = vmul.f32 %v496, 0.6931472
  %v498 = vlog2.pop %v457
  %v499 = vmul.f32 %v498, 0.6931472
  %v500 = vlog2.pop %v458
  %v501 = vmul.f32 %v500, 0.6931472
  %v502 = vlog2.pop %v459
  %v503 = vmul.f32 %v502, 0.6931472
  %v504 = vlog2.pop %v460
  %v505 = vmul.f32 %v504, 0.6931472
  %v506 = vlog2.pop %v461
  %v507 = vmul.f32 %v506, 0.6931472
  %v508 = vlog2.pop %v462
  %v509 = vmul.f32 %v508, 0.6931472
  %v510 = vlog2.pop %v463
  %v511 = vmul.f32 %v510, 0.6931472
  %v512 = vlog2.pop %v464
  %v513 = vmul.f32 %v512, 0.6931472
  %v514 = vlog2.pop %v465
  %v515 = vmul.f32 %v514, 0.6931472
  %v516 = vlog2.pop %v466
  %v517 = vmul.f32 %v516, 0.6931472
  %v518 = vlog2.pop %v467
  %v519 = vmul.f32 %v518, 0.6931472
  %v520 = vlog2.pop %v468
  %v521 = vmul.f32 %v520, 0.6931472
  %v522 = vlog2.pop %v469
  %v523 = vmul.f32 %v522, 0.6931472
  %v524 = vlog2.pop %v470
  %v525 = vmul.f32 %v524, 0.6931472
  %v526 = vlog2.pop %v471
  %v527 = vmul.f32 %v526, 0.6931472
  %v528 = vlog2.pop %v472
  %v529 = vmul.f32 %v528, 0.6931472
  %v530 = vlog2.pop %v473
  %v531 = vmul.f32 %v530, 0.6931472
  %v532 = vlog2.pop %v474
  %v533 = vmul.f32 %v532, 0.6931472
  %v534 = vlog2.pop %v475
  %v535 = vmul.f32 %v534, 0.6931472
  %v536 = vlog2.pop %v476
  %v537 = vmul.f32 %v536, 0.6931472
  %v538 = vlog2.pop %v477
  %v539 = vmul.f32 %v538, 0.6931472
  %v540 = vlog2.pop %v478
  %v541 = vmul.f32 %v540, 0.6931472
  %v542 = vlog2.pop %v479
  %v543 = vmul.f32 %v542, 0.6931472
  %v544 = vsub.f32 1.0, %v256
  %v545 = vsub.f32 1.0, %v257
  %v546 = vsub.f32 1.0, %v258
  %v547 = vsub.f32 1.0, %v259
  %v548 = vsub.f32 1.0, %v260
  %v549 = vsub.f32 1.0, %v261
  %v550 = vsub.f32 1.0, %v262
  %v551 = vsub.f32 1.0, %v263
  %v552 = vsub.f32 1.0, %v264
  %v553 = vsub.f32 1.0, %v265
  %v554 = vsub.f32 1.0, %v266
  %v555 = vsub.f32 1.0, %v267
  %v556 = vsub.f32 1.0, %v268
  %v557 = vsub.f32 1.0, %v269
  %v558 = vsub.f32 1.0, %v270
  %v559 = vsub.f32 1.0, %v271
  %v560 = vsub.f32 1.0, %v272
  %v561 = vsub.f32 1.0, %v273
  %v562 = vsub.f32 1.0, %v274
  %v563 = vsub.f32 1.0, %v275
  %v564 = vsub.f32 1.0, %v276
  %v565 = vsub.f32 1.0, %v277
  %v566 = vsub.f32 1.0, %v278
  %v567 = vsub.f32 1.0, %v279
  %v568 = vsub.f32 1.0, %v280
  %v569 = vsub.f32 1.0, %v281
  %v570 = vsub.f32 1.0, %v282
  %v571 = vsub.f32 1.0, %v283
  %v572 = vsub.f32 1.0, %v284
  %v573 = vsub.f32 1.0, %v285
  %v574 = vsub.f32 1.0, %v286
  %v575 = vsub.f32 1.0, %v287
  %v576 = vmul.f32 %v481, %v544
  %v577 = vmul.f32 %v483, %v545
  %v578 = vmul.f32 %v485, %v546
  %v579 = vmul.f32 %v487, %v547
  %v580 = vmul.f32 %v489, %v548
  %v581 = vmul.f32 %v491, %v549
  %v582 = vmul.f32 %v493, %v550
  %v583 = vmul.f32 %v495, %v551
  %v584 = vmul.f32 %v497, %v552
  %v585 = vmul.f32 %v499, %v553
  %v586 = vmul.f32 %v501, %v554
  %v587 = vmul.f32 %v503, %v555
  %v588 = vmul.f32 %v505, %v556
  %v589 = vmul.f32 %v507, %v557
  %v590 = vmul.f32 %v509, %v558
  %v591 = vmul.f32 %v511, %v559
  %v592 = vmul.f32 %v513, %v560
  %v593 = vmul.f32 %v515, %v561
  %v594 = vmul.f32 %v517, %v562
  %v595 = vmul.f32 %v519, %v563
  %v596 = vmul.f32 %v521, %v564
  %v597 = vmul.f32 %v523, %v565
  %v598 = vmul.f32 %v525, %v566
  %v599 = vmul.f32 %v527, %v567
  %v600 = vmul.f32 %v529, %v568
  %v601 = vmul.f32 %v531, %v569
  %v602 = vmul.f32 %v533, %v570
  %v603 = vmul.f32 %v535, %v571
  %v604 = vmul.f32 %v537, %v572
  %v605 = vmul.f32 %v539, %v573
  %v606 = vmul.f32 %v541, %v574
  %v607 = vmul.f32 %v543, %v575
  %v608 = vadd.f32 %v384, %v576
  %v609 = vadd.f32 %v385, %v577
  %v610 = vadd.f32 %v386, %v578
  %v611 = vadd.f32 %v387, %v579
  %v612 = vadd.f32 %v388, %v580
  %v613 = vadd.f32 %v389, %v581
  %v614 = vadd.f32 %v390, %v582
  %v615 = vadd.f32 %v391, %v583
  %v616 = vadd.f32 %v392, %v584
  %v617 = vadd.f32 %v393, %v585
  %v618 = vadd.f32 %v394, %v586
  %v619 = vadd.f32 %v395, %v587
  %v620 = vadd.f32 %v396, %v588
  %v621 = vadd.f32 %v397, %v589
  %v622 = vadd.f32 %v398, %v590
  %v623 = vadd.f32 %v399, %v591
  %v624 = vadd.f32 %v400, %v592
  %v625 = vadd.f32 %v401, %v593
  %v626 = vadd.f32 %v402, %v594
  %v627 = vadd.f32 %v403, %v595
  %v628 = vadd.f32 %v404, %v596
  %v629 = vadd.f32 %v405, %v597
  %v630 = vadd.f32 %v406, %v598
  %v631 = vadd.f32 %v407, %v599
  %v632 = vadd.f32 %v408, %v600
  %v633 = vadd.f32 %v409, %v601
  %v634 = vadd.f32 %v410, %v602
  %v635 = vadd.f32 %v411, %v603
  %v636 = vadd.f32 %v412, %v604
  %v637 = vadd.f32 %v413, %v605
  %v638 = vadd.f32 %v414, %v606
  %v639 = vadd.f32 %v415, %v607
  %v640 = vsub.f32 0.0, %v608
  %v641 = vsub.f32 0.0, %v609
  %v642 = vsub.f32 0.0, %v610
  %v643 = vsub.f32 0.0, %v611
  %v644 = vsub.f32 0.0, %v612
  %v645 = vsub.f32 0.0, %v613
  %v646 = vsub.f32 0.0, %v614
  %v647 = vsub.f32 0.0, %v615
  %v648 = vsub.f32 0.0, %v616
  %v649 = vsub.f32 0.0, %v617
  %v650 = vsub.f32 0.0, %v618
  %v651 = vsub.f32 0.0, %v619
  %v652 = vsub.f32 0.0, %v620
  %v653 = vsub.f32 0.0, %v621
  %v654 = vsub.f32 0.0, %v622
  %v655 = vsub.f32 0.0, %v623
  %v656 = vsub.f32 0.0, %v624
  %v657 = vsub.f32 0.0, %v625
  %v658 = vsub.f32 0.0, %v626
  %v659 = vsub.f32 0.0, %v627
  %v660 = vsub.f32 0.0, %v628
  %v661 = vsub.f32 0.0, %v629
  %v662 = vsub.f32 0.0, %v630
  %v663 = vsub.f32 0.0, %v631
  %v664 = vsub.f32 0.0, %v632
  %v665 = vsub.f32 0.0, %v633
  %v666 = vsub.f32 0.0, %v634
  %v667 = vsub.f32 0.0, %v635
  %v668 = vsub.f32 0.0, %v636
  %v669 = vsub.f32 0.0, %v637
  %v670 = vsub.f32 0.0, %v638
  %v671 = vsub.f32 0.0, %v639
  %672 = vst [vmem:[%s3] sm:$0xff] %v193
  %673 = vst [vmem:[%s3 + $0x8] sm:$0xff] %v195
  %674 = vst [vmem:[%s3 + $0x10] sm:$0xff] %v197
  %675 = vst [vmem:[%s3 + $0x18] sm:$0xff] %v199
  %676 = vst [vmem:[%s3 + $0x20] sm:$0xff] %v201
  %677 = vst [vmem:[%s3 + $0x28] sm:$0xff] %v203
  %678 = vst [vmem:[%s3 + $0x30] sm:$0xff] %v205
  %679 = vst [vmem:[%s3 + $0x38] sm:$0xff] %v207
  %680 = vst [vmem:[%s3 + $0x40] sm:$0xff] %v209
  %681 = vst [vmem:[%s3 + $0x48] sm:$0xff] %v211
  %682 = vst [vmem:[%s3 + $0x50] sm:$0xff] %v213
  %683 = vst [vmem:[%s3 + $0x58] sm:$0xff] %v215
  %684 = vst [vmem:[%s3 + $0x60] sm:$0xff] %v217
  %685 = vst [vmem:[%s3 + $0x68] sm:$0xff] %v219
  %686 = vst [vmem:[%s3 + $0x70] sm:$0xff] %v221
  %687 = vst [vmem:[%s3 + $0x78] sm:$0xff] %v223
  %688 = vst [vmem:[%s3 + $0x80] sm:$0xff] %v225
  %689 = vst [vmem:[%s3 + $0x88] sm:$0xff] %v227
  %690 = vst [vmem:[%s3 + $0x90] sm:$0xff] %v229
  %691 = vst [vmem:[%s3 + $0x98] sm:$0xff] %v231
  %692 = vst [vmem:[%s3 + $0xa0] sm:$0xff] %v233
  %693 = vst [vmem:[%s3 + $0xa8] sm:$0xff] %v235
  %694 = vst [vmem:[%s3 + $0xb0] sm:$0xff] %v237
  %695 = vst [vmem:[%s3 + $0xb8] sm:$0xff] %v239
  %696 = vst [vmem:[%s3 + $0xc0] sm:$0xff] %v241
  %697 = vst [vmem:[%s3 + $0xc8] sm:$0xff] %v243
  %698 = vst [vmem:[%s3 + $0xd0] sm:$0xff] %v245
  %699 = vst [vmem:[%s3 + $0xd8] sm:$0xff] %v247
  %700 = vst [vmem:[%s3 + $0xe0] sm:$0xff] %v249
  %701 = vst [vmem:[%s3 + $0xe8] sm:$0xff] %v251
  %702 = vst [vmem:[%s3 + $0xf0] sm:$0xff] %v253
  %703 = vst [vmem:[%s3 + $0xf8] sm:$0xff] %v255
  %v704 = vld [vmem:[%s2] sm:$0xff]
  %v705 = vld [vmem:[%s2 + $0x8] sm:$0xff]
  %v706 = vld [vmem:[%s2 + $0x10] sm:$0xff]
  %v707 = vld [vmem:[%s2 + $0x18] sm:$0xff]
  %v708 = vld [vmem:[%s2 + $0x20] sm:$0xff]
  %v709 = vld [vmem:[%s2 + $0x28] sm:$0xff]
  %v710 = vld [vmem:[%s2 + $0x30] sm:$0xff]
  %v711 = vld [vmem:[%s2 + $0x38] sm:$0xff]
  %v712 = vld [vmem:[%s2 + $0x40] sm:$0xff]
  %v713 = vld [vmem:[%s2 + $0x48] sm:$0xff]
  %v714 = vld [vmem:[%s2 + $0x50] sm:$0xff]
  %v715 = vld [vmem:[%s2 + $0x58] sm:$0xff]
  %v716 = vld [vmem:[%s2 + $0x60] sm:$0xff]
  %v717 = vld [vmem:[%s2 + $0x68] sm:$0xff]
  %v718 = vld [vmem:[%s2 + $0x70] sm:$0xff]
  %v719 = vld [vmem:[%s2 + $0x78] sm:$0xff]
  %v720 = vld [vmem:[%s2 + $0x80] sm:$0xff]
  %v721 = vld [vmem:[%s2 + $0x88] sm:$0xff]
  %v722 = vld [vmem:[%s2 + $0x90] sm:$0xff]
  %v723 = vld [vmem:[%s2 + $0x98] sm:$0xff]
  %v724 = vld [vmem:[%s2 + $0xa0] sm:$0xff]
  %v725 = vld [vmem:[%s2 + $0xa8] sm:$0xff]
  %v726 = vld [vmem:[%s2 + $0xb0] sm:$0xff]
  %v727 = vld [vmem:[%s2 + $0xb8] sm:$0xff]
  %v728 = vld [vmem:[%s2 + $0xc0] sm:$0xff]
  %v729 = vld [vmem:[%s2 + $0xc8] sm:$0xff]
  %v730 = vld [vmem:[%s2 + $0xd0] sm:$0xff]
  %v731 = vld [vmem:[%s2 + $0xd8] sm:$0xff]
  %v732 = vld [vmem:[%s2 + $0xe0] sm:$0xff]
  %v733 = vld [vmem:[%s2 + $0xe8] sm:$0xff]
  %v734 = vld [vmem:[%s2 + $0xf0] sm:$0xff]
  %v735 = vld [vmem:[%s2 + $0xf8] sm:$0xff]
  %v736 = vld [vmem:[%s2 + $0x100] sm:$0xff]
  %v737 = vld [vmem:[%s2 + $0x108] sm:$0xff]
  %v738 = vld [vmem:[%s2 + $0x110] sm:$0xff]
  %v739 = vld [vmem:[%s2 + $0x118] sm:$0xff]
  %v740 = vld [vmem:[%s2 + $0x120] sm:$0xff]
  %v741 = vld [vmem:[%s2 + $0x128] sm:$0xff]
  %v742 = vld [vmem:[%s2 + $0x130] sm:$0xff]
  %v743 = vld [vmem:[%s2 + $0x138] sm:$0xff]
  %v744 = vld [vmem:[%s2 + $0x140] sm:$0xff]
  %v745 = vld [vmem:[%s2 + $0x148] sm:$0xff]
  %v746 = vld [vmem:[%s2 + $0x150] sm:$0xff]
  %v747 = vld [vmem:[%s2 + $0x158] sm:$0xff]
  %v748 = vld [vmem:[%s2 + $0x160] sm:$0xff]
  %v749 = vld [vmem:[%s2 + $0x168] sm:$0xff]
  %v750 = vld [vmem:[%s2 + $0x170] sm:$0xff]
  %v751 = vld [vmem:[%s2 + $0x178] sm:$0xff]
  %v752 = vld [vmem:[%s2 + $0x180] sm:$0xff]
  %v753 = vld [vmem:[%s2 + $0x188] sm:$0xff]
  %v754 = vld [vmem:[%s2 + $0x190] sm:$0xff]
  %v755 = vld [vmem:[%s2 + $0x198] sm:$0xff]
  %v756 = vld [vmem:[%s2 + $0x1a0] sm:$0xff]
  %v757 = vld [vmem:[%s2 + $0x1a8] sm:$0xff]
  %v758 = vld [vmem:[%s2 + $0x1b0] sm:$0xff]
  %v759 = vld [vmem:[%s2 + $0x1b8] sm:$0xff]
  %v760 = vld [vmem:[%s2 + $0x1c0] sm:$0xff]
  %v761 = vld [vmem:[%s2 + $0x1c8] sm:$0xff]
  %v762 = vld [vmem:[%s2 + $0x1d0] sm:$0xff]
  %v763 = vld [vmem:[%s2 + $0x1d8] sm:$0xff]
  %v764 = vld [vmem:[%s2 + $0x1e0] sm:$0xff]
  %v765 = vld [vmem:[%s2 + $0x1e8] sm:$0xff]
  %v766 = vld [vmem:[%s2 + $0x1f0] sm:$0xff]
  %v767 = vld [vmem:[%s2 + $0x1f8] sm:$0xff]
  %v768 = vld [vmem:[%s2 + $0x200] sm:$0xff]
  %v769 = vld [vmem:[%s2 + $0x208] sm:$0xff]
  %v770 = vld [vmem:[%s2 + $0x210] sm:$0xff]
  %v771 = vld [vmem:[%s2 + $0x218] sm:$0xff]
  %v772 = vld [vmem:[%s2 + $0x220] sm:$0xff]
  %v773 = vld [vmem:[%s2 + $0x228] sm:$0xff]
  %v774 = vld [vmem:[%s2 + $0x230] sm:$0xff]
  %v775 = vld [vmem:[%s2 + $0x238] sm:$0xff]
  %v776 = vld [vmem:[%s2 + $0x240] sm:$0xff]
  %v777 = vld [vmem:[%s2 + $0x248] sm:$0xff]
  %v778 = vld [vmem:[%s2 + $0x250] sm:$0xff]
  %v779 = vld [vmem:[%s2 + $0x258] sm:$0xff]
  %v780 = vld [vmem:[%s2 + $0x260] sm:$0xff]
  %v781 = vld [vmem:[%s2 + $0x268] sm:$0xff]
  %v782 = vld [vmem:[%s2 + $0x270] sm:$0xff]
  %v783 = vld [vmem:[%s2 + $0x278] sm:$0xff]
  %v784 = vld [vmem:[%s2 + $0x280] sm:$0xff]
  %v785 = vld [vmem:[%s2 + $0x288] sm:$0xff]
  %v786 = vld [vmem:[%s2 + $0x290] sm:$0xff]
  %v787 = vld [vmem:[%s2 + $0x298] sm:$0xff]
  %v788 = vld [vmem:[%s2 + $0x2a0] sm:$0xff]
  %v789 = vld [vmem:[%s2 + $0x2a8] sm:$0xff]
  %v790 = vld [vmem:[%s2 + $0x2b0] sm:$0xff]
  %v791 = vld [vmem:[%s2 + $0x2b8] sm:$0xff]
  %v792 = vld [vmem:[%s2 + $0x2c0] sm:$0xff]
  %v793 = vld [vmem:[%s2 + $0x2c8] sm:$0xff]
  %v794 = vld [vmem:[%s2 + $0x2d0] sm:$0xff]
  %v795 = vld [vmem:[%s2 + $0x2d8] sm:$0xff]
  %v796 = vld [vmem:[%s2 + $0x2e0] sm:$0xff]
  %v797 = vld [vmem:[%s2 + $0x2e8] sm:$0xff]
  %v798 = vld [vmem:[%s2 + $0x2f0] sm:$0xff]
  %v799 = vld [vmem:[%s2 + $0x2f8] sm:$0xff]
  %v800 = vld [vmem:[%s2 + $0x300] sm:$0xff]
  %v801 = vld [vmem:[%s2 + $0x308] sm:$0xff]
  %v802 = vld [vmem:[%s2 + $0x310] sm:$0xff]
  %v803 = vld [vmem:[%s2 + $0x318] sm:$0xff]
  %v804 = vld [vmem:[%s2 + $0x320] sm:$0xff]
  %v805 = vld [vmem:[%s2 + $0x328] sm:$0xff]
  %v806 = vld [vmem:[%s2 + $0x330] sm:$0xff]
  %v807 = vld [vmem:[%s2 + $0x338] sm:$0xff]
  %v808 = vld [vmem:[%s2 + $0x340] sm:$0xff]
  %v809 = vld [vmem:[%s2 + $0x348] sm:$0xff]
  %v810 = vld [vmem:[%s2 + $0x350] sm:$0xff]
  %v811 = vld [vmem:[%s2 + $0x358] sm:$0xff]
  %v812 = vld [vmem:[%s2 + $0x360] sm:$0xff]
  %v813 = vld [vmem:[%s2 + $0x368] sm:$0xff]
  %v814 = vld [vmem:[%s2 + $0x370] sm:$0xff]
  %v815 = vld [vmem:[%s2 + $0x378] sm:$0xff]
  %v816 = vld [vmem:[%s2 + $0x380] sm:$0xff]
  %v817 = vld [vmem:[%s2 + $0x388] sm:$0xff]
  %v818 = vld [vmem:[%s2 + $0x390] sm:$0xff]
  %v819 = vld [vmem:[%s2 + $0x398] sm:$0xff]
  %v820 = vld [vmem:[%s2 + $0x3a0] sm:$0xff]
  %v821 = vld [vmem:[%s2 + $0x3a8] sm:$0xff]
  %v822 = vld [vmem:[%s2 + $0x3b0] sm:$0xff]
  %v823 = vld [vmem:[%s2 + $0x3b8] sm:$0xff]
  %v824 = vld [vmem:[%s2 + $0x3c0] sm:$0xff]
  %v825 = vld [vmem:[%s2 + $0x3c8] sm:$0xff]
  %v826 = vld [vmem:[%s2 + $0x3d0] sm:$0xff]
  %v827 = vld [vmem:[%s2 + $0x3d8] sm:$0xff]
  %v828 = vld [vmem:[%s2 + $0x3e0] sm:$0xff]
  %v829 = vld [vmem:[%s2 + $0x3e8] sm:$0xff]
  %v830 = vld [vmem:[%s2 + $0x3f0] sm:$0xff]
  %v831 = vld [vmem:[%s2 + $0x3f8] sm:$0xff]
  %v832 = vld [vmem:[%s2 + $0x400] sm:$0xff]
  %v833 = vld [vmem:[%s2 + $0x408] sm:$0xff]
  %v834 = vld [vmem:[%s2 + $0x410] sm:$0xff]
  %v835 = vld [vmem:[%s2 + $0x418] sm:$0xff]
  %v836 = vld [vmem:[%s2 + $0x420] sm:$0xff]
  %v837 = vld [vmem:[%s2 + $0x428] sm:$0xff]
  %v838 = vld [vmem:[%s2 + $0x430] sm:$0xff]
  %v839 = vld [vmem:[%s2 + $0x438] sm:$0xff]
  %v840 = vld [vmem:[%s2 + $0x440] sm:$0xff]
  %v841 = vld [vmem:[%s2 + $0x448] sm:$0xff]
  %v842 = vld [vmem:[%s2 + $0x450] sm:$0xff]
  %v843 = vld [vmem:[%s2 + $0x458] sm:$0xff]
  %v844 = vld [vmem:[%s2 + $0x460] sm:$0xff]
  %v845 = vld [vmem:[%s2 + $0x468] sm:$0xff]
  %v846 = vld [vmem:[%s2 + $0x470] sm:$0xff]
  %v847 = vld [vmem:[%s2 + $0x478] sm:$0xff]
  %v848 = vld [vmem:[%s2 + $0x480] sm:$0xff]
  %v849 = vld [vmem:[%s2 + $0x488] sm:$0xff]
  %v850 = vld [vmem:[%s2 + $0x490] sm:$0xff]
  %v851 = vld [vmem:[%s2 + $0x498] sm:$0xff]
  %v852 = vld [vmem:[%s2 + $0x4a0] sm:$0xff]
  %v853 = vld [vmem:[%s2 + $0x4a8] sm:$0xff]
  %v854 = vld [vmem:[%s2 + $0x4b0] sm:$0xff]
  %v855 = vld [vmem:[%s2 + $0x4b8] sm:$0xff]
  %v856 = vld [vmem:[%s2 + $0x4c0] sm:$0xff]
  %v857 = vld [vmem:[%s2 + $0x4c8] sm:$0xff]
  %v858 = vld [vmem:[%s2 + $0x4d0] sm:$0xff]
  %v859 = vld [vmem:[%s2 + $0x4d8] sm:$0xff]
  %v860 = vld [vmem:[%s2 + $0x4e0] sm:$0xff]
  %v861 = vld [vmem:[%s2 + $0x4e8] sm:$0xff]
  %v862 = vld [vmem:[%s2 + $0x4f0] sm:$0xff]
  %v863 = vld [vmem:[%s2 + $0x4f8] sm:$0xff]
  %v864 = vld [vmem:[%s2 + $0x500] sm:$0xff]
  %v865 = vld [vmem:[%s2 + $0x508] sm:$0xff]
  %v866 = vld [vmem:[%s2 + $0x510] sm:$0xff]
  %v867 = vld [vmem:[%s2 + $0x518] sm:$0xff]
  %v868 = vld [vmem:[%s2 + $0x520] sm:$0xff]
  %v869 = vld [vmem:[%s2 + $0x528] sm:$0xff]
  %v870 = vld [vmem:[%s2 + $0x530] sm:$0xff]
  %v871 = vld [vmem:[%s2 + $0x538] sm:$0xff]
  %v872 = vld [vmem:[%s2 + $0x540] sm:$0xff]
  %v873 = vld [vmem:[%s2 + $0x548] sm:$0xff]
  %v874 = vld [vmem:[%s2 + $0x550] sm:$0xff]
  %v875 = vld [vmem:[%s2 + $0x558] sm:$0xff]
  %v876 = vld [vmem:[%s2 + $0x560] sm:$0xff]
  %v877 = vld [vmem:[%s2 + $0x568] sm:$0xff]
  %v878 = vld [vmem:[%s2 + $0x570] sm:$0xff]
  %v879 = vld [vmem:[%s2 + $0x578] sm:$0xff]
  %v880 = vld [vmem:[%s2 + $0x580] sm:$0xff]
  %v881 = vld [vmem:[%s2 + $0x588] sm:$0xff]
  %v882 = vld [vmem:[%s2 + $0x590] sm:$0xff]
  %v883 = vld [vmem:[%s2 + $0x598] sm:$0xff]
  %v884 = vld [vmem:[%s2 + $0x5a0] sm:$0xff]
  %v885 = vld [vmem:[%s2 + $0x5a8] sm:$0xff]
  %v886 = vld [vmem:[%s2 + $0x5b0] sm:$0xff]
  %v887 = vld [vmem:[%s2 + $0x5b8] sm:$0xff]
  %v888 = vld [vmem:[%s2 + $0x5c0] sm:$0xff]
  %v889 = vld [vmem:[%s2 + $0x5c8] sm:$0xff]
  %v890 = vld [vmem:[%s2 + $0x5d0] sm:$0xff]
  %v891 = vld [vmem:[%s2 + $0x5d8] sm:$0xff]
  %v892 = vld [vmem:[%s2 + $0x5e0] sm:$0xff]
  %v893 = vld [vmem:[%s2 + $0x5e8] sm:$0xff]
  %v894 = vld [vmem:[%s2 + $0x5f0] sm:$0xff]
  %v895 = vld [vmem:[%s2 + $0x5f8] sm:$0xff]
  %v896 = vld [vmem:[%s2 + $0x600] sm:$0xff]
  %v897 = vld [vmem:[%s2 + $0x608] sm:$0xff]
  %v898 = vld [vmem:[%s2 + $0x610] sm:$0xff]
  %v899 = vld [vmem:[%s2 + $0x618] sm:$0xff]
  %v900 = vld [vmem:[%s2 + $0x620] sm:$0xff]
  %v901 = vld [vmem:[%s2 + $0x628] sm:$0xff]
  %v902 = vld [vmem:[%s2 + $0x630] sm:$0xff]
  %v903 = vld [vmem:[%s2 + $0x638] sm:$0xff]
  %v904 = vld [vmem:[%s2 + $0x640] sm:$0xff]
  %v905 = vld [vmem:[%s2 + $0x648] sm:$0xff]
  %v906 = vld [vmem:[%s2 + $0x650] sm:$0xff]
  %v907 = vld [vmem:[%s2 + $0x658] sm:$0xff]
  %v908 = vld [vmem:[%s2 + $0x660] sm:$0xff]
  %v909 = vld [vmem:[%s2 + $0x668] sm:$0xff]
  %v910 = vld [vmem:[%s2 + $0x670] sm:$0xff]
  %v911 = vld [vmem:[%s2 + $0x678] sm:$0xff]
  %v912 = vld [vmem:[%s2 + $0x680] sm:$0xff]
  %v913 = vld [vmem:[%s2 + $0x688] sm:$0xff]
  %v914 = vld [vmem:[%s2 + $0x690] sm:$0xff]
  %v915 = vld [vmem:[%s2 + $0x698] sm:$0xff]
  %v916 = vld [vmem:[%s2 + $0x6a0] sm:$0xff]
  %v917 = vld [vmem:[%s2 + $0x6a8] sm:$0xff]
  %v918 = vld [vmem:[%s2 + $0x6b0] sm:$0xff]
  %v919 = vld [vmem:[%s2 + $0x6b8] sm:$0xff]
  %v920 = vld [vmem:[%s2 + $0x6c0] sm:$0xff]
  %v921 = vld [vmem:[%s2 + $0x6c8] sm:$0xff]
  %v922 = vld [vmem:[%s2 + $0x6d0] sm:$0xff]
  %v923 = vld [vmem:[%s2 + $0x6d8] sm:$0xff]
  %v924 = vld [vmem:[%s2 + $0x6e0] sm:$0xff]
  %v925 = vld [vmem:[%s2 + $0x6e8] sm:$0xff]
  %v926 = vld [vmem:[%s2 + $0x6f0] sm:$0xff]
  %v927 = vld [vmem:[%s2 + $0x6f8] sm:$0xff]
  %v928 = vld [vmem:[%s2 + $0x700] sm:$0xff]
  %v929 = vld [vmem:[%s2 + $0x708] sm:$0xff]
  %v930 = vld [vmem:[%s2 + $0x710] sm:$0xff]
  %v931 = vld [vmem:[%s2 + $0x718] sm:$0xff]
  %v932 = vld [vmem:[%s2 + $0x720] sm:$0xff]
  %v933 = vld [vmem:[%s2 + $0x728] sm:$0xff]
  %v934 = vld [vmem:[%s2 + $0x730] sm:$0xff]
  %v935 = vld [vmem:[%s2 + $0x738] sm:$0xff]
  %v936 = vld [vmem:[%s2 + $0x740] sm:$0xff]
  %v937 = vld [vmem:[%s2 + $0x748] sm:$0xff]
  %v938 = vld [vmem:[%s2 + $0x750] sm:$0xff]
  %v939 = vld [vmem:[%s2 + $0x758] sm:$0xff]
  %v940 = vld [vmem:[%s2 + $0x760] sm:$0xff]
  %v941 = vld [vmem:[%s2 + $0x768] sm:$0xff]
  %v942 = vld [vmem:[%s2 + $0x770] sm:$0xff]
  %v943 = vld [vmem:[%s2 + $0x778] sm:$0xff]
  %v944 = vld [vmem:[%s2 + $0x780] sm:$0xff]
  %v945 = vld [vmem:[%s2 + $0x788] sm:$0xff]
  %v946 = vld [vmem:[%s2 + $0x790] sm:$0xff]
  %v947 = vld [vmem:[%s2 + $0x798] sm:$0xff]
  %v948 = vld [vmem:[%s2 + $0x7a0] sm:$0xff]
  %v949 = vld [vmem:[%s2 + $0x7a8] sm:$0xff]
  %v950 = vld [vmem:[%s2 + $0x7b0] sm:$0xff]
  %v951 = vld [vmem:[%s2 + $0x7b8] sm:$0xff]
  %v952 = vld [vmem:[%s2 + $0x7c0] sm:$0xff]
  %v953 = vld [vmem:[%s2 + $0x7c8] sm:$0xff]
  %v954 = vld [vmem:[%s2 + $0x7d0] sm:$0xff]
  %v955 = vld [vmem:[%s2 + $0x7d8] sm:$0xff]
  %v956 = vld [vmem:[%s2 + $0x7e0] sm:$0xff]
  %v957 = vld [vmem:[%s2 + $0x7e8] sm:$0xff]
  %v958 = vld [vmem:[%s2 + $0x7f0] sm:$0xff]
  %v959 = vld [vmem:[%s2 + $0x7f8] sm:$0xff]
  %v960 = vld [vmem:[%s2 + $0x800] sm:$0xff]
  %v961 = vld [vmem:[%s2 + $0x808] sm:$0xff]
  %v962 = vld [vmem:[%s2 + $0x810] sm:$0xff]
  %v963 = vld [vmem:[%s2 + $0x818] sm:$0xff]
  %v964 = vld [vmem:[%s2 + $0x820] sm:$0xff]
  %v965 = vld [vmem:[%s2 + $0x828] sm:$0xff]
  %v966 = vld [vmem:[%s2 + $0x830] sm:$0xff]
  %v967 = vld [vmem:[%s2 + $0x838] sm:$0xff]
  %v968 = vld [vmem:[%s2 + $0x840] sm:$0xff]
  %v969 = vld [vmem:[%s2 + $0x848] sm:$0xff]
  %v970 = vld [vmem:[%s2 + $0x850] sm:$0xff]
  %v971 = vld [vmem:[%s2 + $0x858] sm:$0xff]
  %v972 = vld [vmem:[%s2 + $0x860] sm:$0xff]
  %v973 = vld [vmem:[%s2 + $0x868] sm:$0xff]
  %v974 = vld [vmem:[%s2 + $0x870] sm:$0xff]
  %v975 = vld [vmem:[%s2 + $0x878] sm:$0xff]
  %v976 = vld [vmem:[%s2 + $0x880] sm:$0xff]
  %v977 = vld [vmem:[%s2 + $0x888] sm:$0xff]
  %v978 = vld [vmem:[%s2 + $0x890] sm:$0xff]
  %v979 = vld [vmem:[%s2 + $0x898] sm:$0xff]
  %v980 = vld [vmem:[%s2 + $0x8a0] sm:$0xff]
  %v981 = vld [vmem:[%s2 + $0x8a8] sm:$0xff]
  %v982 = vld [vmem:[%s2 + $0x8b0] sm:$0xff]
  %v983 = vld [vmem:[%s2 + $0x8b8] sm:$0xff]
  %v984 = vld [vmem:[%s2 + $0x8c0] sm:$0xff]
  %v985 = vld [vmem:[%s2 + $0x8c8] sm:$0xff]
  %v986 = vld [vmem:[%s2 + $0x8d0] sm:$0xff]
  %v987 = vld [vmem:[%s2 + $0x8d8] sm:$0xff]
  %v988 = vld [vmem:[%s2 + $0x8e0] sm:$0xff]
  %v989 = vld [vmem:[%s2 + $0x8e8] sm:$0xff]
  %v990 = vld [vmem:[%s2 + $0x8f0] sm:$0xff]
  %v991 = vld [vmem:[%s2 + $0x8f8] sm:$0xff]
  %v992 = vld [vmem:[%s2 + $0x900] sm:$0xff]
  %v993 = vld [vmem:[%s2 + $0x908] sm:$0xff]
  %v994 = vld [vmem:[%s2 + $0x910] sm:$0xff]
  %v995 = vld [vmem:[%s2 + $0x918] sm:$0xff]
  %v996 = vld [vmem:[%s2 + $0x920] sm:$0xff]
  %v997 = vld [vmem:[%s2 + $0x928] sm:$0xff]
  %v998 = vld [vmem:[%s2 + $0x930] sm:$0xff]
  %v999 = vld [vmem:[%s2 + $0x938] sm:$0xff]
  %v1000 = vld [vmem:[%s2 + $0x940] sm:$0xff]
  %v1001 = vld [vmem:[%s2 + $0x948] sm:$0xff]
  %v1002 = vld [vmem:[%s2 + $0x950] sm:$0xff]
  %v1003 = vld [vmem:[%s2 + $0x958] sm:$0xff]
  %v1004 = vld [vmem:[%s2 + $0x960] sm:$0xff]
  %v1005 = vld [vmem:[%s2 + $0x968] sm:$0xff]
  %v1006 = vld [vmem:[%s2 + $0x970] sm:$0xff]
  %v1007 = vld [vmem:[%s2 + $0x978] sm:$0xff]
  %v1008 = vld [vmem:[%s2 + $0x980] sm:$0xff]
  %v1009 = vld [vmem:[%s2 + $0x988] sm:$0xff]
  %v1010 = vld [vmem:[%s2 + $0x990] sm:$0xff]
  %v1011 = vld [vmem:[%s2 + $0x998] sm:$0xff]
  %v1012 = vld [vmem:[%s2 + $0x9a0] sm:$0xff]
  %v1013 = vld [vmem:[%s2 + $0x9a8] sm:$0xff]
  %v1014 = vld [vmem:[%s2 + $0x9b0] sm:$0xff]
  %v1015 = vld [vmem:[%s2 + $0x9b8] sm:$0xff]
  %v1016 = vld [vmem:[%s2 + $0x9c0] sm:$0xff]
  %v1017 = vld [vmem:[%s2 + $0x9c8] sm:$0xff]
  %v1018 = vld [vmem:[%s2 + $0x9d0] sm:$0xff]
  %v1019 = vld [vmem:[%s2 + $0x9d8] sm:$0xff]
  %v1020 = vld [vmem:[%s2 + $0x9e0] sm:$0xff]
  %v1021 = vld [vmem:[%s2 + $0x9e8] sm:$0xff]
  %v1022 = vld [vmem:[%s2 + $0x9f0] sm:$0xff]
  %v1023 = vld [vmem:[%s2 + $0x9f8] sm:$0xff]
  %v1024 = vld [vmem:[%s2 + $0xa00] sm:$0xff]
  %v1025 = vld [vmem:[%s2 + $0xa08] sm:$0xff]
  %v1026 = vld [vmem:[%s2 + $0xa10] sm:$0xff]
  %v1027 = vld [vmem:[%s2 + $0xa18] sm:$0xff]
  %v1028 = vld [vmem:[%s2 + $0xa20] sm:$0xff]
  %v1029 = vld [vmem:[%s2 + $0xa28] sm:$0xff]
  %v1030 = vld [vmem:[%s2 + $0xa30] sm:$0xff]
  %v1031 = vld [vmem:[%s2 + $0xa38] sm:$0xff]
  %v1032 = vld [vmem:[%s2 + $0xa40] sm:$0xff]
  %v1033 = vld [vmem:[%s2 + $0xa48] sm:$0xff]
  %v1034 = vld [vmem:[%s2 + $0xa50] sm:$0xff]
  %v1035 = vld [vmem:[%s2 + $0xa58] sm:$0xff]
  %v1036 = vld [vmem:[%s2 + $0xa60] sm:$0xff]
  %v1037 = vld [vmem:[%s2 + $0xa68] sm:$0xff]
  %v1038 = vld [vmem:[%s2 + $0xa70] sm:$0xff]
  %v1039 = vld [vmem:[%s2 + $0xa78] sm:$0xff]
  %v1040 = vld [vmem:[%s2 + $0xa80] sm:$0xff]
  %v1041 = vld [vmem:[%s2 + $0xa88] sm:$0xff]
  %v1042 = vld [vmem:[%s2 + $0xa90] sm:$0xff]
  %v1043 = vld [vmem:[%s2 + $0xa98] sm:$0xff]
  %v1044 = vld [vmem:[%s2 + $0xaa0] sm:$0xff]
  %v1045 = vld [vmem:[%s2 + $0xaa8] sm:$0xff]
  %v1046 = vld [vmem:[%s2 + $0xab0] sm:$0xff]
  %v1047 = vld [vmem:[%s2 + $0xab8] sm:$0xff]
  %v1048 = vld [vmem:[%s2 + $0xac0] sm:$0xff]
  %v1049 = vld [vmem:[%s2 + $0xac8] sm:$0xff]
  %v1050 = vld [vmem:[%s2 + $0xad0] sm:$0xff]
  %v1051 = vld [vmem:[%s2 + $0xad8] sm:$0xff]
  %v1052 = vld [vmem:[%s2 + $0xae0] sm:$0xff]
  %v1053 = vld [vmem:[%s2 + $0xae8] sm:$0xff]
  %v1054 = vld [vmem:[%s2 + $0xaf0] sm:$0xff]
  %v1055 = vld [vmem:[%s2 + $0xaf8] sm:$0xff]
  %v1056 = vld [vmem:[%s2 + $0xb00] sm:$0xff]
  %v1057 = vld [vmem:[%s2 + $0xb08] sm:$0xff]
  %v1058 = vld [vmem:[%s2 + $0xb10] sm:$0xff]
  %v1059 = vld [vmem:[%s2 + $0xb18] sm:$0xff]
  %v1060 = vld [vmem:[%s2 + $0xb20] sm:$0xff]
  %v1061 = vld [vmem:[%s2 + $0xb28] sm:$0xff]
  %v1062 = vld [vmem:[%s2 + $0xb30] sm:$0xff]
  %v1063 = vld [vmem:[%s2 + $0xb38] sm:$0xff]
  %v1064 = vld [vmem:[%s2 + $0xb40] sm:$0xff]
  %v1065 = vld [vmem:[%s2 + $0xb48] sm:$0xff]
  %v1066 = vld [vmem:[%s2 + $0xb50] sm:$0xff]
  %v1067 = vld [vmem:[%s2 + $0xb58] sm:$0xff]
  %v1068 = vld [vmem:[%s2 + $0xb60] sm:$0xff]
  %v1069 = vld [vmem:[%s2 + $0xb68] sm:$0xff]
  %v1070 = vld [vmem:[%s2 + $0xb70] sm:$0xff]
  %v1071 = vld [vmem:[%s2 + $0xb78] sm:$0xff]
  %v1072 = vld [vmem:[%s2 + $0xb80] sm:$0xff]
  %v1073 = vld [vmem:[%s2 + $0xb88] sm:$0xff]
  %v1074 = vld [vmem:[%s2 + $0xb90] sm:$0xff]
  %v1075 = vld [vmem:[%s2 + $0xb98] sm:$0xff]
  %v1076 = vld [vmem:[%s2 + $0xba0] sm:$0xff]
  %v1077 = vld [vmem:[%s2 + $0xba8] sm:$0xff]
  %v1078 = vld [vmem:[%s2 + $0xbb0] sm:$0xff]
  %v1079 = vld [vmem:[%s2 + $0xbb8] sm:$0xff]
  %v1080 = vld [vmem:[%s2 + $0xbc0] sm:$0xff]
  %v1081 = vld [vmem:[%s2 + $0xbc8] sm:$0xff]
  %v1082 = vld [vmem:[%s2 + $0xbd0] sm:$0xff]
  %v1083 = vld [vmem:[%s2 + $0xbd8] sm:$0xff]
  %v1084 = vld [vmem:[%s2 + $0xbe0] sm:$0xff]
  %v1085 = vld [vmem:[%s2 + $0xbe8] sm:$0xff]
  %v1086 = vld [vmem:[%s2 + $0xbf0] sm:$0xff]
  %v1087 = vld [vmem:[%s2 + $0xbf8] sm:$0xff]
  %v1088 = vld [vmem:[%s2 + $0xc00] sm:$0xff]
  %v1089 = vld [vmem:[%s2 + $0xc08] sm:$0xff]
  %v1090 = vld [vmem:[%s2 + $0xc10] sm:$0xff]
  %v1091 = vld [vmem:[%s2 + $0xc18] sm:$0xff]
  %v1092 = vld [vmem:[%s2 + $0xc20] sm:$0xff]
  %v1093 = vld [vmem:[%s2 + $0xc28] sm:$0xff]
  %v1094 = vld [vmem:[%s2 + $0xc30] sm:$0xff]
  %v1095 = vld [vmem:[%s2 + $0xc38] sm:$0xff]
  %v1096 = vld [vmem:[%s2 + $0xc40] sm:$0xff]
  %v1097 = vld [vmem:[%s2 + $0xc48] sm:$0xff]
  %v1098 = vld [vmem:[%s2 + $0xc50] sm:$0xff]
  %v1099 = vld [vmem:[%s2 + $0xc58] sm:$0xff]
  %v1100 = vld [vmem:[%s2 + $0xc60] sm:$0xff]
  %v1101 = vld [vmem:[%s2 + $0xc68] sm:$0xff]
  %v1102 = vld [vmem:[%s2 + $0xc70] sm:$0xff]
  %v1103 = vld [vmem:[%s2 + $0xc78] sm:$0xff]
  %v1104 = vld [vmem:[%s2 + $0xc80] sm:$0xff]
  %v1105 = vld [vmem:[%s2 + $0xc88] sm:$0xff]
  %v1106 = vld [vmem:[%s2 + $0xc90] sm:$0xff]
  %v1107 = vld [vmem:[%s2 + $0xc98] sm:$0xff]
  %v1108 = vld [vmem:[%s2 + $0xca0] sm:$0xff]
  %v1109 = vld [vmem:[%s2 + $0xca8] sm:$0xff]
  %v1110 = vld [vmem:[%s2 + $0xcb0] sm:$0xff]
  %v1111 = vld [vmem:[%s2 + $0xcb8] sm:$0xff]
  %v1112 = vld [vmem:[%s2 + $0xcc0] sm:$0xff]
  %v1113 = vld [vmem:[%s2 + $0xcc8] sm:$0xff]
  %v1114 = vld [vmem:[%s2 + $0xcd0] sm:$0xff]
  %v1115 = vld [vmem:[%s2 + $0xcd8] sm:$0xff]
  %v1116 = vld [vmem:[%s2 + $0xce0] sm:$0xff]
  %v1117 = vld [vmem:[%s2 + $0xce8] sm:$0xff]
  %v1118 = vld [vmem:[%s2 + $0xcf0] sm:$0xff]
  %v1119 = vld [vmem:[%s2 + $0xcf8] sm:$0xff]
  %v1120 = vld [vmem:[%s2 + $0xd00] sm:$0xff]
  %v1121 = vld [vmem:[%s2 + $0xd08] sm:$0xff]
  %v1122 = vld [vmem:[%s2 + $0xd10] sm:$0xff]
  %v1123 = vld [vmem:[%s2 + $0xd18] sm:$0xff]
  %v1124 = vld [vmem:[%s2 + $0xd20] sm:$0xff]
  %v1125 = vld [vmem:[%s2 + $0xd28] sm:$0xff]
  %v1126 = vld [vmem:[%s2 + $0xd30] sm:$0xff]
  %v1127 = vld [vmem:[%s2 + $0xd38] sm:$0xff]
  %v1128 = vld [vmem:[%s2 + $0xd40] sm:$0xff]
  %v1129 = vld [vmem:[%s2 + $0xd48] sm:$0xff]
  %v1130 = vld [vmem:[%s2 + $0xd50] sm:$0xff]
  %v1131 = vld [vmem:[%s2 + $0xd58] sm:$0xff]
  %v1132 = vld [vmem:[%s2 + $0xd60] sm:$0xff]
  %v1133 = vld [vmem:[%s2 + $0xd68] sm:$0xff]
  %v1134 = vld [vmem:[%s2 + $0xd70] sm:$0xff]
  %v1135 = vld [vmem:[%s2 + $0xd78] sm:$0xff]
  %v1136 = vld [vmem:[%s2 + $0xd80] sm:$0xff]
  %v1137 = vld [vmem:[%s2 + $0xd88] sm:$0xff]
  %v1138 = vld [vmem:[%s2 + $0xd90] sm:$0xff]
  %v1139 = vld [vmem:[%s2 + $0xd98] sm:$0xff]
  %v1140 = vld [vmem:[%s2 + $0xda0] sm:$0xff]
  %v1141 = vld [vmem:[%s2 + $0xda8] sm:$0xff]
  %v1142 = vld [vmem:[%s2 + $0xdb0] sm:$0xff]
  %v1143 = vld [vmem:[%s2 + $0xdb8] sm:$0xff]
  %v1144 = vld [vmem:[%s2 + $0xdc0] sm:$0xff]
  %v1145 = vld [vmem:[%s2 + $0xdc8] sm:$0xff]
  %v1146 = vld [vmem:[%s2 + $0xdd0] sm:$0xff]
  %v1147 = vld [vmem:[%s2 + $0xdd8] sm:$0xff]
  %v1148 = vld [vmem:[%s2 + $0xde0] sm:$0xff]
  %v1149 = vld [vmem:[%s2 + $0xde8] sm:$0xff]
  %v1150 = vld [vmem:[%s2 + $0xdf0] sm:$0xff]
  %v1151 = vld [vmem:[%s2 + $0xdf8] sm:$0xff]
  %v1152 = vld [vmem:[%s2 + $0xe00] sm:$0xff]
  %v1153 = vld [vmem:[%s2 + $0xe08] sm:$0xff]
  %v1154 = vld [vmem:[%s2 + $0xe10] sm:$0xff]
  %v1155 = vld [vmem:[%s2 + $0xe18] sm:$0xff]
  %v1156 = vld [vmem:[%s2 + $0xe20] sm:$0xff]
  %v1157 = vld [vmem:[%s2 + $0xe28] sm:$0xff]
  %v1158 = vld [vmem:[%s2 + $0xe30] sm:$0xff]
  %v1159 = vld [vmem:[%s2 + $0xe38] sm:$0xff]
  %v1160 = vld [vmem:[%s2 + $0xe40] sm:$0xff]
  %v1161 = vld [vmem:[%s2 + $0xe48] sm:$0xff]
  %v1162 = vld [vmem:[%s2 + $0xe50] sm:$0xff]
  %v1163 = vld [vmem:[%s2 + $0xe58] sm:$0xff]
  %v1164 = vld [vmem:[%s2 + $0xe60] sm:$0xff]
  %v1165 = vld [vmem:[%s2 + $0xe68] sm:$0xff]
  %v1166 = vld [vmem:[%s2 + $0xe70] sm:$0xff]
  %v1167 = vld [vmem:[%s2 + $0xe78] sm:$0xff]
  %v1168 = vld [vmem:[%s2 + $0xe80] sm:$0xff]
  %v1169 = vld [vmem:[%s2 + $0xe88] sm:$0xff]
  %v1170 = vld [vmem:[%s2 + $0xe90] sm:$0xff]
  %v1171 = vld [vmem:[%s2 + $0xe98] sm:$0xff]
  %v1172 = vld [vmem:[%s2 + $0xea0] sm:$0xff]
  %v1173 = vld [vmem:[%s2 + $0xea8] sm:$0xff]
  %v1174 = vld [vmem:[%s2 + $0xeb0] sm:$0xff]
  %v1175 = vld [vmem:[%s2 + $0xeb8] sm:$0xff]
  %v1176 = vld [vmem:[%s2 + $0xec0] sm:$0xff]
  %v1177 = vld [vmem:[%s2 + $0xec8] sm:$0xff]
  %v1178 = vld [vmem:[%s2 + $0xed0] sm:$0xff]
  %v1179 = vld [vmem:[%s2 + $0xed8] sm:$0xff]
  %v1180 = vld [vmem:[%s2 + $0xee0] sm:$0xff]
  %v1181 = vld [vmem:[%s2 + $0xee8] sm:$0xff]
  %v1182 = vld [vmem:[%s2 + $0xef0] sm:$0xff]
  %v1183 = vld [vmem:[%s2 + $0xef8] sm:$0xff]
  %v1184 = vld [vmem:[%s2 + $0xf00] sm:$0xff]
  %v1185 = vld [vmem:[%s2 + $0xf08] sm:$0xff]
  %v1186 = vld [vmem:[%s2 + $0xf10] sm:$0xff]
  %v1187 = vld [vmem:[%s2 + $0xf18] sm:$0xff]
  %v1188 = vld [vmem:[%s2 + $0xf20] sm:$0xff]
  %v1189 = vld [vmem:[%s2 + $0xf28] sm:$0xff]
  %v1190 = vld [vmem:[%s2 + $0xf30] sm:$0xff]
  %v1191 = vld [vmem:[%s2 + $0xf38] sm:$0xff]
  %v1192 = vld [vmem:[%s2 + $0xf40] sm:$0xff]
  %v1193 = vld [vmem:[%s2 + $0xf48] sm:$0xff]
  %v1194 = vld [vmem:[%s2 + $0xf50] sm:$0xff]
  %v1195 = vld [vmem:[%s2 + $0xf58] sm:$0xff]
  %v1196 = vld [vmem:[%s2 + $0xf60] sm:$0xff]
  %v1197 = vld [vmem:[%s2 + $0xf68] sm:$0xff]
  %v1198 = vld [vmem:[%s2 + $0xf70] sm:$0xff]
  %v1199 = vld [vmem:[%s2 + $0xf78] sm:$0xff]
  %v1200 = vld [vmem:[%s2 + $0xf80] sm:$0xff]
  %v1201 = vld [vmem:[%s2 + $0xf88] sm:$0xff]
  %v1202 = vld [vmem:[%s2 + $0xf90] sm:$0xff]
  %v1203 = vld [vmem:[%s2 + $0xf98] sm:$0xff]
  %v1204 = vld [vmem:[%s2 + $0xfa0] sm:$0xff]
  %v1205 = vld [vmem:[%s2 + $0xfa8] sm:$0xff]
  %v1206 = vld [vmem:[%s2 + $0xfb0] sm:$0xff]
  %v1207 = vld [vmem:[%s2 + $0xfb8] sm:$0xff]
  %v1208 = vld [vmem:[%s2 + $0xfc0] sm:$0xff]
  %v1209 = vld [vmem:[%s2 + $0xfc8] sm:$0xff]
  %v1210 = vld [vmem:[%s2 + $0xfd0] sm:$0xff]
  %v1211 = vld [vmem:[%s2 + $0xfd8] sm:$0xff]
  %v1212 = vld [vmem:[%s2 + $0xfe0] sm:$0xff]
  %v1213 = vld [vmem:[%s2 + $0xfe8] sm:$0xff]
  %v1214 = vld [vmem:[%s2 + $0xff0] sm:$0xff]
  %v1215 = vld [vmem:[%s2 + $0xff8] sm:$0xff]
  %1216 = vmatprep.subr.mxu0 0.0
  %1217 = vmatpush1.msra.mxu0 %v704
  %1218 = vmatprep.subr.mxu0 0.0
  %1219 = vmatpush1.msra.mxu0 %v705
  %1220 = vmatprep.subr.mxu0 0.0
  %1221 = vmatpush1.msra.mxu0 %v706
  %1222 = vmatprep.subr.mxu0 0.0
  %1223 = vmatpush1.msra.mxu0 %v707
  %1224 = vmatprep.subr.mxu0 0.0
  %1225 = vmatpush1.msra.mxu0 %v708
  %1226 = vmatprep.subr.mxu0 0.0
  %1227 = vmatpush1.msra.mxu0 %v709
  %1228 = vmatprep.subr.mxu0 0.0
  %1229 = vmatpush1.msra.mxu0 %v710
  %1230 = vmatprep.subr.mxu0 0.0
  %1231 = vmatpush1.msra.mxu0 %v711
  %1232 = vmatprep.subr.mxu0 0.0
  %1233 = vmatpush1.msra.mxu0 %v712
  %1234 = vmatprep.subr.mxu0 0.0
  %1235 = vmatpush1.msra.mxu0 %v713
  %1236 = vmatprep.subr.mxu0 0.0
  %1237 = vmatpush1.msra.mxu0 %v714
  %1238 = vmatprep.subr.mxu0 0.0
  %1239 = vmatpush1.msra.mxu0 %v715
  %1240 = vmatprep.subr.mxu0 0.0
  %1241 = vmatpush1.msra.mxu0 %v716
  %1242 = vmatprep.subr.mxu0 0.0
  %1243 = vmatpush1.msra.mxu0 %v717
  %1244 = vmatprep.subr.mxu0 0.0
  %1245 = vmatpush1.msra.mxu0 %v718
  %1246 = vmatprep.subr.mxu0 0.0
  %1247 = vmatpush1.msra.mxu0 %v719
  %1248 = vmatprep.subr.mxu0 0.0
  %1249 = vmatpush1.msra.mxu0 %v720
  %1250 = vmatprep.subr.mxu0 0.0
  %1251 = vmatpush1.msra.mxu0 %v721
  %1252 = vmatprep.subr.mxu0 0.0
  %1253 = vmatpush1.msra.mxu0 %v722
  %1254 = vmatprep.subr.mxu0 0.0
  %1255 = vmatpush1.msra.mxu0 %v723
  %1256 = vmatprep.subr.mxu0 0.0
  %1257 = vmatpush1.msra.mxu0 %v724
  %1258 = vmatprep.subr.mxu0 0.0
  %1259 = vmatpush1.msra.mxu0 %v725
  %1260 = vmatprep.subr.mxu0 0.0
  %1261 = vmatpush1.msra.mxu0 %v726
  %1262 = vmatprep.subr.mxu0 0.0
  %1263 = vmatpush1.msra.mxu0 %v727
  %1264 = vmatprep.subr.mxu0 0.0
  %1265 = vmatpush1.msra.mxu0 %v728
  %1266 = vmatprep.subr.mxu0 0.0
  %1267 = vmatpush1.msra.mxu0 %v729
  %1268 = vmatprep.subr.mxu0 0.0
  %1269 = vmatpush1.msra.mxu0 %v730
  %1270 = vmatprep.subr.mxu0 0.0
  %1271 = vmatpush1.msra.mxu0 %v731
  %1272 = vmatprep.subr.mxu0 0.0
  %1273 = vmatpush1.msra.mxu0 %v732
  %1274 = vmatprep.subr.mxu0 0.0
  %1275 = vmatpush1.msra.mxu0 %v733
  %1276 = vmatprep.subr.mxu0 0.0
  %1277 = vmatpush1.msra.mxu0 %v734
  %1278 = vmatprep.subr.mxu0 0.0
  %1279 = vmatpush1.msra.mxu0 %v735
  %1280 = vmatprep.mubr.f32.mxu0 %v641
  %1281 = vmatmul.mubr.f32.gmra.mrb[0].mxu0 %v640
  %v1282 = vpop.f32.mrb[0].mxu0
  %v1283 = vadd.f32 0.0, %v1282
  %v1284 = vpop.f32.mrb[0].mxu0
  %1285 = vdwg.mxu0
  %1286 = vmatprep.subr.mxu0 0.0
  %1287 = vmatpush1.msra.mxu0 %v736
  %1288 = vmatprep.subr.mxu0 0.0
  %1289 = vmatpush1.msra.mxu0 %v737
  %1290 = vmatprep.subr.mxu0 0.0
  %1291 = vmatpush1.msra.mxu0 %v738
  %1292 = vmatprep.subr.mxu0 0.0
  %1293 = vmatpush1.msra.mxu0 %v739
  %1294 = vmatprep.subr.mxu0 0.0
  %1295 = vmatpush1.msra.mxu0 %v740
  %1296 = vmatprep.subr.mxu0 0.0
  %1297 = vmatpush1.msra.mxu0 %v741
  %1298 = vmatprep.subr.mxu0 0.0
  %1299 = vmatpush1.msra.mxu0 %v742
  %1300 = vmatprep.subr.mxu0 0.0
  %1301 = vmatpush1.msra.mxu0 %v743
  %1302 = vmatprep.subr.mxu0 0.0
  %1303 = vmatpush1.msra.mxu0 %v744
  %1304 = vmatprep.subr.mxu0 0.0
  %1305 = vmatpush1.msra.mxu0 %v745
  %1306 = vmatprep.subr.mxu0 0.0
  %1307 = vmatpush1.msra.mxu0 %v746
  %1308 = vmatprep.subr.mxu0 0.0
  %1309 = vmatpush1.msra.mxu0 %v747
  %1310 = vmatprep.subr.mxu0 0.0
  %1311 = vmatpush1.msra.mxu0 %v748
  %1312 = vmatprep.subr.mxu0 0.0
  %1313 = vmatpush1.msra.mxu0 %v749
  %1314 = vmatprep.subr.mxu0 0.0
  %1315 = vmatpush1.msra.mxu0 %v750
  %1316 = vmatprep.subr.mxu0 0.0
  %1317 = vmatpush1.msra.mxu0 %v751
  %1318 = vmatprep.subr.mxu0 0.0
  %1319 = vmatpush1.msra.mxu0 %v752
  %1320 = vmatprep.subr.mxu0 0.0
  %1321 = vmatpush1.msra.mxu0 %v753
  %1322 = vmatprep.subr.mxu0 0.0
  %1323 = vmatpush1.msra.mxu0 %v754
  %1324 = vmatprep.subr.mxu0 0.0
  %1325 = vmatpush1.msra.mxu0 %v755
  %1326 = vmatprep.subr.mxu0 0.0
  %1327 = vmatpush1.msra.mxu0 %v756
  %1328 = vmatprep.subr.mxu0 0.0
  %1329 = vmatpush1.msra.mxu0 %v757
  %1330 = vmatprep.subr.mxu0 0.0
  %1331 = vmatpush1.msra.mxu0 %v758
  %1332 = vmatprep.subr.mxu0 0.0
  %1333 = vmatpush1.msra.mxu0 %v759
  %1334 = vmatprep.subr.mxu0 0.0
  %1335 = vmatpush1.msra.mxu0 %v760
  %1336 = vmatprep.subr.mxu0 0.0
  %1337 = vmatpush1.msra.mxu0 %v761
  %1338 = vmatprep.subr.mxu0 0.0
  %1339 = vmatpush1.msra.mxu0 %v762
  %1340 = vmatprep.subr.mxu0 0.0
  %1341 = vmatpush1.msra.mxu0 %v763
  %1342 = vmatprep.subr.mxu0 0.0
  %1343 = vmatpush1.msra.mxu0 %v764
  %1344 = vmatprep.subr.mxu0 0.0
  %1345 = vmatpush1.msra.mxu0 %v765
  %1346 = vmatprep.subr.mxu0 0.0
  %1347 = vmatpush1.msra.mxu0 %v766
  %1348 = vmatprep.subr.mxu0 0.0
  %1349 = vmatpush1.msra.mxu0 %v767
  %1350 = vmatprep.mubr.f32.mxu0 %v643
  %1351 = vmatmul.mubr.f32.gmra.mrb[0].mxu0 %v642
  %v1352 = vpop.f32.mrb[0].mxu0
  %v1353 = vadd.f32 %v1283, %v1352
  %v1354 = vpop.f32.mrb[0].mxu0
  %1355 = vdwg.mxu0
  %1356 = vmatprep.subr.mxu0 0.0
  %1357 = vmatpush1.msra.mxu0 %v768
  %1358 = vmatprep.subr.mxu0 0.0
  %1359 = vmatpush1.msra.mxu0 %v769
  %1360 = vmatprep.subr.mxu0 0.0
  %1361 = vmatpush1.msra.mxu0 %v770
  %1362 = vmatprep.subr.mxu0 0.0
  %1363 = vmatpush1.msra.mxu0 %v771
  %1364 = vmatprep.subr.mxu0 0.0
  %1365 = vmatpush1.msra.mxu0 %v772
  %1366 = vmatprep.subr.mxu0 0.0
  %1367 = vmatpush1.msra.mxu0 %v773
  %1368 = vmatprep.subr.mxu0 0.0
  %1369 = vmatpush1.msra.mxu0 %v774
  %1370 = vmatprep.subr.mxu0 0.0
  %1371 = vmatpush1.msra.mxu0 %v775
  %1372 = vmatprep.subr.mxu0 0.0
  %1373 = vmatpush1.msra.mxu0 %v776
  %1374 = vmatprep.subr.mxu0 0.0
  %1375 = vmatpush1.msra.mxu0 %v777
  %1376 = vmatprep.subr.mxu0 0.0
  %1377 = vmatpush1.msra.mxu0 %v778
  %1378 = vmatprep.subr.mxu0 0.0
  %1379 = vmatpush1.msra.mxu0 %v779
  %1380 = vmatprep.subr.mxu0 0.0
  %1381 = vmatpush1.msra.mxu0 %v780
  %1382 = vmatprep.subr.mxu0 0.0
  %1383 = vmatpush1.msra.mxu0 %v781
  %1384 = vmatprep.subr.mxu0 0.0
  %1385 = vmatpush1.msra.mxu0 %v782
  %1386 = vmatprep.subr.mxu0 0.0
  %1387 = vmatpush1.msra.mxu0 %v783
  %1388 = vmatprep.subr.mxu0 0.0
  %1389 = vmatpush1.msra.mxu0 %v784
  %1390 = vmatprep.subr.mxu0 0.0
  %1391 = vmatpush1.msra.mxu0 %v785
  %1392 = vmatprep.subr.mxu0 0.0
  %1393 = vmatpush1.msra.mxu0 %v786
  %1394 = vmatprep.subr.mxu0 0.0
  %1395 = vmatpush1.msra.mxu0 %v787
  %1396 = vmatprep.subr.mxu0 0.0
  %1397 = vmatpush1.msra.mxu0 %v788
  %1398 = vmatprep.subr.mxu0 0.0
  %1399 = vmatpush1.msra.mxu0 %v789
  %1400 = vmatprep.subr.mxu0 0.0
  %1401 = vmatpush1.msra.mxu0 %v790
  %1402 = vmatprep.subr.mxu0 0.0
  %1403 = vmatpush1.msra.mxu0 %v791
  %1404 = vmatprep.subr.mxu0 0.0
  %1405 = vmatpush1.msra.mxu0 %v792
  %1406 = vmatprep.subr.mxu0 0.0
  %1407 = vmatpush1.msra.mxu0 %v793
  %1408 = vmatprep.subr.mxu0 0.0
  %1409 = vmatpush1.msra.mxu0 %v794
  %1410 = vmatprep.subr.mxu0 0.0
  %1411 = vmatpush1.msra.mxu0 %v795
  %1412 = vmatprep.subr.mxu0 0.0
  %1413 = vmatpush1.msra.mxu0 %v796
  %1414 = vmatprep.subr.mxu0 0.0
  %1415 = vmatpush1.msra.mxu0 %v797
  %1416 = vmatprep.subr.mxu0 0.0
  %1417 = vmatpush1.msra.mxu0 %v798
  %1418 = vmatprep.subr.mxu0 0.0
  %1419 = vmatpush1.msra.mxu0 %v799
  %1420 = vmatprep.mubr.f32.mxu0 %v645
  %1421 = vmatmul.mubr.f32.gmra.mrb[0].mxu0 %v644
  %v1422 = vpop.f32.mrb[0].mxu0
  %v1423 = vadd.f32 %v1353, %v1422
  %v1424 = vpop.f32.mrb[0].mxu0
  %1425 = vdwg.mxu0
  %1426 = vmatprep.subr.mxu0 0.0
  %1427 = vmatpush1.msra.mxu0 %v800
  %1428 = vmatprep.subr.mxu0 0.0
  %1429 = vmatpush1.msra.mxu0 %v801
  %1430 = vmatprep.subr.mxu0 0.0
  %1431 = vmatpush1.msra.mxu0 %v802
  %1432 = vmatprep.subr.mxu0 0.0
  %1433 = vmatpush1.msra.mxu0 %v803
  %1434 = vmatprep.subr.mxu0 0.0
  %1435 = vmatpush1.msra.mxu0 %v804
  %1436 = vmatprep.subr.mxu0 0.0
  %1437 = vmatpush1.msra.mxu0 %v805
  %1438 = vmatprep.subr.mxu0 0.0
  %1439 = vmatpush1.msra.mxu0 %v806
  %1440 = vmatprep.subr.mxu0 0.0
  %1441 = vmatpush1.msra.mxu0 %v807
  %1442 = vmatprep.subr.mxu0 0.0
  %1443 = vmatpush1.msra.mxu0 %v808
  %1444 = vmatprep.subr.mxu0 0.0
  %1445 = vmatpush1.msra.mxu0 %v809
  %1446 = vmatprep.subr.mxu0 0.0
  %1447 = vmatpush1.msra.mxu0 %v810
  %1448 = vmatprep.subr.mxu0 0.0
  %1449 = vmatpush1.msra.mxu0 %v811
  %1450 = vmatprep.subr.mxu0 0.0
  %1451 = vmatpush1.msra.mxu0 %v812
  %1452 = vmatprep.subr.mxu0 0.0
  %1453 = vmatpush1.msra.mxu0 %v813
  %1454 = vmatprep.subr.mxu0 0.0
  %1455 = vmatpush1.msra.mxu0 %v814
  %1456 = vmatprep.subr.mxu0 0.0
  %1457 = vmatpush1.msra.mxu0 %v815
  %1458 = vmatprep.subr.mxu0 0.0
  %1459 = vmatpush1.msra.mxu0 %v816
  %1460 = vmatprep.subr.mxu0 0.0
  %1461 = vmatpush1.msra.mxu0 %v817
  %1462 = vmatprep.subr.mxu0 0.0
  %1463 = vmatpush1.msra.mxu0 %v818
  %1464 = vmatprep.subr.mxu0 0.0
  %1465 = vmatpush1.msra.mxu0 %v819
  %1466 = vmatprep.subr.mxu0 0.0
  %1467 = vmatpush1.msra.mxu0 %v820
  %1468 = vmatprep.subr.mxu0 0.0
  %1469 = vmatpush1.msra.mxu0 %v821
  %1470 = vmatprep.subr.mxu0 0.0
  %1471 = vmatpush1.msra.mxu0 %v822
  %1472 = vmatprep.subr.mxu0 0.0
  %1473 = vmatpush1.msra.mxu0 %v823
  %1474 = vmatprep.subr.mxu0 0.0
  %1475 = vmatpush1.msra.mxu0 %v824
  %1476 = vmatprep.subr.mxu0 0.0
  %1477 = vmatpush1.msra.mxu0 %v825
  %1478 = vmatprep.subr.mxu0 0.0
  %1479 = vmatpush1.msra.mxu0 %v826
  %1480 = vmatprep.subr.mxu0 0.0
  %1481 = vmatpush1.msra.mxu0 %v827
  %1482 = vmatprep.subr.mxu0 0.0
  %1483 = vmatpush1.msra.mxu0 %v828
  %1484 = vmatprep.subr.mxu0 0.0
  %1485 = vmatpush1.msra.mxu0 %v829
  %1486 = vmatprep.subr.mxu0 0.0
  %1487 = vmatpush1.msra.mxu0 %v830
  %1488 = vmatprep.subr.mxu0 0.0
  %1489 = vmatpush1.msra.mxu0 %v831
  %1490 = vmatprep.mubr.f32.mxu0 %v647
  %1491 = vmatmul.mubr.f32.gmra.mrb[0].mxu0 %v646
  %v1492 = vpop.f32.mrb[0].mxu0
  %v1493 = vadd.f32 %v1423, %v1492
  %v1494 = vpop.f32.mrb[0].mxu0
  %1495 = vdwg.mxu0
  %1496 = vmatprep.subr.mxu0 0.0
  %1497 = vmatpush1.msra.mxu0 %v832
  %1498 = vmatprep.subr.mxu0 0.0
  %1499 = vmatpush1.msra.mxu0 %v833
  %1500 = vmatprep.subr.mxu0 0.0
  %1501 = vmatpush1.msra.mxu0 %v834
  %1502 = vmatprep.subr.mxu0 0.0
  %1503 = vmatpush1.msra.mxu0 %v835
  %1504 = vmatprep.subr.mxu0 0.0
  %1505 = vmatpush1.msra.mxu0 %v836
  %1506 = vmatprep.subr.mxu0 0.0
  %1507 = vmatpush1.msra.mxu0 %v837
  %1508 = vmatprep.subr.mxu0 0.0
  %1509 = vmatpush1.msra.mxu0 %v838
  %1510 = vmatprep.subr.mxu0 0.0
  %1511 = vmatpush1.msra.mxu0 %v839
  %1512 = vmatprep.subr.mxu0 0.0
  %1513 = vmatpush1.msra.mxu0 %v840
  %1514 = vmatprep.subr.mxu0 0.0
  %1515 = vmatpush1.msra.mxu0 %v841
  %1516 = vmatprep.subr.mxu0 0.0
  %1517 = vmatpush1.msra.mxu0 %v842
  %1518 = vmatprep.subr.mxu0 0.0
  %1519 = vmatpush1.msra.mxu0 %v843
  %1520 = vmatprep.subr.mxu0 0.0
  %1521 = vmatpush1.msra.mxu0 %v844
  %1522 = vmatprep.subr.mxu0 0.0
  %1523 = vmatpush1.msra.mxu0 %v845
  %1524 = vmatprep.subr.mxu0 0.0
  %1525 = vmatpush1.msra.mxu0 %v846
  %1526 = vmatprep.subr.mxu0 0.0
  %1527 = vmatpush1.msra.mxu0 %v847
  %1528 = vmatprep.subr.mxu0 0.0
  %1529 = vmatpush1.msra.mxu0 %v848
  %1530 = vmatprep.subr.mxu0 0.0
  %1531 = vmatpush1.msra.mxu0 %v849
  %1532 = vmatprep.subr.mxu0 0.0
  %1533 = vmatpush1.msra.mxu0 %v850
  %1534 = vmatprep.subr.mxu0 0.0
  %1535 = vmatpush1.msra.mxu0 %v851
  %1536 = vmatprep.subr.mxu0 0.0
  %1537 = vmatpush1.msra.mxu0 %v852
  %1538 = vmatprep.subr.mxu0 0.0
  %1539 = vmatpush1.msra.mxu0 %v853
  %1540 = vmatprep.subr.mxu0 0.0
  %1541 = vmatpush1.msra.mxu0 %v854
  %1542 = vmatprep.subr.mxu0 0.0
  %1543 = vmatpush1.msra.mxu0 %v855
  %1544 = vmatprep.subr.mxu0 0.0
  %1545 = vmatpush1.msra.mxu0 %v856
  %1546 = vmatprep.subr.mxu0 0.0
  %1547 = vmatpush1.msra.mxu0 %v857
  %1548 = vmatprep.subr.mxu0 0.0
  %1549 = vmatpush1.msra.mxu0 %v858
  %1550 = vmatprep.subr.mxu0 0.0
  %1551 = vmatpush1.msra.mxu0 %v859
  %1552 = vmatprep.subr.mxu0 0.0
  %1553 = vmatpush1.msra.mxu0 %v860
  %1554 = vmatprep.subr.mxu0 0.0
  %1555 = vmatpush1.msra.mxu0 %v861
  %1556 = vmatprep.subr.mxu0 0.0
  %1557 = vmatpush1.msra.mxu0 %v862
  %1558 = vmatprep.subr.mxu0 0.0
  %1559 = vmatpush1.msra.mxu0 %v863
  %1560 = vmatprep.mubr.f32.mxu0 %v649
  %1561 = vmatmul.mubr.f32.gmra.mrb[0].mxu0 %v648
  %v1562 = vpop.f32.mrb[0].mxu0
  %v1563 = vadd.f32 %v1493, %v1562
  %v1564 = vpop.f32.mrb[0].mxu0
  %1565 = vdwg.mxu0
  %1566 = vmatprep.subr.mxu0 0.0
  %1567 = vmatpush1.msra.mxu0 %v864
  %1568 = vmatprep.subr.mxu0 0.0
  %1569 = vmatpush1.msra.mxu0 %v865
  %1570 = vmatprep.subr.mxu0 0.0
  %1571 = vmatpush1.msra.mxu0 %v866
  %1572 = vmatprep.subr.mxu0 0.0
  %1573 = vmatpush1.msra.mxu0 %v867
  %1574 = vmatprep.subr.mxu0 0.0
  %1575 = vmatpush1.msra.mxu0 %v868
  %1576 = vmatprep.subr.mxu0 0.0
  %1577 = vmatpush1.msra.mxu0 %v869
  %1578 = vmatprep.subr.mxu0 0.0
  %1579 = vmatpush1.msra.mxu0 %v870
  %1580 = vmatprep.subr.mxu0 0.0
  %1581 = vmatpush1.msra.mxu0 %v871
  %1582 = vmatprep.subr.mxu0 0.0
  %1583 = vmatpush1.msra.mxu0 %v872
  %1584 = vmatprep.subr.mxu0 0.0
  %1585 = vmatpush1.msra.mxu0 %v873
  %1586 = vmatprep.subr.mxu0 0.0
  %1587 = vmatpush1.msra.mxu0 %v874
  %1588 = vmatprep.subr.mxu0 0.0
  %1589 = vmatpush1.msra.mxu0 %v875
  %1590 = vmatprep.subr.mxu0 0.0
  %1591 = vmatpush1.msra.mxu0 %v876
  %1592 = vmatprep.subr.mxu0 0.0
  %1593 = vmatpush1.msra.mxu0 %v877
  %1594 = vmatprep.subr.mxu0 0.0
  %1595 = vmatpush1.msra.mxu0 %v878
  %1596 = vmatprep.subr.mxu0 0.0
  %1597 = vmatpush1.msra.mxu0 %v879
  %1598 = vmatprep.subr.mxu0 0.0
  %1599 = vmatpush1.msra.mxu0 %v880
  %1600 = vmatprep.subr.mxu0 0.0
  %1601 = vmatpush1.msra.mxu0 %v881
  %1602 = vmatprep.subr.mxu0 0.0
  %1603 = vmatpush1.msra.mxu0 %v882
  %1604 = vmatprep.subr.mxu0 0.0
  %1605 = vmatpush1.msra.mxu0 %v883
  %1606 = vmatprep.subr.mxu0 0.0
  %1607 = vmatpush1.msra.mxu0 %v884
  %1608 = vmatprep.subr.mxu0 0.0
  %1609 = vmatpush1.msra.mxu0 %v885
  %1610 = vmatprep.subr.mxu0 0.0
  %1611 = vmatpush1.msra.mxu0 %v886
  %1612 = vmatprep.subr.mxu0 0.0
  %1613 = vmatpush1.msra.mxu0 %v887
  %1614 = vmatprep.subr.mxu0 0.0
  %1615 = vmatpush1.msra.mxu0 %v888
  %1616 = vmatprep.subr.mxu0 0.0
  %1617 = vmatpush1.msra.mxu0 %v889
  %1618 = vmatprep.subr.mxu0 0.0
  %1619 = vmatpush1.msra.mxu0 %v890
  %1620 = vmatprep.subr.mxu0 0.0
  %1621 = vmatpush1.msra.mxu0 %v891
  %1622 = vmatprep.subr.mxu0 0.0
  %1623 = vmatpush1.msra.mxu0 %v892
  %1624 = vmatprep.subr.mxu0 0.0
  %1625 = vmatpush1.msra.mxu0 %v893
  %1626 = vmatprep.subr.mxu0 0.0
  %1627 = vmatpush1.msra.mxu0 %v894
  %1628 = vmatprep.subr.mxu0 0.0
  %1629 = vmatpush1.msra.mxu0 %v895
  %1630 = vmatprep.mubr.f32.mxu0 %v651
  %1631 = vmatmul.mubr.f32.gmra.mrb[0].mxu0 %v650
  %v1632 = vpop.f32.mrb[0].mxu0
  %v1633 = vadd.f32 %v1563, %v1632
  %v1634 = vpop.f32.mrb[0].mxu0
  %1635 = vdwg.mxu0
  %1636 = vmatprep.subr.mxu0 0.0
  %1637 = vmatpush1.msra.mxu0 %v896
  %1638 = vmatprep.subr.mxu0 0.0
  %1639 = vmatpush1.msra.mxu0 %v897
  %1640 = vmatprep.subr.mxu0 0.0
  %1641 = vmatpush1.msra.mxu0 %v898
  %1642 = vmatprep.subr.mxu0 0.0
  %1643 = vmatpush1.msra.mxu0 %v899
  %1644 = vmatprep.subr.mxu0 0.0
  %1645 = vmatpush1.msra.mxu0 %v900
  %1646 = vmatprep.subr.mxu0 0.0
  %1647 = vmatpush1.msra.mxu0 %v901
  %1648 = vmatprep.subr.mxu0 0.0
  %1649 = vmatpush1.msra.mxu0 %v902
  %1650 = vmatprep.subr.mxu0 0.0
  %1651 = vmatpush1.msra.mxu0 %v903
  %1652 = vmatprep.subr.mxu0 0.0
  %1653 = vmatpush1.msra.mxu0 %v904
  %1654 = vmatprep.subr.mxu0 0.0
  %1655 = vmatpush1.msra.mxu0 %v905
  %1656 = vmatprep.subr.mxu0 0.0
  %1657 = vmatpush1.msra.mxu0 %v906
  %1658 = vmatprep.subr.mxu0 0.0
  %1659 = vmatpush1.msra.mxu0 %v907
  %1660 = vmatprep.subr.mxu0 0.0
  %1661 = vmatpush1.msra.mxu0 %v908
  %1662 = vmatprep.subr.mxu0 0.0
  %1663 = vmatpush1.msra.mxu0 %v909
  %1664 = vmatprep.subr.mxu0 0.0
  %1665 = vmatpush1.msra.mxu0 %v910
  %1666 = vmatprep.subr.mxu0 0.0
  %1667 = vmatpush1.msra.mxu0 %v911
  %1668 = vmatprep.subr.mxu0 0.0
  %1669 = vmatpush1.msra.mxu0 %v912
  %1670 = vmatprep.subr.mxu0 0.0
  %1671 = vmatpush1.msra.mxu0 %v913
  %1672 = vmatprep.subr.mxu0 0.0
  %1673 = vmatpush1.msra.mxu0 %v914
  %1674 = vmatprep.subr.mxu0 0.0
  %1675 = vmatpush1.msra.mxu0 %v915
  %1676 = vmatprep.subr.mxu0 0.0
  %1677 = vmatpush1.msra.mxu0 %v916
  %1678 = vmatprep.subr.mxu0 0.0
  %1679 = vmatpush1.msra.mxu0 %v917
  %1680 = vmatprep.subr.mxu0 0.0
  %1681 = vmatpush1.msra.mxu0 %v918
  %1682 = vmatprep.subr.mxu0 0.0
  %1683 = vmatpush1.msra.mxu0 %v919
  %1684 = vmatprep.subr.mxu0 0.0
  %1685 = vmatpush1.msra.mxu0 %v920
  %1686 = vmatprep.subr.mxu0 0.0
  %1687 = vmatpush1.msra.mxu0 %v921
  %1688 = vmatprep.subr.mxu0 0.0
  %1689 = vmatpush1.msra.mxu0 %v922
  %1690 = vmatprep.subr.mxu0 0.0
  %1691 = vmatpush1.msra.mxu0 %v923
  %1692 = vmatprep.subr.mxu0 0.0
  %1693 = vmatpush1.msra.mxu0 %v924
  %1694 = vmatprep.subr.mxu0 0.0
  %1695 = vmatpush1.msra.mxu0 %v925
  %1696 = vmatprep.subr.mxu0 0.0
  %1697 = vmatpush1.msra.mxu0 %v926
  %1698 = vmatprep.subr.mxu0 0.0
  %1699 = vmatpush1.msra.mxu0 %v927
  %1700 = vmatprep.mubr.f32.mxu0 %v653
  %1701 = vmatmul.mubr.f32.gmra.mrb[0].mxu0 %v652
  %v1702 = vpop.f32.mrb[0].mxu0
  %v1703 = vadd.f32 %v1633, %v1702
  %v1704 = vpop.f32.mrb[0].mxu0
  %1705 = vdwg.mxu0
  %1706 = vmatprep.subr.mxu0 0.0
  %1707 = vmatpush1.msra.mxu0 %v928
  %1708 = vmatprep.subr.mxu0 0.0
  %1709 = vmatpush1.msra.mxu0 %v929
  %1710 = vmatprep.subr.mxu0 0.0
  %1711 = vmatpush1.msra.mxu0 %v930
  %1712 = vmatprep.subr.mxu0 0.0
  %1713 = vmatpush1.msra.mxu0 %v931
  %1714 = vmatprep.subr.mxu0 0.0
  %1715 = vmatpush1.msra.mxu0 %v932
  %1716 = vmatprep.subr.mxu0 0.0
  %1717 = vmatpush1.msra.mxu0 %v933
  %1718 = vmatprep.subr.mxu0 0.0
  %1719 = vmatpush1.msra.mxu0 %v934
  %1720 = vmatprep.subr.mxu0 0.0
  %1721 = vmatpush1.msra.mxu0 %v935
  %1722 = vmatprep.subr.mxu0 0.0
  %1723 = vmatpush1.msra.mxu0 %v936
  %1724 = vmatprep.subr.mxu0 0.0
  %1725 = vmatpush1.msra.mxu0 %v937
  %1726 = vmatprep.subr.mxu0 0.0
  %1727 = vmatpush1.msra.mxu0 %v938
  %1728 = vmatprep.subr.mxu0 0.0
  %1729 = vmatpush1.msra.mxu0 %v939
  %1730 = vmatprep.subr.mxu0 0.0
  %1731 = vmatpush1.msra.mxu0 %v940
  %1732 = vmatprep.subr.mxu0 0.0
  %1733 = vmatpush1.msra.mxu0 %v941
  %1734 = vmatprep.subr.mxu0 0.0
  %1735 = vmatpush1.msra.mxu0 %v942
  %1736 = vmatprep.subr.mxu0 0.0
  %1737 = vmatpush1.msra.mxu0 %v943
  %1738 = vmatprep.subr.mxu0 0.0
  %1739 = vmatpush1.msra.mxu0 %v944
  %1740 = vmatprep.subr.mxu0 0.0
  %1741 = vmatpush1.msra.mxu0 %v945
  %1742 = vmatprep.subr.mxu0 0.0
  %1743 = vmatpush1.msra.mxu0 %v946
  %1744 = vmatprep.subr.mxu0 0.0
  %1745 = vmatpush1.msra.mxu0 %v947
  %1746 = vmatprep.subr.mxu0 0.0
  %1747 = vmatpush1.msra.mxu0 %v948
  %1748 = vmatprep.subr.mxu0 0.0
  %1749 = vmatpush1.msra.mxu0 %v949
  %1750 = vmatprep.subr.mxu0 0.0
  %1751 = vmatpush1.msra.mxu0 %v950
  %1752 = vmatprep.subr.mxu0 0.0
  %1753 = vmatpush1.msra.mxu0 %v951
  %1754 = vmatprep.subr.mxu0 0.0
  %1755 = vmatpush1.msra.mxu0 %v952
  %1756 = vmatprep.subr.mxu0 0.0
  %1757 = vmatpush1.msra.mxu0 %v953
  %1758 = vmatprep.subr.mxu0 0.0
  %1759 = vmatpush1.msra.mxu0 %v954
  %1760 = vmatprep.subr.mxu0 0.0
  %1761 = vmatpush1.msra.mxu0 %v955
  %1762 = vmatprep.subr.mxu0 0.0
  %1763 = vmatpush1.msra.mxu0 %v956
  %1764 = vmatprep.subr.mxu0 0.0
  %1765 = vmatpush1.msra.mxu0 %v957
  %1766 = vmatprep.subr.mxu0 0.0
  %1767 = vmatpush1.msra.mxu0 %v958
  %1768 = vmatprep.subr.mxu0 0.0
  %1769 = vmatpush1.msra.mxu0 %v959
  %1770 = vmatprep.mubr.f32.mxu0 %v655
  %1771 = vmatmul.mubr.f32.gmra.mrb[0].mxu0 %v654
  %v1772 = vpop.f32.mrb[0].mxu0
  %v1773 = vadd.f32 %v1703, %v1772
  %v1774 = vpop.f32.mrb[0].mxu0
  %1775 = vdwg.mxu0
  %1776 = vmatprep.subr.mxu0 0.0
  %1777 = vmatpush1.msra.mxu0 %v960
  %1778 = vmatprep.subr.mxu0 0.0
  %1779 = vmatpush1.msra.mxu0 %v961
  %1780 = vmatprep.subr.mxu0 0.0
  %1781 = vmatpush1.msra.mxu0 %v962
  %1782 = vmatprep.subr.mxu0 0.0
  %1783 = vmatpush1.msra.mxu0 %v963
  %1784 = vmatprep.subr.mxu0 0.0
  %1785 = vmatpush1.msra.mxu0 %v964
  %1786 = vmatprep.subr.mxu0 0.0
  %1787 = vmatpush1.msra.mxu0 %v965
  %1788 = vmatprep.subr.mxu0 0.0
  %1789 = vmatpush1.msra.mxu0 %v966
  %1790 = vmatprep.subr.mxu0 0.0
  %1791 = vmatpush1.msra.mxu0 %v967
  %1792 = vmatprep.subr.mxu0 0.0
  %1793 = vmatpush1.msra.mxu0 %v968
  %1794 = vmatprep.subr.mxu0 0.0
  %1795 = vmatpush1.msra.mxu0 %v969
  %1796 = vmatprep.subr.mxu0 0.0
  %1797 = vmatpush1.msra.mxu0 %v970
  %1798 = vmatprep.subr.mxu0 0.0
  %1799 = vmatpush1.msra.mxu0 %v971
  %1800 = vmatprep.subr.mxu0 0.0
  %1801 = vmatpush1.msra.mxu0 %v972
  %1802 = vmatprep.subr.mxu0 0.0
  %1803 = vmatpush1.msra.mxu0 %v973
  %1804 = vmatprep.subr.mxu0 0.0
  %1805 = vmatpush1.msra.mxu0 %v974
  %1806 = vmatprep.subr.mxu0 0.0
  %1807 = vmatpush1.msra.mxu0 %v975
  %1808 = vmatprep.subr.mxu0 0.0
  %1809 = vmatpush1.msra.mxu0 %v976
  %1810 = vmatprep.subr.mxu0 0.0
  %1811 = vmatpush1.msra.mxu0 %v977
  %1812 = vmatprep.subr.mxu0 0.0
  %1813 = vmatpush1.msra.mxu0 %v978
  %1814 = vmatprep.subr.mxu0 0.0
  %1815 = vmatpush1.msra.mxu0 %v979
  %1816 = vmatprep.subr.mxu0 0.0
  %1817 = vmatpush1.msra.mxu0 %v980
  %1818 = vmatprep.subr.mxu0 0.0
  %1819 = vmatpush1.msra.mxu0 %v981
  %1820 = vmatprep.subr.mxu0 0.0
  %1821 = vmatpush1.msra.mxu0 %v982
  %1822 = vmatprep.subr.mxu0 0.0
  %1823 = vmatpush1.msra.mxu0 %v983
  %1824 = vmatprep.subr.mxu0 0.0
  %1825 = vmatpush1.msra.mxu0 %v984
  %1826 = vmatprep.subr.mxu0 0.0
  %1827 = vmatpush1.msra.mxu0 %v985
  %1828 = vmatprep.subr.mxu0 0.0
  %1829 = vmatpush1.msra.mxu0 %v986
  %1830 = vmatprep.subr.mxu0 0.0
  %1831 = vmatpush1.msra.mxu0 %v987
  %1832 = vmatprep.subr.mxu0 0.0
  %1833 = vmatpush1.msra.mxu0 %v988
  %1834 = vmatprep.subr.mxu0 0.0
  %1835 = vmatpush1.msra.mxu0 %v989
  %1836 = vmatprep.subr.mxu0 0.0
  %1837 = vmatpush1.msra.mxu0 %v990
  %1838 = vmatprep.subr.mxu0 0.0
  %1839 = vmatpush1.msra.mxu0 %v991
  %1840 = vmatprep.mubr.f32.mxu0 %v657
  %1841 = vmatmul.mubr.f32.gmra.mrb[0].mxu0 %v656
  %v1842 = vpop.f32.mrb[0].mxu0
  %v1843 = vadd.f32 %v1773, %v1842
  %v1844 = vpop.f32.mrb[0].mxu0
  %1845 = vdwg.mxu0
  %1846 = vmatprep.subr.mxu0 0.0
  %1847 = vmatpush1.msra.mxu0 %v992
  %1848 = vmatprep.subr.mxu0 0.0
  %1849 = vmatpush1.msra.mxu0 %v993
  %1850 = vmatprep.subr.mxu0 0.0
  %1851 = vmatpush1.msra.mxu0 %v994
  %1852 = vmatprep.subr.mxu0 0.0
  %1853 = vmatpush1.msra.mxu0 %v995
  %1854 = vmatprep.subr.mxu0 0.0
  %1855 = vmatpush1.msra.mxu0 %v996
  %1856 = vmatprep.subr.mxu0 0.0
  %1857 = vmatpush1.msra.mxu0 %v997
  %1858 = vmatprep.subr.mxu0 0.0
  %1859 = vmatpush1.msra.mxu0 %v998
  %1860 = vmatprep.subr.mxu0 0.0
  %1861 = vmatpush1.msra.mxu0 %v999
  %1862 = vmatprep.subr.mxu0 0.0
  %1863 = vmatpush1.msra.mxu0 %v1000
  %1864 = vmatprep.subr.mxu0 0.0
  %1865 = vmatpush1.msra.mxu0 %v1001
  %1866 = vmatprep.subr.mxu0 0.0
  %1867 = vmatpush1.msra.mxu0 %v1002
  %1868 = vmatprep.subr.mxu0 0.0
  %1869 = vmatpush1.msra.mxu0 %v1003
  %1870 = vmatprep.subr.mxu0 0.0
  %1871 = vmatpush1.msra.mxu0 %v1004
  %1872 = vmatprep.subr.mxu0 0.0
  %1873 = vmatpush1.msra.mxu0 %v1005
  %1874 = vmatprep.subr.mxu0 0.0
  %1875 = vmatpush1.msra.mxu0 %v1006
  %1876 = vmatprep.subr.mxu0 0.0
  %1877 = vmatpush1.msra.mxu0 %v1007
  %1878 = vmatprep.subr.mxu0 0.0
  %1879 = vmatpush1.msra.mxu0 %v1008
  %1880 = vmatprep.subr.mxu0 0.0
  %1881 = vmatpush1.msra.mxu0 %v1009
  %1882 = vmatprep.subr.mxu0 0.0
  %1883 = vmatpush1.msra.mxu0 %v1010
  %1884 = vmatprep.subr.mxu0 0.0
  %1885 = vmatpush1.msra.mxu0 %v1011
  %1886 = vmatprep.subr.mxu0 0.0
  %1887 = vmatpush1.msra.mxu0 %v1012
  %1888 = vmatprep.subr.mxu0 0.0
  %1889 = vmatpush1.msra.mxu0 %v1013
  %1890 = vmatprep.subr.mxu0 0.0
  %1891 = vmatpush1.msra.mxu0 %v1014
  %1892 = vmatprep.subr.mxu0 0.0
  %1893 = vmatpush1.msra.mxu0 %v1015
  %1894 = vmatprep.subr.mxu0 0.0
  %1895 = vmatpush1.msra.mxu0 %v1016
  %1896 = vmatprep.subr.mxu0 0.0
  %1897 = vmatpush1.msra.mxu0 %v1017
  %1898 = vmatprep.subr.mxu0 0.0
  %1899 = vmatpush1.msra.mxu0 %v1018
  %1900 = vmatprep.subr.mxu0 0.0
  %1901 = vmatpush1.msra.mxu0 %v1019
  %1902 = vmatprep.subr.mxu0 0.0
  %1903 = vmatpush1.msra.mxu0 %v1020
  %1904 = vmatprep.subr.mxu0 0.0
  %1905 = vmatpush1.msra.mxu0 %v1021
  %1906 = vmatprep.subr.mxu0 0.0
  %1907 = vmatpush1.msra.mxu0 %v1022
  %1908 = vmatprep.subr.mxu0 0.0
  %1909 = vmatpush1.msra.mxu0 %v1023
  %1910 = vmatprep.mubr.f32.mxu0 %v659
  %1911 = vmatmul.mubr.f32.gmra.mrb[0].mxu0 %v658
  %v1912 = vpop.f32.mrb[0].mxu0
  %v1913 = vadd.f32 %v1843, %v1912
  %v1914 = vpop.f32.mrb[0].mxu0
  %1915 = vdwg.mxu0
  %1916 = vmatprep.subr.mxu0 0.0
  %1917 = vmatpush1.msra.mxu0 %v1024
  %1918 = vmatprep.subr.mxu0 0.0
  %1919 = vmatpush1.msra.mxu0 %v1025
  %1920 = vmatprep.subr.mxu0 0.0
  %1921 = vmatpush1.msra.mxu0 %v1026
  %1922 = vmatprep.subr.mxu0 0.0
  %1923 = vmatpush1.msra.mxu0 %v1027
  %1924 = vmatprep.subr.mxu0 0.0
  %1925 = vmatpush1.msra.mxu0 %v1028
  %1926 = vmatprep.subr.mxu0 0.0
  %1927 = vmatpush1.msra.mxu0 %v1029
  %1928 = vmatprep.subr.mxu0 0.0
  %1929 = vmatpush1.msra.mxu0 %v1030
  %1930 = vmatprep.subr.mxu0 0.0
  %1931 = vmatpush1.msra.mxu0 %v1031
  %1932 = vmatprep.subr.mxu0 0.0
  %1933 = vmatpush1.msra.mxu0 %v1032
  %1934 = vmatprep.subr.mxu0 0.0
  %1935 = vmatpush1.msra.mxu0 %v1033
  %1936 = vmatprep.subr.mxu0 0.0
  %1937 = vmatpush1.msra.mxu0 %v1034
  %1938 = vmatprep.subr.mxu0 0.0
  %1939 = vmatpush1.msra.mxu0 %v1035
  %1940 = vmatprep.subr.mxu0 0.0
  %1941 = vmatpush1.msra.mxu0 %v1036
  %1942 = vmatprep.subr.mxu0 0.0
  %1943 = vmatpush1.msra.mxu0 %v1037
  %1944 = vmatprep.subr.mxu0 0.0
  %1945 = vmatpush1.msra.mxu0 %v1038
  %1946 = vmatprep.subr.mxu0 0.0
  %1947 = vmatpush1.msra.mxu0 %v1039
  %1948 = vmatprep.subr.mxu0 0.0
  %1949 = vmatpush1.msra.mxu0 %v1040
  %1950 = vmatprep.subr.mxu0 0.0
  %1951 = vmatpush1.msra.mxu0 %v1041
  %1952 = vmatprep.subr.mxu0 0.0
  %1953 = vmatpush1.msra.mxu0 %v1042
  %1954 = vmatprep.subr.mxu0 0.0
  %1955 = vmatpush1.msra.mxu0 %v1043
  %1956 = vmatprep.subr.mxu0 0.0
  %1957 = vmatpush1.msra.mxu0 %v1044
  %1958 = vmatprep.subr.mxu0 0.0
  %1959 = vmatpush1.msra.mxu0 %v1045
  %1960 = vmatprep.subr.mxu0 0.0
  %1961 = vmatpush1.msra.mxu0 %v1046
  %1962 = vmatprep.subr.mxu0 0.0
  %1963 = vmatpush1.msra.mxu0 %v1047
  %1964 = vmatprep.subr.mxu0 0.0
  %1965 = vmatpush1.msra.mxu0 %v1048
  %1966 = vmatprep.subr.mxu0 0.0
  %1967 = vmatpush1.msra.mxu0 %v1049
  %1968 = vmatprep.subr.mxu0 0.0
  %1969 = vmatpush1.msra.mxu0 %v1050
  %1970 = vmatprep.subr.mxu0 0.0
  %1971 = vmatpush1.msra.mxu0 %v1051
  %1972 = vmatprep.subr.mxu0 0.0
  %1973 = vmatpush1.msra.mxu0 %v1052
  %1974 = vmatprep.subr.mxu0 0.0
  %1975 = vmatpush1.msra.mxu0 %v1053
  %1976 = vmatprep.subr.mxu0 0.0
  %1977 = vmatpush1.msra.mxu0 %v1054
  %1978 = vmatprep.subr.mxu0 0.0
  %1979 = vmatpush1.msra.mxu0 %v1055
  %1980 = vmatprep.mubr.f32.mxu0 %v661
  %1981 = vmatmul.mubr.f32.gmra.mrb[0].mxu0 %v660
  %v1982 = vpop.f32.mrb[0].mxu0
  %v1983 = vadd.f32 %v1913, %v1982
  %v1984 = vpop.f32.mrb[0].mxu0
  %1985 = vdwg.mxu0
  %1986 = vmatprep.subr.mxu0 0.0
  %1987 = vmatpush1.msra.mxu0 %v1056
  %1988 = vmatprep.subr.mxu0 0.0
  %1989 = vmatpush1.msra.mxu0 %v1057
  %1990 = vmatprep.subr.mxu0 0.0
  %1991 = vmatpush1.msra.mxu0 %v1058
  %1992 = vmatprep.subr.mxu0 0.0
  %1993 = vmatpush1.msra.mxu0 %v1059
  %1994 = vmatprep.subr.mxu0 0.0
  %1995 = vmatpush1.msra.mxu0 %v1060
  %1996 = vmatprep.subr.mxu0 0.0
  %1997 = vmatpush1.msra.mxu0 %v1061
  %1998 = vmatprep.subr.mxu0 0.0
  %1999 = vmatpush1.msra.mxu0 %v1062
  %2000 = vmatprep.subr.mxu0 0.0
  %2001 = vmatpush1.msra.mxu0 %v1063
  %2002 = vmatprep.subr.mxu0 0.0
  %2003 = vmatpush1.msra.mxu0 %v1064
  %2004 = vmatprep.subr.mxu0 0.0
  %2005 = vmatpush1.msra.mxu0 %v1065
  %2006 = vmatprep.subr.mxu0 0.0
  %2007 = vmatpush1.msra.mxu0 %v1066
  %2008 = vmatprep.subr.mxu0 0.0
  %2009 = vmatpush1.msra.mxu0 %v1067
  %2010 = vmatprep.subr.mxu0 0.0
  %2011 = vmatpush1.msra.mxu0 %v1068
  %2012 = vmatprep.subr.mxu0 0.0
  %2013 = vmatpush1.msra.mxu0 %v1069
  %2014 = vmatprep.subr.mxu0 0.0
  %2015 = vmatpush1.msra.mxu0 %v1070
  %2016 = vmatprep.subr.mxu0 0.0
  %2017 = vmatpush1.msra.mxu0 %v1071
  %2018 = vmatprep.subr.mxu0 0.0
  %2019 = vmatpush1.msra.mxu0 %v1072
  %2020 = vmatprep.subr.mxu0 0.0
  %2021 = vmatpush1.msra.mxu0 %v1073
  %2022 = vmatprep.subr.mxu0 0.0
  %2023 = vmatpush1.msra.mxu0 %v1074
  %2024 = vmatprep.subr.mxu0 0.0
  %2025 = vmatpush1.msra.mxu0 %v1075
  %2026 = vmatprep.subr.mxu0 0.0
  %2027 = vmatpush1.msra.mxu0 %v1076
  %2028 = vmatprep.subr.mxu0 0.0
  %2029 = vmatpush1.msra.mxu0 %v1077
  %2030 = vmatprep.subr.mxu0 0.0
  %2031 = vmatpush1.msra.mxu0 %v1078
  %2032 = vmatprep.subr.mxu0 0.0
  %2033 = vmatpush1.msra.mxu0 %v1079
  %2034 = vmatprep.subr.mxu0 0.0
  %2035 = vmatpush1.msra.mxu0 %v1080
  %2036 = vmatprep.subr.mxu0 0.0
  %2037 = vmatpush1.msra.mxu0 %v1081
  %2038 = vmatprep.subr.mxu0 0.0
  %2039 = vmatpush1.msra.mxu0 %v1082
  %2040 = vmatprep.subr.mxu0 0.0
  %2041 = vmatpush1.msra.mxu0 %v1083
  %2042 = vmatprep.subr.mxu0 0.0
  %2043 = vmatpush1.msra.mxu0 %v1084
  %2044 = vmatprep.subr.mxu0 0.0
  %2045 = vmatpush1.msra.mxu0 %v1085
  %2046 = vmatprep.subr.mxu0 0.0
  %2047 = vmatpush1.msra.mxu0 %v1086
  %2048 = vmatprep.subr.mxu0 0.0
  %2049 = vmatpush1.msra.mxu0 %v1087
  %2050 = vmatprep.mubr.f32.mxu0 %v663
  %2051 = vmatmul.mubr.f32.gmra.mrb[0].mxu0 %v662
  %v2052 = vpop.f32.mrb[0].mxu0
  %v2053 = vadd.f32 %v1983, %v2052
  %v2054 = vpop.f32.mrb[0].mxu0
  %2055 = vdwg.mxu0
  %2056 = vmatprep.subr.mxu0 0.0
  %2057 = vmatpush1.msra.mxu0 %v1088
  %2058 = vmatprep.subr.mxu0 0.0
  %2059 = vmatpush1.msra.mxu0 %v1089
  %2060 = vmatprep.subr.mxu0 0.0
  %2061 = vmatpush1.msra.mxu0 %v1090
  %2062 = vmatprep.subr.mxu0 0.0
  %2063 = vmatpush1.msra.mxu0 %v1091
  %2064 = vmatprep.subr.mxu0 0.0
  %2065 = vmatpush1.msra.mxu0 %v1092
  %2066 = vmatprep.subr.mxu0 0.0
  %2067 = vmatpush1.msra.mxu0 %v1093
  %2068 = vmatprep.subr.mxu0 0.0
  %2069 = vmatpush1.msra.mxu0 %v1094
  %2070 = vmatprep.subr.mxu0 0.0
  %2071 = vmatpush1.msra.mxu0 %v1095
  %2072 = vmatprep.subr.mxu0 0.0
  %2073 = vmatpush1.msra.mxu0 %v1096
  %2074 = vmatprep.subr.mxu0 0.0
  %2075 = vmatpush1.msra.mxu0 %v1097
  %2076 = vmatprep.subr.mxu0 0.0
  %2077 = vmatpush1.msra.mxu0 %v1098
  %2078 = vmatprep.subr.mxu0 0.0
  %2079 = vmatpush1.msra.mxu0 %v1099
  %2080 = vmatprep.subr.mxu0 0.0
  %2081 = vmatpush1.msra.mxu0 %v1100
  %2082 = vmatprep.subr.mxu0 0.0
  %2083 = vmatpush1.msra.mxu0 %v1101
  %2084 = vmatprep.subr.mxu0 0.0
  %2085 = vmatpush1.msra.mxu0 %v1102
  %2086 = vmatprep.subr.mxu0 0.0
  %2087 = vmatpush1.msra.mxu0 %v1103
  %2088 = vmatprep.subr.mxu0 0.0
  %2089 = vmatpush1.msra.mxu0 %v1104
  %2090 = vmatprep.subr.mxu0 0.0
  %2091 = vmatpush1.msra.mxu0 %v1105
  %2092 = vmatprep.subr.mxu0 0.0
  %2093 = vmatpush1.msra.mxu0 %v1106
  %2094 = vmatprep.subr.mxu0 0.0
  %2095 = vmatpush1.msra.mxu0 %v1107
  %2096 = vmatprep.subr.mxu0 0.0
  %2097 = vmatpush1.msra.mxu0 %v1108
  %2098 = vmatprep.subr.mxu0 0.0
  %2099 = vmatpush1.msra.mxu0 %v1109
  %2100 = vmatprep.subr.mxu0 0.0
  %2101 = vmatpush1.msra.mxu0 %v1110
  %2102 = vmatprep.subr.mxu0 0.0
  %2103 = vmatpush1.msra.mxu0 %v1111
  %2104 = vmatprep.subr.mxu0 0.0
  %2105 = vmatpush1.msra.mxu0 %v1112
  %2106 = vmatprep.subr.mxu0 0.0
  %2107 = vmatpush1.msra.mxu0 %v1113
  %2108 = vmatprep.subr.mxu0 0.0
  %2109 = vmatpush1.msra.mxu0 %v1114
  %2110 = vmatprep.subr.mxu0 0.0
  %2111 = vmatpush1.msra.mxu0 %v1115
  %2112 = vmatprep.subr.mxu0 0.0
  %2113 = vmatpush1.msra.mxu0 %v1116
  %2114 = vmatprep.subr.mxu0 0.0
  %2115 = vmatpush1.msra.mxu0 %v1117
  %2116 = vmatprep.subr.mxu0 0.0
  %2117 = vmatpush1.msra.mxu0 %v1118
  %2118 = vmatprep.subr.mxu0 0.0
  %2119 = vmatpush1.msra.mxu0 %v1119
  %2120 = vmatprep.mubr.f32.mxu0 %v665
  %2121 = vmatmul.mubr.f32.gmra.mrb[0].mxu0 %v664
  %v2122 = vpop.f32.mrb[0].mxu0
  %v2123 = vadd.f32 %v2053, %v2122
  %v2124 = vpop.f32.mrb[0].mxu0
  %2125 = vdwg.mxu0
  %2126 = vmatprep.subr.mxu0 0.0
  %2127 = vmatpush1.msra.mxu0 %v1120
  %2128 = vmatprep.subr.mxu0 0.0
  %2129 = vmatpush1.msra.mxu0 %v1121
  %2130 = vmatprep.subr.mxu0 0.0
  %2131 = vmatpush1.msra.mxu0 %v1122
  %2132 = vmatprep.subr.mxu0 0.0
  %2133 = vmatpush1.msra.mxu0 %v1123
  %2134 = vmatprep.subr.mxu0 0.0
  %2135 = vmatpush1.msra.mxu0 %v1124
  %2136 = vmatprep.subr.mxu0 0.0
  %2137 = vmatpush1.msra.mxu0 %v1125
  %2138 = vmatprep.subr.mxu0 0.0
  %2139 = vmatpush1.msra.mxu0 %v1126
  %2140 = vmatprep.subr.mxu0 0.0
  %2141 = vmatpush1.msra.mxu0 %v1127
  %2142 = vmatprep.subr.mxu0 0.0
  %2143 = vmatpush1.msra.mxu0 %v1128
  %2144 = vmatprep.subr.mxu0 0.0
  %2145 = vmatpush1.msra.mxu0 %v1129
  %2146 = vmatprep.subr.mxu0 0.0
  %2147 = vmatpush1.msra.mxu0 %v1130
  %2148 = vmatprep.subr.mxu0 0.0
  %2149 = vmatpush1.msra.mxu0 %v1131
  %2150 = vmatprep.subr.mxu0 0.0
  %2151 = vmatpush1.msra.mxu0 %v1132
  %2152 = vmatprep.subr.mxu0 0.0
  %2153 = vmatpush1.msra.mxu0 %v1133
  %2154 = vmatprep.subr.mxu0 0.0
  %2155 = vmatpush1.msra.mxu0 %v1134
  %2156 = vmatprep.subr.mxu0 0.0
  %2157 = vmatpush1.msra.mxu0 %v1135
  %2158 = vmatprep.subr.mxu0 0.0
  %2159 = vmatpush1.msra.mxu0 %v1136
  %2160 = vmatprep.subr.mxu0 0.0
  %2161 = vmatpush1.msra.mxu0 %v1137
  %2162 = vmatprep.subr.mxu0 0.0
  %2163 = vmatpush1.msra.mxu0 %v1138
  %2164 = vmatprep.subr.mxu0 0.0
  %2165 = vmatpush1.msra.mxu0 %v1139
  %2166 = vmatprep.subr.mxu0 0.0
  %2167 = vmatpush1.msra.mxu0 %v1140
  %2168 = vmatprep.subr.mxu0 0.0
  %2169 = vmatpush1.msra.mxu0 %v1141
  %2170 = vmatprep.subr.mxu0 0.0
  %2171 = vmatpush1.msra.mxu0 %v1142
  %2172 = vmatprep.subr.mxu0 0.0
  %2173 = vmatpush1.msra.mxu0 %v1143
  %2174 = vmatprep.subr.mxu0 0.0
  %2175 = vmatpush1.msra.mxu0 %v1144
  %2176 = vmatprep.subr.mxu0 0.0
  %2177 = vmatpush1.msra.mxu0 %v1145
  %2178 = vmatprep.subr.mxu0 0.0
  %2179 = vmatpush1.msra.mxu0 %v1146
  %2180 = vmatprep.subr.mxu0 0.0
  %2181 = vmatpush1.msra.mxu0 %v1147
  %2182 = vmatprep.subr.mxu0 0.0
  %2183 = vmatpush1.msra.mxu0 %v1148
  %2184 = vmatprep.subr.mxu0 0.0
  %2185 = vmatpush1.msra.mxu0 %v1149
  %2186 = vmatprep.subr.mxu0 0.0
  %2187 = vmatpush1.msra.mxu0 %v1150
  %2188 = vmatprep.subr.mxu0 0.0
  %2189 = vmatpush1.msra.mxu0 %v1151
  %2190 = vmatprep.mubr.f32.mxu0 %v667
  %2191 = vmatmul.mubr.f32.gmra.mrb[0].mxu0 %v666
  %v2192 = vpop.f32.mrb[0].mxu0
  %v2193 = vadd.f32 %v2123, %v2192
  %v2194 = vpop.f32.mrb[0].mxu0
  %2195 = vdwg.mxu0
  %2196 = vmatprep.subr.mxu0 0.0
  %2197 = vmatpush1.msra.mxu0 %v1152
  %2198 = vmatprep.subr.mxu0 0.0
  %2199 = vmatpush1.msra.mxu0 %v1153
  %2200 = vmatprep.subr.mxu0 0.0
  %2201 = vmatpush1.msra.mxu0 %v1154
  %2202 = vmatprep.subr.mxu0 0.0
  %2203 = vmatpush1.msra.mxu0 %v1155
  %2204 = vmatprep.subr.mxu0 0.0
  %2205 = vmatpush1.msra.mxu0 %v1156
  %2206 = vmatprep.subr.mxu0 0.0
  %2207 = vmatpush1.msra.mxu0 %v1157
  %2208 = vmatprep.subr.mxu0 0.0
  %2209 = vmatpush1.msra.mxu0 %v1158
  %2210 = vmatprep.subr.mxu0 0.0
  %2211 = vmatpush1.msra.mxu0 %v1159
  %2212 = vmatprep.subr.mxu0 0.0
  %2213 = vmatpush1.msra.mxu0 %v1160
  %2214 = vmatprep.subr.mxu0 0.0
  %2215 = vmatpush1.msra.mxu0 %v1161
  %2216 = vmatprep.subr.mxu0 0.0
  %2217 = vmatpush1.msra.mxu0 %v1162
  %2218 = vmatprep.subr.mxu0 0.0
  %2219 = vmatpush1.msra.mxu0 %v1163
  %2220 = vmatprep.subr.mxu0 0.0
  %2221 = vmatpush1.msra.mxu0 %v1164
  %2222 = vmatprep.subr.mxu0 0.0
  %2223 = vmatpush1.msra.mxu0 %v1165
  %2224 = vmatprep.subr.mxu0 0.0
  %2225 = vmatpush1.msra.mxu0 %v1166
  %2226 = vmatprep.subr.mxu0 0.0
  %2227 = vmatpush1.msra.mxu0 %v1167
  %2228 = vmatprep.subr.mxu0 0.0
  %2229 = vmatpush1.msra.mxu0 %v1168
  %2230 = vmatprep.subr.mxu0 0.0
  %2231 = vmatpush1.msra.mxu0 %v1169
  %2232 = vmatprep.subr.mxu0 0.0
  %2233 = vmatpush1.msra.mxu0 %v1170
  %2234 = vmatprep.subr.mxu0 0.0
  %2235 = vmatpush1.msra.mxu0 %v1171
  %2236 = vmatprep.subr.mxu0 0.0
  %2237 = vmatpush1.msra.mxu0 %v1172
  %2238 = vmatprep.subr.mxu0 0.0
  %2239 = vmatpush1.msra.mxu0 %v1173
  %2240 = vmatprep.subr.mxu0 0.0
  %2241 = vmatpush1.msra.mxu0 %v1174
  %2242 = vmatprep.subr.mxu0 0.0
  %2243 = vmatpush1.msra.mxu0 %v1175
  %2244 = vmatprep.subr.mxu0 0.0
  %2245 = vmatpush1.msra.mxu0 %v1176
  %2246 = vmatprep.subr.mxu0 0.0
  %2247 = vmatpush1.msra.mxu0 %v1177
  %2248 = vmatprep.subr.mxu0 0.0
  %2249 = vmatpush1.msra.mxu0 %v1178
  %2250 = vmatprep.subr.mxu0 0.0
  %2251 = vmatpush1.msra.mxu0 %v1179
  %2252 = vmatprep.subr.mxu0 0.0
  %2253 = vmatpush1.msra.mxu0 %v1180
  %2254 = vmatprep.subr.mxu0 0.0
  %2255 = vmatpush1.msra.mxu0 %v1181
  %2256 = vmatprep.subr.mxu0 0.0
  %2257 = vmatpush1.msra.mxu0 %v1182
  %2258 = vmatprep.subr.mxu0 0.0
  %2259 = vmatpush1.msra.mxu0 %v1183
  %2260 = vmatprep.mubr.f32.mxu0 %v669
  %2261 = vmatmul.mubr.f32.gmra.mrb[0].mxu0 %v668
  %v2262 = vpop.f32.mrb[0].mxu0
  %v2263 = vadd.f32 %v2193, %v2262
  %v2264 = vpop.f32.mrb[0].mxu0
  %2265 = vdwg.mxu0
  %2266 = vmatprep.subr.mxu0 0.0
  %2267 = vmatpush1.msra.mxu0 %v1184
  %2268 = vmatprep.subr.mxu0 0.0
  %2269 = vmatpush1.msra.mxu0 %v1185
  %2270 = vmatprep.subr.mxu0 0.0
  %2271 = vmatpush1.msra.mxu0 %v1186
  %2272 = vmatprep.subr.mxu0 0.0
  %2273 = vmatpush1.msra.mxu0 %v1187
  %2274 = vmatprep.subr.mxu0 0.0
  %2275 = vmatpush1.msra.mxu0 %v1188
  %2276 = vmatprep.subr.mxu0 0.0
  %2277 = vmatpush1.msra.mxu0 %v1189
  %2278 = vmatprep.subr.mxu0 0.0
  %2279 = vmatpush1.msra.mxu0 %v1190
  %2280 = vmatprep.subr.mxu0 0.0
  %2281 = vmatpush1.msra.mxu0 %v1191
  %2282 = vmatprep.subr.mxu0 0.0
  %2283 = vmatpush1.msra.mxu0 %v1192
  %2284 = vmatprep.subr.mxu0 0.0
  %2285 = vmatpush1.msra.mxu0 %v1193
  %2286 = vmatprep.subr.mxu0 0.0
  %2287 = vmatpush1.msra.mxu0 %v1194
  %2288 = vmatprep.subr.mxu0 0.0
  %2289 = vmatpush1.msra.mxu0 %v1195
  %2290 = vmatprep.subr.mxu0 0.0
  %2291 = vmatpush1.msra.mxu0 %v1196
  %2292 = vmatprep.subr.mxu0 0.0
  %2293 = vmatpush1.msra.mxu0 %v1197
  %2294 = vmatprep.subr.mxu0 0.0
  %2295 = vmatpush1.msra.mxu0 %v1198
  %2296 = vmatprep.subr.mxu0 0.0
  %2297 = vmatpush1.msra.mxu0 %v1199
  %2298 = vmatprep.subr.mxu0 0.0
  %2299 = vmatpush1.msra.mxu0 %v1200
  %2300 = vmatprep.subr.mxu0 0.0
  %2301 = vmatpush1.msra.mxu0 %v1201
  %2302 = vmatprep.subr.mxu0 0.0
  %2303 = vmatpush1.msra.mxu0 %v1202
  %2304 = vmatprep.subr.mxu0 0.0
  %2305 = vmatpush1.msra.mxu0 %v1203
  %2306 = vmatprep.subr.mxu0 0.0
  %2307 = vmatpush1.msra.mxu0 %v1204
  %2308 = vmatprep.subr.mxu0 0.0
  %2309 = vmatpush1.msra.mxu0 %v1205
  %2310 = vmatprep.subr.mxu0 0.0
  %2311 = vmatpush1.msra.mxu0 %v1206
  %2312 = vmatprep.subr.mxu0 0.0
  %2313 = vmatpush1.msra.mxu0 %v1207
  %2314 = vmatprep.subr.mxu0 0.0
  %2315 = vmatpush1.msra.mxu0 %v1208
  %2316 = vmatprep.subr.mxu0 0.0
  %2317 = vmatpush1.msra.mxu0 %v1209
  %2318 = vmatprep.subr.mxu0 0.0
  %2319 = vmatpush1.msra.mxu0 %v1210
  %2320 = vmatprep.subr.mxu0 0.0
  %2321 = vmatpush1.msra.mxu0 %v1211
  %2322 = vmatprep.subr.mxu0 0.0
  %2323 = vmatpush1.msra.mxu0 %v1212
  %2324 = vmatprep.subr.mxu0 0.0
  %2325 = vmatpush1.msra.mxu0 %v1213
  %2326 = vmatprep.subr.mxu0 0.0
  %2327 = vmatpush1.msra.mxu0 %v1214
  %2328 = vmatprep.subr.mxu0 0.0
  %2329 = vmatpush1.msra.mxu0 %v1215
  %2330 = vmatprep.mubr.f32.mxu0 %v671
  %2331 = vmatmul.mubr.f32.gmra.mrb[0].mxu0 %v670
  %v2332 = vpop.f32.mrb[0].mxu0
  %v2333 = vadd.f32 %v2263, %v2332
  %v2334 = vpop.f32.mrb[0].mxu0
  %2335 = vdwg.mxu0
  %vm2336 = vcmask 523264
  %2337 = vst.msk [vmem:[%s4] sm:$0xff] %vm2336, %v2333
  // Predicated region
  $region14: #{decoder_a_forward.17} parent=0 // pred_check
    _
  $region15: #{decoder_a_forward.17} parent=0 // pred_check_branch
    %2339 = sbr.rel (0) target = $region17
  $region16: #{decoder_a_forward.17} parent=0 // pred_region
    _
  $region17: #{decoder_a_forward.17} parent=0 // pred_fallthru
    _
  // Predicated region
  $region18: #{decoder_a_forward.17} parent=0 // pred_check
    _
  $region19: #{decoder_a_forward.17} parent=0 // pred_check_branch
    %2341 = sbr.rel (0) target = $region21
  $region20: #{decoder_a_forward.17} parent=0 // pred_region
    _
  $region21: #{decoder_a_forward.17} parent=0 // pred_fallthru
    _
  // Predicated region
  $region22: #{decoder_a_forward.17} parent=0 // pred_check
    _
  $region23: #{decoder_a_forward.17} parent=0 // pred_check_branch
    %2343 = sbr.rel (0) target = $region25
  $region24: #{decoder_a_forward.17} parent=0 // pred_region
    _
  $region25: #{decoder_a_forward.17} parent=0 // pred_fallthru
    _
  // Predicated region
  $region26: #{decoder_a_forward.17} parent=0 // pred_check
    _
  $region27: #{decoder_a_forward.17} parent=0 // pred_check_branch
    %2345 = sbr.rel (0) target = $region29
  $region28: #{decoder_a_forward.17} parent=0 // pred_region
    _
  $region29: #{decoder_a_forward.17} parent=0 // pred_fallthru
    _

</llo_original>
